<compile_context>
chip_gen: v7x
topology: tpu7x:2x2x1
jax: 0.10.0
libtpu: 0.0.40
codegen_flags: <defaults>
</compile_context>

<pallas_src>
import math
import numpy as np
import jax
import jax.numpy as jnp
from jax.experimental import pallas as pl
from jax.experimental.pallas import tpu as pltpu

# ---------------- model hyper-parameters (small but structure-preserving) ----------
INPUT_SIZE  = 32          # input_size
CHUNK       = 32          # chunk_size (T)
NUM_CLASSES = 3
DIM_CAP     = 16          # dim_capsule
RECEPTIVE   = 8           # receptive_field
NUM_DET     = 5           # num_detections
EPS         = 1e-3        # BatchNorm2d eps

P1 = int(math.ceil(RECEPTIVE / 7))   # 2
P2 = int(math.ceil(RECEPTIVE / 3))   # 3
P3 = int(math.ceil(RECEPTIVE / 2))   # 4
P4 = int(math.ceil(RECEPTIVE))       # 8
PYR_CH = (8, 16, 32, 64)
NPYR   = sum(PYR_CH)                 # 120
TOPF   = (P4 - 1) // 2               # top pad of the widest (fused) pyramid conv

T1 = (CHUNK - 3) // 2 + 1            # 15  after max_pool_spot
T2 = (T1 - 3) // 2 + 1               # 7   after max_pool_spot_1
T3 = (T2 - 3) // 2 + 1               # 3   after max_pool_spot_2
assert T3 == CHUNK // 8 - 1

SEG_C = DIM_CAP * NUM_CLASSES                     # 48
NOUT  = NUM_DET * 2 + NUM_DET * NUM_CLASSES       # 25
LANE  = 128

# ---------------- batched strided row layout ---------------------------------------
BT       = 4                          # batch elements per grid step (BT*CHUNK = 128 rows)
GAP      = 8                          # zero rows between batches (>= conv halos)
STRIDE   = CHUNK + GAP                # 40 rows / batch at full time resolution
S1       = STRIDE // 2                # 20 rows / batch after pool 1
S2       = S1 // 2                    # 10 rows / batch after pool 2
OFF0 = OFF1 = OFF2 = 8                # leading zero halo (sublane aligned)
PAD_TAIL = 8                          # trailing zero halo
NFULL = BT * STRIDE                   # 160
N1    = BT * S1                       # 80
N2    = BT * S2                       # 40
ROWS0 = OFF0 + NFULL + PAD_TAIL       # 176

assert CHUNK % 8 == 0 and STRIDE % 2 == 0 and S1 % 2 == 0
assert GAP >= max(TOPF, P4 - 1 - TOPF) and OFF0 >= TOPF
assert S1 >= T1 + 1 and S2 >= T2 + 1
assert 2 * (T3 - 1) + 2 <= T2 - 1      # last pool reads only valid conv_spot_2 rows


# =====================================================================================
# Single fused kernel: backbone + segmentation head + spotting branch
# =====================================================================================
def _calf_kernel(x_ref, w1_ref, b1_ref, w2_ref, b2_ref,
                 wpyr_ref, bpyr_ref,
                 wsegc_ref, wsegp_ref, bseg_ref,
                 scale_ref, shift_ref, mseg_ref,
                 maskf_ref, mask1_ref, mask2_ref,
                 wsp1a_ref, wsp1b_ref, bsp1_ref,
                 wsp2_ref, bsp2_ref, wfin_ref, bfin_ref,
                 seg_out_ref, spot_out_ref,
                 scr_c2, scr_pyr, scr_sa, scr_sb,
                 scr_p1a, scr_p1b, scr_c1, scr_p2, scr_s2):
    f32 = jnp.float32
    bf16 = jnp.bfloat16

    def zero_rows(ref, start, n):
        ref[pl.ds(start, n), :] = jnp.zeros((n, ref.shape[-1]), f32)

    # Zero only the halo / gap rows, every iteration (a handful of 8-row stores).
    # Every row that is read is also written in the SAME iteration, so the kernel does
    # not depend on scratch state -> safe with a "parallel" (megacore-sharded) grid.
    zero_rows(scr_c2, 0, OFF0)
    for b in range(BT):
        zero_rows(scr_c2, OFF0 + b * STRIDE + CHUNK, GAP)
    zero_rows(scr_c2, OFF0 + NFULL, PAD_TAIL)
    zero_rows(scr_pyr, 0, OFF0)
    zero_rows(scr_pyr, OFF0 + NFULL, PAD_TAIL)
    zero_rows(scr_sa, NFULL, PAD_TAIL)
    zero_rows(scr_sb, NFULL, PAD_TAIL)
    zero_rows(scr_p1a, 0, OFF1)
    zero_rows(scr_p1a, OFF1 + N1, PAD_TAIL)
    zero_rows(scr_p1b, 0, OFF1)
    zero_rows(scr_p1b, OFF1 + N1, PAD_TAIL)
    zero_rows(scr_c1, N1, PAD_TAIL)
    zero_rows(scr_p2, 0, OFF2)
    zero_rows(scr_p2, OFF2 + N2, PAD_TAIL)

    # ---- conv_1 + conv_2: one dense matmul over all BT*CHUNK rows ------------------
    x2 = x_ref[...]                                                    # (BT*CHUNK, F) bf16
    c1 = jnp.maximum(jnp.dot(x2, w1_ref[...], preferred_element_type=f32) + b1_ref[...], 0.0)
    c2 = jnp.maximum(jnp.dot(c1.astype(bf16), w2_ref[...], preferred_element_type=f32)
                     + b2_ref[...], 0.0)
    # scatter per-batch (CHUNK, 32) tiles into the gap-padded strided layout
    for b in range(BT):
        scr_c2[pl.ds(OFF0 + b * STRIDE, CHUNK), :] = c2[b * CHUNK:(b + 1) * CHUNK, :]

    maskf = maskf_ref[...] > 0.5                                       # (NFULL, 1) valid rows

    # ---- four pyramid convs fused into one 8-tap, 120-output-channel conv ----------
    pyr = jnp.zeros((NFULL, NPYR), f32)
    for J in range(P4):
        pyr = pyr + jnp.dot(scr_c2[pl.ds(OFF0 - TOPF + J, NFULL), :].astype(bf16),
                            wpyr_ref[J], preferred_element_type=f32)
    pyr = jnp.maximum(pyr + bpyr_ref[...], 0.0)
    scr_pyr[pl.ds(OFF0, NFULL), :] = jnp.where(maskf, pyr, 0.0)

    # ---- conv_seg over the two concatenated channel groups [conv_2 | pyramid] ------
    seg = jnp.zeros((NFULL, SEG_C), f32)
    for j in range(3):
        seg = seg + jnp.dot(scr_c2[pl.ds(OFF0 - 1 + j, NFULL), :].astype(bf16),
                            wsegc_ref[j], preferred_element_type=f32)
        seg = seg + jnp.dot(scr_pyr[pl.ds(OFF0 - 1 + j, NFULL), :].astype(bf16),
                            wsegp_ref[j], preferred_element_type=f32)
    seg = seg + bseg_ref[...]

    # ---- BatchNorm (eval affine) + sigmoid + capsule length ------------------------
    # TODO(synk): training-mode BatchNorm (batch statistics) is not reproduced; eval-mode
    #             running-stat normalization with synthetic stats is used.
    sig = jax.nn.sigmoid(seg * scale_ref[...] + shift_ref[...])
    q = (sig - 0.5) ** 2
    ss = jnp.dot(q.astype(bf16), mseg_ref[...], preferred_element_type=f32)   # (NFULL,128)
    out_seg = jnp.sqrt(ss * (4.0 / DIM_CAP))        # lanes >= NUM_CLASSES are exactly 0
    for b in range(BT):                             # lane-dense (128-wide) output store
        seg_out_ref[b] = out_seg[b * STRIDE:b * STRIDE + CHUNK, :]

    # ---- spotting branch -------------------------------------------------------------
    scr_sa[pl.ds(0, NFULL), :] = jnp.maximum(seg, 0.0)          # relu(conv_seg)
    scr_sb[pl.ds(0, NFULL), :] = jnp.maximum(1.0 - out_seg, 0.0)  # relu(1 - segmentation)

    def pool3(src, start, n, stride):               # k=3 / stride-2 pool via strided loads
        r0 = src[pl.ds(start + 0, n, stride=stride), :]
        r1 = src[pl.ds(start + 1, n, stride=stride), :]
        r2 = src[pl.ds(start + 2, n, stride=stride), :]
        return jnp.maximum(jnp.maximum(r0, r1), r2)

    m1 = mask1_ref[...] > 0.5
    scr_p1a[pl.ds(OFF1, N1), :] = jnp.where(m1, pool3(scr_sa, 0, N1, 2), 0.0)
    scr_p1b[pl.ds(OFF1, N1), :] = jnp.where(m1, pool3(scr_sb, 0, N1, 2), 0.0)

    c1s = jnp.zeros((N1, 32), f32)                  # conv_spot_1
    for j in range(3):
        c1s = c1s + jnp.dot(scr_p1a[pl.ds(OFF1 - 1 + j, N1), :].astype(bf16),
                            wsp1a_ref[j], preferred_element_type=f32)
        c1s = c1s + jnp.dot(scr_p1b[pl.ds(OFF1 - 1 + j, N1), :].astype(bf16),
                            wsp1b_ref[j], preferred_element_type=f32)
    scr_c1[pl.ds(0, N1), :] = jnp.maximum(c1s + bsp1_ref[...], 0.0)

    m2 = mask2_ref[...] > 0.5
    scr_p2[pl.ds(OFF2, N2), :] = jnp.where(m2, pool3(scr_c1, 0, N2, 2), 0.0)

    c2s = jnp.zeros((N2, 16), f32)                  # conv_spot_2
    for j in range(3):
        c2s = c2s + jnp.dot(scr_p2[pl.ds(OFF2 - 1 + j, N2), :].astype(bf16),
                            wsp2_ref[j], preferred_element_type=f32)
    scr_s2[pl.ds(0, N2), :] = jnp.maximum(c2s + bsp2_ref[...], 0.0)

    # last max-pool + conv_conf/conv_class folded into three (BT,16)@(16,128) matmuls
    logits = jnp.zeros((BT, LANE), f32) + bfin_ref[...]
    for t in range(T3):
        tapv = pool3(scr_s2, 2 * t, BT, S2)                            # (BT, 16)
        logits = logits + jnp.dot(tapv.astype(bf16), wfin_ref[t],
                                  preferred_element_type=f32)
    spot_out_ref[0] = logits


# =====================================================================================
# Wrapper / glue
# =====================================================================================
def _full_spec(a):
    nd = a.ndim
    return pl.BlockSpec(a.shape, lambda i, _nd=nd: (0,) * _nd)


def forward_pallas(x, p):
    """x: (B, CHUNK, INPUT_SIZE) float32.  Returns (segmentation, spotting)."""
    B = x.shape[0]
    f32, bf16 = jnp.float32, jnp.bfloat16

    nblk = -(-B // BT)
    Bpad = nblk * BT
    if Bpad != B:
        x = jnp.concatenate([x, jnp.zeros((Bpad - B,) + x.shape[1:], x.dtype)], axis=0)
    x2d = x.reshape(Bpad * CHUNK, INPUT_SIZE).astype(bf16)

    # BatchNorm eval-mode per-time-step affine, laid out on the strided row grid
    inv_std = 1.0 / jnp.sqrt(p['var'] + EPS)
    scale_t = p['gamma'] * inv_std
    shift_t = p['beta'] - p['mean'] * scale_t
    scale_s = jnp.tile(jnp.concatenate([scale_t, jnp.ones((GAP,), f32)]), BT).reshape(NFULL, 1)
    shift_s = jnp.tile(jnp.concatenate([shift_t, jnp.zeros((GAP,), f32)]), BT).reshape(NFULL, 1)

    # capsule-length reduction matrix, padded to 128 output lanes (lane-dense output)
    mseg = ((jnp.arange(SEG_C) % NUM_CLASSES)[:, None]
            == jnp.arange(LANE)[None, :]).astype(bf16)

    # fuse the four pyramid convs: tap-aligned, output-channel-concatenated (P4,32,120)
    wpyr = jnp.zeros((P4, 32, NPYR), f32)
    off = 0
    for k, cout, name in ((P1, PYR_CH[0], 'Wp1'), (P2, PYR_CH[1], 'Wp2'),
                          (P3, PYR_CH[2], 'Wp3'), (P4, PYR_CH[3], 'Wp4')):
        top = (k - 1) // 2
        wpyr = wpyr.at[TOPF - top:TOPF - top + k, :, off:off + cout].set(p[name])
        off += cout
    bpyr = jnp.concatenate([p['bp1'], p['bp2'], p['bp3'], p['bp4']]).reshape(1, NPYR)

    # conv_seg weight split by input-channel group [conv_2 (32) | pyramid (120)]
    wsegc = p['Wseg'][:, :32, :]
    wsegp = p['Wseg'][:, 32:, :]

    # valid-row masks for the three strided layouts
    maskf = ((jnp.arange(NFULL) % STRIDE) < CHUNK).astype(f32).reshape(NFULL, 1)
    mask1 = ((jnp.arange(N1) % S1) < T1).astype(f32).reshape(N1, 1)
    mask2 = ((jnp.arange(N2) % S2) < T2).astype(f32).reshape(N2, 1)

    # conv_spot_1 weights: conv_seg part + (lane-padded to 128) 1-segmentation part
    wsp1a = p['Wsp1'][:, :SEG_C, :]
    wsp1b = jnp.zeros((3, LANE, 32), f32).at[:, :NUM_CLASSES, :].set(p['Wsp1'][:, SEG_C:, :])

    # conv_conf + conv_class folded into per-tap (16, 128) matrices (channel-major flatten)
    wcat = jnp.concatenate([p['Wconf'], p['Wclass']], axis=0)            # (25, 16*T3)
    wfin = wcat.reshape(NOUT, 16, T3).transpose(2, 1, 0)                 # (T3, 16, 25)
    wfin = jnp.zeros((T3, 16, LANE), f32).at[:, :, :NOUT].set(wfin)
    bfin = jnp.zeros((1, LANE), f32).at[0, :NOUT].set(
        jnp.concatenate([p['bconf'], p['bclass']]))

    inputs = [x2d,
              p['W1'].astype(bf16), p['b1'].reshape(1, -1),
              p['W2'].astype(bf16), p['b2'].reshape(1, -1),
              wpyr.astype(bf16), bpyr,
              wsegc.astype(bf16), wsegp.astype(bf16), p['bseg'].reshape(1, -1),
              scale_s, shift_s, mseg,
              maskf, mask1, mask2,
              wsp1a.astype(bf16), wsp1b.astype(bf16), p['bsp1'].reshape(1, -1),
              p['Wsp2'].astype(bf16), p['bsp2'].reshape(1, -1),
              wfin.astype(bf16), bfin]

    in_specs = ([pl.BlockSpec((BT * CHUNK, INPUT_SIZE), lambda i: (i, 0))]
                + [_full_spec(a) for a in inputs[1:]])

    seg_out, spot_out = pl.pallas_call(
        _calf_kernel,
        grid=(nblk,),
        in_specs=in_specs,
        out_specs=(pl.BlockSpec((BT, CHUNK, LANE), lambda i: (i, 0, 0)),
                   pl.BlockSpec((1, BT, LANE), lambda i: (i, 0, 0))),
        out_shape=(jax.ShapeDtypeStruct((Bpad, CHUNK, LANE), f32),
                   jax.ShapeDtypeStruct((nblk, BT, LANE), f32)),
        scratch_shapes=[pltpu.VMEM((ROWS0, 32), f32),                  # conv_2 (padded)
                        pltpu.VMEM((ROWS0, NPYR), f32),                # pyramid (padded)
                        pltpu.VMEM((NFULL + PAD_TAIL, SEG_C), f32),    # relu(conv_seg)
                        pltpu.VMEM((NFULL + PAD_TAIL, LANE), f32),     # relu(1 - seg)
                        pltpu.VMEM((OFF1 + N1 + PAD_TAIL, SEG_C), f32),
                        pltpu.VMEM((OFF1 + N1 + PAD_TAIL, LANE), f32),
                        pltpu.VMEM((N1 + PAD_TAIL, 32), f32),          # conv_spot_1
                        pltpu.VMEM((OFF2 + N2 + PAD_TAIL, 32), f32),   # pooled 2
                        pltpu.VMEM((N2, 16), f32)],                    # conv_spot_2
        compiler_params=pltpu.CompilerParams(dimension_semantics=("parallel",)),
    )(*inputs)

    # final tiny activations / reshapes stay in plain JAX glue
    segmentation = seg_out[:B, :, :NUM_CLASSES]
    logits = spot_out.reshape(Bpad, LANE)[:B, :NOUT]
    conf = jax.nn.sigmoid(logits[:, :2 * NUM_DET]).reshape(B, NUM_DET, 2)
    cls = jax.nn.softmax(logits[:, 2 * NUM_DET:].reshape(B, NUM_DET, NUM_CLASSES), axis=-1)
    return segmentation, jnp.concatenate([conf, cls], axis=-1)


# =====================================================================================
# Deterministic synthetic parameters + plain-JAX reference
# =====================================================================================
def init_params(key):
    keys = iter(jax.random.split(key, 32))
    nk = lambda: next(keys)
    nrm = lambda shape, s: (s * jax.random.normal(nk(), shape)).astype(jnp.float32)
    p = {}
    p['W1'] = nrm((INPUT_SIZE, 128), 1.0 / math.sqrt(INPUT_SIZE)); p['b1'] = nrm((128,), 0.05)
    p['W2'] = nrm((128, 32), 1.0 / math.sqrt(128));                p['b2'] = nrm((32,), 0.05)
    for i, (k, cout) in enumerate(((P1, 8), (P2, 16), (P3, 32), (P4, 64)), start=1):
        p[f'Wp{i}'] = nrm((k, 32, cout), 1.0 / math.sqrt(32 * k))
        p[f'bp{i}'] = nrm((cout,), 0.05)
    p['Wseg'] = nrm((3, 152, SEG_C), 1.0 / math.sqrt(3 * 152)); p['bseg'] = nrm((SEG_C,), 0.05)
    p['gamma'] = (1.0 + 0.1 * jax.random.normal(nk(), (CHUNK,))).astype(jnp.float32)
    p['beta']  = (0.1 * jax.random.normal(nk(), (CHUNK,))).astype(jnp.float32)
    p['mean']  = (0.1 * jax.random.normal(nk(), (CHUNK,))).astype(jnp.float32)
    p['var']   = jax.random.uniform(nk(), (CHUNK,), minval=0.5, maxval=1.5).astype(jnp.float32)
    p['Wsp1'] = nrm((3, SEG_C + NUM_CLASSES, 32), 1.0 / math.sqrt(3 * (SEG_C + NUM_CLASSES)))
    p['bsp1'] = nrm((32,), 0.05)
    p['Wsp2'] = nrm((3, 32, 16), 1.0 / math.sqrt(3 * 32)); p['bsp2'] = nrm((16,), 0.05)
    nflat = 16 * T3
    p['Wconf']  = nrm((NUM_DET * 2, nflat), 1.0 / math.sqrt(nflat)); p['bconf'] = nrm((NUM_DET * 2,), 0.05)
    p['Wclass'] = nrm((NUM_DET * NUM_CLASSES, nflat), 1.0 / math.sqrt(nflat))
    p['bclass'] = nrm((NUM_DET * NUM_CLASSES,), 0.05)
    return p


def reference_forward(x, p):
    relu = lambda v: jnp.maximum(v, 0.0)

    def tconv(h, W, b, act=True):
        k = W.shape[0]; top = (k - 1) // 2; bot = k - 1 - top
        Tn = h.shape[1]
        hp = jnp.pad(h, ((0, 0), (top, bot), (0, 0)))
        acc = b[None, None, :]
        for j in range(k):
            acc = acc + jnp.einsum('btc,co->bto', hp[:, j:j + Tn, :], W[j])
        return relu(acc) if act else acc

    def pool(h):
        m = jnp.maximum(jnp.maximum(h[:, :-2], h[:, 1:-1]), h[:, 2:])
        return m[:, ::2]

    B = x.shape[0]
    c1 = relu(jnp.einsum('btf,fo->bto', x, p['W1']) + p['b1'])
    c2 = relu(jnp.einsum('btc,co->bto', c1, p['W2']) + p['b2'])
    cat = jnp.concatenate([c2,
                           tconv(c2, p['Wp1'], p['bp1']), tconv(c2, p['Wp2'], p['bp2']),
                           tconv(c2, p['Wp3'], p['bp3']), tconv(c2, p['Wp4'], p['bp4'])], axis=-1)
    seg = tconv(cat, p['Wseg'], p['bseg'], act=False)
    scale = p['gamma'] / jnp.sqrt(p['var'] + EPS)
    shift = p['beta'] - p['mean'] * scale
    sig = jax.nn.sigmoid(seg * scale[None, :, None] + shift[None, :, None])
    ss = ((sig - 0.5) ** 2).reshape(B, CHUNK, DIM_CAP, NUM_CLASSES).sum(axis=2)
    out_seg = jnp.sqrt(ss * 4.0 / DIM_CAP)
    cc2 = relu(jnp.concatenate([seg, 1.0 - out_seg], axis=-1))
    s = pool(cc2)
    s = tconv(s, p['Wsp1'], p['bsp1']); s = pool(s)
    s = tconv(s, p['Wsp2'], p['bsp2']); s = pool(s)          # (B, T3, 16)
    flat = jnp.transpose(s, (0, 2, 1)).reshape(B, 16 * T3)   # channel-major flatten
    conf = jax.nn.sigmoid(flat @ p['Wconf'].T + p['bconf']).reshape(B, NUM_DET, 2)
    cls = jax.nn.softmax((flat @ p['Wclass'].T + p['bclass']).reshape(B, NUM_DET, NUM_CLASSES), axis=-1)
    return out_seg, jnp.concatenate([conf, cls], axis=-1)


if __name__ == "__main__":
    key = jax.random.PRNGKey(0)
    kx, kp = jax.random.split(key)
    params = init_params(kp)
    B = 8                                            # two grid steps of BT=4 batches
    x = jax.random.normal(kx, (B, CHUNK, INPUT_SIZE), dtype=jnp.float32)

    seg, spot = jax.jit(forward_pallas)(x, params)
    jax.block_until_ready((seg, spot))
    assert seg.shape == (B, CHUNK, NUM_CLASSES)
    assert spot.shape == (B, NUM_DET, 2 + NUM_CLASSES)

    seg_ref, spot_ref = reference_forward(x, params)
    np.testing.assert_allclose(np.asarray(seg), np.asarray(seg_ref), rtol=5e-2, atol=5e-2)
    np.testing.assert_allclose(np.asarray(spot), np.asarray(spot_ref), rtol=5e-2, atol=5e-2)
    print("KERNEL_OK")
</pallas_src>

<mosaic_0001>
module attributes {stable_mosaic.version = 11 : i64} {
  func.func @_calf_kernel(%arg0: i32, %arg1: memref<128x32xbf16, #tpu.memory_space<vmem>>, %arg2: memref<32x128xbf16, #tpu.memory_space<vmem>>, %arg3: memref<1x128xf32, #tpu.memory_space<vmem>>, %arg4: memref<128x32xbf16, #tpu.memory_space<vmem>>, %arg5: memref<1x32xf32, #tpu.memory_space<vmem>>, %arg6: memref<8x32x120xbf16, #tpu.memory_space<vmem>>, %arg7: memref<1x120xf32, #tpu.memory_space<vmem>>, %arg8: memref<3x32x48xbf16, #tpu.memory_space<vmem>>, %arg9: memref<3x120x48xbf16, #tpu.memory_space<vmem>>, %arg10: memref<1x48xf32, #tpu.memory_space<vmem>>, %arg11: memref<160x1xf32, #tpu.memory_space<vmem>>, %arg12: memref<160x1xf32, #tpu.memory_space<vmem>>, %arg13: memref<48x128xbf16, #tpu.memory_space<vmem>>, %arg14: memref<160x1xf32, #tpu.memory_space<vmem>>, %arg15: memref<80x1xf32, #tpu.memory_space<vmem>>, %arg16: memref<40x1xf32, #tpu.memory_space<vmem>>, %arg17: memref<3x48x32xbf16, #tpu.memory_space<vmem>>, %arg18: memref<3x128x32xbf16, #tpu.memory_space<vmem>>, %arg19: memref<1x32xf32, #tpu.memory_space<vmem>>, %arg20: memref<3x32x16xbf16, #tpu.memory_space<vmem>>, %arg21: memref<1x16xf32, #tpu.memory_space<vmem>>, %arg22: memref<3x16x128xbf16, #tpu.memory_space<vmem>>, %arg23: memref<1x128xf32, #tpu.memory_space<vmem>>, %arg24: memref<4x32x128xf32, #tpu.memory_space<vmem>>, %arg25: memref<1x4x128xf32, #tpu.memory_space<vmem>>, %arg26: memref<176x32xf32, #tpu.memory_space<vmem>>, %arg27: memref<176x120xf32, #tpu.memory_space<vmem>>, %arg28: memref<168x48xf32, #tpu.memory_space<vmem>>, %arg29: memref<168x128xf32, #tpu.memory_space<vmem>>, %arg30: memref<96x48xf32, #tpu.memory_space<vmem>>, %arg31: memref<96x128xf32, #tpu.memory_space<vmem>>, %arg32: memref<88x32xf32, #tpu.memory_space<vmem>>, %arg33: memref<56x32xf32, #tpu.memory_space<vmem>>, %arg34: memref<40x16xf32, #tpu.memory_space<vmem>>) attributes {dimension_semantics = [#tpu.dimension_semantics<parallel>], iteration_bounds = array<i64: 2>, scalar_prefetch = 0 : i64, scratch_operands = 9 : i64, tpu.core_type = #tpu.core_type<tc>, window_params = [{transform_indices = @transform_0, window_bounds = array<i64: 128, 32>}, {pipeline_mode = #tpu.pipeline_mode<synchronous>, transform_indices = @transform_1, window_bounds = array<i64: 32, 128>}, {pipeline_mode = #tpu.pipeline_mode<synchronous>, transform_indices = @transform_2, window_bounds = array<i64: 1, 128>}, {pipeline_mode = #tpu.pipeline_mode<synchronous>, transform_indices = @transform_3, window_bounds = array<i64: 128, 32>}, {pipeline_mode = #tpu.pipeline_mode<synchronous>, transform_indices = @transform_4, window_bounds = array<i64: 1, 32>}, {pipeline_mode = #tpu.pipeline_mode<synchronous>, transform_indices = @transform_5, window_bounds = array<i64: 8, 32, 120>}, {pipeline_mode = #tpu.pipeline_mode<synchronous>, transform_indices = @transform_6, window_bounds = array<i64: 1, 120>}, {pipeline_mode = #tpu.pipeline_mode<synchronous>, transform_indices = @transform_7, window_bounds = array<i64: 3, 32, 48>}, {pipeline_mode = #tpu.pipeline_mode<synchronous>, transform_indices = @transform_8, window_bounds = array<i64: 3, 120, 48>}, {pipeline_mode = #tpu.pipeline_mode<synchronous>, transform_indices = @transform_9, window_bounds = array<i64: 1, 48>}, {pipeline_mode = #tpu.pipeline_mode<synchronous>, transform_indices = @transform_10, window_bounds = array<i64: 160, 1>}, {pipeline_mode = #tpu.pipeline_mode<synchronous>, transform_indices = @transform_11, window_bounds = array<i64: 160, 1>}, {pipeline_mode = #tpu.pipeline_mode<synchronous>, transform_indices = @transform_12, window_bounds = array<i64: 48, 128>}, {pipeline_mode = #tpu.pipeline_mode<synchronous>, transform_indices = @transform_13, window_bounds = array<i64: 160, 1>}, {pipeline_mode = #tpu.pipeline_mode<synchronous>, transform_indices = @transform_14, window_bounds = array<i64: 80, 1>}, {pipeline_mode = #tpu.pipeline_mode<synchronous>, transform_indices = @transform_15, window_bounds = array<i64: 40, 1>}, {pipeline_mode = #tpu.pipeline_mode<synchronous>, transform_indices = @transform_16, window_bounds = array<i64: 3, 48, 32>}, {pipeline_mode = #tpu.pipeline_mode<synchronous>, transform_indices = @transform_17, window_bounds = array<i64: 3, 128, 32>}, {pipeline_mode = #tpu.pipeline_mode<synchronous>, transform_indices = @transform_18, window_bounds = array<i64: 1, 32>}, {pipeline_mode = #tpu.pipeline_mode<synchronous>, transform_indices = @transform_19, window_bounds = array<i64: 3, 32, 16>}, {pipeline_mode = #tpu.pipeline_mode<synchronous>, transform_indices = @transform_20, window_bounds = array<i64: 1, 16>}, {pipeline_mode = #tpu.pipeline_mode<synchronous>, transform_indices = @transform_21, window_bounds = array<i64: 3, 16, 128>}, {pipeline_mode = #tpu.pipeline_mode<synchronous>, transform_indices = @transform_22, window_bounds = array<i64: 1, 128>}, {transform_indices = @transform_23, window_bounds = array<i64: 4, 32, 128>}, {transform_indices = @transform_24, window_bounds = array<i64: 1, 4, 128>}]} {
    %cst = arith.constant 0.000000e+00 : f32
    %0 = vector.broadcast %cst : f32 to vector<8x32xf32>
    %c0 = arith.constant 0 : index
    %c0_0 = arith.constant 0 : index
    %1 = vector.load %arg26[%c0, %c0_0] : memref<176x32xf32, #tpu.memory_space<vmem>>, vector<8x32xf32>
    tpu.vector_store %arg26[%c0, %c0_0], %0 {strides = array<i32>} : memref<176x32xf32, #tpu.memory_space<vmem>>, vector<8x32xf32>,
    %cst_1 = arith.constant 0.000000e+00 : f32
    %2 = vector.broadcast %cst_1 : f32 to vector<8x32xf32>
    %c40 = arith.constant 40 : index
    %c0_2 = arith.constant 0 : index
    %3 = vector.load %arg26[%c40, %c0_2] : memref<176x32xf32, #tpu.memory_space<vmem>>, vector<8x32xf32>
    tpu.vector_store %arg26[%c40, %c0_2], %2 {strides = array<i32>} : memref<176x32xf32, #tpu.memory_space<vmem>>, vector<8x32xf32>,
    %cst_3 = arith.constant 0.000000e+00 : f32
    %4 = vector.broadcast %cst_3 : f32 to vector<8x32xf32>
    %c80 = arith.constant 80 : index
    %c0_4 = arith.constant 0 : index
    %5 = vector.load %arg26[%c80, %c0_4] : memref<176x32xf32, #tpu.memory_space<vmem>>, vector<8x32xf32>
    tpu.vector_store %arg26[%c80, %c0_4], %4 {strides = array<i32>} : memref<176x32xf32, #tpu.memory_space<vmem>>, vector<8x32xf32>,
    %cst_5 = arith.constant 0.000000e+00 : f32
    %6 = vector.broadcast %cst_5 : f32 to vector<8x32xf32>
    %c120 = arith.constant 120 : index
    %c0_6 = arith.constant 0 : index
    %7 = vector.load %arg26[%c120, %c0_6] : memref<176x32xf32, #tpu.memory_space<vmem>>, vector<8x32xf32>
    tpu.vector_store %arg26[%c120, %c0_6], %6 {strides = array<i32>} : memref<176x32xf32, #tpu.memory_space<vmem>>, vector<8x32xf32>,
    %cst_7 = arith.constant 0.000000e+00 : f32
    %8 = vector.broadcast %cst_7 : f32 to vector<8x32xf32>
    %c160 = arith.constant 160 : index
    %c0_8 = arith.constant 0 : index
    %9 = vector.load %arg26[%c160, %c0_8] : memref<176x32xf32, #tpu.memory_space<vmem>>, vector<8x32xf32>
    tpu.vector_store %arg26[%c160, %c0_8], %8 {strides = array<i32>} : memref<176x32xf32, #tpu.memory_space<vmem>>, vector<8x32xf32>,
    %cst_9 = arith.constant 0.000000e+00 : f32
    %10 = vector.broadcast %cst_9 : f32 to vector<8x32xf32>
    %c168 = arith.constant 168 : index
    %c0_10 = arith.constant 0 : index
    %11 = vector.load %arg26[%c168, %c0_10] : memref<176x32xf32, #tpu.memory_space<vmem>>, vector<8x32xf32>
    tpu.vector_store %arg26[%c168, %c0_10], %10 {strides = array<i32>} : memref<176x32xf32, #tpu.memory_space<vmem>>, vector<8x32xf32>,
    %cst_11 = arith.constant 0.000000e+00 : f32
    %12 = vector.broadcast %cst_11 : f32 to vector<8x120xf32>
    %c0_12 = arith.constant 0 : index
    %c0_13 = arith.constant 0 : index
    %13 = vector.load %arg27[%c0_12, %c0_13] : memref<176x120xf32, #tpu.memory_space<vmem>>, vector<8x120xf32>
    tpu.vector_store %arg27[%c0_12, %c0_13], %12 {strides = array<i32>} : memref<176x120xf32, #tpu.memory_space<vmem>>, vector<8x120xf32>,
    %cst_14 = arith.constant 0.000000e+00 : f32
    %14 = vector.broadcast %cst_14 : f32 to vector<8x120xf32>
    %c168_15 = arith.constant 168 : index
    %c0_16 = arith.constant 0 : index
    %15 = vector.load %arg27[%c168_15, %c0_16] : memref<176x120xf32, #tpu.memory_space<vmem>>, vector<8x120xf32>
    tpu.vector_store %arg27[%c168_15, %c0_16], %14 {strides = array<i32>} : memref<176x120xf32, #tpu.memory_space<vmem>>, vector<8x120xf32>,
    %cst_17 = arith.constant 0.000000e+00 : f32
    %16 = vector.broadcast %cst_17 : f32 to vector<8x48xf32>
    %c160_18 = arith.constant 160 : index
    %c0_19 = arith.constant 0 : index
    %17 = vector.load %arg28[%c160_18, %c0_19] : memref<168x48xf32, #tpu.memory_space<vmem>>, vector<8x48xf32>
    tpu.vector_store %arg28[%c160_18, %c0_19], %16 {strides = array<i32>} : memref<168x48xf32, #tpu.memory_space<vmem>>, vector<8x48xf32>,
    %cst_20 = arith.constant 0.000000e+00 : f32
    %18 = vector.broadcast %cst_20 : f32 to vector<8x128xf32>
    %c160_21 = arith.constant 160 : index
    %c0_22 = arith.constant 0 : index
    %19 = vector.load %arg29[%c160_21, %c0_22] : memref<168x128xf32, #tpu.memory_space<vmem>>, vector<8x128xf32>
    tpu.vector_store %arg29[%c160_21, %c0_22], %18 {strides = array<i32>} : memref<168x128xf32, #tpu.memory_space<vmem>>, vector<8x128xf32>,
    %cst_23 = arith.constant 0.000000e+00 : f32
    %20 = vector.broadcast %cst_23 : f32 to vector<8x48xf32>
    %c0_24 = arith.constant 0 : index
    %c0_25 = arith.constant 0 : index
    %21 = vector.load %arg30[%c0_24, %c0_25] : memref<96x48xf32, #tpu.memory_space<vmem>>, vector<8x48xf32>
    tpu.vector_store %arg30[%c0_24, %c0_25], %20 {strides = array<i32>} : memref<96x48xf32, #tpu.memory_space<vmem>>, vector<8x48xf32>,
    %cst_26 = arith.constant 0.000000e+00 : f32
    %22 = vector.broadcast %cst_26 : f32 to vector<8x48xf32>
    %c88 = arith.constant 88 : index
    %c0_27 = arith.constant 0 : index
    %23 = vector.load %arg30[%c88, %c0_27] : memref<96x48xf32, #tpu.memory_space<vmem>>, vector<8x48xf32>
    tpu.vector_store %arg30[%c88, %c0_27], %22 {strides = array<i32>} : memref<96x48xf32, #tpu.memory_space<vmem>>, vector<8x48xf32>,
    %cst_28 = arith.constant 0.000000e+00 : f32
    %24 = vector.broadcast %cst_28 : f32 to vector<8x128xf32>
    %c0_29 = arith.constant 0 : index
    %c0_30 = arith.constant 0 : index
    %25 = vector.load %arg31[%c0_29, %c0_30] : memref<96x128xf32, #tpu.memory_space<vmem>>, vector<8x128xf32>
    tpu.vector_store %arg31[%c0_29, %c0_30], %24 {strides = array<i32>} : memref<96x128xf32, #tpu.memory_space<vmem>>, vector<8x128xf32>,
    %cst_31 = arith.constant 0.000000e+00 : f32
    %26 = vector.broadcast %cst_31 : f32 to vector<8x128xf32>
    %c88_32 = arith.constant 88 : index
    %c0_33 = arith.constant 0 : index
    %27 = vector.load %arg31[%c88_32, %c0_33] : memref<96x128xf32, #tpu.memory_space<vmem>>, vector<8x128xf32>
    tpu.vector_store %arg31[%c88_32, %c0_33], %26 {strides = array<i32>} : memref<96x128xf32, #tpu.memory_space<vmem>>, vector<8x128xf32>,
    %cst_34 = arith.constant 0.000000e+00 : f32
    %28 = vector.broadcast %cst_34 : f32 to vector<8x32xf32>
    %c80_35 = arith.constant 80 : index
    %c0_36 = arith.constant 0 : index
    %29 = vector.load %arg32[%c80_35, %c0_36] : memref<88x32xf32, #tpu.memory_space<vmem>>, vector<8x32xf32>
    tpu.vector_store %arg32[%c80_35, %c0_36], %28 {strides = array<i32>} : memref<88x32xf32, #tpu.memory_space<vmem>>, vector<8x32xf32>,
    %cst_37 = arith.constant 0.000000e+00 : f32
    %30 = vector.broadcast %cst_37 : f32 to vector<8x32xf32>
    %c0_38 = arith.constant 0 : index
    %c0_39 = arith.constant 0 : index
    %31 = vector.load %arg33[%c0_38, %c0_39] : memref<56x32xf32, #tpu.memory_space<vmem>>, vector<8x32xf32>
    tpu.vector_store %arg33[%c0_38, %c0_39], %30 {strides = array<i32>} : memref<56x32xf32, #tpu.memory_space<vmem>>, vector<8x32xf32>,
    %cst_40 = arith.constant 0.000000e+00 : f32
    %32 = vector.broadcast %cst_40 : f32 to vector<8x32xf32>
    %c48 = arith.constant 48 : index
    %c0_41 = arith.constant 0 : index
    %33 = vector.load %arg33[%c48, %c0_41] : memref<56x32xf32, #tpu.memory_space<vmem>>, vector<8x32xf32>
    tpu.vector_store %arg33[%c48, %c0_41], %32 {strides = array<i32>} : memref<56x32xf32, #tpu.memory_space<vmem>>, vector<8x32xf32>,
    %c0_42 = arith.constant 0 : index
    %c0_43 = arith.constant 0 : index
    %34 = vector.load %arg1[%c0_42, %c0_43] : memref<128x32xbf16, #tpu.memory_space<vmem>>, vector<128x32xbf16>
    %c0_44 = arith.constant 0 : index
    %c0_45 = arith.constant 0 : index
    %35 = vector.load %arg2[%c0_44, %c0_45] : memref<32x128xbf16, #tpu.memory_space<vmem>>, vector<32x128xbf16>
    %cst_46 = arith.constant dense<0.000000e+00> : vector<128x128xf32>
    %36 = tpu.matmul %34, %35, %cst_46 {dimension_numbers = #tpu.dot_dimension_numbers<[1], [0], [0], [1], [0, 0, 1, 1], [], []>} : vector<128x32xbf16>, vector<32x128xbf16>, vector<128x128xf32> -> vector<128x128xf32>
    %c0_47 = arith.constant 0 : index
    %c0_48 = arith.constant 0 : index
    %37 = vector.load %arg3[%c0_47, %c0_48] : memref<1x128xf32, #tpu.memory_space<vmem>>, vector<1x128xf32>
    %38 = vector.broadcast %37 : vector<1x128xf32> to vector<128x128xf32>
    %39 = arith.addf %36, %38 : vector<128x128xf32>
    %cst_49 = arith.constant 0.000000e+00 : f32
    %40 = vector.broadcast %cst_49 : f32 to vector<128x128xf32>
    %41 = arith.maximumf %39, %40 : vector<128x128xf32>
    %42 = arith.truncf %41 : vector<128x128xf32> to vector<128x128xbf16>
    %c0_50 = arith.constant 0 : index
    %c0_51 = arith.constant 0 : index
    %43 = vector.load %arg4[%c0_50, %c0_51] : memref<128x32xbf16, #tpu.memory_space<vmem>>, vector<128x32xbf16>
    %cst_52 = arith.constant dense<0.000000e+00> : vector<128x32xf32>
    %44 = tpu.matmul %42, %43, %cst_52 {dimension_numbers = #tpu.dot_dimension_numbers<[1], [0], [0], [1], [0, 0, 1, 1], [], []>} : vector<128x128xbf16>, vector<128x32xbf16>, vector<128x32xf32> -> vector<128x32xf32>
    %c0_53 = arith.constant 0 : index
    %c0_54 = arith.constant 0 : index
    %45 = vector.load %arg5[%c0_53, %c0_54] : memref<1x32xf32, #tpu.memory_space<vmem>>, vector<1x32xf32>
    %46 = vector.broadcast %45 : vector<1x32xf32> to vector<128x32xf32>
    %47 = arith.addf %44, %46 : vector<128x32xf32>
    %cst_55 = arith.constant 0.000000e+00 : f32
    %48 = vector.broadcast %cst_55 : f32 to vector<128x32xf32>
    %49 = arith.maximumf %47, %48 : vector<128x32xf32>
    %50 = vector.extract_strided_slice %49 {offsets = [0, 0], sizes = [32, 32], strides = [1, 1]} : vector<128x32xf32> to vector<32x32xf32>
    %c8 = arith.constant 8 : index
    %c0_56 = arith.constant 0 : index
    %51 = vector.load %arg26[%c8, %c0_56] : memref<176x32xf32, #tpu.memory_space<vmem>>, vector<32x32xf32>
    tpu.vector_store %arg26[%c8, %c0_56], %50 {strides = array<i32>} : memref<176x32xf32, #tpu.memory_space<vmem>>, vector<32x32xf32>,
    %52 = vector.extract_strided_slice %49 {offsets = [32, 0], sizes = [32, 32], strides = [1, 1]} : vector<128x32xf32> to vector<32x32xf32>
    %c48_57 = arith.constant 48 : index
    %c0_58 = arith.constant 0 : index
    %53 = vector.load %arg26[%c48_57, %c0_58] : memref<176x32xf32, #tpu.memory_space<vmem>>, vector<32x32xf32>
    tpu.vector_store %arg26[%c48_57, %c0_58], %52 {strides = array<i32>} : memref<176x32xf32, #tpu.memory_space<vmem>>, vector<32x32xf32>,
    %54 = vector.extract_strided_slice %49 {offsets = [64, 0], sizes = [32, 32], strides = [1, 1]} : vector<128x32xf32> to vector<32x32xf32>
    %c88_59 = arith.constant 88 : index
    %c0_60 = arith.constant 0 : index
    %55 = vector.load %arg26[%c88_59, %c0_60] : memref<176x32xf32, #tpu.memory_space<vmem>>, vector<32x32xf32>
    tpu.vector_store %arg26[%c88_59, %c0_60], %54 {strides = array<i32>} : memref<176x32xf32, #tpu.memory_space<vmem>>, vector<32x32xf32>,
    %56 = vector.extract_strided_slice %49 {offsets = [96, 0], sizes = [32, 32], strides = [1, 1]} : vector<128x32xf32> to vector<32x32xf32>
    %c128 = arith.constant 128 : index
    %c0_61 = arith.constant 0 : index
    %57 = vector.load %arg26[%c128, %c0_61] : memref<176x32xf32, #tpu.memory_space<vmem>>, vector<32x32xf32>
    tpu.vector_store %arg26[%c128, %c0_61], %56 {strides = array<i32>} : memref<176x32xf32, #tpu.memory_space<vmem>>, vector<32x32xf32>,
    %c0_62 = arith.constant 0 : index
    %c0_63 = arith.constant 0 : index
    %58 = vector.load %arg14[%c0_62, %c0_63] : memref<160x1xf32, #tpu.memory_space<vmem>>, vector<160x1xf32>
    %cst_64 = arith.constant 5.000000e-01 : f32
    %59 = vector.broadcast %cst_64 : f32 to vector<160x1xf32>
    %60 = arith.cmpf ogt, %58, %59 : vector<160x1xf32>
    %cst_65 = arith.constant 0.000000e+00 : f32
    %61 = vector.broadcast %cst_65 : f32 to vector<160x120xf32>
    %c5 = arith.constant 5 : index
    %c0_66 = arith.constant 0 : index
    %62 = vector.load %arg26[%c5, %c0_66] : memref<176x32xf32, #tpu.memory_space<vmem>>, vector<160x32xf32>
    %63 = arith.truncf %62 : vector<160x32xf32> to vector<160x32xbf16>
    %c0_67 = arith.constant 0 : index
    %c0_68 = arith.constant 0 : index
    %c0_69 = arith.constant 0 : index
    %64 = vector.load %arg6[%c0_67, %c0_68, %c0_69] : memref<8x32x120xbf16, #tpu.memory_space<vmem>>, vector<1x32x120xbf16>
    %65 = vector.shape_cast %64 : vector<1x32x120xbf16> to vector<32x120xbf16>
    %cst_70 = arith.constant dense<0.000000e+00> : vector<160x120xf32>
    %66 = tpu.matmul %63, %65, %cst_70 {dimension_numbers = #tpu.dot_dimension_numbers<[1], [0], [0], [1], [0, 0, 1, 1], [], []>} : vector<160x32xbf16>, vector<32x120xbf16>, vector<160x120xf32> -> vector<160x120xf32>
    %67 = arith.addf %61, %66 : vector<160x120xf32>
    %c6 = arith.constant 6 : index
    %c0_71 = arith.constant 0 : index
    %68 = vector.load %arg26[%c6, %c0_71] : memref<176x32xf32, #tpu.memory_space<vmem>>, vector<160x32xf32>
    %69 = arith.truncf %68 : vector<160x32xf32> to vector<160x32xbf16>
    %c1 = arith.constant 1 : index
    %c0_72 = arith.constant 0 : index
    %c0_73 = arith.constant 0 : index
    %70 = vector.load %arg6[%c1, %c0_72, %c0_73] : memref<8x32x120xbf16, #tpu.memory_space<vmem>>, vector<1x32x120xbf16>
    %71 = vector.shape_cast %70 : vector<1x32x120xbf16> to vector<32x120xbf16>
    %cst_74 = arith.constant dense<0.000000e+00> : vector<160x120xf32>
    %72 = tpu.matmul %69, %71, %cst_74 {dimension_numbers = #tpu.dot_dimension_numbers<[1], [0], [0], [1], [0, 0, 1, 1], [], []>} : vector<160x32xbf16>, vector<32x120xbf16>, vector<160x120xf32> -> vector<160x120xf32>
    %73 = arith.addf %67, %72 : vector<160x120xf32>
    %c7 = arith.constant 7 : index
    %c0_75 = arith.constant 0 : index
    %74 = vector.load %arg26[%c7, %c0_75] : memref<176x32xf32, #tpu.memory_space<vmem>>, vector<160x32xf32>
    %75 = arith.truncf %74 : vector<160x32xf32> to vector<160x32xbf16>
    %c2 = arith.constant 2 : index
    %c0_76 = arith.constant 0 : index
    %c0_77 = arith.constant 0 : index
    %76 = vector.load %arg6[%c2, %c0_76, %c0_77] : memref<8x32x120xbf16, #tpu.memory_space<vmem>>, vector<1x32x120xbf16>
    %77 = vector.shape_cast %76 : vector<1x32x120xbf16> to vector<32x120xbf16>
    %cst_78 = arith.constant dense<0.000000e+00> : vector<160x120xf32>
    %78 = tpu.matmul %75, %77, %cst_78 {dimension_numbers = #tpu.dot_dimension_numbers<[1], [0], [0], [1], [0, 0, 1, 1], [], []>} : vector<160x32xbf16>, vector<32x120xbf16>, vector<160x120xf32> -> vector<160x120xf32>
    %79 = arith.addf %73, %78 : vector<160x120xf32>
    %c8_79 = arith.constant 8 : index
    %c0_80 = arith.constant 0 : index
    %80 = vector.load %arg26[%c8_79, %c0_80] : memref<176x32xf32, #tpu.memory_space<vmem>>, vector<160x32xf32>
    %81 = arith.truncf %80 : vector<160x32xf32> to vector<160x32xbf16>
    %c3 = arith.constant 3 : index
    %c0_81 = arith.constant 0 : index
    %c0_82 = arith.constant 0 : index
    %82 = vector.load %arg6[%c3, %c0_81, %c0_82] : memref<8x32x120xbf16, #tpu.memory_space<vmem>>, vector<1x32x120xbf16>
    %83 = vector.shape_cast %82 : vector<1x32x120xbf16> to vector<32x120xbf16>
    %cst_83 = arith.constant dense<0.000000e+00> : vector<160x120xf32>
    %84 = tpu.matmul %81, %83, %cst_83 {dimension_numbers = #tpu.dot_dimension_numbers<[1], [0], [0], [1], [0, 0, 1, 1], [], []>} : vector<160x32xbf16>, vector<32x120xbf16>, vector<160x120xf32> -> vector<160x120xf32>
    %85 = arith.addf %79, %84 : vector<160x120xf32>
    %c9 = arith.constant 9 : index
    %c0_84 = arith.constant 0 : index
    %86 = vector.load %arg26[%c9, %c0_84] : memref<176x32xf32, #tpu.memory_space<vmem>>, vector<160x32xf32>
    %87 = arith.truncf %86 : vector<160x32xf32> to vector<160x32xbf16>
    %c4 = arith.constant 4 : index
    %c0_85 = arith.constant 0 : index
    %c0_86 = arith.constant 0 : index
    %88 = vector.load %arg6[%c4, %c0_85, %c0_86] : memref<8x32x120xbf16, #tpu.memory_space<vmem>>, vector<1x32x120xbf16>
    %89 = vector.shape_cast %88 : vector<1x32x120xbf16> to vector<32x120xbf16>
    %cst_87 = arith.constant dense<0.000000e+00> : vector<160x120xf32>
    %90 = tpu.matmul %87, %89, %cst_87 {dimension_numbers = #tpu.dot_dimension_numbers<[1], [0], [0], [1], [0, 0, 1, 1], [], []>} : vector<160x32xbf16>, vector<32x120xbf16>, vector<160x120xf32> -> vector<160x120xf32>
    %91 = arith.addf %85, %90 : vector<160x120xf32>
    %c10 = arith.constant 10 : index
    %c0_88 = arith.constant 0 : index
    %92 = vector.load %arg26[%c10, %c0_88] : memref<176x32xf32, #tpu.memory_space<vmem>>, vector<160x32xf32>
    %93 = arith.truncf %92 : vector<160x32xf32> to vector<160x32xbf16>
    %c5_89 = arith.constant 5 : index
    %c0_90 = arith.constant 0 : index
    %c0_91 = arith.constant 0 : index
    %94 = vector.load %arg6[%c5_89, %c0_90, %c0_91] : memref<8x32x120xbf16, #tpu.memory_space<vmem>>, vector<1x32x120xbf16>
    %95 = vector.shape_cast %94 : vector<1x32x120xbf16> to vector<32x120xbf16>
    %cst_92 = arith.constant dense<0.000000e+00> : vector<160x120xf32>
    %96 = tpu.matmul %93, %95, %cst_92 {dimension_numbers = #tpu.dot_dimension_numbers<[1], [0], [0], [1], [0, 0, 1, 1], [], []>} : vector<160x32xbf16>, vector<32x120xbf16>, vector<160x120xf32> -> vector<160x120xf32>
    %97 = arith.addf %91, %96 : vector<160x120xf32>
    %c11 = arith.constant 11 : index
    %c0_93 = arith.constant 0 : index
    %98 = vector.load %arg26[%c11, %c0_93] : memref<176x32xf32, #tpu.memory_space<vmem>>, vector<160x32xf32>
    %99 = arith.truncf %98 : vector<160x32xf32> to vector<160x32xbf16>
    %c6_94 = arith.constant 6 : index
    %c0_95 = arith.constant 0 : index
    %c0_96 = arith.constant 0 : index
    %100 = vector.load %arg6[%c6_94, %c0_95, %c0_96] : memref<8x32x120xbf16, #tpu.memory_space<vmem>>, vector<1x32x120xbf16>
    %101 = vector.shape_cast %100 : vector<1x32x120xbf16> to vector<32x120xbf16>
    %cst_97 = arith.constant dense<0.000000e+00> : vector<160x120xf32>
    %102 = tpu.matmul %99, %101, %cst_97 {dimension_numbers = #tpu.dot_dimension_numbers<[1], [0], [0], [1], [0, 0, 1, 1], [], []>} : vector<160x32xbf16>, vector<32x120xbf16>, vector<160x120xf32> -> vector<160x120xf32>
    %103 = arith.addf %97, %102 : vector<160x120xf32>
    %c12 = arith.constant 12 : index
    %c0_98 = arith.constant 0 : index
    %104 = vector.load %arg26[%c12, %c0_98] : memref<176x32xf32, #tpu.memory_space<vmem>>, vector<160x32xf32>
    %105 = arith.truncf %104 : vector<160x32xf32> to vector<160x32xbf16>
    %c7_99 = arith.constant 7 : index
    %c0_100 = arith.constant 0 : index
    %c0_101 = arith.constant 0 : index
    %106 = vector.load %arg6[%c7_99, %c0_100, %c0_101] : memref<8x32x120xbf16, #tpu.memory_space<vmem>>, vector<1x32x120xbf16>
    %107 = vector.shape_cast %106 : vector<1x32x120xbf16> to vector<32x120xbf16>
    %cst_102 = arith.constant dense<0.000000e+00> : vector<160x120xf32>
    %108 = tpu.matmul %105, %107, %cst_102 {dimension_numbers = #tpu.dot_dimension_numbers<[1], [0], [0], [1], [0, 0, 1, 1], [], []>} : vector<160x32xbf16>, vector<32x120xbf16>, vector<160x120xf32> -> vector<160x120xf32>
    %109 = arith.addf %103, %108 : vector<160x120xf32>
    %c0_103 = arith.constant 0 : index
    %c0_104 = arith.constant 0 : index
    %110 = vector.load %arg7[%c0_103, %c0_104] : memref<1x120xf32, #tpu.memory_space<vmem>>, vector<1x120xf32>
    %111 = vector.broadcast %110 : vector<1x120xf32> to vector<160x120xf32>
    %112 = arith.addf %109, %111 : vector<160x120xf32>
    %cst_105 = arith.constant 0.000000e+00 : f32
    %113 = vector.broadcast %cst_105 : f32 to vector<160x120xf32>
    %114 = arith.maximumf %112, %113 : vector<160x120xf32>
    %cst_106 = arith.constant 0.000000e+00 : f32
    %115 = vector.shape_cast %60 : vector<160x1xi1> to vector<160x1xi1>
    %116 = vector.broadcast %115 : vector<160x1xi1> to vector<160x120xi1>
    %117 = vector.broadcast %cst_106 : f32 to vector<160x120xf32>
    %118 = arith.select %116, %114, %117 : vector<160x120xi1>, vector<160x120xf32>
    %c8_107 = arith.constant 8 : index
    %c0_108 = arith.constant 0 : index
    %119 = vector.load %arg27[%c8_107, %c0_108] : memref<176x120xf32, #tpu.memory_space<vmem>>, vector<160x120xf32>
    tpu.vector_store %arg27[%c8_107, %c0_108], %118 {strides = array<i32>} : memref<176x120xf32, #tpu.memory_space<vmem>>, vector<160x120xf32>,
    %cst_109 = arith.constant 0.000000e+00 : f32
    %120 = vector.broadcast %cst_109 : f32 to vector<160x48xf32>
    %c7_110 = arith.constant 7 : index
    %c0_111 = arith.constant 0 : index
    %121 = vector.load %arg26[%c7_110, %c0_111] : memref<176x32xf32, #tpu.memory_space<vmem>>, vector<160x32xf32>
    %122 = arith.truncf %121 : vector<160x32xf32> to vector<160x32xbf16>
    %c0_112 = arith.constant 0 : index
    %c0_113 = arith.constant 0 : index
    %c0_114 = arith.constant 0 : index
    %123 = vector.load %arg8[%c0_112, %c0_113, %c0_114] : memref<3x32x48xbf16, #tpu.memory_space<vmem>>, vector<1x32x48xbf16>
    %124 = vector.shape_cast %123 : vector<1x32x48xbf16> to vector<32x48xbf16>
    %cst_115 = arith.constant dense<0.000000e+00> : vector<160x48xf32>
    %125 = tpu.matmul %122, %124, %cst_115 {dimension_numbers = #tpu.dot_dimension_numbers<[1], [0], [0], [1], [0, 0, 1, 1], [], []>} : vector<160x32xbf16>, vector<32x48xbf16>, vector<160x48xf32> -> vector<160x48xf32>
    %126 = arith.addf %120, %125 : vector<160x48xf32>
    %c7_116 = arith.constant 7 : index
    %c0_117 = arith.constant 0 : index
    %127 = vector.load %arg27[%c7_116, %c0_117] : memref<176x120xf32, #tpu.memory_space<vmem>>, vector<160x120xf32>
    %128 = arith.truncf %127 : vector<160x120xf32> to vector<160x120xbf16>
    %c0_118 = arith.constant 0 : index
    %c0_119 = arith.constant 0 : index
    %c0_120 = arith.constant 0 : index
    %129 = vector.load %arg9[%c0_118, %c0_119, %c0_120] : memref<3x120x48xbf16, #tpu.memory_space<vmem>>, vector<1x120x48xbf16>
    %130 = vector.shape_cast %129 : vector<1x120x48xbf16> to vector<120x48xbf16>
    %cst_121 = arith.constant dense<0.000000e+00> : vector<160x48xf32>
    %131 = tpu.matmul %128, %130, %cst_121 {dimension_numbers = #tpu.dot_dimension_numbers<[1], [0], [0], [1], [0, 0, 1, 1], [], []>} : vector<160x120xbf16>, vector<120x48xbf16>, vector<160x48xf32> -> vector<160x48xf32>
    %132 = arith.addf %126, %131 : vector<160x48xf32>
    %c8_122 = arith.constant 8 : index
    %c0_123 = arith.constant 0 : index
    %133 = vector.load %arg26[%c8_122, %c0_123] : memref<176x32xf32, #tpu.memory_space<vmem>>, vector<160x32xf32>
    %134 = arith.truncf %133 : vector<160x32xf32> to vector<160x32xbf16>
    %c1_124 = arith.constant 1 : index
    %c0_125 = arith.constant 0 : index
    %c0_126 = arith.constant 0 : index
    %135 = vector.load %arg8[%c1_124, %c0_125, %c0_126] : memref<3x32x48xbf16, #tpu.memory_space<vmem>>, vector<1x32x48xbf16>
    %136 = vector.shape_cast %135 : vector<1x32x48xbf16> to vector<32x48xbf16>
    %cst_127 = arith.constant dense<0.000000e+00> : vector<160x48xf32>
    %137 = tpu.matmul %134, %136, %cst_127 {dimension_numbers = #tpu.dot_dimension_numbers<[1], [0], [0], [1], [0, 0, 1, 1], [], []>} : vector<160x32xbf16>, vector<32x48xbf16>, vector<160x48xf32> -> vector<160x48xf32>
    %138 = arith.addf %132, %137 : vector<160x48xf32>
    %c8_128 = arith.constant 8 : index
    %c0_129 = arith.constant 0 : index
    %139 = vector.load %arg27[%c8_128, %c0_129] : memref<176x120xf32, #tpu.memory_space<vmem>>, vector<160x120xf32>
    %140 = arith.truncf %139 : vector<160x120xf32> to vector<160x120xbf16>
    %c1_130 = arith.constant 1 : index
    %c0_131 = arith.constant 0 : index
    %c0_132 = arith.constant 0 : index
    %141 = vector.load %arg9[%c1_130, %c0_131, %c0_132] : memref<3x120x48xbf16, #tpu.memory_space<vmem>>, vector<1x120x48xbf16>
    %142 = vector.shape_cast %141 : vector<1x120x48xbf16> to vector<120x48xbf16>
    %cst_133 = arith.constant dense<0.000000e+00> : vector<160x48xf32>
    %143 = tpu.matmul %140, %142, %cst_133 {dimension_numbers = #tpu.dot_dimension_numbers<[1], [0], [0], [1], [0, 0, 1, 1], [], []>} : vector<160x120xbf16>, vector<120x48xbf16>, vector<160x48xf32> -> vector<160x48xf32>
    %144 = arith.addf %138, %143 : vector<160x48xf32>
    %c9_134 = arith.constant 9 : index
    %c0_135 = arith.constant 0 : index
    %145 = vector.load %arg26[%c9_134, %c0_135] : memref<176x32xf32, #tpu.memory_space<vmem>>, vector<160x32xf32>
    %146 = arith.truncf %145 : vector<160x32xf32> to vector<160x32xbf16>
    %c2_136 = arith.constant 2 : index
    %c0_137 = arith.constant 0 : index
    %c0_138 = arith.constant 0 : index
    %147 = vector.load %arg8[%c2_136, %c0_137, %c0_138] : memref<3x32x48xbf16, #tpu.memory_space<vmem>>, vector<1x32x48xbf16>
    %148 = vector.shape_cast %147 : vector<1x32x48xbf16> to vector<32x48xbf16>
    %cst_139 = arith.constant dense<0.000000e+00> : vector<160x48xf32>
    %149 = tpu.matmul %146, %148, %cst_139 {dimension_numbers = #tpu.dot_dimension_numbers<[1], [0], [0], [1], [0, 0, 1, 1], [], []>} : vector<160x32xbf16>, vector<32x48xbf16>, vector<160x48xf32> -> vector<160x48xf32>
    %150 = arith.addf %144, %149 : vector<160x48xf32>
    %c9_140 = arith.constant 9 : index
    %c0_141 = arith.constant 0 : index
    %151 = vector.load %arg27[%c9_140, %c0_141] : memref<176x120xf32, #tpu.memory_space<vmem>>, vector<160x120xf32>
    %152 = arith.truncf %151 : vector<160x120xf32> to vector<160x120xbf16>
    %c2_142 = arith.constant 2 : index
    %c0_143 = arith.constant 0 : index
    %c0_144 = arith.constant 0 : index
    %153 = vector.load %arg9[%c2_142, %c0_143, %c0_144] : memref<3x120x48xbf16, #tpu.memory_space<vmem>>, vector<1x120x48xbf16>
    %154 = vector.shape_cast %153 : vector<1x120x48xbf16> to vector<120x48xbf16>
    %cst_145 = arith.constant dense<0.000000e+00> : vector<160x48xf32>
    %155 = tpu.matmul %152, %154, %cst_145 {dimension_numbers = #tpu.dot_dimension_numbers<[1], [0], [0], [1], [0, 0, 1, 1], [], []>} : vector<160x120xbf16>, vector<120x48xbf16>, vector<160x48xf32> -> vector<160x48xf32>
    %156 = arith.addf %150, %155 : vector<160x48xf32>
    %c0_146 = arith.constant 0 : index
    %c0_147 = arith.constant 0 : index
    %157 = vector.load %arg10[%c0_146, %c0_147] : memref<1x48xf32, #tpu.memory_space<vmem>>, vector<1x48xf32>
    %158 = vector.broadcast %157 : vector<1x48xf32> to vector<160x48xf32>
    %159 = arith.addf %156, %158 : vector<160x48xf32>
    %c0_148 = arith.constant 0 : index
    %c0_149 = arith.constant 0 : index
    %160 = vector.load %arg11[%c0_148, %c0_149] : memref<160x1xf32, #tpu.memory_space<vmem>>, vector<160x1xf32>
    %161 = vector.broadcast %160 : vector<160x1xf32> to vector<160x48xf32>
    %162 = arith.mulf %159, %161 : vector<160x48xf32>
    %c0_150 = arith.constant 0 : index
    %c0_151 = arith.constant 0 : index
    %163 = vector.load %arg12[%c0_150, %c0_151] : memref<160x1xf32, #tpu.memory_space<vmem>>, vector<160x1xf32>
    %164 = vector.broadcast %163 : vector<160x1xf32> to vector<160x48xf32>
    %165 = arith.addf %162, %164 : vector<160x48xf32>
    %166 = arith.negf %165 : vector<160x48xf32>
    %167 = math.exp %166 : vector<160x48xf32>
    %cst_152 = arith.constant 1.000000e+00 : f32
    %168 = vector.broadcast %cst_152 : f32 to vector<160x48xf32>
    %169 = arith.addf %168, %167 : vector<160x48xf32>
    %170 = arith.divf %168, %169 : vector<160x48xf32>
    %cst_153 = arith.constant 5.000000e-01 : f32
    %171 = vector.broadcast %cst_153 : f32 to vector<160x48xf32>
    %172 = arith.subf %170, %171 : vector<160x48xf32>
    %173 = arith.mulf %172, %172 : vector<160x48xf32>
    %174 = arith.truncf %173 : vector<160x48xf32> to vector<160x48xbf16>
    %c0_154 = arith.constant 0 : index
    %c0_155 = arith.constant 0 : index
    %175 = vector.load %arg13[%c0_154, %c0_155] : memref<48x128xbf16, #tpu.memory_space<vmem>>, vector<48x128xbf16>
    %cst_156 = arith.constant dense<0.000000e+00> : vector<160x128xf32>
    %176 = tpu.matmul %174, %175, %cst_156 {dimension_numbers = #tpu.dot_dimension_numbers<[1], [0], [0], [1], [0, 0, 1, 1], [], []>} : vector<160x48xbf16>, vector<48x128xbf16>, vector<160x128xf32> -> vector<160x128xf32>
    %cst_157 = arith.constant 2.500000e-01 : f32
    %177 = vector.broadcast %cst_157 : f32 to vector<160x128xf32>
    %178 = arith.mulf %176, %177 : vector<160x128xf32>
    %179 = math.sqrt %178 : vector<160x128xf32>
    %180 = vector.extract_strided_slice %179 {offsets = [0, 0], sizes = [32, 128], strides = [1, 1]} : vector<160x128xf32> to vector<32x128xf32>
    %c0_158 = arith.constant 0 : index
    %c0_159 = arith.constant 0 : index
    %c0_160 = arith.constant 0 : index
    %181 = vector.load %arg24[%c0_158, %c0_159, %c0_160] : memref<4x32x128xf32, #tpu.memory_space<vmem>>, vector<1x32x128xf32>
    %182 = vector.shape_cast %181 : vector<1x32x128xf32> to vector<32x128xf32>
    %183 = vector.shape_cast %180 : vector<32x128xf32> to vector<1x32x128xf32>
    tpu.vector_store %arg24[%c0_158, %c0_159, %c0_160], %183 {strides = array<i32>} : memref<4x32x128xf32, #tpu.memory_space<vmem>>, vector<1x32x128xf32>,
    %184 = vector.extract_strided_slice %179 {offsets = [40, 0], sizes = [32, 128], strides = [1, 1]} : vector<160x128xf32> to vector<32x128xf32>
    %c1_161 = arith.constant 1 : index
    %c0_162 = arith.constant 0 : index
    %c0_163 = arith.constant 0 : index
    %185 = vector.load %arg24[%c1_161, %c0_162, %c0_163] : memref<4x32x128xf32, #tpu.memory_space<vmem>>, vector<1x32x128xf32>
    %186 = vector.shape_cast %185 : vector<1x32x128xf32> to vector<32x128xf32>
    %187 = vector.shape_cast %184 : vector<32x128xf32> to vector<1x32x128xf32>
    tpu.vector_store %arg24[%c1_161, %c0_162, %c0_163], %187 {strides = array<i32>} : memref<4x32x128xf32, #tpu.memory_space<vmem>>, vector<1x32x128xf32>,
    %188 = vector.extract_strided_slice %179 {offsets = [80, 0], sizes = [32, 128], strides = [1, 1]} : vector<160x128xf32> to vector<32x128xf32>
    %c2_164 = arith.constant 2 : index
    %c0_165 = arith.constant 0 : index
    %c0_166 = arith.constant 0 : index
    %189 = vector.load %arg24[%c2_164, %c0_165, %c0_166] : memref<4x32x128xf32, #tpu.memory_space<vmem>>, vector<1x32x128xf32>
    %190 = vector.shape_cast %189 : vector<1x32x128xf32> to vector<32x128xf32>
    %191 = vector.shape_cast %188 : vector<32x128xf32> to vector<1x32x128xf32>
    tpu.vector_store %arg24[%c2_164, %c0_165, %c0_166], %191 {strides = array<i32>} : memref<4x32x128xf32, #tpu.memory_space<vmem>>, vector<1x32x128xf32>,
    %192 = vector.extract_strided_slice %179 {offsets = [120, 0], sizes = [32, 128], strides = [1, 1]} : vector<160x128xf32> to vector<32x128xf32>
    %c3_167 = arith.constant 3 : index
    %c0_168 = arith.constant 0 : index
    %c0_169 = arith.constant 0 : index
    %193 = vector.load %arg24[%c3_167, %c0_168, %c0_169] : memref<4x32x128xf32, #tpu.memory_space<vmem>>, vector<1x32x128xf32>
    %194 = vector.shape_cast %193 : vector<1x32x128xf32> to vector<32x128xf32>
    %195 = vector.shape_cast %192 : vector<32x128xf32> to vector<1x32x128xf32>
    tpu.vector_store %arg24[%c3_167, %c0_168, %c0_169], %195 {strides = array<i32>} : memref<4x32x128xf32, #tpu.memory_space<vmem>>, vector<1x32x128xf32>,
    %cst_170 = arith.constant 0.000000e+00 : f32
    %196 = vector.broadcast %cst_170 : f32 to vector<160x48xf32>
    %197 = arith.maximumf %159, %196 : vector<160x48xf32>
    %c0_171 = arith.constant 0 : index
    %c0_172 = arith.constant 0 : index
    %198 = vector.load %arg28[%c0_171, %c0_172] : memref<168x48xf32, #tpu.memory_space<vmem>>, vector<160x48xf32>
    tpu.vector_store %arg28[%c0_171, %c0_172], %197 {strides = array<i32>} : memref<168x48xf32, #tpu.memory_space<vmem>>, vector<160x48xf32>,
    %cst_173 = arith.constant 1.000000e+00 : f32
    %199 = vector.broadcast %cst_173 : f32 to vector<160x128xf32>
    %200 = arith.subf %199, %179 : vector<160x128xf32>
    %cst_174 = arith.constant 0.000000e+00 : f32
    %201 = vector.broadcast %cst_174 : f32 to vector<160x128xf32>
    %202 = arith.maximumf %200, %201 : vector<160x128xf32>
    %c0_175 = arith.constant 0 : index
    %c0_176 = arith.constant 0 : index
    %203 = vector.load %arg29[%c0_175, %c0_176] : memref<168x128xf32, #tpu.memory_space<vmem>>, vector<160x128xf32>
    tpu.vector_store %arg29[%c0_175, %c0_176], %202 {strides = array<i32>} : memref<168x128xf32, #tpu.memory_space<vmem>>, vector<160x128xf32>,
    %c0_177 = arith.constant 0 : index
    %c0_178 = arith.constant 0 : index
    %204 = vector.load %arg15[%c0_177, %c0_178] : memref<80x1xf32, #tpu.memory_space<vmem>>, vector<80x1xf32>
    %cst_179 = arith.constant 5.000000e-01 : f32
    %205 = vector.broadcast %cst_179 : f32 to vector<80x1xf32>
    %206 = arith.cmpf ogt, %204, %205 : vector<80x1xf32>
    %c0_180 = arith.constant 0 : index
    %c0_181 = arith.constant 0 : index
    %207 = tpu.strided_load %arg28[%c0_180, %c0_181] {strides = array<i32: 2, 1>} : memref<168x48xf32, #tpu.memory_space<vmem>>, vector<80x48xf32>
    %c1_182 = arith.constant 1 : index
    %c0_183 = arith.constant 0 : index
    %208 = tpu.strided_load %arg28[%c1_182, %c0_183] {strides = array<i32: 2, 1>} : memref<168x48xf32, #tpu.memory_space<vmem>>, vector<80x48xf32>
    %c2_184 = arith.constant 2 : index
    %c0_185 = arith.constant 0 : index
    %209 = tpu.strided_load %arg28[%c2_184, %c0_185] {strides = array<i32: 2, 1>} : memref<168x48xf32, #tpu.memory_space<vmem>>, vector<80x48xf32>
    %210 = arith.maximumf %207, %208 : vector<80x48xf32>
    %211 = arith.maximumf %210, %209 : vector<80x48xf32>
    %cst_186 = arith.constant 0.000000e+00 : f32
    %212 = vector.shape_cast %206 : vector<80x1xi1> to vector<80x1xi1>
    %213 = vector.broadcast %212 : vector<80x1xi1> to vector<80x48xi1>
    %214 = vector.broadcast %cst_186 : f32 to vector<80x48xf32>
    %215 = arith.select %213, %211, %214 : vector<80x48xi1>, vector<80x48xf32>
    %c8_187 = arith.constant 8 : index
    %c0_188 = arith.constant 0 : index
    %216 = vector.load %arg30[%c8_187, %c0_188] : memref<96x48xf32, #tpu.memory_space<vmem>>, vector<80x48xf32>
    tpu.vector_store %arg30[%c8_187, %c0_188], %215 {strides = array<i32>} : memref<96x48xf32, #tpu.memory_space<vmem>>, vector<80x48xf32>,
    %c0_189 = arith.constant 0 : index
    %c0_190 = arith.constant 0 : index
    %217 = tpu.strided_load %arg29[%c0_189, %c0_190] {strides = array<i32: 2, 1>} : memref<168x128xf32, #tpu.memory_space<vmem>>, vector<80x128xf32>
    %c1_191 = arith.constant 1 : index
    %c0_192 = arith.constant 0 : index
    %218 = tpu.strided_load %arg29[%c1_191, %c0_192] {strides = array<i32: 2, 1>} : memref<168x128xf32, #tpu.memory_space<vmem>>, vector<80x128xf32>
    %c2_193 = arith.constant 2 : index
    %c0_194 = arith.constant 0 : index
    %219 = tpu.strided_load %arg29[%c2_193, %c0_194] {strides = array<i32: 2, 1>} : memref<168x128xf32, #tpu.memory_space<vmem>>, vector<80x128xf32>
    %220 = arith.maximumf %217, %218 : vector<80x128xf32>
    %221 = arith.maximumf %220, %219 : vector<80x128xf32>
    %cst_195 = arith.constant 0.000000e+00 : f32
    %222 = vector.shape_cast %206 : vector<80x1xi1> to vector<80x1xi1>
    %223 = vector.broadcast %222 : vector<80x1xi1> to vector<80x128xi1>
    %224 = vector.broadcast %cst_195 : f32 to vector<80x128xf32>
    %225 = arith.select %223, %221, %224 : vector<80x128xi1>, vector<80x128xf32>
    %c8_196 = arith.constant 8 : index
    %c0_197 = arith.constant 0 : index
    %226 = vector.load %arg31[%c8_196, %c0_197] : memref<96x128xf32, #tpu.memory_space<vmem>>, vector<80x128xf32>
    tpu.vector_store %arg31[%c8_196, %c0_197], %225 {strides = array<i32>} : memref<96x128xf32, #tpu.memory_space<vmem>>, vector<80x128xf32>,
    %cst_198 = arith.constant 0.000000e+00 : f32
    %227 = vector.broadcast %cst_198 : f32 to vector<80x32xf32>
    %c7_199 = arith.constant 7 : index
    %c0_200 = arith.constant 0 : index
    %228 = vector.load %arg30[%c7_199, %c0_200] : memref<96x48xf32, #tpu.memory_space<vmem>>, vector<80x48xf32>
    %229 = arith.truncf %228 : vector<80x48xf32> to vector<80x48xbf16>
    %c0_201 = arith.constant 0 : index
    %c0_202 = arith.constant 0 : index
    %c0_203 = arith.constant 0 : index
    %230 = vector.load %arg17[%c0_201, %c0_202, %c0_203] : memref<3x48x32xbf16, #tpu.memory_space<vmem>>, vector<1x48x32xbf16>
    %231 = vector.shape_cast %230 : vector<1x48x32xbf16> to vector<48x32xbf16>
    %cst_204 = arith.constant dense<0.000000e+00> : vector<80x32xf32>
    %232 = tpu.matmul %229, %231, %cst_204 {dimension_numbers = #tpu.dot_dimension_numbers<[1], [0], [0], [1], [0, 0, 1, 1], [], []>} : vector<80x48xbf16>, vector<48x32xbf16>, vector<80x32xf32> -> vector<80x32xf32>
    %233 = arith.addf %227, %232 : vector<80x32xf32>
    %c7_205 = arith.constant 7 : index
    %c0_206 = arith.constant 0 : index
    %234 = vector.load %arg31[%c7_205, %c0_206] : memref<96x128xf32, #tpu.memory_space<vmem>>, vector<80x128xf32>
    %235 = arith.truncf %234 : vector<80x128xf32> to vector<80x128xbf16>
    %c0_207 = arith.constant 0 : index
    %c0_208 = arith.constant 0 : index
    %c0_209 = arith.constant 0 : index
    %236 = vector.load %arg18[%c0_207, %c0_208, %c0_209] : memref<3x128x32xbf16, #tpu.memory_space<vmem>>, vector<1x128x32xbf16>
    %237 = vector.shape_cast %236 : vector<1x128x32xbf16> to vector<128x32xbf16>
    %cst_210 = arith.constant dense<0.000000e+00> : vector<80x32xf32>
    %238 = tpu.matmul %235, %237, %cst_210 {dimension_numbers = #tpu.dot_dimension_numbers<[1], [0], [0], [1], [0, 0, 1, 1], [], []>} : vector<80x128xbf16>, vector<128x32xbf16>, vector<80x32xf32> -> vector<80x32xf32>
    %239 = arith.addf %233, %238 : vector<80x32xf32>
    %c8_211 = arith.constant 8 : index
    %c0_212 = arith.constant 0 : index
    %240 = vector.load %arg30[%c8_211, %c0_212] : memref<96x48xf32, #tpu.memory_space<vmem>>, vector<80x48xf32>
    %241 = arith.truncf %240 : vector<80x48xf32> to vector<80x48xbf16>
    %c1_213 = arith.constant 1 : index
    %c0_214 = arith.constant 0 : index
    %c0_215 = arith.constant 0 : index
    %242 = vector.load %arg17[%c1_213, %c0_214, %c0_215] : memref<3x48x32xbf16, #tpu.memory_space<vmem>>, vector<1x48x32xbf16>
    %243 = vector.shape_cast %242 : vector<1x48x32xbf16> to vector<48x32xbf16>
    %cst_216 = arith.constant dense<0.000000e+00> : vector<80x32xf32>
    %244 = tpu.matmul %241, %243, %cst_216 {dimension_numbers = #tpu.dot_dimension_numbers<[1], [0], [0], [1], [0, 0, 1, 1], [], []>} : vector<80x48xbf16>, vector<48x32xbf16>, vector<80x32xf32> -> vector<80x32xf32>
    %245 = arith.addf %239, %244 : vector<80x32xf32>
    %c8_217 = arith.constant 8 : index
    %c0_218 = arith.constant 0 : index
    %246 = vector.load %arg31[%c8_217, %c0_218] : memref<96x128xf32, #tpu.memory_space<vmem>>, vector<80x128xf32>
    %247 = arith.truncf %246 : vector<80x128xf32> to vector<80x128xbf16>
    %c1_219 = arith.constant 1 : index
    %c0_220 = arith.constant 0 : index
    %c0_221 = arith.constant 0 : index
    %248 = vector.load %arg18[%c1_219, %c0_220, %c0_221] : memref<3x128x32xbf16, #tpu.memory_space<vmem>>, vector<1x128x32xbf16>
    %249 = vector.shape_cast %248 : vector<1x128x32xbf16> to vector<128x32xbf16>
    %cst_222 = arith.constant dense<0.000000e+00> : vector<80x32xf32>
    %250 = tpu.matmul %247, %249, %cst_222 {dimension_numbers = #tpu.dot_dimension_numbers<[1], [0], [0], [1], [0, 0, 1, 1], [], []>} : vector<80x128xbf16>, vector<128x32xbf16>, vector<80x32xf32> -> vector<80x32xf32>
    %251 = arith.addf %245, %250 : vector<80x32xf32>
    %c9_223 = arith.constant 9 : index
    %c0_224 = arith.constant 0 : index
    %252 = vector.load %arg30[%c9_223, %c0_224] : memref<96x48xf32, #tpu.memory_space<vmem>>, vector<80x48xf32>
    %253 = arith.truncf %252 : vector<80x48xf32> to vector<80x48xbf16>
    %c2_225 = arith.constant 2 : index
    %c0_226 = arith.constant 0 : index
    %c0_227 = arith.constant 0 : index
    %254 = vector.load %arg17[%c2_225, %c0_226, %c0_227] : memref<3x48x32xbf16, #tpu.memory_space<vmem>>, vector<1x48x32xbf16>
    %255 = vector.shape_cast %254 : vector<1x48x32xbf16> to vector<48x32xbf16>
    %cst_228 = arith.constant dense<0.000000e+00> : vector<80x32xf32>
    %256 = tpu.matmul %253, %255, %cst_228 {dimension_numbers = #tpu.dot_dimension_numbers<[1], [0], [0], [1], [0, 0, 1, 1], [], []>} : vector<80x48xbf16>, vector<48x32xbf16>, vector<80x32xf32> -> vector<80x32xf32>
    %257 = arith.addf %251, %256 : vector<80x32xf32>
    %c9_229 = arith.constant 9 : index
    %c0_230 = arith.constant 0 : index
    %258 = vector.load %arg31[%c9_229, %c0_230] : memref<96x128xf32, #tpu.memory_space<vmem>>, vector<80x128xf32>
    %259 = arith.truncf %258 : vector<80x128xf32> to vector<80x128xbf16>
    %c2_231 = arith.constant 2 : index
    %c0_232 = arith.constant 0 : index
    %c0_233 = arith.constant 0 : index
    %260 = vector.load %arg18[%c2_231, %c0_232, %c0_233] : memref<3x128x32xbf16, #tpu.memory_space<vmem>>, vector<1x128x32xbf16>
    %261 = vector.shape_cast %260 : vector<1x128x32xbf16> to vector<128x32xbf16>
    %cst_234 = arith.constant dense<0.000000e+00> : vector<80x32xf32>
    %262 = tpu.matmul %259, %261, %cst_234 {dimension_numbers = #tpu.dot_dimension_numbers<[1], [0], [0], [1], [0, 0, 1, 1], [], []>} : vector<80x128xbf16>, vector<128x32xbf16>, vector<80x32xf32> -> vector<80x32xf32>
    %263 = arith.addf %257, %262 : vector<80x32xf32>
    %c0_235 = arith.constant 0 : index
    %c0_236 = arith.constant 0 : index
    %264 = vector.load %arg19[%c0_235, %c0_236] : memref<1x32xf32, #tpu.memory_space<vmem>>, vector<1x32xf32>
    %265 = vector.broadcast %264 : vector<1x32xf32> to vector<80x32xf32>
    %266 = arith.addf %263, %265 : vector<80x32xf32>
    %cst_237 = arith.constant 0.000000e+00 : f32
    %267 = vector.broadcast %cst_237 : f32 to vector<80x32xf32>
    %268 = arith.maximumf %266, %267 : vector<80x32xf32>
    %c0_238 = arith.constant 0 : index
    %c0_239 = arith.constant 0 : index
    %269 = vector.load %arg32[%c0_238, %c0_239] : memref<88x32xf32, #tpu.memory_space<vmem>>, vector<80x32xf32>
    tpu.vector_store %arg32[%c0_238, %c0_239], %268 {strides = array<i32>} : memref<88x32xf32, #tpu.memory_space<vmem>>, vector<80x32xf32>,
    %c0_240 = arith.constant 0 : index
    %c0_241 = arith.constant 0 : index
    %270 = vector.load %arg16[%c0_240, %c0_241] : memref<40x1xf32, #tpu.memory_space<vmem>>, vector<40x1xf32>
    %cst_242 = arith.constant 5.000000e-01 : f32
    %271 = vector.broadcast %cst_242 : f32 to vector<40x1xf32>
    %272 = arith.cmpf ogt, %270, %271 : vector<40x1xf32>
    %c0_243 = arith.constant 0 : index
    %c0_244 = arith.constant 0 : index
    %273 = tpu.strided_load %arg32[%c0_243, %c0_244] {strides = array<i32: 2, 1>} : memref<88x32xf32, #tpu.memory_space<vmem>>, vector<40x32xf32>
    %c1_245 = arith.constant 1 : index
    %c0_246 = arith.constant 0 : index
    %274 = tpu.strided_load %arg32[%c1_245, %c0_246] {strides = array<i32: 2, 1>} : memref<88x32xf32, #tpu.memory_space<vmem>>, vector<40x32xf32>
    %c2_247 = arith.constant 2 : index
    %c0_248 = arith.constant 0 : index
    %275 = tpu.strided_load %arg32[%c2_247, %c0_248] {strides = array<i32: 2, 1>} : memref<88x32xf32, #tpu.memory_space<vmem>>, vector<40x32xf32>
    %276 = arith.maximumf %273, %274 : vector<40x32xf32>
    %277 = arith.maximumf %276, %275 : vector<40x32xf32>
    %cst_249 = arith.constant 0.000000e+00 : f32
    %278 = vector.shape_cast %272 : vector<40x1xi1> to vector<40x1xi1>
    %279 = vector.broadcast %278 : vector<40x1xi1> to vector<40x32xi1>
    %280 = vector.broadcast %cst_249 : f32 to vector<40x32xf32>
    %281 = arith.select %279, %277, %280 : vector<40x32xi1>, vector<40x32xf32>
    %c8_250 = arith.constant 8 : index
    %c0_251 = arith.constant 0 : index
    %282 = vector.load %arg33[%c8_250, %c0_251] : memref<56x32xf32, #tpu.memory_space<vmem>>, vector<40x32xf32>
    tpu.vector_store %arg33[%c8_250, %c0_251], %281 {strides = array<i32>} : memref<56x32xf32, #tpu.memory_space<vmem>>, vector<40x32xf32>,
    %cst_252 = arith.constant 0.000000e+00 : f32
    %283 = vector.broadcast %cst_252 : f32 to vector<40x16xf32>
    %c7_253 = arith.constant 7 : index
    %c0_254 = arith.constant 0 : index
    %284 = vector.load %arg33[%c7_253, %c0_254] : memref<56x32xf32, #tpu.memory_space<vmem>>, vector<40x32xf32>
    %285 = arith.truncf %284 : vector<40x32xf32> to vector<40x32xbf16>
    %c0_255 = arith.constant 0 : index
    %c0_256 = arith.constant 0 : index
    %c0_257 = arith.constant 0 : index
    %286 = vector.load %arg20[%c0_255, %c0_256, %c0_257] : memref<3x32x16xbf16, #tpu.memory_space<vmem>>, vector<1x32x16xbf16>
    %287 = vector.shape_cast %286 : vector<1x32x16xbf16> to vector<32x16xbf16>
    %cst_258 = arith.constant dense<0.000000e+00> : vector<40x16xf32>
    %288 = tpu.matmul %285, %287, %cst_258 {dimension_numbers = #tpu.dot_dimension_numbers<[1], [0], [0], [1], [0, 0, 1, 1], [], []>} : vector<40x32xbf16>, vector<32x16xbf16>, vector<40x16xf32> -> vector<40x16xf32>
    %289 = arith.addf %283, %288 : vector<40x16xf32>
    %c8_259 = arith.constant 8 : index
    %c0_260 = arith.constant 0 : index
    %290 = vector.load %arg33[%c8_259, %c0_260] : memref<56x32xf32, #tpu.memory_space<vmem>>, vector<40x32xf32>
    %291 = arith.truncf %290 : vector<40x32xf32> to vector<40x32xbf16>
    %c1_261 = arith.constant 1 : index
    %c0_262 = arith.constant 0 : index
    %c0_263 = arith.constant 0 : index
    %292 = vector.load %arg20[%c1_261, %c0_262, %c0_263] : memref<3x32x16xbf16, #tpu.memory_space<vmem>>, vector<1x32x16xbf16>
    %293 = vector.shape_cast %292 : vector<1x32x16xbf16> to vector<32x16xbf16>
    %cst_264 = arith.constant dense<0.000000e+00> : vector<40x16xf32>
    %294 = tpu.matmul %291, %293, %cst_264 {dimension_numbers = #tpu.dot_dimension_numbers<[1], [0], [0], [1], [0, 0, 1, 1], [], []>} : vector<40x32xbf16>, vector<32x16xbf16>, vector<40x16xf32> -> vector<40x16xf32>
    %295 = arith.addf %289, %294 : vector<40x16xf32>
    %c9_265 = arith.constant 9 : index
    %c0_266 = arith.constant 0 : index
    %296 = vector.load %arg33[%c9_265, %c0_266] : memref<56x32xf32, #tpu.memory_space<vmem>>, vector<40x32xf32>
    %297 = arith.truncf %296 : vector<40x32xf32> to vector<40x32xbf16>
    %c2_267 = arith.constant 2 : index
    %c0_268 = arith.constant 0 : index
    %c0_269 = arith.constant 0 : index
    %298 = vector.load %arg20[%c2_267, %c0_268, %c0_269] : memref<3x32x16xbf16, #tpu.memory_space<vmem>>, vector<1x32x16xbf16>
    %299 = vector.shape_cast %298 : vector<1x32x16xbf16> to vector<32x16xbf16>
    %cst_270 = arith.constant dense<0.000000e+00> : vector<40x16xf32>
    %300 = tpu.matmul %297, %299, %cst_270 {dimension_numbers = #tpu.dot_dimension_numbers<[1], [0], [0], [1], [0, 0, 1, 1], [], []>} : vector<40x32xbf16>, vector<32x16xbf16>, vector<40x16xf32> -> vector<40x16xf32>
    %301 = arith.addf %295, %300 : vector<40x16xf32>
    %c0_271 = arith.constant 0 : index
    %c0_272 = arith.constant 0 : index
    %302 = vector.load %arg21[%c0_271, %c0_272] : memref<1x16xf32, #tpu.memory_space<vmem>>, vector<1x16xf32>
    %303 = vector.broadcast %302 : vector<1x16xf32> to vector<40x16xf32>
    %304 = arith.addf %301, %303 : vector<40x16xf32>
    %cst_273 = arith.constant 0.000000e+00 : f32
    %305 = vector.broadcast %cst_273 : f32 to vector<40x16xf32>
    %306 = arith.maximumf %304, %305 : vector<40x16xf32>
    %c0_274 = arith.constant 0 : index
    %c0_275 = arith.constant 0 : index
    %307 = vector.load %arg34[%c0_274, %c0_275] : memref<40x16xf32, #tpu.memory_space<vmem>>, vector<40x16xf32>
    tpu.vector_store %arg34[%c0_274, %c0_275], %306 {strides = array<i32>} : memref<40x16xf32, #tpu.memory_space<vmem>>, vector<40x16xf32>,
    %cst_276 = arith.constant 0.000000e+00 : f32
    %308 = vector.broadcast %cst_276 : f32 to vector<4x128xf32>
    %c0_277 = arith.constant 0 : index
    %c0_278 = arith.constant 0 : index
    %309 = vector.load %arg23[%c0_277, %c0_278] : memref<1x128xf32, #tpu.memory_space<vmem>>, vector<1x128xf32>
    %310 = vector.broadcast %309 : vector<1x128xf32> to vector<4x128xf32>
    %311 = arith.addf %308, %310 : vector<4x128xf32>
    %c0_279 = arith.constant 0 : index
    %c0_280 = arith.constant 0 : index
    %312 = tpu.strided_load %arg34[%c0_279, %c0_280] {strides = array<i32: 10, 1>} : memref<40x16xf32, #tpu.memory_space<vmem>>, vector<4x16xf32>
    %c1_281 = arith.constant 1 : index
    %c0_282 = arith.constant 0 : index
    %313 = tpu.strided_load %arg34[%c1_281, %c0_282] {strides = array<i32: 10, 1>} : memref<40x16xf32, #tpu.memory_space<vmem>>, vector<4x16xf32>
    %c2_283 = arith.constant 2 : index
    %c0_284 = arith.constant 0 : index
    %314 = tpu.strided_load %arg34[%c2_283, %c0_284] {strides = array<i32: 10, 1>} : memref<40x16xf32, #tpu.memory_space<vmem>>, vector<4x16xf32>
    %315 = arith.maximumf %312, %313 : vector<4x16xf32>
    %316 = arith.maximumf %315, %314 : vector<4x16xf32>
    %317 = arith.truncf %316 : vector<4x16xf32> to vector<4x16xbf16>
    %c0_285 = arith.constant 0 : index
    %c0_286 = arith.constant 0 : index
    %c0_287 = arith.constant 0 : index
    %318 = vector.load %arg22[%c0_285, %c0_286, %c0_287] : memref<3x16x128xbf16, #tpu.memory_space<vmem>>, vector<1x16x128xbf16>
    %319 = vector.shape_cast %318 : vector<1x16x128xbf16> to vector<16x128xbf16>
    %cst_288 = arith.constant dense<0.000000e+00> : vector<4x128xf32>
    %320 = tpu.matmul %317, %319, %cst_288 {dimension_numbers = #tpu.dot_dimension_numbers<[1], [0], [0], [1], [0, 0, 1, 1], [], []>} : vector<4x16xbf16>, vector<16x128xbf16>, vector<4x128xf32> -> vector<4x128xf32>
    %321 = arith.addf %311, %320 : vector<4x128xf32>
    %c2_289 = arith.constant 2 : index
    %c0_290 = arith.constant 0 : index
    %322 = tpu.strided_load %arg34[%c2_289, %c0_290] {strides = array<i32: 10, 1>} : memref<40x16xf32, #tpu.memory_space<vmem>>, vector<4x16xf32>
    %c3_291 = arith.constant 3 : index
    %c0_292 = arith.constant 0 : index
    %323 = tpu.strided_load %arg34[%c3_291, %c0_292] {strides = array<i32: 10, 1>} : memref<40x16xf32, #tpu.memory_space<vmem>>, vector<4x16xf32>
    %c4_293 = arith.constant 4 : index
    %c0_294 = arith.constant 0 : index
    %324 = tpu.strided_load %arg34[%c4_293, %c0_294] {strides = array<i32: 10, 1>} : memref<40x16xf32, #tpu.memory_space<vmem>>, vector<4x16xf32>
    %325 = arith.maximumf %322, %323 : vector<4x16xf32>
    %326 = arith.maximumf %325, %324 : vector<4x16xf32>
    %327 = arith.truncf %326 : vector<4x16xf32> to vector<4x16xbf16>
    %c1_295 = arith.constant 1 : index
    %c0_296 = arith.constant 0 : index
    %c0_297 = arith.constant 0 : index
    %328 = vector.load %arg22[%c1_295, %c0_296, %c0_297] : memref<3x16x128xbf16, #tpu.memory_space<vmem>>, vector<1x16x128xbf16>
    %329 = vector.shape_cast %328 : vector<1x16x128xbf16> to vector<16x128xbf16>
    %cst_298 = arith.constant dense<0.000000e+00> : vector<4x128xf32>
    %330 = tpu.matmul %327, %329, %cst_298 {dimension_numbers = #tpu.dot_dimension_numbers<[1], [0], [0], [1], [0, 0, 1, 1], [], []>} : vector<4x16xbf16>, vector<16x128xbf16>, vector<4x128xf32> -> vector<4x128xf32>
    %331 = arith.addf %321, %330 : vector<4x128xf32>
    %c4_299 = arith.constant 4 : index
    %c0_300 = arith.constant 0 : index
    %332 = tpu.strided_load %arg34[%c4_299, %c0_300] {strides = array<i32: 10, 1>} : memref<40x16xf32, #tpu.memory_space<vmem>>, vector<4x16xf32>
    %c5_301 = arith.constant 5 : index
    %c0_302 = arith.constant 0 : index
    %333 = tpu.strided_load %arg34[%c5_301, %c0_302] {strides = array<i32: 10, 1>} : memref<40x16xf32, #tpu.memory_space<vmem>>, vector<4x16xf32>
    %c6_303 = arith.constant 6 : index
    %c0_304 = arith.constant 0 : index
    %334 = tpu.strided_load %arg34[%c6_303, %c0_304] {strides = array<i32: 10, 1>} : memref<40x16xf32, #tpu.memory_space<vmem>>, vector<4x16xf32>
    %335 = arith.maximumf %332, %333 : vector<4x16xf32>
    %336 = arith.maximumf %335, %334 : vector<4x16xf32>
    %337 = arith.truncf %336 : vector<4x16xf32> to vector<4x16xbf16>
    %c2_305 = arith.constant 2 : index
    %c0_306 = arith.constant 0 : index
    %c0_307 = arith.constant 0 : index
    %338 = vector.load %arg22[%c2_305, %c0_306, %c0_307] : memref<3x16x128xbf16, #tpu.memory_space<vmem>>, vector<1x16x128xbf16>
    %339 = vector.shape_cast %338 : vector<1x16x128xbf16> to vector<16x128xbf16>
    %cst_308 = arith.constant dense<0.000000e+00> : vector<4x128xf32>
    %340 = tpu.matmul %337, %339, %cst_308 {dimension_numbers = #tpu.dot_dimension_numbers<[1], [0], [0], [1], [0, 0, 1, 1], [], []>} : vector<4x16xbf16>, vector<16x128xbf16>, vector<4x128xf32> -> vector<4x128xf32>
    %341 = arith.addf %331, %340 : vector<4x128xf32>
    %c0_309 = arith.constant 0 : index
    %c0_310 = arith.constant 0 : index
    %c0_311 = arith.constant 0 : index
    %342 = vector.load %arg25[%c0_309, %c0_310, %c0_311] : memref<1x4x128xf32, #tpu.memory_space<vmem>>, vector<1x4x128xf32>
    %343 = vector.shape_cast %342 : vector<1x4x128xf32> to vector<4x128xf32>
    %344 = vector.shape_cast %341 : vector<4x128xf32> to vector<1x4x128xf32>
    tpu.vector_store %arg25[%c0_309, %c0_310, %c0_311], %344 {strides = array<i32>} : memref<1x4x128xf32, #tpu.memory_space<vmem>>, vector<1x4x128xf32>,
    return
  }
  func.func @transform_0(%arg0: i32) -> (i32, i32) {
    %c0_i32 = arith.constant 0 : i32
    %c0_i32_0 = arith.constant 0 : i32
    return %arg0, %c0_i32 : i32, i32
  }
  func.func @transform_1(%arg0: i32) -> (i32, i32) {
    %c0_i32 = arith.constant 0 : i32
    %c0_i32_0 = arith.constant 0 : i32
    %c0_i32_1 = arith.constant 0 : i32
    return %c0_i32, %c0_i32_0 : i32, i32
  }
  func.func @transform_2(%arg0: i32) -> (i32, i32) {
    %c0_i32 = arith.constant 0 : i32
    %c0_i32_0 = arith.constant 0 : i32
    %c0_i32_1 = arith.constant 0 : i32
    return %c0_i32, %c0_i32_0 : i32, i32
  }
  func.func @transform_3(%arg0: i32) -> (i32, i32) {
    %c0_i32 = arith.constant 0 : i32
    %c0_i32_0 = arith.constant 0 : i32
    %c0_i32_1 = arith.constant 0 : i32
    return %c0_i32, %c0_i32_0 : i32, i32
  }
  func.func @transform_4(%arg0: i32) -> (i32, i32) {
    %c0_i32 = arith.constant 0 : i32
    %c0_i32_0 = arith.constant 0 : i32
    %c0_i32_1 = arith.constant 0 : i32
    return %c0_i32, %c0_i32_0 : i32, i32
  }
  func.func @transform_5(%arg0: i32) -> (i32, i32, i32) {
    %c0_i32 = arith.constant 0 : i32
    %c0_i32_0 = arith.constant 0 : i32
    %c0_i32_1 = arith.constant 0 : i32
    %c0_i32_2 = arith.constant 0 : i32
    return %c0_i32, %c0_i32_0, %c0_i32_1 : i32, i32, i32
  }
  func.func @transform_6(%arg0: i32) -> (i32, i32) {
    %c0_i32 = arith.constant 0 : i32
    %c0_i32_0 = arith.constant 0 : i32
    %c0_i32_1 = arith.constant 0 : i32
    return %c0_i32, %c0_i32_0 : i32, i32
  }
  func.func @transform_7(%arg0: i32) -> (i32, i32, i32) {
    %c0_i32 = arith.constant 0 : i32
    %c0_i32_0 = arith.constant 0 : i32
    %c0_i32_1 = arith.constant 0 : i32
    %c0_i32_2 = arith.constant 0 : i32
    return %c0_i32, %c0_i32_0, %c0_i32_1 : i32, i32, i32
  }
  func.func @transform_8(%arg0: i32) -> (i32, i32, i32) {
    %c0_i32 = arith.constant 0 : i32
    %c0_i32_0 = arith.constant 0 : i32
    %c0_i32_1 = arith.constant 0 : i32
    %c0_i32_2 = arith.constant 0 : i32
    return %c0_i32, %c0_i32_0, %c0_i32_1 : i32, i32, i32
  }
  func.func @transform_9(%arg0: i32) -> (i32, i32) {
    %c0_i32 = arith.constant 0 : i32
    %c0_i32_0 = arith.constant 0 : i32
    %c0_i32_1 = arith.constant 0 : i32
    return %c0_i32, %c0_i32_0 : i32, i32
  }
  func.func @transform_10(%arg0: i32) -> (i32, i32) {
    %c0_i32 = arith.constant 0 : i32
    %c0_i32_0 = arith.constant 0 : i32
    %c0_i32_1 = arith.constant 0 : i32
    return %c0_i32, %c0_i32_0 : i32, i32
  }
  func.func @transform_11(%arg0: i32) -> (i32, i32) {
    %c0_i32 = arith.constant 0 : i32
    %c0_i32_0 = arith.constant 0 : i32
    %c0_i32_1 = arith.constant 0 : i32
    return %c0_i32, %c0_i32_0 : i32, i32
  }
  func.func @transform_12(%arg0: i32) -> (i32, i32) {
    %c0_i32 = arith.constant 0 : i32
    %c0_i32_0 = arith.constant 0 : i32
    %c0_i32_1 = arith.constant 0 : i32
    return %c0_i32, %c0_i32_0 : i32, i32
  }
  func.func @transform_13(%arg0: i32) -> (i32, i32) {
    %c0_i32 = arith.constant 0 : i32
    %c0_i32_0 = arith.constant 0 : i32
    %c0_i32_1 = arith.constant 0 : i32
    return %c0_i32, %c0_i32_0 : i32, i32
  }
  func.func @transform_14(%arg0: i32) -> (i32, i32) {
    %c0_i32 = arith.constant 0 : i32
    %c0_i32_0 = arith.constant 0 : i32
    %c0_i32_1 = arith.constant 0 : i32
    return %c0_i32, %c0_i32_0 : i32, i32
  }
  func.func @transform_15(%arg0: i32) -> (i32, i32) {
    %c0_i32 = arith.constant 0 : i32
    %c0_i32_0 = arith.constant 0 : i32
    %c0_i32_1 = arith.constant 0 : i32
    return %c0_i32, %c0_i32_0 : i32, i32
  }
  func.func @transform_16(%arg0: i32) -> (i32, i32, i32) {
    %c0_i32 = arith.constant 0 : i32
    %c0_i32_0 = arith.constant 0 : i32
    %c0_i32_1 = arith.constant 0 : i32
    %c0_i32_2 = arith.constant 0 : i32
    return %c0_i32, %c0_i32_0, %c0_i32_1 : i32, i32, i32
  }
  func.func @transform_17(%arg0: i32) -> (i32, i32, i32) {
    %c0_i32 = arith.constant 0 : i32
    %c0_i32_0 = arith.constant 0 : i32
    %c0_i32_1 = arith.constant 0 : i32
    %c0_i32_2 = arith.constant 0 : i32
    return %c0_i32, %c0_i32_0, %c0_i32_1 : i32, i32, i32
  }
  func.func @transform_18(%arg0: i32) -> (i32, i32) {
    %c0_i32 = arith.constant 0 : i32
    %c0_i32_0 = arith.constant 0 : i32
    %c0_i32_1 = arith.constant 0 : i32
    return %c0_i32, %c0_i32_0 : i32, i32
  }
  func.func @transform_19(%arg0: i32) -> (i32, i32, i32) {
    %c0_i32 = arith.constant 0 : i32
    %c0_i32_0 = arith.constant 0 : i32
    %c0_i32_1 = arith.constant 0 : i32
    %c0_i32_2 = arith.constant 0 : i32
    return %c0_i32, %c0_i32_0, %c0_i32_1 : i32, i32, i32
  }
  func.func @transform_20(%arg0: i32) -> (i32, i32) {
    %c0_i32 = arith.constant 0 : i32
    %c0_i32_0 = arith.constant 0 : i32
    %c0_i32_1 = arith.constant 0 : i32
    return %c0_i32, %c0_i32_0 : i32, i32
  }
  func.func @transform_21(%arg0: i32) -> (i32, i32, i32) {
    %c0_i32 = arith.constant 0 : i32
    %c0_i32_0 = arith.constant 0 : i32
    %c0_i32_1 = arith.constant 0 : i32
    %c0_i32_2 = arith.constant 0 : i32
    return %c0_i32, %c0_i32_0, %c0_i32_1 : i32, i32, i32
  }
  func.func @transform_22(%arg0: i32) -> (i32, i32) {
    %c0_i32 = arith.constant 0 : i32
    %c0_i32_0 = arith.constant 0 : i32
    %c0_i32_1 = arith.constant 0 : i32
    return %c0_i32, %c0_i32_0 : i32, i32
  }
  func.func @transform_23(%arg0: i32) -> (i32, i32, i32) {
    %c0_i32 = arith.constant 0 : i32
    %c0_i32_0 = arith.constant 0 : i32
    %c0_i32_1 = arith.constant 0 : i32
    return %arg0, %c0_i32, %c0_i32_0 : i32, i32, i32
  }
  func.func @transform_24(%arg0: i32) -> (i32, i32, i32) {
    %c0_i32 = arith.constant 0 : i32
    %c0_i32_0 = arith.constant 0 : i32
    %c0_i32_1 = arith.constant 0 : i32
    return %arg0, %c0_i32, %c0_i32_0 : i32, i32, i32
  }
}

</mosaic_0001>

<llo_original>
// kernel: tile.13
$region0: #{tile.13}
  #allocation0 [shape = 's32[1]{0}', space=sflag, size = 0x4, scoped, tag = 'scoped memory for tile.13']
  %s0 = inlined_call_operand.vmem [shape: f32[40], index: 0, kind: input, shape index: {}]
  %s1 = inlined_call_operand.vmem [shape: f32[4,40], index: 1, kind: output, shape index: {}]
  // Predicated region
  $region2: #{tile.13} parent=0 // pred_check
    _
  $region3: #{tile.13} parent=0 // pred_check_branch
    %3 = sbr.rel (0) target = $region5
  $region4: #{tile.13} parent=0 // pred_region
    _
  $region5: #{tile.13} parent=0 // pred_fallthru
    _
  %v4 = vld [vmem:[%s0] ss:$0 sm:$0xff]
  %5 = vst [vmem:[%s1] sm:$0xf] %v4

// kernel: tile.1
$region0: #{tile.1}
  %s0 = inlined_call_operand.vmem [shape: f32[4,40], index: 0, kind: input, shape index: {}]
  %s1 = inlined_call_operand.vmem [shape: f32[160,1], index: 1, kind: output, shape index: {}]
  $region1: #{tile.1} parent=0
    #allocation0 [shape = 'u8[4096]{0}', space=vmem, size = 0x1000, scoped, tag = 'scoped mem for input reshape']
    %s3 = sshllo.u32 0, 4
    %v4 = vld [vmem:[%s0] sm:%s3]
    %5 = vst [vmem:[#allocation0] sm:%s3] %v4
    %v6 = vld [vmem:[#allocation0] sm:$0xf]
    %vm7 = vcmask 7168
    %8 = vst.msk [vmem:[%s1] ss:$40 sm:$0xf] %vm7, %v6
    %v9 = vld [vmem:[#allocation0] sm:$0xf]
    %10 = vrot.lane.b32.xlu0 %v9, 127
    %v11 = vpop.permute.xlu0 %10
    %vm12 = vcmask 7168
    %s13 = scalar_lea.vmem %s1, 1
    %14 = vst.msk [vmem:[%s13] ss:$40 sm:$0xf] %vm12, %v11
    %v15 = vld [vmem:[#allocation0] sm:$0xf]
    %16 = vrot.lane.b32.xlu0 %v15, 126
    %v17 = vpop.permute.xlu0 %16
    %vm18 = vcmask 7168
    %s19 = scalar_lea.vmem %s1, 2
    %20 = vst.msk [vmem:[%s19] ss:$40 sm:$0xf] %vm18, %v17
    %v21 = vld [vmem:[#allocation0] sm:$0xf]
    %22 = vrot.lane.b32.xlu0 %v21, 125
    %v23 = vpop.permute.xlu0 %22
    %vm24 = vcmask 7168
    %s25 = scalar_lea.vmem %s1, 3
    %26 = vst.msk [vmem:[%s25] ss:$40 sm:$0xf] %vm24, %v23
    %v27 = vld [vmem:[#allocation0] sm:$0xf]
    %28 = vrot.lane.b32.xlu0 %v27, 124
    %v29 = vpop.permute.xlu0 %28
    %vm30 = vcmask 7168
    %s31 = scalar_lea.vmem %s1, 4
    %32 = vst.msk [vmem:[%s31] ss:$40 sm:$0xf] %vm30, %v29
    %v33 = vld [vmem:[#allocation0] sm:$0xf]
    %34 = vrot.lane.b32.xlu0 %v33, 123
    %v35 = vpop.permute.xlu0 %34
    %vm36 = vcmask 7168
    %s37 = scalar_lea.vmem %s1, 5
    %38 = vst.msk [vmem:[%s37] ss:$40 sm:$0xf] %vm36, %v35
    %v39 = vld [vmem:[#allocation0] sm:$0xf]
    %40 = vrot.lane.b32.xlu0 %v39, 122
    %v41 = vpop.permute.xlu0 %40
    %vm42 = vcmask 7168
    %s43 = scalar_lea.vmem %s1, 6
    %44 = vst.msk [vmem:[%s43] ss:$40 sm:$0xf] %vm42, %v41
    %v45 = vld [vmem:[#allocation0] sm:$0xf]
    %46 = vrot.lane.b32.xlu0 %v45, 121
    %v47 = vpop.permute.xlu0 %46
    %vm48 = vcmask 7168
    %s49 = scalar_lea.vmem %s1, 7
    %50 = vst.msk [vmem:[%s49] ss:$40 sm:$0xf] %vm48, %v47
    %v51 = vld.sshfl [vmem:[#allocation0] sm:$0xff pattern:$0x22222103]
    %52 = vrot.lane.b32.xlu0 %v51, 120
    %v53 = vpop.permute.xlu0 %52
    %vm54 = vcmask 7168
    %s55 = scalar_lea.vmem %s1, 128
    %56 = vst.msk [vmem:[%s55] ss:$-120 sm:$0x3] %vm54, %v53
    %s57 = scalar_lea.vmem %s1, 4294967264
    %58 = vst.msk [vmem:[%s57] ss:$40 sm:$0xc] %vm54, %v53
    %v59 = vld.sshfl [vmem:[#allocation0] sm:$0xff pattern:$0x22222103]
    %60 = vrot.lane.b32.xlu0 %v59, 119
    %v61 = vpop.permute.xlu0 %60
    %vm62 = vcmask 7168
    %s63 = scalar_lea.vmem %s1, 129
    %64 = vst.msk [vmem:[%s63] ss:$-120 sm:$0x3] %vm62, %v61
    %s65 = scalar_lea.vmem %s1, 4294967265
    %66 = vst.msk [vmem:[%s65] ss:$40 sm:$0xc] %vm62, %v61
    %v67 = vld.sshfl [vmem:[#allocation0] sm:$0xff pattern:$0x22222103]
    %68 = vrot.lane.b32.xlu0 %v67, 118
    %v69 = vpop.permute.xlu0 %68
    %vm70 = vcmask 7168
    %s71 = scalar_lea.vmem %s1, 130
    %72 = vst.msk [vmem:[%s71] ss:$-120 sm:$0x3] %vm70, %v69
    %s73 = scalar_lea.vmem %s1, 4294967266
    %74 = vst.msk [vmem:[%s73] ss:$40 sm:$0xc] %vm70, %v69
    %v75 = vld.sshfl [vmem:[#allocation0] sm:$0xff pattern:$0x22222103]
    %76 = vrot.lane.b32.xlu0 %v75, 117
    %v77 = vpop.permute.xlu0 %76
    %vm78 = vcmask 7168
    %s79 = scalar_lea.vmem %s1, 131
    %80 = vst.msk [vmem:[%s79] ss:$-120 sm:$0x3] %vm78, %v77
    %s81 = scalar_lea.vmem %s1, 4294967267
    %82 = vst.msk [vmem:[%s81] ss:$40 sm:$0xc] %vm78, %v77
    %v83 = vld.sshfl [vmem:[#allocation0] sm:$0xff pattern:$0x22222103]
    %84 = vrot.lane.b32.xlu0 %v83, 116
    %v85 = vpop.permute.xlu0 %84
    %vm86 = vcmask 7168
    %s87 = scalar_lea.vmem %s1, 132
    %88 = vst.msk [vmem:[%s87] ss:$-120 sm:$0x3] %vm86, %v85
    %s89 = scalar_lea.vmem %s1, 4294967268
    %90 = vst.msk [vmem:[%s89] ss:$40 sm:$0xc] %vm86, %v85
    %v91 = vld.sshfl [vmem:[#allocation0] sm:$0xff pattern:$0x22222103]
    %92 = vrot.lane.b32.xlu0 %v91, 115
    %v93 = vpop.permute.xlu0 %92
    %vm94 = vcmask 7168
    %s95 = scalar_lea.vmem %s1, 133
    %96 = vst.msk [vmem:[%s95] ss:$-120 sm:$0x3] %vm94, %v93
    %s97 = scalar_lea.vmem %s1, 4294967269
    %98 = vst.msk [vmem:[%s97] ss:$40 sm:$0xc] %vm94, %v93
    %v99 = vld.sshfl [vmem:[#allocation0] sm:$0xff pattern:$0x22222103]
    %100 = vrot.lane.b32.xlu0 %v99, 114
    %v101 = vpop.permute.xlu0 %100
    %vm102 = vcmask 7168
    %s103 = scalar_lea.vmem %s1, 134
    %104 = vst.msk [vmem:[%s103] ss:$-120 sm:$0x3] %vm102, %v101
    %s105 = scalar_lea.vmem %s1, 4294967270
    %106 = vst.msk [vmem:[%s105] ss:$40 sm:$0xc] %vm102, %v101
    %v107 = vld.sshfl [vmem:[#allocation0] sm:$0xff pattern:$0x22222103]
    %108 = vrot.lane.b32.xlu0 %v107, 113
    %v109 = vpop.permute.xlu0 %108
    %vm110 = vcmask 7168
    %s111 = scalar_lea.vmem %s1, 135
    %112 = vst.msk [vmem:[%s111] ss:$-120 sm:$0x3] %vm110, %v109
    %s113 = scalar_lea.vmem %s1, 4294967271
    %114 = vst.msk [vmem:[%s113] ss:$40 sm:$0xc] %vm110, %v109
    %v115 = vld.sshfl [vmem:[#allocation0] sm:$0xff pattern:$0x11111032]
    %116 = vrot.lane.b32.xlu0 %v115, 112
    %v117 = vpop.permute.xlu0 %116
    %vm118 = vcmask 7168
    %s119 = scalar_lea.vmem %s1, 96
    %120 = vst.msk [vmem:[%s119] ss:$40 sm:$0x3] %vm118, %v117
    %s121 = scalar_lea.vmem %s1, 4294967232
    %122 = vst.msk [vmem:[%s121] ss:$40 sm:$0xc] %vm118, %v117
    %v123 = vld.sshfl [vmem:[#allocation0] sm:$0xff pattern:$0x11111032]
    %124 = vrot.lane.b32.xlu0 %v123, 111
    %v125 = vpop.permute.xlu0 %124
    %vm126 = vcmask 7168
    %s127 = scalar_lea.vmem %s1, 97
    %128 = vst.msk [vmem:[%s127] ss:$40 sm:$0x3] %vm126, %v125
    %s129 = scalar_lea.vmem %s1, 4294967233
    %130 = vst.msk [vmem:[%s129] ss:$40 sm:$0xc] %vm126, %v125
    %v131 = vld.sshfl [vmem:[#allocation0] sm:$0xff pattern:$0x11111032]
    %132 = vrot.lane.b32.xlu0 %v131, 110
    %v133 = vpop.permute.xlu0 %132
    %vm134 = vcmask 7168
    %s135 = scalar_lea.vmem %s1, 98
    %136 = vst.msk [vmem:[%s135] ss:$40 sm:$0x3] %vm134, %v133
    %s137 = scalar_lea.vmem %s1, 4294967234
    %138 = vst.msk [vmem:[%s137] ss:$40 sm:$0xc] %vm134, %v133
    %v139 = vld.sshfl [vmem:[#allocation0] sm:$0xff pattern:$0x11111032]
    %140 = vrot.lane.b32.xlu0 %v139, 109
    %v141 = vpop.permute.xlu0 %140
    %vm142 = vcmask 7168
    %s143 = scalar_lea.vmem %s1, 99
    %144 = vst.msk [vmem:[%s143] ss:$40 sm:$0x3] %vm142, %v141
    %s145 = scalar_lea.vmem %s1, 4294967235
    %146 = vst.msk [vmem:[%s145] ss:$40 sm:$0xc] %vm142, %v141
    %v147 = vld.sshfl [vmem:[#allocation0] sm:$0xff pattern:$0x11111032]
    %148 = vrot.lane.b32.xlu0 %v147, 108
    %v149 = vpop.permute.xlu0 %148
    %vm150 = vcmask 7168
    %s151 = scalar_lea.vmem %s1, 100
    %152 = vst.msk [vmem:[%s151] ss:$40 sm:$0x3] %vm150, %v149
    %s153 = scalar_lea.vmem %s1, 4294967236
    %154 = vst.msk [vmem:[%s153] ss:$40 sm:$0xc] %vm150, %v149
    %v155 = vld.sshfl [vmem:[#allocation0] sm:$0xff pattern:$0x11111032]
    %156 = vrot.lane.b32.xlu0 %v155, 107
    %v157 = vpop.permute.xlu0 %156
    %vm158 = vcmask 7168
    %s159 = scalar_lea.vmem %s1, 101
    %160 = vst.msk [vmem:[%s159] ss:$40 sm:$0x3] %vm158, %v157
    %s161 = scalar_lea.vmem %s1, 4294967237
    %162 = vst.msk [vmem:[%s161] ss:$40 sm:$0xc] %vm158, %v157
    %v163 = vld.sshfl [vmem:[#allocation0] sm:$0xff pattern:$0x11111032]
    %164 = vrot.lane.b32.xlu0 %v163, 106
    %v165 = vpop.permute.xlu0 %164
    %vm166 = vcmask 7168
    %s167 = scalar_lea.vmem %s1, 102
    %168 = vst.msk [vmem:[%s167] ss:$40 sm:$0x3] %vm166, %v165
    %s169 = scalar_lea.vmem %s1, 4294967238
    %170 = vst.msk [vmem:[%s169] ss:$40 sm:$0xc] %vm166, %v165
    %v171 = vld.sshfl [vmem:[#allocation0] sm:$0xff pattern:$0x11111032]
    %172 = vrot.lane.b32.xlu0 %v171, 105
    %v173 = vpop.permute.xlu0 %172
    %vm174 = vcmask 7168
    %s175 = scalar_lea.vmem %s1, 103
    %176 = vst.msk [vmem:[%s175] ss:$40 sm:$0x3] %vm174, %v173
    %s177 = scalar_lea.vmem %s1, 4294967239
    %178 = vst.msk [vmem:[%s177] ss:$40 sm:$0xc] %vm174, %v173
    %v179 = vld.sshfl [vmem:[#allocation0] sm:$0xff pattern:$0x321]
    %180 = vrot.lane.b32.xlu0 %v179, 104
    %v181 = vpop.permute.xlu0 %180
    %vm182 = vcmask 7168
    %s183 = scalar_lea.vmem %s1, 64
    %184 = vst.msk [vmem:[%s183] ss:$40 sm:$0x7] %vm182, %v181
    %s185 = scalar_lea.vmem %s1, 21
    %186 = vst.msk [vmem:[%s185] sm:$0x8] %vm182, %v181
    %v187 = vld.sshfl [vmem:[#allocation0] sm:$0xff pattern:$0x321]
    %188 = vrot.lane.b32.xlu0 %v187, 103
    %v189 = vpop.permute.xlu0 %188
    %vm190 = vcmask 7168
    %s191 = scalar_lea.vmem %s1, 65
    %192 = vst.msk [vmem:[%s191] ss:$40 sm:$0x7] %vm190, %v189
    %s193 = scalar_lea.vmem %s1, 22
    %194 = vst.msk [vmem:[%s193] sm:$0x8] %vm190, %v189
    %v195 = vld.sshfl [vmem:[#allocation0] sm:$0xff pattern:$0x321]
    %196 = vrot.lane.b32.xlu0 %v195, 102
    %v197 = vpop.permute.xlu0 %196
    %vm198 = vcmask 7168
    %s199 = scalar_lea.vmem %s1, 66
    %200 = vst.msk [vmem:[%s199] ss:$40 sm:$0x7] %vm198, %v197
    %s201 = scalar_lea.vmem %s1, 23
    %202 = vst.msk [vmem:[%s201] sm:$0x8] %vm198, %v197
    %v203 = vld.sshfl [vmem:[#allocation0] sm:$0xff pattern:$0x321]
    %204 = vrot.lane.b32.xlu0 %v203, 101
    %v205 = vpop.permute.xlu0 %204
    %vm206 = vcmask 7168
    %s207 = scalar_lea.vmem %s1, 67
    %208 = vst.msk [vmem:[%s207] ss:$40 sm:$0x7] %vm206, %v205
    %s209 = scalar_lea.vmem %s1, 24
    %210 = vst.msk [vmem:[%s209] sm:$0x8] %vm206, %v205
    %v211 = vld.sshfl [vmem:[#allocation0] sm:$0xff pattern:$0x321]
    %212 = vrot.lane.b32.xlu0 %v211, 100
    %v213 = vpop.permute.xlu0 %212
    %vm214 = vcmask 7168
    %s215 = scalar_lea.vmem %s1, 68
    %216 = vst.msk [vmem:[%s215] ss:$40 sm:$0x7] %vm214, %v213
    %s217 = scalar_lea.vmem %s1, 25
    %218 = vst.msk [vmem:[%s217] sm:$0x8] %vm214, %v213
    %v219 = vld.sshfl [vmem:[#allocation0] sm:$0xff pattern:$0x321]
    %220 = vrot.lane.b32.xlu0 %v219, 99
    %v221 = vpop.permute.xlu0 %220
    %vm222 = vcmask 7168
    %s223 = scalar_lea.vmem %s1, 69
    %224 = vst.msk [vmem:[%s223] ss:$40 sm:$0x7] %vm222, %v221
    %s225 = scalar_lea.vmem %s1, 26
    %226 = vst.msk [vmem:[%s225] sm:$0x8] %vm222, %v221
    %v227 = vld.sshfl [vmem:[#allocation0] sm:$0xff pattern:$0x321]
    %228 = vrot.lane.b32.xlu0 %v227, 98
    %v229 = vpop.permute.xlu0 %228
    %vm230 = vcmask 7168
    %s231 = scalar_lea.vmem %s1, 70
    %232 = vst.msk [vmem:[%s231] ss:$40 sm:$0x7] %vm230, %v229
    %s233 = scalar_lea.vmem %s1, 27
    %234 = vst.msk [vmem:[%s233] sm:$0x8] %vm230, %v229
    %v235 = vld.sshfl [vmem:[#allocation0] sm:$0xff pattern:$0x321]
    %236 = vrot.lane.b32.xlu0 %v235, 97
    %v237 = vpop.permute.xlu0 %236
    %vm238 = vcmask 7168
    %s239 = scalar_lea.vmem %s1, 71
    %240 = vst.msk [vmem:[%s239] ss:$40 sm:$0x7] %vm238, %v237
    %s241 = scalar_lea.vmem %s1, 28
    %242 = vst.msk [vmem:[%s241] sm:$0x8] %vm238, %v237
    %v243 = vld [vmem:[#allocation0] sm:$0xf]
    %244 = vrot.lane.b32.xlu0 %v243, 96
    %v245 = vpop.permute.xlu0 %244
    %vm246 = vcmask 7168
    %s247 = scalar_lea.vmem %s1, 32
    %248 = vst.msk [vmem:[%s247] ss:$40 sm:$0xf] %vm246, %v245
    %v249 = vld [vmem:[#allocation0] sm:$0xf]
    %250 = vrot.lane.b32.xlu0 %v249, 95
    %v251 = vpop.permute.xlu0 %250
    %vm252 = vcmask 7168
    %s253 = scalar_lea.vmem %s1, 33
    %254 = vst.msk [vmem:[%s253] ss:$40 sm:$0xf] %vm252, %v251
    %v255 = vld [vmem:[#allocation0] sm:$0xf]
    %256 = vrot.lane.b32.xlu0 %v255, 94
    %v257 = vpop.permute.xlu0 %256
    %vm258 = vcmask 7168
    %s259 = scalar_lea.vmem %s1, 34
    %260 = vst.msk [vmem:[%s259] ss:$40 sm:$0xf] %vm258, %v257
    %v261 = vld [vmem:[#allocation0] sm:$0xf]
    %262 = vrot.lane.b32.xlu0 %v261, 93
    %v263 = vpop.permute.xlu0 %262
    %vm264 = vcmask 7168
    %s265 = scalar_lea.vmem %s1, 35
    %266 = vst.msk [vmem:[%s265] ss:$40 sm:$0xf] %vm264, %v263
    %v267 = vld [vmem:[#allocation0] sm:$0xf]
    %268 = vrot.lane.b32.xlu0 %v267, 92
    %v269 = vpop.permute.xlu0 %268
    %vm270 = vcmask 7168
    %s271 = scalar_lea.vmem %s1, 36
    %272 = vst.msk [vmem:[%s271] ss:$40 sm:$0xf] %vm270, %v269
    %v273 = vld [vmem:[#allocation0] sm:$0xf]
    %274 = vrot.lane.b32.xlu0 %v273, 91
    %v275 = vpop.permute.xlu0 %274
    %vm276 = vcmask 7168
    %s277 = scalar_lea.vmem %s1, 37
    %278 = vst.msk [vmem:[%s277] ss:$40 sm:$0xf] %vm276, %v275
    %v279 = vld [vmem:[#allocation0] sm:$0xf]
    %280 = vrot.lane.b32.xlu0 %v279, 90
    %v281 = vpop.permute.xlu0 %280
    %vm282 = vcmask 7168
    %s283 = scalar_lea.vmem %s1, 38
    %284 = vst.msk [vmem:[%s283] ss:$40 sm:$0xf] %vm282, %v281
    %v285 = vld [vmem:[#allocation0] sm:$0xf]
    %286 = vrot.lane.b32.xlu0 %v285, 89
    %v287 = vpop.permute.xlu0 %286
    %vm288 = vcmask 7168
    %s289 = scalar_lea.vmem %s1, 39
    %290 = vst.msk [vmem:[%s289] ss:$40 sm:$0xf] %vm288, %v287

// kernel: forward_pallas.1
$region0: #{forward_pallas.1}
  #allocation0 [shape = 'u32[]', space=smem, size = 0x4, offset = 0x4, fixed_abs, tag = 'smem constant byte address 0x4 - core index']
  #allocation1 [shape = 'u32[144,128]{1,0:T(1,128)}', space=vmem, size = 0x12000, scoped, tag = 'internal scratch']
  #allocation2 [shape = 'f32[176,32]{1,0:T(8,128)}', space=vmem, size = 0x16000, scoped, tag = 'scratch operand']
  #allocation3 [shape = 'f32[176,120]{1,0:T(8,128)}', space=vmem, size = 0x16000, scoped, tag = 'scratch operand']
  #allocation4 [shape = 'f32[168,48]{1,0:T(8,128)}', space=vmem, size = 0x15000, scoped, tag = 'scratch operand']
  #allocation5 [shape = 'f32[168,128]{1,0:T(8,128)}', space=vmem, size = 0x15000, scoped, tag = 'scratch operand']
  #allocation6 [shape = 'f32[96,48]{1,0:T(8,128)}', space=vmem, size = 0xc000, scoped, tag = 'scratch operand']
  #allocation7 [shape = 'f32[96,128]{1,0:T(8,128)}', space=vmem, size = 0xc000, scoped, tag = 'scratch operand']
  #allocation8 [shape = 'f32[88,32]{1,0:T(8,128)}', space=vmem, size = 0xb000, scoped, tag = 'scratch operand']
  #allocation9 [shape = 'f32[56,32]{1,0:T(8,128)}', space=vmem, size = 0x7000, scoped, tag = 'scratch operand']
  #allocation10 [shape = 'f32[40,16]{1,0:T(8,128)}', space=vmem, size = 0x5000, scoped, tag = 'scratch operand']
  %s0 = inlined_call_operand.vmem [shape: bf16[256,32], index: 0, kind: input, shape index: {}]
  %s1 = inlined_call_operand.vmem [shape: bf16[32,128], index: 1, kind: input, shape index: {}]
  %s2 = inlined_call_operand.vmem [shape: f32[1,128], index: 2, kind: input, shape index: {}]
  %s3 = inlined_call_operand.vmem [shape: bf16[128,32], index: 3, kind: input, shape index: {}]
  %s4 = inlined_call_operand.vmem [shape: f32[1,32], index: 4, kind: input, shape index: {}]
  %s5 = inlined_call_operand.vmem [shape: bf16[8,32,120], index: 5, kind: input, shape index: {}]
  %s6 = inlined_call_operand.vmem [shape: f32[1,120], index: 6, kind: input, shape index: {}]
  %s7 = inlined_call_operand.vmem [shape: bf16[3,32,48], index: 7, kind: input, shape index: {}]
  %s8 = inlined_call_operand.vmem [shape: bf16[3,120,48], index: 8, kind: input, shape index: {}]
  %s9 = inlined_call_operand.vmem [shape: f32[1,48], index: 9, kind: input, shape index: {}]
  %s10 = inlined_call_operand.vmem [shape: f32[160,1], index: 10, kind: input, shape index: {}]
  %s11 = inlined_call_operand.vmem [shape: f32[160,1], index: 11, kind: input, shape index: {}]
  %s12 = inlined_call_operand.vmem [shape: bf16[48,128], index: 12, kind: input, shape index: {}]
  %s13 = inlined_call_operand.vmem [shape: f32[160,1], index: 13, kind: input, shape index: {}]
  %s14 = inlined_call_operand.vmem [shape: f32[80,1], index: 14, kind: input, shape index: {}]
  %s15 = inlined_call_operand.vmem [shape: f32[40,1], index: 15, kind: input, shape index: {}]
  %s16 = inlined_call_operand.vmem [shape: bf16[3,48,32], index: 16, kind: input, shape index: {}]
  %s17 = inlined_call_operand.vmem [shape: bf16[3,128,32], index: 17, kind: input, shape index: {}]
  %s18 = inlined_call_operand.vmem [shape: f32[1,32], index: 18, kind: input, shape index: {}]
  %s19 = inlined_call_operand.vmem [shape: bf16[3,32,16], index: 19, kind: input, shape index: {}]
  %s20 = inlined_call_operand.vmem [shape: f32[1,16], index: 20, kind: input, shape index: {}]
  %s21 = inlined_call_operand.vmem [shape: bf16[3,16,128], index: 21, kind: input, shape index: {}]
  %s22 = inlined_call_operand.vmem [shape: f32[1,128], index: 22, kind: input, shape index: {}]
  %s23 = inlined_call_operand.vmem [shape: f32[8,32,128], index: 23, kind: output, shape index: {0}]
  %s24 = inlined_call_operand.vmem [shape: f32[2,4,128], index: 24, kind: output, shape index: {1}]
  %25 = xla_tuple %s23, %s24
  %s26 = sld [smem:[#allocation0]]
  $region133: #{forward_pallas.1} parent=0
    _
  %s28 = ssub.s32 1, %s26
  %s29 = scalar_select 0, %s28, %s26
  loop: start=0, step=1, limit=4
  $region2: #{forward_pallas.1} parent=0 // loop_pre_header
    _
  $region3: #{forward_pallas.1} parent=0 // loop_header
    %s31 = sphi 0, %s35
    %p32 = scmp.ge.s32.totalorder %s31, 4
    %s41 = sphi 0, %s43
    %s44 = sphi 0, %s41
    %s45 = sphi 0, %s44
    %s61 = sphi 0, %s45
    %s65 = sphi 0, %s65
    %s67 = sphi 0, %s65
    %s68 = sphi 0, %s67
    %s82 = sphi 0, %s68
    %s86 = sphi 0, %s86
    %s88 = sphi 0, %s86
    %s89 = sphi 0, %s88
    %s103 = sphi 0, %s89
    %s107 = sphi 0, %s107
    %s109 = sphi 0, %s107
    %s110 = sphi 0, %s109
    %s124 = sphi 0, %s110
    %s128 = sphi 0, %s128
    %s130 = sphi 0, %s128
    %s131 = sphi 0, %s130
    %s145 = sphi 0, %s131
    %s149 = sphi 0, %s149
    %s151 = sphi 0, %s149
    %s152 = sphi 0, %s151
    %s166 = sphi 0, %s152
    %s170 = sphi 0, %s170
    %s172 = sphi 0, %s170
    %s173 = sphi 0, %s172
    %s187 = sphi 0, %s173
    %s191 = sphi 0, %s191
    %s193 = sphi 0, %s191
    %s194 = sphi 0, %s193
    %s208 = sphi 0, %s194
    %s212 = sphi 0, %s212
    %s214 = sphi 0, %s212
    %s215 = sphi 0, %s214
    %s229 = sphi 0, %s215
    %s233 = sphi 0, %s233
    %s235 = sphi 0, %s233
    %s236 = sphi 0, %s235
    %s250 = sphi 0, %s236
    %s254 = sphi 0, %s254
    %s256 = sphi 0, %s254
    %s257 = sphi 0, %s256
    %s271 = sphi 0, %s257
    %s275 = sphi 0, %s275
    %s277 = sphi 0, %s275
    %s278 = sphi 0, %s277
    %s292 = sphi 0, %s278
    %s296 = sphi 0, %s296
    %s298 = sphi 0, %s296
    %s299 = sphi 0, %s298
    %s313 = sphi 0, %s299
    %s317 = sphi 0, %s317
    %s319 = sphi 0, %s317
    %s320 = sphi 0, %s319
    %s334 = sphi 0, %s320
    %s338 = sphi 0, %s338
    %s340 = sphi 0, %s338
    %s341 = sphi 0, %s340
    %s355 = sphi 0, %s341
    %s359 = sphi 0, %s359
    %s361 = sphi 0, %s359
    %s362 = sphi 0, %s361
    %s376 = sphi 0, %s362
    %s380 = sphi 0, %s380
    %s382 = sphi 0, %s380
    %s383 = sphi 0, %s382
    %s397 = sphi 0, %s383
    %s401 = sphi 0, %s401
    %s403 = sphi 0, %s401
    %s404 = sphi 0, %s403
    %s418 = sphi 0, %s404
    %s422 = sphi 0, %s422
    %s424 = sphi 0, %s422
    %s425 = sphi 0, %s424
    %s439 = sphi 0, %s425
    %s443 = sphi 0, %s443
    %s445 = sphi 0, %s443
    %s446 = sphi 0, %s445
    %s460 = sphi 0, %s446
    %s464 = sphi 0, %s464
    %s466 = sphi 0, %s464
    %s467 = sphi 0, %s466
    %s481 = sphi 0, %s467
    %s485 = sphi 0, %s485
    %s487 = sphi 0, %s485
    %s488 = sphi 0, %s487
    %s502 = sphi 0, %s488
    %s506 = sphi 0, %s506
    %s508 = sphi 0, %s506
    %s509 = sphi 0, %s508
    %s523 = sphi 0, %s509
    %s529 = sphi 0, %s531
    %s532 = sphi 0, %s529
    %s533 = sphi 0, %s532
    %s549 = sphi 0, %s533
    %s555 = sphi 0, %s557
    %s558 = sphi 0, %s555
    %s559 = sphi 0, %s558
    %s575 = sphi 0, %s559
  $region4: #{forward_pallas.1} parent=0 // loop_header_branch
    %34 = sbr.rel (%p32) target = $region8
  $region5: #{forward_pallas.1} parent=0 // loop_body
    %s36 = ssub.s32 %s31, 1
    %s37 = ssub.s32 %s31, 2
    %s38 = sadd.s32 %s31, 1
    %s39 = ssub.s32 %s31, %s38
    %p40 = scmp.eq.s32.totalorder %s39, 0
    %s42 = sadd.s32 %s41, 1
    %s43 = scalar_select %p40, %s41, %s42
    %p46 = pneg %p40
    %p47 = scmp.eq.s32.totalorder %s31, 1
    %p48 = por %p46, %p47
    %p49 = scmp.ne.s32.totalorder %s41, %s44
    %p50 = scmp.eq.s32.totalorder %s31, 0
    %p51 = por %p49, %p50
    %p52 = scmp.ne.s32.totalorder %s41, %s44
    %p53 = scmp.eq.s32.totalorder %s36, 1
    %p54 = por %p52, %p53
    %p55 = scmp.ne.s32.totalorder %s44, %s45
    %p56 = scmp.eq.s32.totalorder %s36, 0
    %p57 = por %p55, %p56
    %p58 = scmp.ne.s32.totalorder %s44, %s45
    %p59 = scmp.eq.s32.totalorder %s37, 1
    %p60 = por %p58, %p59
    %p62 = scmp.ne.s32.totalorder %s45, %s61
    %p63 = scmp.eq.s32.totalorder %s37, 0
    %p64 = por %p62, %p63
    %s66 = sadd.s32 %s65, 1
    %p69 = scmp.eq.s32.totalorder %s31, 1
    %p70 = scmp.ne.s32.totalorder %s65, %s67
    %p71 = scmp.eq.s32.totalorder %s31, 0
    %p72 = por %p70, %p71
    %p73 = scmp.ne.s32.totalorder %s65, %s67
    %p74 = scmp.eq.s32.totalorder %s36, 1
    %p75 = por %p73, %p74
    %p76 = scmp.ne.s32.totalorder %s67, %s68
    %p77 = scmp.eq.s32.totalorder %s36, 0
    %p78 = por %p76, %p77
    %p79 = scmp.ne.s32.totalorder %s67, %s68
    %p80 = scmp.eq.s32.totalorder %s37, 1
    %p81 = por %p79, %p80
    %p83 = scmp.ne.s32.totalorder %s68, %s82
    %p84 = scmp.eq.s32.totalorder %s37, 0
    %p85 = por %p83, %p84
    %s87 = sadd.s32 %s86, 1
    %p90 = scmp.eq.s32.totalorder %s31, 1
    %p91 = scmp.ne.s32.totalorder %s86, %s88
    %p92 = scmp.eq.s32.totalorder %s31, 0
    %p93 = por %p91, %p92
    %p94 = scmp.ne.s32.totalorder %s86, %s88
    %p95 = scmp.eq.s32.totalorder %s36, 1
    %p96 = por %p94, %p95
    %p97 = scmp.ne.s32.totalorder %s88, %s89
    %p98 = scmp.eq.s32.totalorder %s36, 0
    %p99 = por %p97, %p98
    %p100 = scmp.ne.s32.totalorder %s88, %s89
    %p101 = scmp.eq.s32.totalorder %s37, 1
    %p102 = por %p100, %p101
    %p104 = scmp.ne.s32.totalorder %s89, %s103
    %p105 = scmp.eq.s32.totalorder %s37, 0
    %p106 = por %p104, %p105
    %s108 = sadd.s32 %s107, 1
    %p111 = scmp.eq.s32.totalorder %s31, 1
    %p112 = scmp.ne.s32.totalorder %s107, %s109
    %p113 = scmp.eq.s32.totalorder %s31, 0
    %p114 = por %p112, %p113
    %p115 = scmp.ne.s32.totalorder %s107, %s109
    %p116 = scmp.eq.s32.totalorder %s36, 1
    %p117 = por %p115, %p116
    %p118 = scmp.ne.s32.totalorder %s109, %s110
    %p119 = scmp.eq.s32.totalorder %s36, 0
    %p120 = por %p118, %p119
    %p121 = scmp.ne.s32.totalorder %s109, %s110
    %p122 = scmp.eq.s32.totalorder %s37, 1
    %p123 = por %p121, %p122
    %p125 = scmp.ne.s32.totalorder %s110, %s124
    %p126 = scmp.eq.s32.totalorder %s37, 0
    %p127 = por %p125, %p126
    %s129 = sadd.s32 %s128, 1
    %p132 = scmp.eq.s32.totalorder %s31, 1
    %p133 = scmp.ne.s32.totalorder %s128, %s130
    %p134 = scmp.eq.s32.totalorder %s31, 0
    %p135 = por %p133, %p134
    %p136 = scmp.ne.s32.totalorder %s128, %s130
    %p137 = scmp.eq.s32.totalorder %s36, 1
    %p138 = por %p136, %p137
    %p139 = scmp.ne.s32.totalorder %s130, %s131
    %p140 = scmp.eq.s32.totalorder %s36, 0
    %p141 = por %p139, %p140
    %p142 = scmp.ne.s32.totalorder %s130, %s131
    %p143 = scmp.eq.s32.totalorder %s37, 1
    %p144 = por %p142, %p143
    %p146 = scmp.ne.s32.totalorder %s131, %s145
    %p147 = scmp.eq.s32.totalorder %s37, 0
    %p148 = por %p146, %p147
    %s150 = sadd.s32 %s149, 1
    %p153 = scmp.eq.s32.totalorder %s31, 1
    %p154 = scmp.ne.s32.totalorder %s149, %s151
    %p155 = scmp.eq.s32.totalorder %s31, 0
    %p156 = por %p154, %p155
    %p157 = scmp.ne.s32.totalorder %s149, %s151
    %p158 = scmp.eq.s32.totalorder %s36, 1
    %p159 = por %p157, %p158
    %p160 = scmp.ne.s32.totalorder %s151, %s152
    %p161 = scmp.eq.s32.totalorder %s36, 0
    %p162 = por %p160, %p161
    %p163 = scmp.ne.s32.totalorder %s151, %s152
    %p164 = scmp.eq.s32.totalorder %s37, 1
    %p165 = por %p163, %p164
    %p167 = scmp.ne.s32.totalorder %s152, %s166
    %p168 = scmp.eq.s32.totalorder %s37, 0
    %p169 = por %p167, %p168
    %s171 = sadd.s32 %s170, 1
    %p174 = scmp.eq.s32.totalorder %s31, 1
    %p175 = scmp.ne.s32.totalorder %s170, %s172
    %p176 = scmp.eq.s32.totalorder %s31, 0
    %p177 = por %p175, %p176
    %p178 = scmp.ne.s32.totalorder %s170, %s172
    %p179 = scmp.eq.s32.totalorder %s36, 1
    %p180 = por %p178, %p179
    %p181 = scmp.ne.s32.totalorder %s172, %s173
    %p182 = scmp.eq.s32.totalorder %s36, 0
    %p183 = por %p181, %p182
    %p184 = scmp.ne.s32.totalorder %s172, %s173
    %p185 = scmp.eq.s32.totalorder %s37, 1
    %p186 = por %p184, %p185
    %p188 = scmp.ne.s32.totalorder %s173, %s187
    %p189 = scmp.eq.s32.totalorder %s37, 0
    %p190 = por %p188, %p189
    %s192 = sadd.s32 %s191, 1
    %p195 = scmp.eq.s32.totalorder %s31, 1
    %p196 = scmp.ne.s32.totalorder %s191, %s193
    %p197 = scmp.eq.s32.totalorder %s31, 0
    %p198 = por %p196, %p197
    %p199 = scmp.ne.s32.totalorder %s191, %s193
    %p200 = scmp.eq.s32.totalorder %s36, 1
    %p201 = por %p199, %p200
    %p202 = scmp.ne.s32.totalorder %s193, %s194
    %p203 = scmp.eq.s32.totalorder %s36, 0
    %p204 = por %p202, %p203
    %p205 = scmp.ne.s32.totalorder %s193, %s194
    %p206 = scmp.eq.s32.totalorder %s37, 1
    %p207 = por %p205, %p206
    %p209 = scmp.ne.s32.totalorder %s194, %s208
    %p210 = scmp.eq.s32.totalorder %s37, 0
    %p211 = por %p209, %p210
    %s213 = sadd.s32 %s212, 1
    %p216 = scmp.eq.s32.totalorder %s31, 1
    %p217 = scmp.ne.s32.totalorder %s212, %s214
    %p218 = scmp.eq.s32.totalorder %s31, 0
    %p219 = por %p217, %p218
    %p220 = scmp.ne.s32.totalorder %s212, %s214
    %p221 = scmp.eq.s32.totalorder %s36, 1
    %p222 = por %p220, %p221
    %p223 = scmp.ne.s32.totalorder %s214, %s215
    %p224 = scmp.eq.s32.totalorder %s36, 0
    %p225 = por %p223, %p224
    %p226 = scmp.ne.s32.totalorder %s214, %s215
    %p227 = scmp.eq.s32.totalorder %s37, 1
    %p228 = por %p226, %p227
    %p230 = scmp.ne.s32.totalorder %s215, %s229
    %p231 = scmp.eq.s32.totalorder %s37, 0
    %p232 = por %p230, %p231
    %s234 = sadd.s32 %s233, 1
    %p237 = scmp.eq.s32.totalorder %s31, 1
    %p238 = scmp.ne.s32.totalorder %s233, %s235
    %p239 = scmp.eq.s32.totalorder %s31, 0
    %p240 = por %p238, %p239
    %p241 = scmp.ne.s32.totalorder %s233, %s235
    %p242 = scmp.eq.s32.totalorder %s36, 1
    %p243 = por %p241, %p242
    %p244 = scmp.ne.s32.totalorder %s235, %s236
    %p245 = scmp.eq.s32.totalorder %s36, 0
    %p246 = por %p244, %p245
    %p247 = scmp.ne.s32.totalorder %s235, %s236
    %p248 = scmp.eq.s32.totalorder %s37, 1
    %p249 = por %p247, %p248
    %p251 = scmp.ne.s32.totalorder %s236, %s250
    %p252 = scmp.eq.s32.totalorder %s37, 0
    %p253 = por %p251, %p252
    %s255 = sadd.s32 %s254, 1
    %p258 = scmp.eq.s32.totalorder %s31, 1
    %p259 = scmp.ne.s32.totalorder %s254, %s256
    %p260 = scmp.eq.s32.totalorder %s31, 0
    %p261 = por %p259, %p260
    %p262 = scmp.ne.s32.totalorder %s254, %s256
    %p263 = scmp.eq.s32.totalorder %s36, 1
    %p264 = por %p262, %p263
    %p265 = scmp.ne.s32.totalorder %s256, %s257
    %p266 = scmp.eq.s32.totalorder %s36, 0
    %p267 = por %p265, %p266
    %p268 = scmp.ne.s32.totalorder %s256, %s257
    %p269 = scmp.eq.s32.totalorder %s37, 1
    %p270 = por %p268, %p269
    %p272 = scmp.ne.s32.totalorder %s257, %s271
    %p273 = scmp.eq.s32.totalorder %s37, 0
    %p274 = por %p272, %p273
    %s276 = sadd.s32 %s275, 1
    %p279 = scmp.eq.s32.totalorder %s31, 1
    %p280 = scmp.ne.s32.totalorder %s275, %s277
    %p281 = scmp.eq.s32.totalorder %s31, 0
    %p282 = por %p280, %p281
    %p283 = scmp.ne.s32.totalorder %s275, %s277
    %p284 = scmp.eq.s32.totalorder %s36, 1
    %p285 = por %p283, %p284
    %p286 = scmp.ne.s32.totalorder %s277, %s278
    %p287 = scmp.eq.s32.totalorder %s36, 0
    %p288 = por %p286, %p287
    %p289 = scmp.ne.s32.totalorder %s277, %s278
    %p290 = scmp.eq.s32.totalorder %s37, 1
    %p291 = por %p289, %p290
    %p293 = scmp.ne.s32.totalorder %s278, %s292
    %p294 = scmp.eq.s32.totalorder %s37, 0
    %p295 = por %p293, %p294
    %s297 = sadd.s32 %s296, 1
    %p300 = scmp.eq.s32.totalorder %s31, 1
    %p301 = scmp.ne.s32.totalorder %s296, %s298
    %p302 = scmp.eq.s32.totalorder %s31, 0
    %p303 = por %p301, %p302
    %p304 = scmp.ne.s32.totalorder %s296, %s298
    %p305 = scmp.eq.s32.totalorder %s36, 1
    %p306 = por %p304, %p305
    %p307 = scmp.ne.s32.totalorder %s298, %s299
    %p308 = scmp.eq.s32.totalorder %s36, 0
    %p309 = por %p307, %p308
    %p310 = scmp.ne.s32.totalorder %s298, %s299
    %p311 = scmp.eq.s32.totalorder %s37, 1
    %p312 = por %p310, %p311
    %p314 = scmp.ne.s32.totalorder %s299, %s313
    %p315 = scmp.eq.s32.totalorder %s37, 0
    %p316 = por %p314, %p315
    %s318 = sadd.s32 %s317, 1
    %p321 = scmp.eq.s32.totalorder %s31, 1
    %p322 = scmp.ne.s32.totalorder %s317, %s319
    %p323 = scmp.eq.s32.totalorder %s31, 0
    %p324 = por %p322, %p323
    %p325 = scmp.ne.s32.totalorder %s317, %s319
    %p326 = scmp.eq.s32.totalorder %s36, 1
    %p327 = por %p325, %p326
    %p328 = scmp.ne.s32.totalorder %s319, %s320
    %p329 = scmp.eq.s32.totalorder %s36, 0
    %p330 = por %p328, %p329
    %p331 = scmp.ne.s32.totalorder %s319, %s320
    %p332 = scmp.eq.s32.totalorder %s37, 1
    %p333 = por %p331, %p332
    %p335 = scmp.ne.s32.totalorder %s320, %s334
    %p336 = scmp.eq.s32.totalorder %s37, 0
    %p337 = por %p335, %p336
    %s339 = sadd.s32 %s338, 1
    %p342 = scmp.eq.s32.totalorder %s31, 1
    %p343 = scmp.ne.s32.totalorder %s338, %s340
    %p344 = scmp.eq.s32.totalorder %s31, 0
    %p345 = por %p343, %p344
    %p346 = scmp.ne.s32.totalorder %s338, %s340
    %p347 = scmp.eq.s32.totalorder %s36, 1
    %p348 = por %p346, %p347
    %p349 = scmp.ne.s32.totalorder %s340, %s341
    %p350 = scmp.eq.s32.totalorder %s36, 0
    %p351 = por %p349, %p350
    %p352 = scmp.ne.s32.totalorder %s340, %s341
    %p353 = scmp.eq.s32.totalorder %s37, 1
    %p354 = por %p352, %p353
    %p356 = scmp.ne.s32.totalorder %s341, %s355
    %p357 = scmp.eq.s32.totalorder %s37, 0
    %p358 = por %p356, %p357
    %s360 = sadd.s32 %s359, 1
    %p363 = scmp.eq.s32.totalorder %s31, 1
    %p364 = scmp.ne.s32.totalorder %s359, %s361
    %p365 = scmp.eq.s32.totalorder %s31, 0
    %p366 = por %p364, %p365
    %p367 = scmp.ne.s32.totalorder %s359, %s361
    %p368 = scmp.eq.s32.totalorder %s36, 1
    %p369 = por %p367, %p368
    %p370 = scmp.ne.s32.totalorder %s361, %s362
    %p371 = scmp.eq.s32.totalorder %s36, 0
    %p372 = por %p370, %p371
    %p373 = scmp.ne.s32.totalorder %s361, %s362
    %p374 = scmp.eq.s32.totalorder %s37, 1
    %p375 = por %p373, %p374
    %p377 = scmp.ne.s32.totalorder %s362, %s376
    %p378 = scmp.eq.s32.totalorder %s37, 0
    %p379 = por %p377, %p378
    %s381 = sadd.s32 %s380, 1
    %p384 = scmp.eq.s32.totalorder %s31, 1
    %p385 = scmp.ne.s32.totalorder %s380, %s382
    %p386 = scmp.eq.s32.totalorder %s31, 0
    %p387 = por %p385, %p386
    %p388 = scmp.ne.s32.totalorder %s380, %s382
    %p389 = scmp.eq.s32.totalorder %s36, 1
    %p390 = por %p388, %p389
    %p391 = scmp.ne.s32.totalorder %s382, %s383
    %p392 = scmp.eq.s32.totalorder %s36, 0
    %p393 = por %p391, %p392
    %p394 = scmp.ne.s32.totalorder %s382, %s383
    %p395 = scmp.eq.s32.totalorder %s37, 1
    %p396 = por %p394, %p395
    %p398 = scmp.ne.s32.totalorder %s383, %s397
    %p399 = scmp.eq.s32.totalorder %s37, 0
    %p400 = por %p398, %p399
    %s402 = sadd.s32 %s401, 1
    %p405 = scmp.eq.s32.totalorder %s31, 1
    %p406 = scmp.ne.s32.totalorder %s401, %s403
    %p407 = scmp.eq.s32.totalorder %s31, 0
    %p408 = por %p406, %p407
    %p409 = scmp.ne.s32.totalorder %s401, %s403
    %p410 = scmp.eq.s32.totalorder %s36, 1
    %p411 = por %p409, %p410
    %p412 = scmp.ne.s32.totalorder %s403, %s404
    %p413 = scmp.eq.s32.totalorder %s36, 0
    %p414 = por %p412, %p413
    %p415 = scmp.ne.s32.totalorder %s403, %s404
    %p416 = scmp.eq.s32.totalorder %s37, 1
    %p417 = por %p415, %p416
    %p419 = scmp.ne.s32.totalorder %s404, %s418
    %p420 = scmp.eq.s32.totalorder %s37, 0
    %p421 = por %p419, %p420
    %s423 = sadd.s32 %s422, 1
    %p426 = scmp.eq.s32.totalorder %s31, 1
    %p427 = scmp.ne.s32.totalorder %s422, %s424
    %p428 = scmp.eq.s32.totalorder %s31, 0
    %p429 = por %p427, %p428
    %p430 = scmp.ne.s32.totalorder %s422, %s424
    %p431 = scmp.eq.s32.totalorder %s36, 1
    %p432 = por %p430, %p431
    %p433 = scmp.ne.s32.totalorder %s424, %s425
    %p434 = scmp.eq.s32.totalorder %s36, 0
    %p435 = por %p433, %p434
    %p436 = scmp.ne.s32.totalorder %s424, %s425
    %p437 = scmp.eq.s32.totalorder %s37, 1
    %p438 = por %p436, %p437
    %p440 = scmp.ne.s32.totalorder %s425, %s439
    %p441 = scmp.eq.s32.totalorder %s37, 0
    %p442 = por %p440, %p441
    %s444 = sadd.s32 %s443, 1
    %p447 = scmp.eq.s32.totalorder %s31, 1
    %p448 = scmp.ne.s32.totalorder %s443, %s445
    %p449 = scmp.eq.s32.totalorder %s31, 0
    %p450 = por %p448, %p449
    %p451 = scmp.ne.s32.totalorder %s443, %s445
    %p452 = scmp.eq.s32.totalorder %s36, 1
    %p453 = por %p451, %p452
    %p454 = scmp.ne.s32.totalorder %s445, %s446
    %p455 = scmp.eq.s32.totalorder %s36, 0
    %p456 = por %p454, %p455
    %p457 = scmp.ne.s32.totalorder %s445, %s446
    %p458 = scmp.eq.s32.totalorder %s37, 1
    %p459 = por %p457, %p458
    %p461 = scmp.ne.s32.totalorder %s446, %s460
    %p462 = scmp.eq.s32.totalorder %s37, 0
    %p463 = por %p461, %p462
    %s465 = sadd.s32 %s464, 1
    %p468 = scmp.eq.s32.totalorder %s31, 1
    %p469 = scmp.ne.s32.totalorder %s464, %s466
    %p470 = scmp.eq.s32.totalorder %s31, 0
    %p471 = por %p469, %p470
    %p472 = scmp.ne.s32.totalorder %s464, %s466
    %p473 = scmp.eq.s32.totalorder %s36, 1
    %p474 = por %p472, %p473
    %p475 = scmp.ne.s32.totalorder %s466, %s467
    %p476 = scmp.eq.s32.totalorder %s36, 0
    %p477 = por %p475, %p476
    %p478 = scmp.ne.s32.totalorder %s466, %s467
    %p479 = scmp.eq.s32.totalorder %s37, 1
    %p480 = por %p478, %p479
    %p482 = scmp.ne.s32.totalorder %s467, %s481
    %p483 = scmp.eq.s32.totalorder %s37, 0
    %p484 = por %p482, %p483
    %s486 = sadd.s32 %s485, 1
    %p489 = scmp.eq.s32.totalorder %s31, 1
    %p490 = scmp.ne.s32.totalorder %s485, %s487
    %p491 = scmp.eq.s32.totalorder %s31, 0
    %p492 = por %p490, %p491
    %p493 = scmp.ne.s32.totalorder %s485, %s487
    %p494 = scmp.eq.s32.totalorder %s36, 1
    %p495 = por %p493, %p494
    %p496 = scmp.ne.s32.totalorder %s487, %s488
    %p497 = scmp.eq.s32.totalorder %s36, 0
    %p498 = por %p496, %p497
    %p499 = scmp.ne.s32.totalorder %s487, %s488
    %p500 = scmp.eq.s32.totalorder %s37, 1
    %p501 = por %p499, %p500
    %p503 = scmp.ne.s32.totalorder %s488, %s502
    %p504 = scmp.eq.s32.totalorder %s37, 0
    %p505 = por %p503, %p504
    %s507 = sadd.s32 %s506, 1
    %p510 = scmp.eq.s32.totalorder %s31, 1
    %p511 = scmp.ne.s32.totalorder %s506, %s508
    %p512 = scmp.eq.s32.totalorder %s31, 0
    %p513 = por %p511, %p512
    %p514 = scmp.ne.s32.totalorder %s506, %s508
    %p515 = scmp.eq.s32.totalorder %s36, 1
    %p516 = por %p514, %p515
    %p517 = scmp.ne.s32.totalorder %s508, %s509
    %p518 = scmp.eq.s32.totalorder %s36, 0
    %p519 = por %p517, %p518
    %p520 = scmp.ne.s32.totalorder %s508, %s509
    %p521 = scmp.eq.s32.totalorder %s37, 1
    %p522 = por %p520, %p521
    %p524 = scmp.ne.s32.totalorder %s509, %s523
    %p525 = scmp.eq.s32.totalorder %s37, 0
    %p526 = por %p524, %p525
    %s527 = ssub.s32 %s31, %s38
    %p528 = scmp.eq.s32.totalorder %s527, 0
    %s530 = sadd.s32 %s529, 1
    %s531 = scalar_select %p528, %s529, %s530
    %p534 = pneg %p528
    %p535 = scmp.eq.s32.totalorder %s31, 1
    %p536 = por %p534, %p535
    %p537 = scmp.ne.s32.totalorder %s529, %s532
    %p538 = scmp.eq.s32.totalorder %s31, 0
    %p539 = por %p537, %p538
    %p540 = scmp.ne.s32.totalorder %s529, %s532
    %p541 = scmp.eq.s32.totalorder %s36, 1
    %p542 = por %p540, %p541
    %p543 = scmp.ne.s32.totalorder %s532, %s533
    %p544 = scmp.eq.s32.totalorder %s36, 0
    %p545 = por %p543, %p544
    %p546 = scmp.ne.s32.totalorder %s532, %s533
    %p547 = scmp.eq.s32.totalorder %s37, 1
    %p548 = por %p546, %p547
    %p550 = scmp.ne.s32.totalorder %s533, %s549
    %p551 = scmp.eq.s32.totalorder %s37, 0
    %p552 = por %p550, %p551
    %s553 = ssub.s32 %s31, %s38
    %p554 = scmp.eq.s32.totalorder %s553, 0
    %s556 = sadd.s32 %s555, 1
    %s557 = scalar_select %p554, %s555, %s556
    %p560 = pneg %p554
    %p561 = scmp.eq.s32.totalorder %s31, 1
    %p562 = por %p560, %p561
    %p563 = scmp.ne.s32.totalorder %s555, %s558
    %p564 = scmp.eq.s32.totalorder %s31, 0
    %p565 = por %p563, %p564
    %p566 = scmp.ne.s32.totalorder %s555, %s558
    %p567 = scmp.eq.s32.totalorder %s36, 1
    %p568 = por %p566, %p567
    %p569 = scmp.ne.s32.totalorder %s558, %s559
    %p570 = scmp.eq.s32.totalorder %s36, 0
    %p571 = por %p569, %p570
    %p572 = scmp.ne.s32.totalorder %s558, %s559
    %p573 = scmp.eq.s32.totalorder %s37, 1
    %p574 = por %p572, %p573
    %p576 = scmp.ne.s32.totalorder %s559, %s575
    %p577 = scmp.eq.s32.totalorder %s37, 0
    %p578 = por %p576, %p577
    %p579 = scmp.le.s32.totalorder 1, %s31
    %p580 = scmp.lt.s32.totalorder %s31, 3
    %p581 = pnand %p579, %p580
    %p582 = pneg %p581
    // Predicated region
    $region9: #{forward_pallas.1} parent=5 // pred_check
      _
    $region10: #{forward_pallas.1} parent=5 // pred_check_branch
      %584 = sbr.rel (%p581) target = $region12
    $region11: #{forward_pallas.1} parent=5 // pred_region
      %s585 = ssub.s32 %s31, 1
      // Predicated region
      $region13: #{forward_pallas.1} parent=11 // pred_check
        %p586 = pneg %p78
      $region14: #{forward_pallas.1} parent=11 // pred_check_branch
        %588 = sbr.rel (%p586) target = $region16
      $region15: #{forward_pallas.1} parent=11 // pred_region
        _
      $region16: #{forward_pallas.1} parent=11 // pred_fallthru
        _
      // Predicated region
      $region17: #{forward_pallas.1} parent=11 // pred_check
        %p589 = pneg %p99
      $region18: #{forward_pallas.1} parent=11 // pred_check_branch
        %591 = sbr.rel (%p589) target = $region20
      $region19: #{forward_pallas.1} parent=11 // pred_region
        _
      $region20: #{forward_pallas.1} parent=11 // pred_fallthru
        _
      // Predicated region
      $region21: #{forward_pallas.1} parent=11 // pred_check
        %p592 = pneg %p120
      $region22: #{forward_pallas.1} parent=11 // pred_check_branch
        %594 = sbr.rel (%p592) target = $region24
      $region23: #{forward_pallas.1} parent=11 // pred_region
        _
      $region24: #{forward_pallas.1} parent=11 // pred_fallthru
        _
      // Predicated region
      $region25: #{forward_pallas.1} parent=11 // pred_check
        %p595 = pneg %p141
      $region26: #{forward_pallas.1} parent=11 // pred_check_branch
        %597 = sbr.rel (%p595) target = $region28
      $region27: #{forward_pallas.1} parent=11 // pred_region
        _
      $region28: #{forward_pallas.1} parent=11 // pred_fallthru
        _
      // Predicated region
      $region29: #{forward_pallas.1} parent=11 // pred_check
        %p598 = pneg %p162
      $region30: #{forward_pallas.1} parent=11 // pred_check_branch
        %600 = sbr.rel (%p598) target = $region32
      $region31: #{forward_pallas.1} parent=11 // pred_region
        _
      $region32: #{forward_pallas.1} parent=11 // pred_fallthru
        _
      // Predicated region
      $region33: #{forward_pallas.1} parent=11 // pred_check
        %p601 = pneg %p183
      $region34: #{forward_pallas.1} parent=11 // pred_check_branch
        %603 = sbr.rel (%p601) target = $region36
      $region35: #{forward_pallas.1} parent=11 // pred_region
        _
      $region36: #{forward_pallas.1} parent=11 // pred_fallthru
        _
      // Predicated region
      $region37: #{forward_pallas.1} parent=11 // pred_check
        %p604 = pneg %p204
      $region38: #{forward_pallas.1} parent=11 // pred_check_branch
        %606 = sbr.rel (%p604) target = $region40
      $region39: #{forward_pallas.1} parent=11 // pred_region
        _
      $region40: #{forward_pallas.1} parent=11 // pred_fallthru
        _
      // Predicated region
      $region41: #{forward_pallas.1} parent=11 // pred_check
        %p607 = pneg %p225
      $region42: #{forward_pallas.1} parent=11 // pred_check_branch
        %609 = sbr.rel (%p607) target = $region44
      $region43: #{forward_pallas.1} parent=11 // pred_region
        _
      $region44: #{forward_pallas.1} parent=11 // pred_fallthru
        _
      // Predicated region
      $region45: #{forward_pallas.1} parent=11 // pred_check
        %p610 = pneg %p246
      $region46: #{forward_pallas.1} parent=11 // pred_check_branch
        %612 = sbr.rel (%p610) target = $region48
      $region47: #{forward_pallas.1} parent=11 // pred_region
        _
      $region48: #{forward_pallas.1} parent=11 // pred_fallthru
        _
      // Predicated region
      $region49: #{forward_pallas.1} parent=11 // pred_check
        %p613 = pneg %p267
      $region50: #{forward_pallas.1} parent=11 // pred_check_branch
        %615 = sbr.rel (%p613) target = $region52
      $region51: #{forward_pallas.1} parent=11 // pred_region
        _
      $region52: #{forward_pallas.1} parent=11 // pred_fallthru
        _
      // Predicated region
      $region53: #{forward_pallas.1} parent=11 // pred_check
        %p616 = pneg %p288
      $region54: #{forward_pallas.1} parent=11 // pred_check_branch
        %618 = sbr.rel (%p616) target = $region56
      $region55: #{forward_pallas.1} parent=11 // pred_region
        _
      $region56: #{forward_pallas.1} parent=11 // pred_fallthru
        _
      // Predicated region
      $region57: #{forward_pallas.1} parent=11 // pred_check
        %p619 = pneg %p309
      $region58: #{forward_pallas.1} parent=11 // pred_check_branch
        %621 = sbr.rel (%p619) target = $region60
      $region59: #{forward_pallas.1} parent=11 // pred_region
        _
      $region60: #{forward_pallas.1} parent=11 // pred_fallthru
        _
      // Predicated region
      $region61: #{forward_pallas.1} parent=11 // pred_check
        %p622 = pneg %p330
      $region62: #{forward_pallas.1} parent=11 // pred_check_branch
        %624 = sbr.rel (%p622) target = $region64
      $region63: #{forward_pallas.1} parent=11 // pred_region
        _
      $region64: #{forward_pallas.1} parent=11 // pred_fallthru
        _
      // Predicated region
      $region65: #{forward_pallas.1} parent=11 // pred_check
        %p625 = pneg %p351
      $region66: #{forward_pallas.1} parent=11 // pred_check_branch
        %627 = sbr.rel (%p625) target = $region68
      $region67: #{forward_pallas.1} parent=11 // pred_region
        _
      $region68: #{forward_pallas.1} parent=11 // pred_fallthru
        _
      // Predicated region
      $region69: #{forward_pallas.1} parent=11 // pred_check
        %p628 = pneg %p372
      $region70: #{forward_pallas.1} parent=11 // pred_check_branch
        %630 = sbr.rel (%p628) target = $region72
      $region71: #{forward_pallas.1} parent=11 // pred_region
        _
      $region72: #{forward_pallas.1} parent=11 // pred_fallthru
        _
      // Predicated region
      $region73: #{forward_pallas.1} parent=11 // pred_check
        %p631 = pneg %p393
      $region74: #{forward_pallas.1} parent=11 // pred_check_branch
        %633 = sbr.rel (%p631) target = $region76
      $region75: #{forward_pallas.1} parent=11 // pred_region
        _
      $region76: #{forward_pallas.1} parent=11 // pred_fallthru
        _
      // Predicated region
      $region77: #{forward_pallas.1} parent=11 // pred_check
        %p634 = pneg %p414
      $region78: #{forward_pallas.1} parent=11 // pred_check_branch
        %636 = sbr.rel (%p634) target = $region80
      $region79: #{forward_pallas.1} parent=11 // pred_region
        _
      $region80: #{forward_pallas.1} parent=11 // pred_fallthru
        _
      // Predicated region
      $region81: #{forward_pallas.1} parent=11 // pred_check
        %p637 = pneg %p435
      $region82: #{forward_pallas.1} parent=11 // pred_check_branch
        %639 = sbr.rel (%p637) target = $region84
      $region83: #{forward_pallas.1} parent=11 // pred_region
        _
      $region84: #{forward_pallas.1} parent=11 // pred_fallthru
        _
      // Predicated region
      $region85: #{forward_pallas.1} parent=11 // pred_check
        %p640 = pneg %p456
      $region86: #{forward_pallas.1} parent=11 // pred_check_branch
        %642 = sbr.rel (%p640) target = $region88
      $region87: #{forward_pallas.1} parent=11 // pred_region
        _
      $region88: #{forward_pallas.1} parent=11 // pred_fallthru
        _
      // Predicated region
      $region89: #{forward_pallas.1} parent=11 // pred_check
        %p643 = pneg %p477
      $region90: #{forward_pallas.1} parent=11 // pred_check_branch
        %645 = sbr.rel (%p643) target = $region92
      $region91: #{forward_pallas.1} parent=11 // pred_region
        _
      $region92: #{forward_pallas.1} parent=11 // pred_fallthru
        _
      // Predicated region
      $region93: #{forward_pallas.1} parent=11 // pred_check
        %p646 = pneg %p498
      $region94: #{forward_pallas.1} parent=11 // pred_check_branch
        %648 = sbr.rel (%p646) target = $region96
      $region95: #{forward_pallas.1} parent=11 // pred_region
        _
      $region96: #{forward_pallas.1} parent=11 // pred_fallthru
        _
      // Predicated region
      $region97: #{forward_pallas.1} parent=11 // pred_check
        %p649 = pneg %p519
      $region98: #{forward_pallas.1} parent=11 // pred_check_branch
        %651 = sbr.rel (%p649) target = $region100
      $region99: #{forward_pallas.1} parent=11 // pred_region
        _
      $region100: #{forward_pallas.1} parent=11 // pred_fallthru
        _
    $region12: #{forward_pallas.1} parent=5 // pred_fallthru
      _
    %p652 = scmp.lt.s32.totalorder %s31, 2
    // Predicated region
    $region101: #{forward_pallas.1} parent=5 // pred_check
      %p653 = pneg %p652
    $region102: #{forward_pallas.1} parent=5 // pred_check_branch
      %655 = sbr.rel (%p653) target = $region104
    $region103: #{forward_pallas.1} parent=5 // pred_region
      // Predicated region
      $region105: #{forward_pallas.1} parent=103 // pred_check
        %p656 = pneg %p51
      $region106: #{forward_pallas.1} parent=103 // pred_check_branch
        %658 = sbr.rel (%p656) target = $region108
      $region107: #{forward_pallas.1} parent=103 // pred_region
        %s659 = smul.u32 16, %s31
        %p660 = scmp.lt.s32.totalorder %s659, 31
        %s661 = scalar_select %p660, %s659, 31
        %s662 = smul.addr %s661, 4
        %s663 = scalar_lea.vmem %s0, %s662
        %s664 = smul.u32 16, %s31
      $region108: #{forward_pallas.1} parent=103 // pred_fallthru
        _
    $region104: #{forward_pallas.1} parent=5 // pred_fallthru
      _
    %p665 = scmp.le.s32.totalorder 1, %s31
    %p666 = scmp.lt.s32.totalorder %s31, 3
    %p667 = pnand %p665, %p666
    %p668 = pneg %p667
    // Predicated region
    $region109: #{forward_pallas.1} parent=5 // pred_check
      _
    $region110: #{forward_pallas.1} parent=5 // pred_check_branch
      %670 = sbr.rel (%p667) target = $region112
    $region111: #{forward_pallas.1} parent=5 // pred_region
      %s671 = ssub.s32 %s31, 1
      %s672 = smul.u32 16, %s36
      %p673 = scmp.lt.s32.totalorder %s672, 31
      %s674 = scalar_select %p673, %s672, 31
      %s675 = smul.addr %s674, 4
      %s676 = scalar_lea.vmem %s0, %s675
      %p677 = pneg %p57
      %p678 = pneg %p54
      %p679 = pneg %p78
      %p680 = pneg %p75
      %p681 = pneg %p99
      %p682 = pneg %p96
      %p683 = pneg %p120
      %p684 = pneg %p117
      %p685 = pneg %p141
      %p686 = pneg %p138
      %p687 = pneg %p162
      %p688 = pneg %p159
      %p689 = pneg %p183
      %p690 = pneg %p180
      %p691 = pneg %p204
      %p692 = pneg %p201
      %p693 = pneg %p225
      %p694 = pneg %p222
      %p695 = pneg %p246
      %p696 = pneg %p243
      %p697 = pneg %p267
      %p698 = pneg %p264
      %p699 = pneg %p288
      %p700 = pneg %p285
      %p701 = pneg %p309
      %p702 = pneg %p306
      %p703 = pneg %p330
      %p704 = pneg %p327
      %p705 = pneg %p351
      %p706 = pneg %p348
      %p707 = pneg %p372
      %p708 = pneg %p369
      %p709 = pneg %p393
      %p710 = pneg %p390
      %p711 = pneg %p414
      %p712 = pneg %p411
      %p713 = pneg %p435
      %p714 = pneg %p432
      %p715 = pneg %p456
      %p716 = pneg %p453
      %p717 = pneg %p477
      %p718 = pneg %p474
      %p719 = pneg %p498
      %p720 = pneg %p495
      %p721 = pneg %p519
      %p722 = pneg %p516
      %p723 = pneg %p545
      %p724 = pneg %p542
      %s725 = smul.u32 4, %s36
      %p726 = scmp.lt.s32.totalorder %s725, 7
      %s727 = scalar_select %p726, %s725, 7
      %s728 = smul.addr %s727, 4
      %s729 = smul.addr %s728, 8
      %s730 = scalar_lea.vmem %s23, %s729
      %p731 = pneg %p571
      %p732 = pneg %p568
      %p733 = scmp.lt.s32.totalorder %s36, 1
      %s734 = scalar_select %p733, %s36, 1
      %s735 = smul.addr %s734, 4
      %s736 = scalar_lea.vmem %s24, %s735
      %s737 = smul.u32 16, %s36
      %p738 = scmp.lt.s32.totalorder %s737, 31
      %s739 = scalar_select %p738, %s737, 31
      %s740 = smul.addr %s739, 4
      %s741 = scalar_lea.vmem %s0, %s740
      %s742 = smul.u32 16, %s36
      %s743 = smul.u32 4, %s36
      %p744 = scmp.lt.s32.totalorder %s743, 7
      %s745 = scalar_select %p744, %s743, 7
      %s746 = smul.addr %s745, 4
      %s747 = smul.addr %s746, 8
      %s748 = scalar_lea.vmem %s23, %s747
      %s749 = smul.u32 4, %s36
      %p750 = scmp.lt.s32.totalorder %s36, 1
      %s751 = scalar_select %p750, %s36, 1
      %s752 = smul.addr %s751, 4
      %s753 = scalar_lea.vmem %s24, %s752
      %vm755 = vcmask 261120
      %756 = vst.msk [vmem:[#allocation2] sm:$0xff] %vm755, 0.0
      %757 = vst.msk [vmem:[#allocation2 + $0x28] sm:$0xff] %vm755, 0.0
      %758 = vst.msk [vmem:[#allocation2 + $0x50] sm:$0xff] %vm755, 0.0
      %759 = vst.msk [vmem:[#allocation2 + $0x78] sm:$0xff] %vm755, 0.0
      %760 = vst.msk [vmem:[#allocation2 + $0xa0] sm:$0xff] %vm755, 0.0
      %761 = vst.msk [vmem:[#allocation2 + $0xa8] sm:$0xff] %vm755, 0.0
      %vm762 = vcmask 982016
      %763 = vst.msk [vmem:[#allocation3] sm:$0xff] %vm762, 0.0
      %764 = vst.msk [vmem:[#allocation3 + $0xa8] sm:$0xff] %vm762, 0.0
      %vm765 = vcmask 392192
      %766 = vst.msk [vmem:[#allocation4 + $0xa0] sm:$0xff] %vm765, 0.0
      %767 = vst [vmem:[#allocation5 + $0xa0] sm:$0xff] 0.0
      %768 = vst.msk [vmem:[#allocation6] sm:$0xff] %vm765, 0.0
      %769 = vst.msk [vmem:[#allocation6 + $0x58] sm:$0xff] %vm765, 0.0
      %770 = vst [vmem:[#allocation7] sm:$0xff] 0.0
      %771 = vst [vmem:[#allocation7 + $0x58] sm:$0xff] 0.0
      %772 = vst.msk [vmem:[#allocation8 + $0x50] sm:$0xff] %vm755, 0.0
      %773 = vst.msk [vmem:[#allocation9] sm:$0xff] %vm755, 0.0
      %774 = vst.msk [vmem:[#allocation9 + $0x30] sm:$0xff] %vm755, 0.0
      %v775 = vld [vmem:[%s741] sm:$0xf]
      %v776 = vld [vmem:[%s741 + $0x4] sm:$0xf]
      %v777 = vld [vmem:[%s741 + $0x8] sm:$0xf]
      %v778 = vld [vmem:[%s741 + $0xc] sm:$0xf]
      %v779 = vld [vmem:[%s741 + $0x10] sm:$0xf]
      %v780 = vld [vmem:[%s741 + $0x14] sm:$0xf]
      %v781 = vld [vmem:[%s741 + $0x18] sm:$0xf]
      %v782 = vld [vmem:[%s741 + $0x1c] sm:$0xf]
      %v783 = vld [vmem:[%s741 + $0x20] sm:$0xf]
      %v784 = vld [vmem:[%s741 + $0x24] sm:$0xf]
      %v785 = vld [vmem:[%s741 + $0x28] sm:$0xf]
      %v786 = vld [vmem:[%s741 + $0x2c] sm:$0xf]
      %v787 = vld [vmem:[%s741 + $0x30] sm:$0xf]
      %v788 = vld [vmem:[%s741 + $0x34] sm:$0xf]
      %v789 = vld [vmem:[%s741 + $0x38] sm:$0xf]
      %v790 = vld [vmem:[%s741 + $0x3c] sm:$0xf]
      %v791 = vld [vmem:[%s1] sm:$0xf]
      %v792 = vld [vmem:[%s1 + $0x4] sm:$0xf]
      %v793 = vld [vmem:[%s1 + $0x8] sm:$0xf]
      %v794 = vld [vmem:[%s1 + $0xc] sm:$0xf]
      %v795 = vld [vmem:[%s2] sm:$0x1]
      %v797 = vlaneseq
      %v798 = vshrl.u32 %v797, 7
      %v799 = vsub.s32 0, %v798
      %v800 = vrot.slane %v795, %v799
      %v818 = vunpack.c.l.b16 %v775
      %v819 = vunpack.c.l.b16 %v776
      %v820 = vunpack.c.l.b16 %v777
      %v821 = vunpack.c.l.b16 %v778
      %v822 = vunpack.c.l.b16 %v779
      %v823 = vunpack.c.l.b16 %v780
      %v824 = vunpack.c.l.b16 %v781
      %v825 = vunpack.c.l.b16 %v782
      %v826 = vunpack.c.l.b16 %v783
      %v827 = vunpack.c.l.b16 %v784
      %v828 = vunpack.c.l.b16 %v785
      %v829 = vunpack.c.l.b16 %v786
      %v830 = vunpack.c.l.b16 %v787
      %v831 = vunpack.c.l.b16 %v788
      %v832 = vunpack.c.l.b16 %v789
      %v833 = vunpack.c.l.b16 %v790
      %v834 = vpack.c.b16 %v819, %v818
      %v835 = vpack.c.b16 %v821, %v820
      %v836 = vpack.c.b16 %v823, %v822
      %v837 = vpack.c.b16 %v825, %v824
      %v838 = vpack.c.b16 %v827, %v826
      %v839 = vpack.c.b16 %v829, %v828
      %v840 = vpack.c.b16 %v831, %v830
      %v841 = vpack.c.b16 %v833, %v832
      %v846 = vunpack.c.l.b16 %v791
      %v847 = vunpack.c.l.b16 %v792
      %v848 = vunpack.c.l.b16 %v793
      %v849 = vunpack.c.l.b16 %v794
      %v850 = vpack.c.b16 %v847, %v846
      %v851 = vpack.c.b16 %v849, %v848
      %v855 = vsel %vm755, %v834, 0
      %v858 = vsel %vm755, %v835, 0
      %v861 = vsel %vm755, %v836, 0
      %v864 = vsel %vm755, %v837, 0
      %v867 = vsel %vm755, %v838, 0
      %v870 = vsel %vm755, %v839, 0
      %v873 = vsel %vm755, %v840, 0
      %v876 = vsel %vm755, %v841, 0
      %878 = vmatprep.subr.bf16.mxu0 0
      %879 = vmatpush1.bf16.msra.mxu0 %v850
      %880 = vmatprep.subr.bf16.mxu0 0
      %881 = vmatpush1.bf16.msra.mxu0 %v851
      %882 = vmatprep.subr.bf16.mxu0 0
      %883 = vmatpush1.bf16.msra.mxu0 0
      %884 = vmatprep.subr.bf16.mxu0 0
      %885 = vmatpush1.bf16.msra.mxu0 0
      %886 = vmatprep.subr.bf16.mxu0 0
      %887 = vmatpush1.bf16.msra.mxu0 0
      %888 = vmatprep.subr.bf16.mxu0 0
      %889 = vmatpush1.bf16.msra.mxu0 0
      %890 = vmatprep.subr.bf16.mxu0 0
      %891 = vmatpush1.bf16.msra.mxu0 0
      %892 = vmatprep.subr.bf16.mxu0 0
      %893 = vmatpush1.bf16.msra.mxu0 0
      %894 = vmatprep.subr.bf16.mxu0 0
      %895 = vmatpush1.bf16.msra.mxu0 0
      %896 = vmatprep.subr.bf16.mxu0 0
      %897 = vmatpush1.bf16.msra.mxu0 0
      %898 = vmatprep.subr.bf16.mxu0 0
      %899 = vmatpush1.bf16.msra.mxu0 0
      %900 = vmatprep.subr.bf16.mxu0 0
      %901 = vmatpush1.bf16.msra.mxu0 0
      %902 = vmatprep.subr.bf16.mxu0 0
      %903 = vmatpush1.bf16.msra.mxu0 0
      %904 = vmatprep.subr.bf16.mxu0 0
      %905 = vmatpush1.bf16.msra.mxu0 0
      %906 = vmatprep.subr.bf16.mxu0 0
      %907 = vmatpush1.bf16.msra.mxu0 0
      %908 = vmatprep.subr.bf16.mxu0 0
      %909 = vmatpush1.bf16.msra.mxu0 0
      %910 = vmatprep.mubr.bf16.mxu0 0
      %911 = vmatmul.mubr.bf16.gmra.mrb[0].mxu0 %v855
      %v912 = vpop.f32.mrb[0].mxu0
      %v913 = vadd.f32 %v800, %v912
      %v914 = vpop.f32.mrb[0].mxu0
      %v915 = vpop.f32.mrb[0].mxu0
      %v916 = vadd.f32 %v800, %v915
      %v917 = vpop.f32.mrb[0].mxu0
      %918 = vmatprep.mubr.bf16.mxu0 0
      %919 = vmatmul.mubr.bf16.gmra.mrb[0].mxu0 %v858
      %v920 = vpop.f32.mrb[0].mxu0
      %v921 = vadd.f32 %v800, %v920
      %v922 = vpop.f32.mrb[0].mxu0
      %v923 = vpop.f32.mrb[0].mxu0
      %v924 = vadd.f32 %v800, %v923
      %v925 = vpop.f32.mrb[0].mxu0
      %926 = vmatprep.mubr.bf16.mxu0 0
      %927 = vmatmul.mubr.bf16.gmra.mrb[0].mxu0 %v861
      %v928 = vpop.f32.mrb[0].mxu0
      %v929 = vadd.f32 %v800, %v928
      %v930 = vpop.f32.mrb[0].mxu0
      %v931 = vpop.f32.mrb[0].mxu0
      %v932 = vadd.f32 %v800, %v931
      %v933 = vpop.f32.mrb[0].mxu0
      %934 = vmatprep.mubr.bf16.mxu0 0
      %935 = vmatmul.mubr.bf16.gmra.mrb[0].mxu0 %v864
      %v936 = vpop.f32.mrb[0].mxu0
      %v937 = vadd.f32 %v800, %v936
      %v938 = vpop.f32.mrb[0].mxu0
      %v939 = vpop.f32.mrb[0].mxu0
      %v940 = vadd.f32 %v800, %v939
      %v941 = vpop.f32.mrb[0].mxu0
      %942 = vmatprep.mubr.bf16.mxu0 0
      %943 = vmatmul.mubr.bf16.gmra.mrb[0].mxu0 %v867
      %v944 = vpop.f32.mrb[0].mxu0
      %v945 = vadd.f32 %v800, %v944
      %v946 = vpop.f32.mrb[0].mxu0
      %v947 = vpop.f32.mrb[0].mxu0
      %v948 = vadd.f32 %v800, %v947
      %v949 = vpop.f32.mrb[0].mxu0
      %950 = vmatprep.mubr.bf16.mxu0 0
      %951 = vmatmul.mubr.bf16.gmra.mrb[0].mxu0 %v870
      %v952 = vpop.f32.mrb[0].mxu0
      %v953 = vadd.f32 %v800, %v952
      %v954 = vpop.f32.mrb[0].mxu0
      %v955 = vpop.f32.mrb[0].mxu0
      %v956 = vadd.f32 %v800, %v955
      %v957 = vpop.f32.mrb[0].mxu0
      %958 = vmatprep.mubr.bf16.mxu0 0
      %959 = vmatmul.mubr.bf16.gmra.mrb[0].mxu0 %v873
      %v960 = vpop.f32.mrb[0].mxu0
      %v961 = vadd.f32 %v800, %v960
      %v962 = vpop.f32.mrb[0].mxu0
      %v963 = vpop.f32.mrb[0].mxu0
      %v964 = vadd.f32 %v800, %v963
      %v965 = vpop.f32.mrb[0].mxu0
      %966 = vmatprep.mubr.bf16.mxu0 0
      %967 = vmatmul.mubr.bf16.gmra.mrb[0].mxu0 %v876
      %v968 = vpop.f32.mrb[0].mxu0
      %v969 = vadd.f32 %v800, %v968
      %v970 = vpop.f32.mrb[0].mxu0
      %v971 = vpop.f32.mrb[0].mxu0
      %v972 = vadd.f32 %v800, %v971
      %v973 = vpop.f32.mrb[0].mxu0
      %974 = vdwg.mxu0
      %v975 = vmax.f32 %v913, 0.0
      %v976 = vmax.f32 %v916, 0.0
      %v977 = vmax.f32 %v921, 0.0
      %v978 = vmax.f32 %v924, 0.0
      %v979 = vmax.f32 %v929, 0.0
      %v980 = vmax.f32 %v932, 0.0
      %v981 = vmax.f32 %v937, 0.0
      %v982 = vmax.f32 %v940, 0.0
      %v983 = vmax.f32 %v945, 0.0
      %v984 = vmax.f32 %v948, 0.0
      %v985 = vmax.f32 %v953, 0.0
      %v986 = vmax.f32 %v956, 0.0
      %v987 = vmax.f32 %v961, 0.0
      %v988 = vmax.f32 %v964, 0.0
      %v989 = vmax.f32 %v969, 0.0
      %v990 = vmax.f32 %v972, 0.0
      %v991 = vpack.c.bf16 %v976, %v975
      %v992 = vpack.c.bf16 %v978, %v977
      %v993 = vpack.c.bf16 %v980, %v979
      %v994 = vpack.c.bf16 %v982, %v981
      %v995 = vpack.c.bf16 %v984, %v983
      %v996 = vpack.c.bf16 %v986, %v985
      %v997 = vpack.c.bf16 %v988, %v987
      %v998 = vpack.c.bf16 %v990, %v989
      %v999 = vld [vmem:[%s3] sm:$0xf]
      %v1000 = vld [vmem:[%s3 + $0x4] sm:$0xf]
      %v1001 = vld [vmem:[%s3 + $0x8] sm:$0xf]
      %v1002 = vld [vmem:[%s3 + $0xc] sm:$0xf]
      %v1003 = vld [vmem:[%s3 + $0x10] sm:$0xf]
      %v1004 = vld [vmem:[%s3 + $0x14] sm:$0xf]
      %v1005 = vld [vmem:[%s3 + $0x18] sm:$0xf]
      %v1006 = vld [vmem:[%s3 + $0x1c] sm:$0xf]
      %v1007 = vld [vmem:[%s3 + $0x20] sm:$0xf]
      %v1008 = vld [vmem:[%s3 + $0x24] sm:$0xf]
      %v1009 = vld [vmem:[%s3 + $0x28] sm:$0xf]
      %v1010 = vld [vmem:[%s3 + $0x2c] sm:$0xf]
      %v1011 = vld [vmem:[%s3 + $0x30] sm:$0xf]
      %v1012 = vld [vmem:[%s3 + $0x34] sm:$0xf]
      %v1013 = vld [vmem:[%s3 + $0x38] sm:$0xf]
      %v1014 = vld [vmem:[%s3 + $0x3c] sm:$0xf]
      %v1015 = vld [vmem:[%s4] sm:$0x1]
      %v1017 = vlaneseq
      %v1018 = vshrl.u32 %v1017, 7
      %v1019 = vsub.s32 0, %v1018
      %v1020 = vrot.slane %v1015, %v1019
      %v1038 = vunpack.c.l.b16 %v999
      %v1039 = vunpack.c.l.b16 %v1000
      %v1040 = vunpack.c.l.b16 %v1001
      %v1041 = vunpack.c.l.b16 %v1002
      %v1042 = vunpack.c.l.b16 %v1003
      %v1043 = vunpack.c.l.b16 %v1004
      %v1044 = vunpack.c.l.b16 %v1005
      %v1045 = vunpack.c.l.b16 %v1006
      %v1046 = vunpack.c.l.b16 %v1007
      %v1047 = vunpack.c.l.b16 %v1008
      %v1048 = vunpack.c.l.b16 %v1009
      %v1049 = vunpack.c.l.b16 %v1010
      %v1050 = vunpack.c.l.b16 %v1011
      %v1051 = vunpack.c.l.b16 %v1012
      %v1052 = vunpack.c.l.b16 %v1013
      %v1053 = vunpack.c.l.b16 %v1014
      %v1054 = vpack.c.b16 %v1039, %v1038
      %v1055 = vpack.c.b16 %v1041, %v1040
      %v1056 = vpack.c.b16 %v1043, %v1042
      %v1057 = vpack.c.b16 %v1045, %v1044
      %v1058 = vpack.c.b16 %v1047, %v1046
      %v1059 = vpack.c.b16 %v1049, %v1048
      %v1060 = vpack.c.b16 %v1051, %v1050
      %v1061 = vpack.c.b16 %v1053, %v1052
      %1070 = vmatprep.subr.bf16.mxu0 0
      %1071 = vmatpush1.bf16.msra.mxu0 %v1054
      %1072 = vmatprep.subr.bf16.mxu0 0
      %1073 = vmatpush1.bf16.msra.mxu0 %v1055
      %1074 = vmatprep.subr.bf16.mxu0 0
      %1075 = vmatpush1.bf16.msra.mxu0 %v1056
      %1076 = vmatprep.subr.bf16.mxu0 0
      %1077 = vmatpush1.bf16.msra.mxu0 %v1057
      %1078 = vmatprep.subr.bf16.mxu0 0
      %1079 = vmatpush1.bf16.msra.mxu0 %v1058
      %1080 = vmatprep.subr.bf16.mxu0 0
      %1081 = vmatpush1.bf16.msra.mxu0 %v1059
      %1082 = vmatprep.subr.bf16.mxu0 0
      %1083 = vmatpush1.bf16.msra.mxu0 %v1060
      %1084 = vmatprep.subr.bf16.mxu0 0
      %1085 = vmatpush1.bf16.msra.mxu0 %v1061
      %1086 = vmatprep.subr.bf16.mxu0 0
      %1087 = vmatpush1.bf16.msra.mxu0 0
      %1088 = vmatprep.subr.bf16.mxu0 0
      %1089 = vmatpush1.bf16.msra.mxu0 0
      %1090 = vmatprep.subr.bf16.mxu0 0
      %1091 = vmatpush1.bf16.msra.mxu0 0
      %1092 = vmatprep.subr.bf16.mxu0 0
      %1093 = vmatpush1.bf16.msra.mxu0 0
      %1094 = vmatprep.subr.bf16.mxu0 0
      %1095 = vmatpush1.bf16.msra.mxu0 0
      %1096 = vmatprep.subr.bf16.mxu0 0
      %1097 = vmatpush1.bf16.msra.mxu0 0
      %1098 = vmatprep.subr.bf16.mxu0 0
      %1099 = vmatpush1.bf16.msra.mxu0 0
      %1100 = vmatprep.subr.bf16.mxu0 0
      %1101 = vmatpush1.bf16.msra.mxu0 0
      %1102 = vmatprep.mubr.bf16.mxu0 0
      %1103 = vmatmul.mubr.bf16.gmra.mrb[0].mxu0 %v991
      %v1104 = vpop.f32.mrb[0].mxu0
      %v1105 = vadd.f32 %v1020, %v1104
      %v1106 = vpop.f32.mrb[0].mxu0
      %v1107 = vpop.f32.mrb[0].mxu0
      %v1108 = vadd.f32 %v1020, %v1107
      %v1109 = vpop.f32.mrb[0].mxu0
      %1110 = vmatprep.mubr.bf16.mxu0 0
      %1111 = vmatmul.mubr.bf16.gmra.mrb[0].mxu0 %v992
      %v1112 = vpop.f32.mrb[0].mxu0
      %v1113 = vadd.f32 %v1020, %v1112
      %v1114 = vpop.f32.mrb[0].mxu0
      %v1115 = vpop.f32.mrb[0].mxu0
      %v1116 = vadd.f32 %v1020, %v1115
      %v1117 = vpop.f32.mrb[0].mxu0
      %1118 = vmatprep.mubr.bf16.mxu0 0
      %1119 = vmatmul.mubr.bf16.gmra.mrb[0].mxu0 %v993
      %v1120 = vpop.f32.mrb[0].mxu0
      %v1121 = vadd.f32 %v1020, %v1120
      %v1122 = vpop.f32.mrb[0].mxu0
      %v1123 = vpop.f32.mrb[0].mxu0
      %v1124 = vadd.f32 %v1020, %v1123
      %v1125 = vpop.f32.mrb[0].mxu0
      %1126 = vmatprep.mubr.bf16.mxu0 0
      %1127 = vmatmul.mubr.bf16.gmra.mrb[0].mxu0 %v994
      %v1128 = vpop.f32.mrb[0].mxu0
      %v1129 = vadd.f32 %v1020, %v1128
      %v1130 = vpop.f32.mrb[0].mxu0
      %v1131 = vpop.f32.mrb[0].mxu0
      %v1132 = vadd.f32 %v1020, %v1131
      %v1133 = vpop.f32.mrb[0].mxu0
      %1134 = vmatprep.mubr.bf16.mxu0 0
      %1135 = vmatmul.mubr.bf16.gmra.mrb[0].mxu0 %v995
      %v1136 = vpop.f32.mrb[0].mxu0
      %v1137 = vadd.f32 %v1020, %v1136
      %v1138 = vpop.f32.mrb[0].mxu0
      %v1139 = vpop.f32.mrb[0].mxu0
      %v1140 = vadd.f32 %v1020, %v1139
      %v1141 = vpop.f32.mrb[0].mxu0
      %1142 = vmatprep.mubr.bf16.mxu0 0
      %1143 = vmatmul.mubr.bf16.gmra.mrb[0].mxu0 %v996
      %v1144 = vpop.f32.mrb[0].mxu0
      %v1145 = vadd.f32 %v1020, %v1144
      %v1146 = vpop.f32.mrb[0].mxu0
      %v1147 = vpop.f32.mrb[0].mxu0
      %v1148 = vadd.f32 %v1020, %v1147
      %v1149 = vpop.f32.mrb[0].mxu0
      %1150 = vmatprep.mubr.bf16.mxu0 0
      %1151 = vmatmul.mubr.bf16.gmra.mrb[0].mxu0 %v997
      %v1152 = vpop.f32.mrb[0].mxu0
      %v1153 = vadd.f32 %v1020, %v1152
      %v1154 = vpop.f32.mrb[0].mxu0
      %v1155 = vpop.f32.mrb[0].mxu0
      %v1156 = vadd.f32 %v1020, %v1155
      %v1157 = vpop.f32.mrb[0].mxu0
      %1158 = vmatprep.mubr.bf16.mxu0 0
      %1159 = vmatmul.mubr.bf16.gmra.mrb[0].mxu0 %v998
      %v1160 = vpop.f32.mrb[0].mxu0
      %v1161 = vadd.f32 %v1020, %v1160
      %v1162 = vpop.f32.mrb[0].mxu0
      %v1163 = vpop.f32.mrb[0].mxu0
      %v1164 = vadd.f32 %v1020, %v1163
      %v1165 = vpop.f32.mrb[0].mxu0
      %1166 = vdwg.mxu0
      %v1167 = vmax.f32 %v1105, 0.0
      %v1168 = vmax.f32 %v1108, 0.0
      %v1169 = vmax.f32 %v1113, 0.0
      %v1170 = vmax.f32 %v1116, 0.0
      %v1171 = vmax.f32 %v1121, 0.0
      %v1172 = vmax.f32 %v1124, 0.0
      %v1173 = vmax.f32 %v1129, 0.0
      %v1174 = vmax.f32 %v1132, 0.0
      %v1175 = vmax.f32 %v1137, 0.0
      %v1176 = vmax.f32 %v1140, 0.0
      %v1177 = vmax.f32 %v1145, 0.0
      %v1178 = vmax.f32 %v1148, 0.0
      %v1179 = vmax.f32 %v1153, 0.0
      %v1180 = vmax.f32 %v1156, 0.0
      %v1181 = vmax.f32 %v1161, 0.0
      %v1182 = vmax.f32 %v1164, 0.0
      %1183 = vst.msk [vmem:[#allocation2 + $0x8] sm:$0xff] %vm755, %v1167
      %1184 = vst.msk [vmem:[#allocation2 + $0x10] sm:$0xff] %vm755, %v1168
      %1185 = vst.msk [vmem:[#allocation2 + $0x18] sm:$0xff] %vm755, %v1169
      %1186 = vst.msk [vmem:[#allocation2 + $0x20] sm:$0xff] %vm755, %v1170
      %1187 = vst.msk [vmem:[#allocation2 + $0x30] sm:$0xff] %vm755, %v1171
      %1188 = vst.msk [vmem:[#allocation2 + $0x38] sm:$0xff] %vm755, %v1172
      %1189 = vst.msk [vmem:[#allocation2 + $0x40] sm:$0xff] %vm755, %v1173
      %1190 = vst.msk [vmem:[#allocation2 + $0x48] sm:$0xff] %vm755, %v1174
      %1191 = vst.msk [vmem:[#allocation2 + $0x58] sm:$0xff] %vm755, %v1175
      %1192 = vst.msk [vmem:[#allocation2 + $0x60] sm:$0xff] %vm755, %v1176
      %1193 = vst.msk [vmem:[#allocation2 + $0x68] sm:$0xff] %vm755, %v1177
      %1194 = vst.msk [vmem:[#allocation2 + $0x70] sm:$0xff] %vm755, %v1178
      %1195 = vst.msk [vmem:[#allocation2 + $0x80] sm:$0xff] %vm755, %v1179
      %1196 = vst.msk [vmem:[#allocation2 + $0x88] sm:$0xff] %vm755, %v1180
      %1197 = vst.msk [vmem:[#allocation2 + $0x90] sm:$0xff] %vm755, %v1181
      %1198 = vst.msk [vmem:[#allocation2 + $0x98] sm:$0xff] %vm755, %v1182
      %v1199 = vld [vmem:[%s13] sm:$0xff]
      %v1200 = vld [vmem:[%s13 + $0x8] sm:$0xff]
      %v1201 = vld [vmem:[%s13 + $0x10] sm:$0xff]
      %v1202 = vld [vmem:[%s13 + $0x18] sm:$0xff]
      %v1203 = vld [vmem:[%s13 + $0x20] sm:$0xff]
      %v1204 = vld [vmem:[%s13 + $0x28] sm:$0xff]
      %v1205 = vld [vmem:[%s13 + $0x30] sm:$0xff]
      %v1206 = vld [vmem:[%s13 + $0x38] sm:$0xff]
      %v1207 = vld [vmem:[%s13 + $0x40] sm:$0xff]
      %v1208 = vld [vmem:[%s13 + $0x48] sm:$0xff]
      %v1209 = vld [vmem:[%s13 + $0x50] sm:$0xff]
      %v1210 = vld [vmem:[%s13 + $0x58] sm:$0xff]
      %v1211 = vld [vmem:[%s13 + $0x60] sm:$0xff]
      %v1212 = vld [vmem:[%s13 + $0x68] sm:$0xff]
      %v1213 = vld [vmem:[%s13 + $0x70] sm:$0xff]
      %v1214 = vld [vmem:[%s13 + $0x78] sm:$0xff]
      %v1215 = vld [vmem:[%s13 + $0x80] sm:$0xff]
      %v1216 = vld [vmem:[%s13 + $0x88] sm:$0xff]
      %v1217 = vld [vmem:[%s13 + $0x90] sm:$0xff]
      %v1218 = vld [vmem:[%s13 + $0x98] sm:$0xff]
      %vm1219 = vcmp.gt.f32.partialorder %v1199, 0.5
      %vm1220 = vcmp.gt.f32.partialorder %v1200, 0.5
      %vm1221 = vcmp.gt.f32.partialorder %v1201, 0.5
      %vm1222 = vcmp.gt.f32.partialorder %v1202, 0.5
      %vm1223 = vcmp.gt.f32.partialorder %v1203, 0.5
      %vm1224 = vcmp.gt.f32.partialorder %v1204, 0.5
      %vm1225 = vcmp.gt.f32.partialorder %v1205, 0.5
      %vm1226 = vcmp.gt.f32.partialorder %v1206, 0.5
      %vm1227 = vcmp.gt.f32.partialorder %v1207, 0.5
      %vm1228 = vcmp.gt.f32.partialorder %v1208, 0.5
      %vm1229 = vcmp.gt.f32.partialorder %v1209, 0.5
      %vm1230 = vcmp.gt.f32.partialorder %v1210, 0.5
      %vm1231 = vcmp.gt.f32.partialorder %v1211, 0.5
      %vm1232 = vcmp.gt.f32.partialorder %v1212, 0.5
      %vm1233 = vcmp.gt.f32.partialorder %v1213, 0.5
      %vm1234 = vcmp.gt.f32.partialorder %v1214, 0.5
      %vm1235 = vcmp.gt.f32.partialorder %v1215, 0.5
      %vm1236 = vcmp.gt.f32.partialorder %v1216, 0.5
      %vm1237 = vcmp.gt.f32.partialorder %v1217, 0.5
      %vm1238 = vcmp.gt.f32.partialorder %v1218, 0.5
      %v1239 = vld [vmem:[#allocation2 + $0x5] sm:$0xff]
      %v1240 = vld [vmem:[#allocation2 + $0xd] sm:$0xff]
      %v1241 = vld [vmem:[#allocation2 + $0x15] sm:$0xff]
      %v1242 = vld [vmem:[#allocation2 + $0x1d] sm:$0xff]
      %v1243 = vld [vmem:[#allocation2 + $0x25] sm:$0xff]
      %v1244 = vld [vmem:[#allocation2 + $0x2d] sm:$0xff]
      %v1245 = vld [vmem:[#allocation2 + $0x35] sm:$0xff]
      %v1246 = vld [vmem:[#allocation2 + $0x3d] sm:$0xff]
      %v1247 = vld [vmem:[#allocation2 + $0x45] sm:$0xff]
      %v1248 = vld [vmem:[#allocation2 + $0x4d] sm:$0xff]
      %v1249 = vld [vmem:[#allocation2 + $0x55] sm:$0xff]
      %v1250 = vld [vmem:[#allocation2 + $0x5d] sm:$0xff]
      %v1251 = vld [vmem:[#allocation2 + $0x65] sm:$0xff]
      %v1252 = vld [vmem:[#allocation2 + $0x6d] sm:$0xff]
      %v1253 = vld [vmem:[#allocation2 + $0x75] sm:$0xff]
      %v1254 = vld [vmem:[#allocation2 + $0x7d] sm:$0xff]
      %v1255 = vld [vmem:[#allocation2 + $0x85] sm:$0xff]
      %v1256 = vld [vmem:[#allocation2 + $0x8d] sm:$0xff]
      %v1257 = vld [vmem:[#allocation2 + $0x95] sm:$0xff]
      %v1258 = vld [vmem:[#allocation2 + $0x9d] sm:$0xff]
      %v1259 = vpack.c.bf16 %v1240, %v1239
      %v1260 = vpack.c.bf16 %v1242, %v1241
      %v1261 = vpack.c.bf16 %v1244, %v1243
      %v1262 = vpack.c.bf16 %v1246, %v1245
      %v1263 = vpack.c.bf16 %v1248, %v1247
      %v1264 = vpack.c.bf16 %v1250, %v1249
      %v1265 = vpack.c.bf16 %v1252, %v1251
      %v1266 = vpack.c.bf16 %v1254, %v1253
      %v1267 = vpack.c.bf16 %v1256, %v1255
      %v1268 = vpack.c.bf16 %v1258, %v1257
      %v1269 = vld [vmem:[%s5] sm:$0xf]
      %v1270 = vld [vmem:[%s5 + $0x4] sm:$0xf]
      %v1271 = vld [vmem:[%s5 + $0x8] sm:$0xf]
      %v1272 = vld [vmem:[%s5 + $0xc] sm:$0xf]
      %v1273 = vld [vmem:[#allocation2 + $0x6] sm:$0xff]
      %v1274 = vld [vmem:[#allocation2 + $0xe] sm:$0xff]
      %v1275 = vld [vmem:[#allocation2 + $0x16] sm:$0xff]
      %v1276 = vld [vmem:[#allocation2 + $0x1e] sm:$0xff]
      %v1277 = vld [vmem:[#allocation2 + $0x26] sm:$0xff]
      %v1278 = vld [vmem:[#allocation2 + $0x2e] sm:$0xff]
      %v1279 = vld [vmem:[#allocation2 + $0x36] sm:$0xff]
      %v1280 = vld [vmem:[#allocation2 + $0x3e] sm:$0xff]
      %v1281 = vld [vmem:[#allocation2 + $0x46] sm:$0xff]
      %v1282 = vld [vmem:[#allocation2 + $0x4e] sm:$0xff]
      %v1283 = vld [vmem:[#allocation2 + $0x56] sm:$0xff]
      %v1284 = vld [vmem:[#allocation2 + $0x5e] sm:$0xff]
      %v1285 = vld [vmem:[#allocation2 + $0x66] sm:$0xff]
      %v1286 = vld [vmem:[#allocation2 + $0x6e] sm:$0xff]
      %v1287 = vld [vmem:[#allocation2 + $0x76] sm:$0xff]
      %v1288 = vld [vmem:[#allocation2 + $0x7e] sm:$0xff]
      %v1289 = vld [vmem:[#allocation2 + $0x86] sm:$0xff]
      %v1290 = vld [vmem:[#allocation2 + $0x8e] sm:$0xff]
      %v1291 = vld [vmem:[#allocation2 + $0x96] sm:$0xff]
      %v1292 = vld [vmem:[#allocation2 + $0x9e] sm:$0xff]
      %v1293 = vpack.c.bf16 %v1274, %v1273
      %v1294 = vpack.c.bf16 %v1276, %v1275
      %v1295 = vpack.c.bf16 %v1278, %v1277
      %v1296 = vpack.c.bf16 %v1280, %v1279
      %v1297 = vpack.c.bf16 %v1282, %v1281
      %v1298 = vpack.c.bf16 %v1284, %v1283
      %v1299 = vpack.c.bf16 %v1286, %v1285
      %v1300 = vpack.c.bf16 %v1288, %v1287
      %v1301 = vpack.c.bf16 %v1290, %v1289
      %v1302 = vpack.c.bf16 %v1292, %v1291
      %s1303 = scalar_lea.vmem %s5, 16
      %v1304 = vld [vmem:[%s1303] sm:$0xf]
      %v1305 = vld [vmem:[%s1303 + $0x4] sm:$0xf]
      %v1306 = vld [vmem:[%s1303 + $0x8] sm:$0xf]
      %v1307 = vld [vmem:[%s1303 + $0xc] sm:$0xf]
      %v1312 = vunpack.c.l.b16 %v1304
      %v1313 = vunpack.c.l.b16 %v1305
      %v1314 = vunpack.c.l.b16 %v1306
      %v1315 = vunpack.c.l.b16 %v1307
      %v1316 = vpack.c.b16 %v1313, %v1312
      %v1317 = vpack.c.b16 %v1315, %v1314
      %v1321 = vsel %vm755, %v1293, 0
      %v1324 = vsel %vm755, %v1294, 0
      %v1327 = vsel %vm755, %v1295, 0
      %v1330 = vsel %vm755, %v1296, 0
      %v1333 = vsel %vm755, %v1297, 0
      %v1336 = vsel %vm755, %v1298, 0
      %v1339 = vsel %vm755, %v1299, 0
      %v1342 = vsel %vm755, %v1300, 0
      %v1345 = vsel %vm755, %v1301, 0
      %v1348 = vsel %vm755, %v1302, 0
      %1350 = vmatprep.subr.bf16.mxu0 0
      %1351 = vmatpush1.bf16.msra.mxu0 %v1316
      %1352 = vmatprep.subr.bf16.mxu0 0
      %1353 = vmatpush1.bf16.msra.mxu0 %v1317
      %1354 = vmatprep.subr.bf16.mxu0 0
      %1355 = vmatpush1.bf16.msra.mxu0 0
      %1356 = vmatprep.subr.bf16.mxu0 0
      %1357 = vmatpush1.bf16.msra.mxu0 0
      %1358 = vmatprep.subr.bf16.mxu0 0
      %1359 = vmatpush1.bf16.msra.mxu0 0
      %1360 = vmatprep.subr.bf16.mxu0 0
      %1361 = vmatpush1.bf16.msra.mxu0 0
      %1362 = vmatprep.subr.bf16.mxu0 0
      %1363 = vmatpush1.bf16.msra.mxu0 0
      %1364 = vmatprep.subr.bf16.mxu0 0
      %1365 = vmatpush1.bf16.msra.mxu0 0
      %1366 = vmatprep.subr.bf16.mxu0 0
      %1367 = vmatpush1.bf16.msra.mxu0 0
      %1368 = vmatprep.subr.bf16.mxu0 0
      %1369 = vmatpush1.bf16.msra.mxu0 0
      %1370 = vmatprep.subr.bf16.mxu0 0
      %1371 = vmatpush1.bf16.msra.mxu0 0
      %1372 = vmatprep.subr.bf16.mxu0 0
      %1373 = vmatpush1.bf16.msra.mxu0 0
      %1374 = vmatprep.subr.bf16.mxu0 0
      %1375 = vmatpush1.bf16.msra.mxu0 0
      %1376 = vmatprep.subr.bf16.mxu0 0
      %1377 = vmatpush1.bf16.msra.mxu0 0
      %1378 = vmatprep.subr.bf16.mxu0 0
      %1379 = vmatpush1.bf16.msra.mxu0 0
      %1380 = vmatprep.subr.bf16.mxu0 0
      %1381 = vmatpush1.bf16.msra.mxu0 0
      %1382 = vmatprep.mubr.bf16.mxu0 0
      %1383 = vmatmul.mubr.bf16.gmra.mrb[0].mxu0 %v1321
      %v1384 = vpop.f32.mrb[0].mxu0
      %v1385 = vadd.f32 0.0, %v1384
      %v1386 = vpop.f32.mrb[0].mxu0
      %v1387 = vpop.f32.mrb[0].mxu0
      %v1388 = vadd.f32 0.0, %v1387
      %v1389 = vpop.f32.mrb[0].mxu0
      %1390 = vmatprep.mubr.bf16.mxu0 0
      %1391 = vmatmul.mubr.bf16.gmra.mrb[0].mxu0 %v1324
      %v1392 = vpop.f32.mrb[0].mxu0
      %v1393 = vadd.f32 0.0, %v1392
      %v1394 = vpop.f32.mrb[0].mxu0
      %v1395 = vpop.f32.mrb[0].mxu0
      %v1396 = vadd.f32 0.0, %v1395
      %v1397 = vpop.f32.mrb[0].mxu0
      %1398 = vmatprep.mubr.bf16.mxu0 0
      %1399 = vmatmul.mubr.bf16.gmra.mrb[0].mxu0 %v1327
      %v1400 = vpop.f32.mrb[0].mxu0
      %v1401 = vadd.f32 0.0, %v1400
      %v1402 = vpop.f32.mrb[0].mxu0
      %v1403 = vpop.f32.mrb[0].mxu0
      %v1404 = vadd.f32 0.0, %v1403
      %v1405 = vpop.f32.mrb[0].mxu0
      %1406 = vmatprep.mubr.bf16.mxu0 0
      %1407 = vmatmul.mubr.bf16.gmra.mrb[0].mxu0 %v1330
      %v1408 = vpop.f32.mrb[0].mxu0
      %v1409 = vadd.f32 0.0, %v1408
      %v1410 = vpop.f32.mrb[0].mxu0
      %v1411 = vpop.f32.mrb[0].mxu0
      %v1412 = vadd.f32 0.0, %v1411
      %v1413 = vpop.f32.mrb[0].mxu0
      %1414 = vmatprep.mubr.bf16.mxu0 0
      %1415 = vmatmul.mubr.bf16.gmra.mrb[0].mxu0 %v1333
      %v1416 = vpop.f32.mrb[0].mxu0
      %v1417 = vadd.f32 0.0, %v1416
      %v1418 = vpop.f32.mrb[0].mxu0
      %v1419 = vpop.f32.mrb[0].mxu0
      %v1420 = vadd.f32 0.0, %v1419
      %v1421 = vpop.f32.mrb[0].mxu0
      %1422 = vmatprep.mubr.bf16.mxu0 0
      %1423 = vmatmul.mubr.bf16.gmra.mrb[0].mxu0 %v1336
      %v1424 = vpop.f32.mrb[0].mxu0
      %v1425 = vadd.f32 0.0, %v1424
      %v1426 = vpop.f32.mrb[0].mxu0
      %v1427 = vpop.f32.mrb[0].mxu0
      %v1428 = vadd.f32 0.0, %v1427
      %v1429 = vpop.f32.mrb[0].mxu0
      %1430 = vmatprep.mubr.bf16.mxu0 0
      %1431 = vmatmul.mubr.bf16.gmra.mrb[0].mxu0 %v1339
      %v1432 = vpop.f32.mrb[0].mxu0
      %v1433 = vadd.f32 0.0, %v1432
      %v1434 = vpop.f32.mrb[0].mxu0
      %v1435 = vpop.f32.mrb[0].mxu0
      %v1436 = vadd.f32 0.0, %v1435
      %v1437 = vpop.f32.mrb[0].mxu0
      %1438 = vmatprep.mubr.bf16.mxu0 0
      %1439 = vmatmul.mubr.bf16.gmra.mrb[0].mxu0 %v1342
      %v1440 = vpop.f32.mrb[0].mxu0
      %v1441 = vadd.f32 0.0, %v1440
      %v1442 = vpop.f32.mrb[0].mxu0
      %v1443 = vpop.f32.mrb[0].mxu0
      %v1444 = vadd.f32 0.0, %v1443
      %v1445 = vpop.f32.mrb[0].mxu0
      %1446 = vmatprep.mubr.bf16.mxu0 0
      %1447 = vmatmul.mubr.bf16.gmra.mrb[0].mxu0 %v1345
      %v1448 = vpop.f32.mrb[0].mxu0
      %v1449 = vadd.f32 0.0, %v1448
      %v1450 = vpop.f32.mrb[0].mxu0
      %v1451 = vpop.f32.mrb[0].mxu0
      %v1452 = vadd.f32 0.0, %v1451
      %v1453 = vpop.f32.mrb[0].mxu0
      %1454 = vmatprep.mubr.bf16.mxu0 0
      %1455 = vmatmul.mubr.bf16.gmra.mrb[0].mxu0 %v1348
      %v1456 = vpop.f32.mrb[0].mxu0
      %v1457 = vadd.f32 0.0, %v1456
      %v1458 = vpop.f32.mrb[0].mxu0
      %v1459 = vpop.f32.mrb[0].mxu0
      %v1460 = vadd.f32 0.0, %v1459
      %v1461 = vpop.f32.mrb[0].mxu0
      %1462 = vdwg.mxu0
      %v1467 = vunpack.c.l.b16 %v1269
      %v1468 = vunpack.c.l.b16 %v1270
      %v1469 = vunpack.c.l.b16 %v1271
      %v1470 = vunpack.c.l.b16 %v1272
      %v1471 = vpack.c.b16 %v1468, %v1467
      %v1472 = vpack.c.b16 %v1470, %v1469
      %v1476 = vsel %vm755, %v1259, 0
      %v1479 = vsel %vm755, %v1260, 0
      %v1482 = vsel %vm755, %v1261, 0
      %v1485 = vsel %vm755, %v1262, 0
      %v1488 = vsel %vm755, %v1263, 0
      %v1491 = vsel %vm755, %v1264, 0
      %v1494 = vsel %vm755, %v1265, 0
      %v1497 = vsel %vm755, %v1266, 0
      %v1500 = vsel %vm755, %v1267, 0
      %v1503 = vsel %vm755, %v1268, 0
      %1505 = vmatprep.subr.bf16.mxu0 0
      %1506 = vmatpush1.bf16.msra.mxu0 %v1471
      %1507 = vmatprep.subr.bf16.mxu0 0
      %1508 = vmatpush1.bf16.msra.mxu0 %v1472
      %1509 = vmatprep.subr.bf16.mxu0 0
      %1510 = vmatpush1.bf16.msra.mxu0 0
      %1511 = vmatprep.subr.bf16.mxu0 0
      %1512 = vmatpush1.bf16.msra.mxu0 0
      %1513 = vmatprep.subr.bf16.mxu0 0
      %1514 = vmatpush1.bf16.msra.mxu0 0
      %1515 = vmatprep.subr.bf16.mxu0 0
      %1516 = vmatpush1.bf16.msra.mxu0 0
      %1517 = vmatprep.subr.bf16.mxu0 0
      %1518 = vmatpush1.bf16.msra.mxu0 0
      %1519 = vmatprep.subr.bf16.mxu0 0
      %1520 = vmatpush1.bf16.msra.mxu0 0
      %1521 = vmatprep.subr.bf16.mxu0 0
      %1522 = vmatpush1.bf16.msra.mxu0 0
      %1523 = vmatprep.subr.bf16.mxu0 0
      %1524 = vmatpush1.bf16.msra.mxu0 0
      %1525 = vmatprep.subr.bf16.mxu0 0
      %1526 = vmatpush1.bf16.msra.mxu0 0
      %1527 = vmatprep.subr.bf16.mxu0 0
      %1528 = vmatpush1.bf16.msra.mxu0 0
      %1529 = vmatprep.subr.bf16.mxu0 0
      %1530 = vmatpush1.bf16.msra.mxu0 0
      %1531 = vmatprep.subr.bf16.mxu0 0
      %1532 = vmatpush1.bf16.msra.mxu0 0
      %1533 = vmatprep.subr.bf16.mxu0 0
      %1534 = vmatpush1.bf16.msra.mxu0 0
      %1535 = vmatprep.subr.bf16.mxu0 0
      %1536 = vmatpush1.bf16.msra.mxu0 0
      %1537 = vmatprep.mubr.bf16.mxu0 0
      %1538 = vmatmul.mubr.bf16.gmra.mrb[0].mxu0 %v1476
      %v1539 = vpop.f32.mrb[0].mxu0
      %v1540 = vadd.f32 %v1385, %v1539
      %v1541 = vpop.f32.mrb[0].mxu0
      %v1542 = vpop.f32.mrb[0].mxu0
      %v1543 = vadd.f32 %v1388, %v1542
      %v1544 = vpop.f32.mrb[0].mxu0
      %1545 = vmatprep.mubr.bf16.mxu0 0
      %1546 = vmatmul.mubr.bf16.gmra.mrb[0].mxu0 %v1479
      %v1547 = vpop.f32.mrb[0].mxu0
      %v1548 = vadd.f32 %v1393, %v1547
      %v1549 = vpop.f32.mrb[0].mxu0
      %v1550 = vpop.f32.mrb[0].mxu0
      %v1551 = vadd.f32 %v1396, %v1550
      %v1552 = vpop.f32.mrb[0].mxu0
      %1553 = vmatprep.mubr.bf16.mxu0 0
      %1554 = vmatmul.mubr.bf16.gmra.mrb[0].mxu0 %v1482
      %v1555 = vpop.f32.mrb[0].mxu0
      %v1556 = vadd.f32 %v1401, %v1555
      %v1557 = vpop.f32.mrb[0].mxu0
      %v1558 = vpop.f32.mrb[0].mxu0
      %v1559 = vadd.f32 %v1404, %v1558
      %v1560 = vpop.f32.mrb[0].mxu0
      %1561 = vmatprep.mubr.bf16.mxu0 0
      %1562 = vmatmul.mubr.bf16.gmra.mrb[0].mxu0 %v1485
      %v1563 = vpop.f32.mrb[0].mxu0
      %v1564 = vadd.f32 %v1409, %v1563
      %v1565 = vpop.f32.mrb[0].mxu0
      %v1566 = vpop.f32.mrb[0].mxu0
      %v1567 = vadd.f32 %v1412, %v1566
      %v1568 = vpop.f32.mrb[0].mxu0
      %1569 = vmatprep.mubr.bf16.mxu0 0
      %1570 = vmatmul.mubr.bf16.gmra.mrb[0].mxu0 %v1488
      %v1571 = vpop.f32.mrb[0].mxu0
      %v1572 = vadd.f32 %v1417, %v1571
      %v1573 = vpop.f32.mrb[0].mxu0
      %v1574 = vpop.f32.mrb[0].mxu0
      %v1575 = vadd.f32 %v1420, %v1574
      %v1576 = vpop.f32.mrb[0].mxu0
      %1577 = vmatprep.mubr.bf16.mxu0 0
      %1578 = vmatmul.mubr.bf16.gmra.mrb[0].mxu0 %v1491
      %v1579 = vpop.f32.mrb[0].mxu0
      %v1580 = vadd.f32 %v1425, %v1579
      %v1581 = vpop.f32.mrb[0].mxu0
      %v1582 = vpop.f32.mrb[0].mxu0
      %v1583 = vadd.f32 %v1428, %v1582
      %v1584 = vpop.f32.mrb[0].mxu0
      %1585 = vmatprep.mubr.bf16.mxu0 0
      %1586 = vmatmul.mubr.bf16.gmra.mrb[0].mxu0 %v1494
      %v1587 = vpop.f32.mrb[0].mxu0
      %v1588 = vadd.f32 %v1433, %v1587
      %v1589 = vpop.f32.mrb[0].mxu0
      %v1590 = vpop.f32.mrb[0].mxu0
      %v1591 = vadd.f32 %v1436, %v1590
      %v1592 = vpop.f32.mrb[0].mxu0
      %1593 = vmatprep.mubr.bf16.mxu0 0
      %1594 = vmatmul.mubr.bf16.gmra.mrb[0].mxu0 %v1497
      %v1595 = vpop.f32.mrb[0].mxu0
      %v1596 = vadd.f32 %v1441, %v1595
      %v1597 = vpop.f32.mrb[0].mxu0
      %v1598 = vpop.f32.mrb[0].mxu0
      %v1599 = vadd.f32 %v1444, %v1598
      %v1600 = vpop.f32.mrb[0].mxu0
      %1601 = vmatprep.mubr.bf16.mxu0 0
      %1602 = vmatmul.mubr.bf16.gmra.mrb[0].mxu0 %v1500
      %v1603 = vpop.f32.mrb[0].mxu0
      %v1604 = vadd.f32 %v1449, %v1603
      %v1605 = vpop.f32.mrb[0].mxu0
      %v1606 = vpop.f32.mrb[0].mxu0
      %v1607 = vadd.f32 %v1452, %v1606
      %v1608 = vpop.f32.mrb[0].mxu0
      %1609 = vmatprep.mubr.bf16.mxu0 0
      %1610 = vmatmul.mubr.bf16.gmra.mrb[0].mxu0 %v1503
      %v1611 = vpop.f32.mrb[0].mxu0
      %v1612 = vadd.f32 %v1457, %v1611
      %v1613 = vpop.f32.mrb[0].mxu0
      %v1614 = vpop.f32.mrb[0].mxu0
      %v1615 = vadd.f32 %v1460, %v1614
      %v1616 = vpop.f32.mrb[0].mxu0
      %1617 = vdwg.mxu0
      %v1618 = vld [vmem:[#allocation2 + $0x7] sm:$0xff]
      %v1619 = vld [vmem:[#allocation2 + $0xf] sm:$0xff]
      %v1620 = vld [vmem:[#allocation2 + $0x17] sm:$0xff]
      %v1621 = vld [vmem:[#allocation2 + $0x1f] sm:$0xff]
      %v1622 = vld [vmem:[#allocation2 + $0x27] sm:$0xff]
      %v1623 = vld [vmem:[#allocation2 + $0x2f] sm:$0xff]
      %v1624 = vld [vmem:[#allocation2 + $0x37] sm:$0xff]
      %v1625 = vld [vmem:[#allocation2 + $0x3f] sm:$0xff]
      %v1626 = vld [vmem:[#allocation2 + $0x47] sm:$0xff]
      %v1627 = vld [vmem:[#allocation2 + $0x4f] sm:$0xff]
      %v1628 = vld [vmem:[#allocation2 + $0x57] sm:$0xff]
      %v1629 = vld [vmem:[#allocation2 + $0x5f] sm:$0xff]
      %v1630 = vld [vmem:[#allocation2 + $0x67] sm:$0xff]
      %v1631 = vld [vmem:[#allocation2 + $0x6f] sm:$0xff]
      %v1632 = vld [vmem:[#allocation2 + $0x77] sm:$0xff]
      %v1633 = vld [vmem:[#allocation2 + $0x7f] sm:$0xff]
      %v1634 = vld [vmem:[#allocation2 + $0x87] sm:$0xff]
      %v1635 = vld [vmem:[#allocation2 + $0x8f] sm:$0xff]
      %v1636 = vld [vmem:[#allocation2 + $0x97] sm:$0xff]
      %v1637 = vld [vmem:[#allocation2 + $0x9f] sm:$0xff]
      %v1638 = vpack.c.bf16 %v1619, %v1618
      %v1639 = vpack.c.bf16 %v1621, %v1620
      %v1640 = vpack.c.bf16 %v1623, %v1622
      %v1641 = vpack.c.bf16 %v1625, %v1624
      %v1642 = vpack.c.bf16 %v1627, %v1626
      %v1643 = vpack.c.bf16 %v1629, %v1628
      %v1644 = vpack.c.bf16 %v1631, %v1630
      %v1645 = vpack.c.bf16 %v1633, %v1632
      %v1646 = vpack.c.bf16 %v1635, %v1634
      %v1647 = vpack.c.bf16 %v1637, %v1636
      %s1648 = scalar_lea.vmem %s5, 32
      %v1649 = vld [vmem:[%s1648] sm:$0xf]
      %v1650 = vld [vmem:[%s1648 + $0x4] sm:$0xf]
      %v1651 = vld [vmem:[%s1648 + $0x8] sm:$0xf]
      %v1652 = vld [vmem:[%s1648 + $0xc] sm:$0xf]
      %v1657 = vunpack.c.l.b16 %v1649
      %v1658 = vunpack.c.l.b16 %v1650
      %v1659 = vunpack.c.l.b16 %v1651
      %v1660 = vunpack.c.l.b16 %v1652
      %v1661 = vpack.c.b16 %v1658, %v1657
      %v1662 = vpack.c.b16 %v1660, %v1659
      %v1666 = vsel %vm755, %v1638, 0
      %v1669 = vsel %vm755, %v1639, 0
      %v1672 = vsel %vm755, %v1640, 0
      %v1675 = vsel %vm755, %v1641, 0
      %v1678 = vsel %vm755, %v1642, 0
      %v1681 = vsel %vm755, %v1643, 0
      %v1684 = vsel %vm755, %v1644, 0
      %v1687 = vsel %vm755, %v1645, 0
      %v1690 = vsel %vm755, %v1646, 0
      %v1693 = vsel %vm755, %v1647, 0
      %1695 = vmatprep.subr.bf16.mxu0 0
      %1696 = vmatpush1.bf16.msra.mxu0 %v1661
      %1697 = vmatprep.subr.bf16.mxu0 0
      %1698 = vmatpush1.bf16.msra.mxu0 %v1662
      %1699 = vmatprep.subr.bf16.mxu0 0
      %1700 = vmatpush1.bf16.msra.mxu0 0
      %1701 = vmatprep.subr.bf16.mxu0 0
      %1702 = vmatpush1.bf16.msra.mxu0 0
      %1703 = vmatprep.subr.bf16.mxu0 0
      %1704 = vmatpush1.bf16.msra.mxu0 0
      %1705 = vmatprep.subr.bf16.mxu0 0
      %1706 = vmatpush1.bf16.msra.mxu0 0
      %1707 = vmatprep.subr.bf16.mxu0 0
      %1708 = vmatpush1.bf16.msra.mxu0 0
      %1709 = vmatprep.subr.bf16.mxu0 0
      %1710 = vmatpush1.bf16.msra.mxu0 0
      %1711 = vmatprep.subr.bf16.mxu0 0
      %1712 = vmatpush1.bf16.msra.mxu0 0
      %1713 = vmatprep.subr.bf16.mxu0 0
      %1714 = vmatpush1.bf16.msra.mxu0 0
      %1715 = vmatprep.subr.bf16.mxu0 0
      %1716 = vmatpush1.bf16.msra.mxu0 0
      %1717 = vmatprep.subr.bf16.mxu0 0
      %1718 = vmatpush1.bf16.msra.mxu0 0
      %1719 = vmatprep.subr.bf16.mxu0 0
      %1720 = vmatpush1.bf16.msra.mxu0 0
      %1721 = vmatprep.subr.bf16.mxu0 0
      %1722 = vmatpush1.bf16.msra.mxu0 0
      %1723 = vmatprep.subr.bf16.mxu0 0
      %1724 = vmatpush1.bf16.msra.mxu0 0
      %1725 = vmatprep.subr.bf16.mxu0 0
      %1726 = vmatpush1.bf16.msra.mxu0 0
      %1727 = vmatprep.mubr.bf16.mxu0 0
      %1728 = vmatmul.mubr.bf16.gmra.mrb[0].mxu0 %v1666
      %v1729 = vpop.f32.mrb[0].mxu0
      %v1730 = vadd.f32 0.0, %v1729
      %v1731 = vpop.f32.mrb[0].mxu0
      %v1732 = vpop.f32.mrb[0].mxu0
      %v1733 = vadd.f32 0.0, %v1732
      %v1734 = vpop.f32.mrb[0].mxu0
      %1735 = vmatprep.mubr.bf16.mxu0 0
      %1736 = vmatmul.mubr.bf16.gmra.mrb[0].mxu0 %v1669
      %v1737 = vpop.f32.mrb[0].mxu0
      %v1738 = vadd.f32 0.0, %v1737
      %v1739 = vpop.f32.mrb[0].mxu0
      %v1740 = vpop.f32.mrb[0].mxu0
      %v1741 = vadd.f32 0.0, %v1740
      %v1742 = vpop.f32.mrb[0].mxu0
      %1743 = vmatprep.mubr.bf16.mxu0 0
      %1744 = vmatmul.mubr.bf16.gmra.mrb[0].mxu0 %v1672
      %v1745 = vpop.f32.mrb[0].mxu0
      %v1746 = vadd.f32 0.0, %v1745
      %v1747 = vpop.f32.mrb[0].mxu0
      %v1748 = vpop.f32.mrb[0].mxu0
      %v1749 = vadd.f32 0.0, %v1748
      %v1750 = vpop.f32.mrb[0].mxu0
      %1751 = vmatprep.mubr.bf16.mxu0 0
      %1752 = vmatmul.mubr.bf16.gmra.mrb[0].mxu0 %v1675
      %v1753 = vpop.f32.mrb[0].mxu0
      %v1754 = vadd.f32 0.0, %v1753
      %v1755 = vpop.f32.mrb[0].mxu0
      %v1756 = vpop.f32.mrb[0].mxu0
      %v1757 = vadd.f32 0.0, %v1756
      %v1758 = vpop.f32.mrb[0].mxu0
      %1759 = vmatprep.mubr.bf16.mxu0 0
      %1760 = vmatmul.mubr.bf16.gmra.mrb[0].mxu0 %v1678
      %v1761 = vpop.f32.mrb[0].mxu0
      %v1762 = vadd.f32 0.0, %v1761
      %v1763 = vpop.f32.mrb[0].mxu0
      %v1764 = vpop.f32.mrb[0].mxu0
      %v1765 = vadd.f32 0.0, %v1764
      %v1766 = vpop.f32.mrb[0].mxu0
      %1767 = vmatprep.mubr.bf16.mxu0 0
      %1768 = vmatmul.mubr.bf16.gmra.mrb[0].mxu0 %v1681
      %v1769 = vpop.f32.mrb[0].mxu0
      %v1770 = vadd.f32 0.0, %v1769
      %v1771 = vpop.f32.mrb[0].mxu0
      %v1772 = vpop.f32.mrb[0].mxu0
      %v1773 = vadd.f32 0.0, %v1772
      %v1774 = vpop.f32.mrb[0].mxu0
      %1775 = vmatprep.mubr.bf16.mxu0 0
      %1776 = vmatmul.mubr.bf16.gmra.mrb[0].mxu0 %v1684
      %v1777 = vpop.f32.mrb[0].mxu0
      %v1778 = vadd.f32 0.0, %v1777
      %v1779 = vpop.f32.mrb[0].mxu0
      %v1780 = vpop.f32.mrb[0].mxu0
      %v1781 = vadd.f32 0.0, %v1780
      %v1782 = vpop.f32.mrb[0].mxu0
      %1783 = vmatprep.mubr.bf16.mxu0 0
      %1784 = vmatmul.mubr.bf16.gmra.mrb[0].mxu0 %v1687
      %v1785 = vpop.f32.mrb[0].mxu0
      %v1786 = vadd.f32 0.0, %v1785
      %v1787 = vpop.f32.mrb[0].mxu0
      %v1788 = vpop.f32.mrb[0].mxu0
      %v1789 = vadd.f32 0.0, %v1788
      %v1790 = vpop.f32.mrb[0].mxu0
      %1791 = vmatprep.mubr.bf16.mxu0 0
      %1792 = vmatmul.mubr.bf16.gmra.mrb[0].mxu0 %v1690
      %v1793 = vpop.f32.mrb[0].mxu0
      %v1794 = vadd.f32 0.0, %v1793
      %v1795 = vpop.f32.mrb[0].mxu0
      %v1796 = vpop.f32.mrb[0].mxu0
      %v1797 = vadd.f32 0.0, %v1796
      %v1798 = vpop.f32.mrb[0].mxu0
      %1799 = vmatprep.mubr.bf16.mxu0 0
      %1800 = vmatmul.mubr.bf16.gmra.mrb[0].mxu0 %v1693
      %v1801 = vpop.f32.mrb[0].mxu0
      %v1802 = vadd.f32 0.0, %v1801
      %v1803 = vpop.f32.mrb[0].mxu0
      %v1804 = vpop.f32.mrb[0].mxu0
      %v1805 = vadd.f32 0.0, %v1804
      %v1806 = vpop.f32.mrb[0].mxu0
      %1807 = vdwg.mxu0
      %v1808 = vadd.f32 %v1540, %v1730
      %v1809 = vadd.f32 %v1543, %v1733
      %v1810 = vadd.f32 %v1548, %v1738
      %v1811 = vadd.f32 %v1551, %v1741
      %v1812 = vadd.f32 %v1556, %v1746
      %v1813 = vadd.f32 %v1559, %v1749
      %v1814 = vadd.f32 %v1564, %v1754
      %v1815 = vadd.f32 %v1567, %v1757
      %v1816 = vadd.f32 %v1572, %v1762
      %v1817 = vadd.f32 %v1575, %v1765
      %v1818 = vadd.f32 %v1580, %v1770
      %v1819 = vadd.f32 %v1583, %v1773
      %v1820 = vadd.f32 %v1588, %v1778
      %v1821 = vadd.f32 %v1591, %v1781
      %v1822 = vadd.f32 %v1596, %v1786
      %v1823 = vadd.f32 %v1599, %v1789
      %v1824 = vadd.f32 %v1604, %v1794
      %v1825 = vadd.f32 %v1607, %v1797
      %v1826 = vadd.f32 %v1612, %v1802
      %v1827 = vadd.f32 %v1615, %v1805
      %v1828 = vld [vmem:[#allocation2 + $0x8] sm:$0xff]
      %v1829 = vld [vmem:[#allocation2 + $0x10] sm:$0xff]
      %v1830 = vld [vmem:[#allocation2 + $0x18] sm:$0xff]
      %v1831 = vld [vmem:[#allocation2 + $0x20] sm:$0xff]
      %v1832 = vld [vmem:[#allocation2 + $0x28] sm:$0xff]
      %v1833 = vld [vmem:[#allocation2 + $0x30] sm:$0xff]
      %v1834 = vld [vmem:[#allocation2 + $0x38] sm:$0xff]
      %v1835 = vld [vmem:[#allocation2 + $0x40] sm:$0xff]
      %v1836 = vld [vmem:[#allocation2 + $0x48] sm:$0xff]
      %v1837 = vld [vmem:[#allocation2 + $0x50] sm:$0xff]
      %v1838 = vld [vmem:[#allocation2 + $0x58] sm:$0xff]
      %v1839 = vld [vmem:[#allocation2 + $0x60] sm:$0xff]
      %v1840 = vld [vmem:[#allocation2 + $0x68] sm:$0xff]
      %v1841 = vld [vmem:[#allocation2 + $0x70] sm:$0xff]
      %v1842 = vld [vmem:[#allocation2 + $0x78] sm:$0xff]
      %v1843 = vld [vmem:[#allocation2 + $0x80] sm:$0xff]
      %v1844 = vld [vmem:[#allocation2 + $0x88] sm:$0xff]
      %v1845 = vld [vmem:[#allocation2 + $0x90] sm:$0xff]
      %v1846 = vld [vmem:[#allocation2 + $0x98] sm:$0xff]
      %v1847 = vld [vmem:[#allocation2 + $0xa0] sm:$0xff]
      %v1848 = vpack.c.bf16 %v1829, %v1828
      %v1849 = vpack.c.bf16 %v1831, %v1830
      %v1850 = vpack.c.bf16 %v1833, %v1832
      %v1851 = vpack.c.bf16 %v1835, %v1834
      %v1852 = vpack.c.bf16 %v1837, %v1836
      %v1853 = vpack.c.bf16 %v1839, %v1838
      %v1854 = vpack.c.bf16 %v1841, %v1840
      %v1855 = vpack.c.bf16 %v1843, %v1842
      %v1856 = vpack.c.bf16 %v1845, %v1844
      %v1857 = vpack.c.bf16 %v1847, %v1846
      %s1858 = scalar_lea.vmem %s5, 48
      %v1859 = vld [vmem:[%s1858] sm:$0xf]
      %v1860 = vld [vmem:[%s1858 + $0x4] sm:$0xf]
      %v1861 = vld [vmem:[%s1858 + $0x8] sm:$0xf]
      %v1862 = vld [vmem:[%s1858 + $0xc] sm:$0xf]
      %v1867 = vunpack.c.l.b16 %v1859
      %v1868 = vunpack.c.l.b16 %v1860
      %v1869 = vunpack.c.l.b16 %v1861
      %v1870 = vunpack.c.l.b16 %v1862
      %v1871 = vpack.c.b16 %v1868, %v1867
      %v1872 = vpack.c.b16 %v1870, %v1869
      %v1876 = vsel %vm755, %v1848, 0
      %v1879 = vsel %vm755, %v1849, 0
      %v1882 = vsel %vm755, %v1850, 0
      %v1885 = vsel %vm755, %v1851, 0
      %v1888 = vsel %vm755, %v1852, 0
      %v1891 = vsel %vm755, %v1853, 0
      %v1894 = vsel %vm755, %v1854, 0
      %v1897 = vsel %vm755, %v1855, 0
      %v1900 = vsel %vm755, %v1856, 0
      %v1903 = vsel %vm755, %v1857, 0
      %1905 = vmatprep.subr.bf16.mxu0 0
      %1906 = vmatpush1.bf16.msra.mxu0 %v1871
      %1907 = vmatprep.subr.bf16.mxu0 0
      %1908 = vmatpush1.bf16.msra.mxu0 %v1872
      %1909 = vmatprep.subr.bf16.mxu0 0
      %1910 = vmatpush1.bf16.msra.mxu0 0
      %1911 = vmatprep.subr.bf16.mxu0 0
      %1912 = vmatpush1.bf16.msra.mxu0 0
      %1913 = vmatprep.subr.bf16.mxu0 0
      %1914 = vmatpush1.bf16.msra.mxu0 0
      %1915 = vmatprep.subr.bf16.mxu0 0
      %1916 = vmatpush1.bf16.msra.mxu0 0
      %1917 = vmatprep.subr.bf16.mxu0 0
      %1918 = vmatpush1.bf16.msra.mxu0 0
      %1919 = vmatprep.subr.bf16.mxu0 0
      %1920 = vmatpush1.bf16.msra.mxu0 0
      %1921 = vmatprep.subr.bf16.mxu0 0
      %1922 = vmatpush1.bf16.msra.mxu0 0
      %1923 = vmatprep.subr.bf16.mxu0 0
      %1924 = vmatpush1.bf16.msra.mxu0 0
      %1925 = vmatprep.subr.bf16.mxu0 0
      %1926 = vmatpush1.bf16.msra.mxu0 0
      %1927 = vmatprep.subr.bf16.mxu0 0
      %1928 = vmatpush1.bf16.msra.mxu0 0
      %1929 = vmatprep.subr.bf16.mxu0 0
      %1930 = vmatpush1.bf16.msra.mxu0 0
      %1931 = vmatprep.subr.bf16.mxu0 0
      %1932 = vmatpush1.bf16.msra.mxu0 0
      %1933 = vmatprep.subr.bf16.mxu0 0
      %1934 = vmatpush1.bf16.msra.mxu0 0
      %1935 = vmatprep.subr.bf16.mxu0 0
      %1936 = vmatpush1.bf16.msra.mxu0 0
      %1937 = vmatprep.mubr.bf16.mxu0 0
      %1938 = vmatmul.mubr.bf16.gmra.mrb[0].mxu0 %v1876
      %v1939 = vpop.f32.mrb[0].mxu0
      %v1940 = vadd.f32 0.0, %v1939
      %v1941 = vpop.f32.mrb[0].mxu0
      %v1942 = vpop.f32.mrb[0].mxu0
      %v1943 = vadd.f32 0.0, %v1942
      %v1944 = vpop.f32.mrb[0].mxu0
      %1945 = vmatprep.mubr.bf16.mxu0 0
      %1946 = vmatmul.mubr.bf16.gmra.mrb[0].mxu0 %v1879
      %v1947 = vpop.f32.mrb[0].mxu0
      %v1948 = vadd.f32 0.0, %v1947
      %v1949 = vpop.f32.mrb[0].mxu0
      %v1950 = vpop.f32.mrb[0].mxu0
      %v1951 = vadd.f32 0.0, %v1950
      %v1952 = vpop.f32.mrb[0].mxu0
      %1953 = vmatprep.mubr.bf16.mxu0 0
      %1954 = vmatmul.mubr.bf16.gmra.mrb[0].mxu0 %v1882
      %v1955 = vpop.f32.mrb[0].mxu0
      %v1956 = vadd.f32 0.0, %v1955
      %v1957 = vpop.f32.mrb[0].mxu0
      %v1958 = vpop.f32.mrb[0].mxu0
      %v1959 = vadd.f32 0.0, %v1958
      %v1960 = vpop.f32.mrb[0].mxu0
      %1961 = vmatprep.mubr.bf16.mxu0 0
      %1962 = vmatmul.mubr.bf16.gmra.mrb[0].mxu0 %v1885
      %v1963 = vpop.f32.mrb[0].mxu0
      %v1964 = vadd.f32 0.0, %v1963
      %v1965 = vpop.f32.mrb[0].mxu0
      %v1966 = vpop.f32.mrb[0].mxu0
      %v1967 = vadd.f32 0.0, %v1966
      %v1968 = vpop.f32.mrb[0].mxu0
      %1969 = vmatprep.mubr.bf16.mxu0 0
      %1970 = vmatmul.mubr.bf16.gmra.mrb[0].mxu0 %v1888
      %v1971 = vpop.f32.mrb[0].mxu0
      %v1972 = vadd.f32 0.0, %v1971
      %v1973 = vpop.f32.mrb[0].mxu0
      %v1974 = vpop.f32.mrb[0].mxu0
      %v1975 = vadd.f32 0.0, %v1974
      %v1976 = vpop.f32.mrb[0].mxu0
      %1977 = vmatprep.mubr.bf16.mxu0 0
      %1978 = vmatmul.mubr.bf16.gmra.mrb[0].mxu0 %v1891
      %v1979 = vpop.f32.mrb[0].mxu0
      %v1980 = vadd.f32 0.0, %v1979
      %v1981 = vpop.f32.mrb[0].mxu0
      %v1982 = vpop.f32.mrb[0].mxu0
      %v1983 = vadd.f32 0.0, %v1982
      %v1984 = vpop.f32.mrb[0].mxu0
      %1985 = vmatprep.mubr.bf16.mxu0 0
      %1986 = vmatmul.mubr.bf16.gmra.mrb[0].mxu0 %v1894
      %v1987 = vpop.f32.mrb[0].mxu0
      %v1988 = vadd.f32 0.0, %v1987
      %v1989 = vpop.f32.mrb[0].mxu0
      %v1990 = vpop.f32.mrb[0].mxu0
      %v1991 = vadd.f32 0.0, %v1990
      %v1992 = vpop.f32.mrb[0].mxu0
      %1993 = vmatprep.mubr.bf16.mxu0 0
      %1994 = vmatmul.mubr.bf16.gmra.mrb[0].mxu0 %v1897
      %v1995 = vpop.f32.mrb[0].mxu0
      %v1996 = vadd.f32 0.0, %v1995
      %v1997 = vpop.f32.mrb[0].mxu0
      %v1998 = vpop.f32.mrb[0].mxu0
      %v1999 = vadd.f32 0.0, %v1998
      %v2000 = vpop.f32.mrb[0].mxu0
      %2001 = vmatprep.mubr.bf16.mxu0 0
      %2002 = vmatmul.mubr.bf16.gmra.mrb[0].mxu0 %v1900
      %v2003 = vpop.f32.mrb[0].mxu0
      %v2004 = vadd.f32 0.0, %v2003
      %v2005 = vpop.f32.mrb[0].mxu0
      %v2006 = vpop.f32.mrb[0].mxu0
      %v2007 = vadd.f32 0.0, %v2006
      %v2008 = vpop.f32.mrb[0].mxu0
      %2009 = vmatprep.mubr.bf16.mxu0 0
      %2010 = vmatmul.mubr.bf16.gmra.mrb[0].mxu0 %v1903
      %v2011 = vpop.f32.mrb[0].mxu0
      %v2012 = vadd.f32 0.0, %v2011
      %v2013 = vpop.f32.mrb[0].mxu0
      %v2014 = vpop.f32.mrb[0].mxu0
      %v2015 = vadd.f32 0.0, %v2014
      %v2016 = vpop.f32.mrb[0].mxu0
      %2017 = vdwg.mxu0
      %v2018 = vadd.f32 %v1808, %v1940
      %v2019 = vadd.f32 %v1809, %v1943
      %v2020 = vadd.f32 %v1810, %v1948
      %v2021 = vadd.f32 %v1811, %v1951
      %v2022 = vadd.f32 %v1812, %v1956
      %v2023 = vadd.f32 %v1813, %v1959
      %v2024 = vadd.f32 %v1814, %v1964
      %v2025 = vadd.f32 %v1815, %v1967
      %v2026 = vadd.f32 %v1816, %v1972
      %v2027 = vadd.f32 %v1817, %v1975
      %v2028 = vadd.f32 %v1818, %v1980
      %v2029 = vadd.f32 %v1819, %v1983
      %v2030 = vadd.f32 %v1820, %v1988
      %v2031 = vadd.f32 %v1821, %v1991
      %v2032 = vadd.f32 %v1822, %v1996
      %v2033 = vadd.f32 %v1823, %v1999
      %v2034 = vadd.f32 %v1824, %v2004
      %v2035 = vadd.f32 %v1825, %v2007
      %v2036 = vadd.f32 %v1826, %v2012
      %v2037 = vadd.f32 %v1827, %v2015
      %v2038 = vld [vmem:[#allocation2 + $0x9] sm:$0xff]
      %v2039 = vld [vmem:[#allocation2 + $0x11] sm:$0xff]
      %v2040 = vld [vmem:[#allocation2 + $0x19] sm:$0xff]
      %v2041 = vld [vmem:[#allocation2 + $0x21] sm:$0xff]
      %v2042 = vld [vmem:[#allocation2 + $0x29] sm:$0xff]
      %v2043 = vld [vmem:[#allocation2 + $0x31] sm:$0xff]
      %v2044 = vld [vmem:[#allocation2 + $0x39] sm:$0xff]
      %v2045 = vld [vmem:[#allocation2 + $0x41] sm:$0xff]
      %v2046 = vld [vmem:[#allocation2 + $0x49] sm:$0xff]
      %v2047 = vld [vmem:[#allocation2 + $0x51] sm:$0xff]
      %v2048 = vld [vmem:[#allocation2 + $0x59] sm:$0xff]
      %v2049 = vld [vmem:[#allocation2 + $0x61] sm:$0xff]
      %v2050 = vld [vmem:[#allocation2 + $0x69] sm:$0xff]
      %v2051 = vld [vmem:[#allocation2 + $0x71] sm:$0xff]
      %v2052 = vld [vmem:[#allocation2 + $0x79] sm:$0xff]
      %v2053 = vld [vmem:[#allocation2 + $0x81] sm:$0xff]
      %v2054 = vld [vmem:[#allocation2 + $0x89] sm:$0xff]
      %v2055 = vld [vmem:[#allocation2 + $0x91] sm:$0xff]
      %v2056 = vld [vmem:[#allocation2 + $0x99] sm:$0xff]
      %v2057 = vld [vmem:[#allocation2 + $0xa1] sm:$0xff]
      %v2058 = vpack.c.bf16 %v2039, %v2038
      %v2059 = vpack.c.bf16 %v2041, %v2040
      %v2060 = vpack.c.bf16 %v2043, %v2042
      %v2061 = vpack.c.bf16 %v2045, %v2044
      %v2062 = vpack.c.bf16 %v2047, %v2046
      %v2063 = vpack.c.bf16 %v2049, %v2048
      %v2064 = vpack.c.bf16 %v2051, %v2050
      %v2065 = vpack.c.bf16 %v2053, %v2052
      %v2066 = vpack.c.bf16 %v2055, %v2054
      %v2067 = vpack.c.bf16 %v2057, %v2056
      %s2068 = scalar_lea.vmem %s5, 64
      %v2069 = vld [vmem:[%s2068] sm:$0xf]
      %v2070 = vld [vmem:[%s2068 + $0x4] sm:$0xf]
      %v2071 = vld [vmem:[%s2068 + $0x8] sm:$0xf]
      %v2072 = vld [vmem:[%s2068 + $0xc] sm:$0xf]
      %v2077 = vunpack.c.l.b16 %v2069
      %v2078 = vunpack.c.l.b16 %v2070
      %v2079 = vunpack.c.l.b16 %v2071
      %v2080 = vunpack.c.l.b16 %v2072
      %v2081 = vpack.c.b16 %v2078, %v2077
      %v2082 = vpack.c.b16 %v2080, %v2079
      %v2086 = vsel %vm755, %v2058, 0
      %v2089 = vsel %vm755, %v2059, 0
      %v2092 = vsel %vm755, %v2060, 0
      %v2095 = vsel %vm755, %v2061, 0
      %v2098 = vsel %vm755, %v2062, 0
      %v2101 = vsel %vm755, %v2063, 0
      %v2104 = vsel %vm755, %v2064, 0
      %v2107 = vsel %vm755, %v2065, 0
      %v2110 = vsel %vm755, %v2066, 0
      %v2113 = vsel %vm755, %v2067, 0
      %2115 = vmatprep.subr.bf16.mxu0 0
      %2116 = vmatpush1.bf16.msra.mxu0 %v2081
      %2117 = vmatprep.subr.bf16.mxu0 0
      %2118 = vmatpush1.bf16.msra.mxu0 %v2082
      %2119 = vmatprep.subr.bf16.mxu0 0
      %2120 = vmatpush1.bf16.msra.mxu0 0
      %2121 = vmatprep.subr.bf16.mxu0 0
      %2122 = vmatpush1.bf16.msra.mxu0 0
      %2123 = vmatprep.subr.bf16.mxu0 0
      %2124 = vmatpush1.bf16.msra.mxu0 0
      %2125 = vmatprep.subr.bf16.mxu0 0
      %2126 = vmatpush1.bf16.msra.mxu0 0
      %2127 = vmatprep.subr.bf16.mxu0 0
      %2128 = vmatpush1.bf16.msra.mxu0 0
      %2129 = vmatprep.subr.bf16.mxu0 0
      %2130 = vmatpush1.bf16.msra.mxu0 0
      %2131 = vmatprep.subr.bf16.mxu0 0
      %2132 = vmatpush1.bf16.msra.mxu0 0
      %2133 = vmatprep.subr.bf16.mxu0 0
      %2134 = vmatpush1.bf16.msra.mxu0 0
      %2135 = vmatprep.subr.bf16.mxu0 0
      %2136 = vmatpush1.bf16.msra.mxu0 0
      %2137 = vmatprep.subr.bf16.mxu0 0
      %2138 = vmatpush1.bf16.msra.mxu0 0
      %2139 = vmatprep.subr.bf16.mxu0 0
      %2140 = vmatpush1.bf16.msra.mxu0 0
      %2141 = vmatprep.subr.bf16.mxu0 0
      %2142 = vmatpush1.bf16.msra.mxu0 0
      %2143 = vmatprep.subr.bf16.mxu0 0
      %2144 = vmatpush1.bf16.msra.mxu0 0
      %2145 = vmatprep.subr.bf16.mxu0 0
      %2146 = vmatpush1.bf16.msra.mxu0 0
      %2147 = vmatprep.mubr.bf16.mxu0 0
      %2148 = vmatmul.mubr.bf16.gmra.mrb[0].mxu0 %v2086
      %v2149 = vpop.f32.mrb[0].mxu0
      %v2150 = vadd.f32 0.0, %v2149
      %v2151 = vpop.f32.mrb[0].mxu0
      %v2152 = vpop.f32.mrb[0].mxu0
      %v2153 = vadd.f32 0.0, %v2152
      %v2154 = vpop.f32.mrb[0].mxu0
      %2155 = vmatprep.mubr.bf16.mxu0 0
      %2156 = vmatmul.mubr.bf16.gmra.mrb[0].mxu0 %v2089
      %v2157 = vpop.f32.mrb[0].mxu0
      %v2158 = vadd.f32 0.0, %v2157
      %v2159 = vpop.f32.mrb[0].mxu0
      %v2160 = vpop.f32.mrb[0].mxu0
      %v2161 = vadd.f32 0.0, %v2160
      %v2162 = vpop.f32.mrb[0].mxu0
      %2163 = vmatprep.mubr.bf16.mxu0 0
      %2164 = vmatmul.mubr.bf16.gmra.mrb[0].mxu0 %v2092
      %v2165 = vpop.f32.mrb[0].mxu0
      %v2166 = vadd.f32 0.0, %v2165
      %v2167 = vpop.f32.mrb[0].mxu0
      %v2168 = vpop.f32.mrb[0].mxu0
      %v2169 = vadd.f32 0.0, %v2168
      %v2170 = vpop.f32.mrb[0].mxu0
      %2171 = vmatprep.mubr.bf16.mxu0 0
      %2172 = vmatmul.mubr.bf16.gmra.mrb[0].mxu0 %v2095
      %v2173 = vpop.f32.mrb[0].mxu0
      %v2174 = vadd.f32 0.0, %v2173
      %v2175 = vpop.f32.mrb[0].mxu0
      %v2176 = vpop.f32.mrb[0].mxu0
      %v2177 = vadd.f32 0.0, %v2176
      %v2178 = vpop.f32.mrb[0].mxu0
      %2179 = vmatprep.mubr.bf16.mxu0 0
      %2180 = vmatmul.mubr.bf16.gmra.mrb[0].mxu0 %v2098
      %v2181 = vpop.f32.mrb[0].mxu0
      %v2182 = vadd.f32 0.0, %v2181
      %v2183 = vpop.f32.mrb[0].mxu0
      %v2184 = vpop.f32.mrb[0].mxu0
      %v2185 = vadd.f32 0.0, %v2184
      %v2186 = vpop.f32.mrb[0].mxu0
      %2187 = vmatprep.mubr.bf16.mxu0 0
      %2188 = vmatmul.mubr.bf16.gmra.mrb[0].mxu0 %v2101
      %v2189 = vpop.f32.mrb[0].mxu0
      %v2190 = vadd.f32 0.0, %v2189
      %v2191 = vpop.f32.mrb[0].mxu0
      %v2192 = vpop.f32.mrb[0].mxu0
      %v2193 = vadd.f32 0.0, %v2192
      %v2194 = vpop.f32.mrb[0].mxu0
      %2195 = vmatprep.mubr.bf16.mxu0 0
      %2196 = vmatmul.mubr.bf16.gmra.mrb[0].mxu0 %v2104
      %v2197 = vpop.f32.mrb[0].mxu0
      %v2198 = vadd.f32 0.0, %v2197
      %v2199 = vpop.f32.mrb[0].mxu0
      %v2200 = vpop.f32.mrb[0].mxu0
      %v2201 = vadd.f32 0.0, %v2200
      %v2202 = vpop.f32.mrb[0].mxu0
      %2203 = vmatprep.mubr.bf16.mxu0 0
      %2204 = vmatmul.mubr.bf16.gmra.mrb[0].mxu0 %v2107
      %v2205 = vpop.f32.mrb[0].mxu0
      %v2206 = vadd.f32 0.0, %v2205
      %v2207 = vpop.f32.mrb[0].mxu0
      %v2208 = vpop.f32.mrb[0].mxu0
      %v2209 = vadd.f32 0.0, %v2208
      %v2210 = vpop.f32.mrb[0].mxu0
      %2211 = vmatprep.mubr.bf16.mxu0 0
      %2212 = vmatmul.mubr.bf16.gmra.mrb[0].mxu0 %v2110
      %v2213 = vpop.f32.mrb[0].mxu0
      %v2214 = vadd.f32 0.0, %v2213
      %v2215 = vpop.f32.mrb[0].mxu0
      %v2216 = vpop.f32.mrb[0].mxu0
      %v2217 = vadd.f32 0.0, %v2216
      %v2218 = vpop.f32.mrb[0].mxu0
      %2219 = vmatprep.mubr.bf16.mxu0 0
      %2220 = vmatmul.mubr.bf16.gmra.mrb[0].mxu0 %v2113
      %v2221 = vpop.f32.mrb[0].mxu0
      %v2222 = vadd.f32 0.0, %v2221
      %v2223 = vpop.f32.mrb[0].mxu0
      %v2224 = vpop.f32.mrb[0].mxu0
      %v2225 = vadd.f32 0.0, %v2224
      %v2226 = vpop.f32.mrb[0].mxu0
      %2227 = vdwg.mxu0
      %v2228 = vadd.f32 %v2018, %v2150
      %v2229 = vadd.f32 %v2019, %v2153
      %v2230 = vadd.f32 %v2020, %v2158
      %v2231 = vadd.f32 %v2021, %v2161
      %v2232 = vadd.f32 %v2022, %v2166
      %v2233 = vadd.f32 %v2023, %v2169
      %v2234 = vadd.f32 %v2024, %v2174
      %v2235 = vadd.f32 %v2025, %v2177
      %v2236 = vadd.f32 %v2026, %v2182
      %v2237 = vadd.f32 %v2027, %v2185
      %v2238 = vadd.f32 %v2028, %v2190
      %v2239 = vadd.f32 %v2029, %v2193
      %v2240 = vadd.f32 %v2030, %v2198
      %v2241 = vadd.f32 %v2031, %v2201
      %v2242 = vadd.f32 %v2032, %v2206
      %v2243 = vadd.f32 %v2033, %v2209
      %v2244 = vadd.f32 %v2034, %v2214
      %v2245 = vadd.f32 %v2035, %v2217
      %v2246 = vadd.f32 %v2036, %v2222
      %v2247 = vadd.f32 %v2037, %v2225
      %v2248 = vld [vmem:[#allocation2 + $0xa] sm:$0xff]
      %v2249 = vld [vmem:[#allocation2 + $0x12] sm:$0xff]
      %v2250 = vld [vmem:[#allocation2 + $0x1a] sm:$0xff]
      %v2251 = vld [vmem:[#allocation2 + $0x22] sm:$0xff]
      %v2252 = vld [vmem:[#allocation2 + $0x2a] sm:$0xff]
      %v2253 = vld [vmem:[#allocation2 + $0x32] sm:$0xff]
      %v2254 = vld [vmem:[#allocation2 + $0x3a] sm:$0xff]
      %v2255 = vld [vmem:[#allocation2 + $0x42] sm:$0xff]
      %v2256 = vld [vmem:[#allocation2 + $0x4a] sm:$0xff]
      %v2257 = vld [vmem:[#allocation2 + $0x52] sm:$0xff]
      %v2258 = vld [vmem:[#allocation2 + $0x5a] sm:$0xff]
      %v2259 = vld [vmem:[#allocation2 + $0x62] sm:$0xff]
      %v2260 = vld [vmem:[#allocation2 + $0x6a] sm:$0xff]
      %v2261 = vld [vmem:[#allocation2 + $0x72] sm:$0xff]
      %v2262 = vld [vmem:[#allocation2 + $0x7a] sm:$0xff]
      %v2263 = vld [vmem:[#allocation2 + $0x82] sm:$0xff]
      %v2264 = vld [vmem:[#allocation2 + $0x8a] sm:$0xff]
      %v2265 = vld [vmem:[#allocation2 + $0x92] sm:$0xff]
      %v2266 = vld [vmem:[#allocation2 + $0x9a] sm:$0xff]
      %v2267 = vld [vmem:[#allocation2 + $0xa2] sm:$0xff]
      %v2268 = vpack.c.bf16 %v2249, %v2248
      %v2269 = vpack.c.bf16 %v2251, %v2250
      %v2270 = vpack.c.bf16 %v2253, %v2252
      %v2271 = vpack.c.bf16 %v2255, %v2254
      %v2272 = vpack.c.bf16 %v2257, %v2256
      %v2273 = vpack.c.bf16 %v2259, %v2258
      %v2274 = vpack.c.bf16 %v2261, %v2260
      %v2275 = vpack.c.bf16 %v2263, %v2262
      %v2276 = vpack.c.bf16 %v2265, %v2264
      %v2277 = vpack.c.bf16 %v2267, %v2266
      %s2278 = scalar_lea.vmem %s5, 80
      %v2279 = vld [vmem:[%s2278] sm:$0xf]
      %v2280 = vld [vmem:[%s2278 + $0x4] sm:$0xf]
      %v2281 = vld [vmem:[%s2278 + $0x8] sm:$0xf]
      %v2282 = vld [vmem:[%s2278 + $0xc] sm:$0xf]
      %v2287 = vunpack.c.l.b16 %v2279
      %v2288 = vunpack.c.l.b16 %v2280
      %v2289 = vunpack.c.l.b16 %v2281
      %v2290 = vunpack.c.l.b16 %v2282
      %v2291 = vpack.c.b16 %v2288, %v2287
      %v2292 = vpack.c.b16 %v2290, %v2289
      %v2296 = vsel %vm755, %v2268, 0
      %v2299 = vsel %vm755, %v2269, 0
      %v2302 = vsel %vm755, %v2270, 0
      %v2305 = vsel %vm755, %v2271, 0
      %v2308 = vsel %vm755, %v2272, 0
      %v2311 = vsel %vm755, %v2273, 0
      %v2314 = vsel %vm755, %v2274, 0
      %v2317 = vsel %vm755, %v2275, 0
      %v2320 = vsel %vm755, %v2276, 0
      %v2323 = vsel %vm755, %v2277, 0
      %2325 = vmatprep.subr.bf16.mxu0 0
      %2326 = vmatpush1.bf16.msra.mxu0 %v2291
      %2327 = vmatprep.subr.bf16.mxu0 0
      %2328 = vmatpush1.bf16.msra.mxu0 %v2292
      %2329 = vmatprep.subr.bf16.mxu0 0
      %2330 = vmatpush1.bf16.msra.mxu0 0
      %2331 = vmatprep.subr.bf16.mxu0 0
      %2332 = vmatpush1.bf16.msra.mxu0 0
      %2333 = vmatprep.subr.bf16.mxu0 0
      %2334 = vmatpush1.bf16.msra.mxu0 0
      %2335 = vmatprep.subr.bf16.mxu0 0
      %2336 = vmatpush1.bf16.msra.mxu0 0
      %2337 = vmatprep.subr.bf16.mxu0 0
      %2338 = vmatpush1.bf16.msra.mxu0 0
      %2339 = vmatprep.subr.bf16.mxu0 0
      %2340 = vmatpush1.bf16.msra.mxu0 0
      %2341 = vmatprep.subr.bf16.mxu0 0
      %2342 = vmatpush1.bf16.msra.mxu0 0
      %2343 = vmatprep.subr.bf16.mxu0 0
      %2344 = vmatpush1.bf16.msra.mxu0 0
      %2345 = vmatprep.subr.bf16.mxu0 0
      %2346 = vmatpush1.bf16.msra.mxu0 0
      %2347 = vmatprep.subr.bf16.mxu0 0
      %2348 = vmatpush1.bf16.msra.mxu0 0
      %2349 = vmatprep.subr.bf16.mxu0 0
      %2350 = vmatpush1.bf16.msra.mxu0 0
      %2351 = vmatprep.subr.bf16.mxu0 0
      %2352 = vmatpush1.bf16.msra.mxu0 0
      %2353 = vmatprep.subr.bf16.mxu0 0
      %2354 = vmatpush1.bf16.msra.mxu0 0
      %2355 = vmatprep.subr.bf16.mxu0 0
      %2356 = vmatpush1.bf16.msra.mxu0 0
      %2357 = vmatprep.mubr.bf16.mxu0 0
      %2358 = vmatmul.mubr.bf16.gmra.mrb[0].mxu0 %v2296
      %v2359 = vpop.f32.mrb[0].mxu0
      %v2360 = vadd.f32 0.0, %v2359
      %v2361 = vpop.f32.mrb[0].mxu0
      %v2362 = vpop.f32.mrb[0].mxu0
      %v2363 = vadd.f32 0.0, %v2362
      %v2364 = vpop.f32.mrb[0].mxu0
      %2365 = vmatprep.mubr.bf16.mxu0 0
      %2366 = vmatmul.mubr.bf16.gmra.mrb[0].mxu0 %v2299
      %v2367 = vpop.f32.mrb[0].mxu0
      %v2368 = vadd.f32 0.0, %v2367
      %v2369 = vpop.f32.mrb[0].mxu0
      %v2370 = vpop.f32.mrb[0].mxu0
      %v2371 = vadd.f32 0.0, %v2370
      %v2372 = vpop.f32.mrb[0].mxu0
      %2373 = vmatprep.mubr.bf16.mxu0 0
      %2374 = vmatmul.mubr.bf16.gmra.mrb[0].mxu0 %v2302
      %v2375 = vpop.f32.mrb[0].mxu0
      %v2376 = vadd.f32 0.0, %v2375
      %v2377 = vpop.f32.mrb[0].mxu0
      %v2378 = vpop.f32.mrb[0].mxu0
      %v2379 = vadd.f32 0.0, %v2378
      %v2380 = vpop.f32.mrb[0].mxu0
      %2381 = vmatprep.mubr.bf16.mxu0 0
      %2382 = vmatmul.mubr.bf16.gmra.mrb[0].mxu0 %v2305
      %v2383 = vpop.f32.mrb[0].mxu0
      %v2384 = vadd.f32 0.0, %v2383
      %v2385 = vpop.f32.mrb[0].mxu0
      %v2386 = vpop.f32.mrb[0].mxu0
      %v2387 = vadd.f32 0.0, %v2386
      %v2388 = vpop.f32.mrb[0].mxu0
      %2389 = vmatprep.mubr.bf16.mxu0 0
      %2390 = vmatmul.mubr.bf16.gmra.mrb[0].mxu0 %v2308
      %v2391 = vpop.f32.mrb[0].mxu0
      %v2392 = vadd.f32 0.0, %v2391
      %v2393 = vpop.f32.mrb[0].mxu0
      %v2394 = vpop.f32.mrb[0].mxu0
      %v2395 = vadd.f32 0.0, %v2394
      %v2396 = vpop.f32.mrb[0].mxu0
      %2397 = vmatprep.mubr.bf16.mxu0 0
      %2398 = vmatmul.mubr.bf16.gmra.mrb[0].mxu0 %v2311
      %v2399 = vpop.f32.mrb[0].mxu0
      %v2400 = vadd.f32 0.0, %v2399
      %v2401 = vpop.f32.mrb[0].mxu0
      %v2402 = vpop.f32.mrb[0].mxu0
      %v2403 = vadd.f32 0.0, %v2402
      %v2404 = vpop.f32.mrb[0].mxu0
      %2405 = vmatprep.mubr.bf16.mxu0 0
      %2406 = vmatmul.mubr.bf16.gmra.mrb[0].mxu0 %v2314
      %v2407 = vpop.f32.mrb[0].mxu0
      %v2408 = vadd.f32 0.0, %v2407
      %v2409 = vpop.f32.mrb[0].mxu0
      %v2410 = vpop.f32.mrb[0].mxu0
      %v2411 = vadd.f32 0.0, %v2410
      %v2412 = vpop.f32.mrb[0].mxu0
      %2413 = vmatprep.mubr.bf16.mxu0 0
      %2414 = vmatmul.mubr.bf16.gmra.mrb[0].mxu0 %v2317
      %v2415 = vpop.f32.mrb[0].mxu0
      %v2416 = vadd.f32 0.0, %v2415
      %v2417 = vpop.f32.mrb[0].mxu0
      %v2418 = vpop.f32.mrb[0].mxu0
      %v2419 = vadd.f32 0.0, %v2418
      %v2420 = vpop.f32.mrb[0].mxu0
      %2421 = vmatprep.mubr.bf16.mxu0 0
      %2422 = vmatmul.mubr.bf16.gmra.mrb[0].mxu0 %v2320
      %v2423 = vpop.f32.mrb[0].mxu0
      %v2424 = vadd.f32 0.0, %v2423
      %v2425 = vpop.f32.mrb[0].mxu0
      %v2426 = vpop.f32.mrb[0].mxu0
      %v2427 = vadd.f32 0.0, %v2426
      %v2428 = vpop.f32.mrb[0].mxu0
      %2429 = vmatprep.mubr.bf16.mxu0 0
      %2430 = vmatmul.mubr.bf16.gmra.mrb[0].mxu0 %v2323
      %v2431 = vpop.f32.mrb[0].mxu0
      %v2432 = vadd.f32 0.0, %v2431
      %v2433 = vpop.f32.mrb[0].mxu0
      %v2434 = vpop.f32.mrb[0].mxu0
      %v2435 = vadd.f32 0.0, %v2434
      %v2436 = vpop.f32.mrb[0].mxu0
      %2437 = vdwg.mxu0
      %v2438 = vadd.f32 %v2228, %v2360
      %v2439 = vadd.f32 %v2229, %v2363
      %v2440 = vadd.f32 %v2230, %v2368
      %v2441 = vadd.f32 %v2231, %v2371
      %v2442 = vadd.f32 %v2232, %v2376
      %v2443 = vadd.f32 %v2233, %v2379
      %v2444 = vadd.f32 %v2234, %v2384
      %v2445 = vadd.f32 %v2235, %v2387
      %v2446 = vadd.f32 %v2236, %v2392
      %v2447 = vadd.f32 %v2237, %v2395
      %v2448 = vadd.f32 %v2238, %v2400
      %v2449 = vadd.f32 %v2239, %v2403
      %v2450 = vadd.f32 %v2240, %v2408
      %v2451 = vadd.f32 %v2241, %v2411
      %v2452 = vadd.f32 %v2242, %v2416
      %v2453 = vadd.f32 %v2243, %v2419
      %v2454 = vadd.f32 %v2244, %v2424
      %v2455 = vadd.f32 %v2245, %v2427
      %v2456 = vadd.f32 %v2246, %v2432
      %v2457 = vadd.f32 %v2247, %v2435
      %v2458 = vld [vmem:[#allocation2 + $0xb] sm:$0xff]
      %v2459 = vld [vmem:[#allocation2 + $0x13] sm:$0xff]
      %v2460 = vld [vmem:[#allocation2 + $0x1b] sm:$0xff]
      %v2461 = vld [vmem:[#allocation2 + $0x23] sm:$0xff]
      %v2462 = vld [vmem:[#allocation2 + $0x2b] sm:$0xff]
      %v2463 = vld [vmem:[#allocation2 + $0x33] sm:$0xff]
      %v2464 = vld [vmem:[#allocation2 + $0x3b] sm:$0xff]
      %v2465 = vld [vmem:[#allocation2 + $0x43] sm:$0xff]
      %v2466 = vld [vmem:[#allocation2 + $0x4b] sm:$0xff]
      %v2467 = vld [vmem:[#allocation2 + $0x53] sm:$0xff]
      %v2468 = vld [vmem:[#allocation2 + $0x5b] sm:$0xff]
      %v2469 = vld [vmem:[#allocation2 + $0x63] sm:$0xff]
      %v2470 = vld [vmem:[#allocation2 + $0x6b] sm:$0xff]
      %v2471 = vld [vmem:[#allocation2 + $0x73] sm:$0xff]
      %v2472 = vld [vmem:[#allocation2 + $0x7b] sm:$0xff]
      %v2473 = vld [vmem:[#allocation2 + $0x83] sm:$0xff]
      %v2474 = vld [vmem:[#allocation2 + $0x8b] sm:$0xff]
      %v2475 = vld [vmem:[#allocation2 + $0x93] sm:$0xff]
      %v2476 = vld [vmem:[#allocation2 + $0x9b] sm:$0xff]
      %v2477 = vld [vmem:[#allocation2 + $0xa3] sm:$0xff]
      %v2478 = vpack.c.bf16 %v2459, %v2458
      %v2479 = vpack.c.bf16 %v2461, %v2460
      %v2480 = vpack.c.bf16 %v2463, %v2462
      %v2481 = vpack.c.bf16 %v2465, %v2464
      %v2482 = vpack.c.bf16 %v2467, %v2466
      %v2483 = vpack.c.bf16 %v2469, %v2468
      %v2484 = vpack.c.bf16 %v2471, %v2470
      %v2485 = vpack.c.bf16 %v2473, %v2472
      %v2486 = vpack.c.bf16 %v2475, %v2474
      %v2487 = vpack.c.bf16 %v2477, %v2476
      %s2488 = scalar_lea.vmem %s5, 96
      %v2489 = vld [vmem:[%s2488] sm:$0xf]
      %v2490 = vld [vmem:[%s2488 + $0x4] sm:$0xf]
      %v2491 = vld [vmem:[%s2488 + $0x8] sm:$0xf]
      %v2492 = vld [vmem:[%s2488 + $0xc] sm:$0xf]
      %v2497 = vunpack.c.l.b16 %v2489
      %v2498 = vunpack.c.l.b16 %v2490
      %v2499 = vunpack.c.l.b16 %v2491
      %v2500 = vunpack.c.l.b16 %v2492
      %v2501 = vpack.c.b16 %v2498, %v2497
      %v2502 = vpack.c.b16 %v2500, %v2499
      %v2506 = vsel %vm755, %v2478, 0
      %v2509 = vsel %vm755, %v2479, 0
      %v2512 = vsel %vm755, %v2480, 0
      %v2515 = vsel %vm755, %v2481, 0
      %v2518 = vsel %vm755, %v2482, 0
      %v2521 = vsel %vm755, %v2483, 0
      %v2524 = vsel %vm755, %v2484, 0
      %v2527 = vsel %vm755, %v2485, 0
      %v2530 = vsel %vm755, %v2486, 0
      %v2533 = vsel %vm755, %v2487, 0
      %2535 = vmatprep.subr.bf16.mxu0 0
      %2536 = vmatpush1.bf16.msra.mxu0 %v2501
      %2537 = vmatprep.subr.bf16.mxu0 0
      %2538 = vmatpush1.bf16.msra.mxu0 %v2502
      %2539 = vmatprep.subr.bf16.mxu0 0
      %2540 = vmatpush1.bf16.msra.mxu0 0
      %2541 = vmatprep.subr.bf16.mxu0 0
      %2542 = vmatpush1.bf16.msra.mxu0 0
      %2543 = vmatprep.subr.bf16.mxu0 0
      %2544 = vmatpush1.bf16.msra.mxu0 0
      %2545 = vmatprep.subr.bf16.mxu0 0
      %2546 = vmatpush1.bf16.msra.mxu0 0
      %2547 = vmatprep.subr.bf16.mxu0 0
      %2548 = vmatpush1.bf16.msra.mxu0 0
      %2549 = vmatprep.subr.bf16.mxu0 0
      %2550 = vmatpush1.bf16.msra.mxu0 0
      %2551 = vmatprep.subr.bf16.mxu0 0
      %2552 = vmatpush1.bf16.msra.mxu0 0
      %2553 = vmatprep.subr.bf16.mxu0 0
      %2554 = vmatpush1.bf16.msra.mxu0 0
      %2555 = vmatprep.subr.bf16.mxu0 0
      %2556 = vmatpush1.bf16.msra.mxu0 0
      %2557 = vmatprep.subr.bf16.mxu0 0
      %2558 = vmatpush1.bf16.msra.mxu0 0
      %2559 = vmatprep.subr.bf16.mxu0 0
      %2560 = vmatpush1.bf16.msra.mxu0 0
      %2561 = vmatprep.subr.bf16.mxu0 0
      %2562 = vmatpush1.bf16.msra.mxu0 0
      %2563 = vmatprep.subr.bf16.mxu0 0
      %2564 = vmatpush1.bf16.msra.mxu0 0
      %2565 = vmatprep.subr.bf16.mxu0 0
      %2566 = vmatpush1.bf16.msra.mxu0 0
      %2567 = vmatprep.mubr.bf16.mxu0 0
      %2568 = vmatmul.mubr.bf16.gmra.mrb[0].mxu0 %v2506
      %v2569 = vpop.f32.mrb[0].mxu0
      %v2570 = vadd.f32 0.0, %v2569
      %v2571 = vpop.f32.mrb[0].mxu0
      %v2572 = vpop.f32.mrb[0].mxu0
      %v2573 = vadd.f32 0.0, %v2572
      %v2574 = vpop.f32.mrb[0].mxu0
      %2575 = vmatprep.mubr.bf16.mxu0 0
      %2576 = vmatmul.mubr.bf16.gmra.mrb[0].mxu0 %v2509
      %v2577 = vpop.f32.mrb[0].mxu0
      %v2578 = vadd.f32 0.0, %v2577
      %v2579 = vpop.f32.mrb[0].mxu0
      %v2580 = vpop.f32.mrb[0].mxu0
      %v2581 = vadd.f32 0.0, %v2580
      %v2582 = vpop.f32.mrb[0].mxu0
      %2583 = vmatprep.mubr.bf16.mxu0 0
      %2584 = vmatmul.mubr.bf16.gmra.mrb[0].mxu0 %v2512
      %v2585 = vpop.f32.mrb[0].mxu0
      %v2586 = vadd.f32 0.0, %v2585
      %v2587 = vpop.f32.mrb[0].mxu0
      %v2588 = vpop.f32.mrb[0].mxu0
      %v2589 = vadd.f32 0.0, %v2588
      %v2590 = vpop.f32.mrb[0].mxu0
      %2591 = vmatprep.mubr.bf16.mxu0 0
      %2592 = vmatmul.mubr.bf16.gmra.mrb[0].mxu0 %v2515
      %v2593 = vpop.f32.mrb[0].mxu0
      %v2594 = vadd.f32 0.0, %v2593
      %v2595 = vpop.f32.mrb[0].mxu0
      %v2596 = vpop.f32.mrb[0].mxu0
      %v2597 = vadd.f32 0.0, %v2596
      %v2598 = vpop.f32.mrb[0].mxu0
      %2599 = vmatprep.mubr.bf16.mxu0 0
      %2600 = vmatmul.mubr.bf16.gmra.mrb[0].mxu0 %v2518
      %v2601 = vpop.f32.mrb[0].mxu0
      %v2602 = vadd.f32 0.0, %v2601
      %v2603 = vpop.f32.mrb[0].mxu0
      %v2604 = vpop.f32.mrb[0].mxu0
      %v2605 = vadd.f32 0.0, %v2604
      %v2606 = vpop.f32.mrb[0].mxu0
      %2607 = vmatprep.mubr.bf16.mxu0 0
      %2608 = vmatmul.mubr.bf16.gmra.mrb[0].mxu0 %v2521
      %v2609 = vpop.f32.mrb[0].mxu0
      %v2610 = vadd.f32 0.0, %v2609
      %v2611 = vpop.f32.mrb[0].mxu0
      %v2612 = vpop.f32.mrb[0].mxu0
      %v2613 = vadd.f32 0.0, %v2612
      %v2614 = vpop.f32.mrb[0].mxu0
      %2615 = vmatprep.mubr.bf16.mxu0 0
      %2616 = vmatmul.mubr.bf16.gmra.mrb[0].mxu0 %v2524
      %v2617 = vpop.f32.mrb[0].mxu0
      %v2618 = vadd.f32 0.0, %v2617
      %v2619 = vpop.f32.mrb[0].mxu0
      %v2620 = vpop.f32.mrb[0].mxu0
      %v2621 = vadd.f32 0.0, %v2620
      %v2622 = vpop.f32.mrb[0].mxu0
      %2623 = vmatprep.mubr.bf16.mxu0 0
      %2624 = vmatmul.mubr.bf16.gmra.mrb[0].mxu0 %v2527
      %v2625 = vpop.f32.mrb[0].mxu0
      %v2626 = vadd.f32 0.0, %v2625
      %v2627 = vpop.f32.mrb[0].mxu0
      %v2628 = vpop.f32.mrb[0].mxu0
      %v2629 = vadd.f32 0.0, %v2628
      %v2630 = vpop.f32.mrb[0].mxu0
      %2631 = vmatprep.mubr.bf16.mxu0 0
      %2632 = vmatmul.mubr.bf16.gmra.mrb[0].mxu0 %v2530
      %v2633 = vpop.f32.mrb[0].mxu0
      %v2634 = vadd.f32 0.0, %v2633
      %v2635 = vpop.f32.mrb[0].mxu0
      %v2636 = vpop.f32.mrb[0].mxu0
      %v2637 = vadd.f32 0.0, %v2636
      %v2638 = vpop.f32.mrb[0].mxu0
      %2639 = vmatprep.mubr.bf16.mxu0 0
      %2640 = vmatmul.mubr.bf16.gmra.mrb[0].mxu0 %v2533
      %v2641 = vpop.f32.mrb[0].mxu0
      %v2642 = vadd.f32 0.0, %v2641
      %v2643 = vpop.f32.mrb[0].mxu0
      %v2644 = vpop.f32.mrb[0].mxu0
      %v2645 = vadd.f32 0.0, %v2644
      %v2646 = vpop.f32.mrb[0].mxu0
      %2647 = vdwg.mxu0
      %v2648 = vadd.f32 %v2438, %v2570
      %v2649 = vadd.f32 %v2439, %v2573
      %v2650 = vadd.f32 %v2440, %v2578
      %v2651 = vadd.f32 %v2441, %v2581
      %v2652 = vadd.f32 %v2442, %v2586
      %v2653 = vadd.f32 %v2443, %v2589
      %v2654 = vadd.f32 %v2444, %v2594
      %v2655 = vadd.f32 %v2445, %v2597
      %v2656 = vadd.f32 %v2446, %v2602
      %v2657 = vadd.f32 %v2447, %v2605
      %v2658 = vadd.f32 %v2448, %v2610
      %v2659 = vadd.f32 %v2449, %v2613
      %v2660 = vadd.f32 %v2450, %v2618
      %v2661 = vadd.f32 %v2451, %v2621
      %v2662 = vadd.f32 %v2452, %v2626
      %v2663 = vadd.f32 %v2453, %v2629
      %v2664 = vadd.f32 %v2454, %v2634
      %v2665 = vadd.f32 %v2455, %v2637
      %v2666 = vadd.f32 %v2456, %v2642
      %v2667 = vadd.f32 %v2457, %v2645
      %v2668 = vld [vmem:[#allocation2 + $0xc] sm:$0xff]
      %v2669 = vld [vmem:[#allocation2 + $0x14] sm:$0xff]
      %v2670 = vld [vmem:[#allocation2 + $0x1c] sm:$0xff]
      %v2671 = vld [vmem:[#allocation2 + $0x24] sm:$0xff]
      %v2672 = vld [vmem:[#allocation2 + $0x2c] sm:$0xff]
      %v2673 = vld [vmem:[#allocation2 + $0x34] sm:$0xff]
      %v2674 = vld [vmem:[#allocation2 + $0x3c] sm:$0xff]
      %v2675 = vld [vmem:[#allocation2 + $0x44] sm:$0xff]
      %v2676 = vld [vmem:[#allocation2 + $0x4c] sm:$0xff]
      %v2677 = vld [vmem:[#allocation2 + $0x54] sm:$0xff]
      %v2678 = vld [vmem:[#allocation2 + $0x5c] sm:$0xff]
      %v2679 = vld [vmem:[#allocation2 + $0x64] sm:$0xff]
      %v2680 = vld [vmem:[#allocation2 + $0x6c] sm:$0xff]
      %v2681 = vld [vmem:[#allocation2 + $0x74] sm:$0xff]
      %v2682 = vld [vmem:[#allocation2 + $0x7c] sm:$0xff]
      %v2683 = vld [vmem:[#allocation2 + $0x84] sm:$0xff]
      %v2684 = vld [vmem:[#allocation2 + $0x8c] sm:$0xff]
      %v2685 = vld [vmem:[#allocation2 + $0x94] sm:$0xff]
      %v2686 = vld [vmem:[#allocation2 + $0x9c] sm:$0xff]
      %v2687 = vld [vmem:[#allocation2 + $0xa4] sm:$0xff]
      %v2688 = vpack.c.bf16 %v2669, %v2668
      %v2689 = vpack.c.bf16 %v2671, %v2670
      %v2690 = vpack.c.bf16 %v2673, %v2672
      %v2691 = vpack.c.bf16 %v2675, %v2674
      %v2692 = vpack.c.bf16 %v2677, %v2676
      %v2693 = vpack.c.bf16 %v2679, %v2678
      %v2694 = vpack.c.bf16 %v2681, %v2680
      %v2695 = vpack.c.bf16 %v2683, %v2682
      %v2696 = vpack.c.bf16 %v2685, %v2684
      %v2697 = vpack.c.bf16 %v2687, %v2686
      %s2698 = scalar_lea.vmem %s5, 112
      %v2699 = vld [vmem:[%s2698] sm:$0xf]
      %v2700 = vld [vmem:[%s2698 + $0x4] sm:$0xf]
      %v2701 = vld [vmem:[%s2698 + $0x8] sm:$0xf]
      %v2702 = vld [vmem:[%s2698 + $0xc] sm:$0xf]
      %v2707 = vunpack.c.l.b16 %v2699
      %v2708 = vunpack.c.l.b16 %v2700
      %v2709 = vunpack.c.l.b16 %v2701
      %v2710 = vunpack.c.l.b16 %v2702
      %v2711 = vpack.c.b16 %v2708, %v2707
      %v2712 = vpack.c.b16 %v2710, %v2709
      %v2716 = vsel %vm755, %v2688, 0
      %v2719 = vsel %vm755, %v2689, 0
      %v2722 = vsel %vm755, %v2690, 0
      %v2725 = vsel %vm755, %v2691, 0
      %v2728 = vsel %vm755, %v2692, 0
      %v2731 = vsel %vm755, %v2693, 0
      %v2734 = vsel %vm755, %v2694, 0
      %v2737 = vsel %vm755, %v2695, 0
      %v2740 = vsel %vm755, %v2696, 0
      %v2743 = vsel %vm755, %v2697, 0
      %2745 = vmatprep.subr.bf16.mxu0 0
      %2746 = vmatpush1.bf16.msra.mxu0 %v2711
      %2747 = vmatprep.subr.bf16.mxu0 0
      %2748 = vmatpush1.bf16.msra.mxu0 %v2712
      %2749 = vmatprep.subr.bf16.mxu0 0
      %2750 = vmatpush1.bf16.msra.mxu0 0
      %2751 = vmatprep.subr.bf16.mxu0 0
      %2752 = vmatpush1.bf16.msra.mxu0 0
      %2753 = vmatprep.subr.bf16.mxu0 0
      %2754 = vmatpush1.bf16.msra.mxu0 0
      %2755 = vmatprep.subr.bf16.mxu0 0
      %2756 = vmatpush1.bf16.msra.mxu0 0
      %2757 = vmatprep.subr.bf16.mxu0 0
      %2758 = vmatpush1.bf16.msra.mxu0 0
      %2759 = vmatprep.subr.bf16.mxu0 0
      %2760 = vmatpush1.bf16.msra.mxu0 0
      %2761 = vmatprep.subr.bf16.mxu0 0
      %2762 = vmatpush1.bf16.msra.mxu0 0
      %2763 = vmatprep.subr.bf16.mxu0 0
      %2764 = vmatpush1.bf16.msra.mxu0 0
      %2765 = vmatprep.subr.bf16.mxu0 0
      %2766 = vmatpush1.bf16.msra.mxu0 0
      %2767 = vmatprep.subr.bf16.mxu0 0
      %2768 = vmatpush1.bf16.msra.mxu0 0
      %2769 = vmatprep.subr.bf16.mxu0 0
      %2770 = vmatpush1.bf16.msra.mxu0 0
      %2771 = vmatprep.subr.bf16.mxu0 0
      %2772 = vmatpush1.bf16.msra.mxu0 0
      %2773 = vmatprep.subr.bf16.mxu0 0
      %2774 = vmatpush1.bf16.msra.mxu0 0
      %2775 = vmatprep.subr.bf16.mxu0 0
      %2776 = vmatpush1.bf16.msra.mxu0 0
      %2777 = vmatprep.mubr.bf16.mxu0 0
      %2778 = vmatmul.mubr.bf16.gmra.mrb[0].mxu0 %v2716
      %v2779 = vpop.f32.mrb[0].mxu0
      %v2780 = vadd.f32 0.0, %v2779
      %v2781 = vpop.f32.mrb[0].mxu0
      %v2782 = vpop.f32.mrb[0].mxu0
      %v2783 = vadd.f32 0.0, %v2782
      %v2784 = vpop.f32.mrb[0].mxu0
      %2785 = vmatprep.mubr.bf16.mxu0 0
      %2786 = vmatmul.mubr.bf16.gmra.mrb[0].mxu0 %v2719
      %v2787 = vpop.f32.mrb[0].mxu0
      %v2788 = vadd.f32 0.0, %v2787
      %v2789 = vpop.f32.mrb[0].mxu0
      %v2790 = vpop.f32.mrb[0].mxu0
      %v2791 = vadd.f32 0.0, %v2790
      %v2792 = vpop.f32.mrb[0].mxu0
      %2793 = vmatprep.mubr.bf16.mxu0 0
      %2794 = vmatmul.mubr.bf16.gmra.mrb[0].mxu0 %v2722
      %v2795 = vpop.f32.mrb[0].mxu0
      %v2796 = vadd.f32 0.0, %v2795
      %v2797 = vpop.f32.mrb[0].mxu0
      %v2798 = vpop.f32.mrb[0].mxu0
      %v2799 = vadd.f32 0.0, %v2798
      %v2800 = vpop.f32.mrb[0].mxu0
      %2801 = vmatprep.mubr.bf16.mxu0 0
      %2802 = vmatmul.mubr.bf16.gmra.mrb[0].mxu0 %v2725
      %v2803 = vpop.f32.mrb[0].mxu0
      %v2804 = vadd.f32 0.0, %v2803
      %v2805 = vpop.f32.mrb[0].mxu0
      %v2806 = vpop.f32.mrb[0].mxu0
      %v2807 = vadd.f32 0.0, %v2806
      %v2808 = vpop.f32.mrb[0].mxu0
      %2809 = vmatprep.mubr.bf16.mxu0 0
      %2810 = vmatmul.mubr.bf16.gmra.mrb[0].mxu0 %v2728
      %v2811 = vpop.f32.mrb[0].mxu0
      %v2812 = vadd.f32 0.0, %v2811
      %v2813 = vpop.f32.mrb[0].mxu0
      %v2814 = vpop.f32.mrb[0].mxu0
      %v2815 = vadd.f32 0.0, %v2814
      %v2816 = vpop.f32.mrb[0].mxu0
      %2817 = vmatprep.mubr.bf16.mxu0 0
      %2818 = vmatmul.mubr.bf16.gmra.mrb[0].mxu0 %v2731
      %v2819 = vpop.f32.mrb[0].mxu0
      %v2820 = vadd.f32 0.0, %v2819
      %v2821 = vpop.f32.mrb[0].mxu0
      %v2822 = vpop.f32.mrb[0].mxu0
      %v2823 = vadd.f32 0.0, %v2822
      %v2824 = vpop.f32.mrb[0].mxu0
      %2825 = vmatprep.mubr.bf16.mxu0 0
      %2826 = vmatmul.mubr.bf16.gmra.mrb[0].mxu0 %v2734
      %v2827 = vpop.f32.mrb[0].mxu0
      %v2828 = vadd.f32 0.0, %v2827
      %v2829 = vpop.f32.mrb[0].mxu0
      %v2830 = vpop.f32.mrb[0].mxu0
      %v2831 = vadd.f32 0.0, %v2830
      %v2832 = vpop.f32.mrb[0].mxu0
      %2833 = vmatprep.mubr.bf16.mxu0 0
      %2834 = vmatmul.mubr.bf16.gmra.mrb[0].mxu0 %v2737
      %v2835 = vpop.f32.mrb[0].mxu0
      %v2836 = vadd.f32 0.0, %v2835
      %v2837 = vpop.f32.mrb[0].mxu0
      %v2838 = vpop.f32.mrb[0].mxu0
      %v2839 = vadd.f32 0.0, %v2838
      %v2840 = vpop.f32.mrb[0].mxu0
      %2841 = vmatprep.mubr.bf16.mxu0 0
      %2842 = vmatmul.mubr.bf16.gmra.mrb[0].mxu0 %v2740
      %v2843 = vpop.f32.mrb[0].mxu0
      %v2844 = vadd.f32 0.0, %v2843
      %v2845 = vpop.f32.mrb[0].mxu0
      %v2846 = vpop.f32.mrb[0].mxu0
      %v2847 = vadd.f32 0.0, %v2846
      %v2848 = vpop.f32.mrb[0].mxu0
      %2849 = vmatprep.mubr.bf16.mxu0 0
      %2850 = vmatmul.mubr.bf16.gmra.mrb[0].mxu0 %v2743
      %v2851 = vpop.f32.mrb[0].mxu0
      %v2852 = vadd.f32 0.0, %v2851
      %v2853 = vpop.f32.mrb[0].mxu0
      %v2854 = vpop.f32.mrb[0].mxu0
      %v2855 = vadd.f32 0.0, %v2854
      %v2856 = vpop.f32.mrb[0].mxu0
      %2857 = vdwg.mxu0
      %v2858 = vadd.f32 %v2648, %v2780
      %v2859 = vadd.f32 %v2649, %v2783
      %v2860 = vadd.f32 %v2650, %v2788
      %v2861 = vadd.f32 %v2651, %v2791
      %v2862 = vadd.f32 %v2652, %v2796
      %v2863 = vadd.f32 %v2653, %v2799
      %v2864 = vadd.f32 %v2654, %v2804
      %v2865 = vadd.f32 %v2655, %v2807
      %v2866 = vadd.f32 %v2656, %v2812
      %v2867 = vadd.f32 %v2657, %v2815
      %v2868 = vadd.f32 %v2658, %v2820
      %v2869 = vadd.f32 %v2659, %v2823
      %v2870 = vadd.f32 %v2660, %v2828
      %v2871 = vadd.f32 %v2661, %v2831
      %v2872 = vadd.f32 %v2662, %v2836
      %v2873 = vadd.f32 %v2663, %v2839
      %v2874 = vadd.f32 %v2664, %v2844
      %v2875 = vadd.f32 %v2665, %v2847
      %v2876 = vadd.f32 %v2666, %v2852
      %v2877 = vadd.f32 %v2667, %v2855
      %v2878 = vld [vmem:[%s6] sm:$0x1]
      %v2880 = vlaneseq
      %v2881 = vshrl.u32 %v2880, 7
      %v2882 = vsub.s32 0, %v2881
      %v2883 = vrot.slane %v2878, %v2882
      %v2885 = vadd.f32 %v2858, %v2883
      %v2886 = vadd.f32 %v2859, %v2883
      %v2887 = vadd.f32 %v2860, %v2883
      %v2888 = vadd.f32 %v2861, %v2883
      %v2889 = vadd.f32 %v2862, %v2883
      %v2890 = vadd.f32 %v2863, %v2883
      %v2891 = vadd.f32 %v2864, %v2883
      %v2892 = vadd.f32 %v2865, %v2883
      %v2893 = vadd.f32 %v2866, %v2883
      %v2894 = vadd.f32 %v2867, %v2883
      %v2895 = vadd.f32 %v2868, %v2883
      %v2896 = vadd.f32 %v2869, %v2883
      %v2897 = vadd.f32 %v2870, %v2883
      %v2898 = vadd.f32 %v2871, %v2883
      %v2899 = vadd.f32 %v2872, %v2883
      %v2900 = vadd.f32 %v2873, %v2883
      %v2901 = vadd.f32 %v2874, %v2883
      %v2902 = vadd.f32 %v2875, %v2883
      %v2903 = vadd.f32 %v2876, %v2883
      %v2904 = vadd.f32 %v2877, %v2883
      %v2905 = vmax.f32 %v2885, 0.0
      %v2906 = vmax.f32 %v2886, 0.0
      %v2907 = vmax.f32 %v2887, 0.0
      %v2908 = vmax.f32 %v2888, 0.0
      %v2909 = vmax.f32 %v2889, 0.0
      %v2910 = vmax.f32 %v2890, 0.0
      %v2911 = vmax.f32 %v2891, 0.0
      %v2912 = vmax.f32 %v2892, 0.0
      %v2913 = vmax.f32 %v2893, 0.0
      %v2914 = vmax.f32 %v2894, 0.0
      %v2915 = vmax.f32 %v2895, 0.0
      %v2916 = vmax.f32 %v2896, 0.0
      %v2917 = vmax.f32 %v2897, 0.0
      %v2918 = vmax.f32 %v2898, 0.0
      %v2919 = vmax.f32 %v2899, 0.0
      %v2920 = vmax.f32 %v2900, 0.0
      %v2921 = vmax.f32 %v2901, 0.0
      %v2922 = vmax.f32 %v2902, 0.0
      %v2923 = vmax.f32 %v2903, 0.0
      %v2924 = vmax.f32 %v2904, 0.0
      %v2925 = vsel %vm1219, 1, 0
      %v2926 = vsel %vm1220, 1, 0
      %v2927 = vsel %vm1221, 1, 0
      %v2928 = vsel %vm1222, 1, 0
      %v2929 = vsel %vm1223, 1, 0
      %v2930 = vsel %vm1224, 1, 0
      %v2931 = vsel %vm1225, 1, 0
      %v2932 = vsel %vm1226, 1, 0
      %v2933 = vsel %vm1227, 1, 0
      %v2934 = vsel %vm1228, 1, 0
      %v2935 = vsel %vm1229, 1, 0
      %v2936 = vsel %vm1230, 1, 0
      %v2937 = vsel %vm1231, 1, 0
      %v2938 = vsel %vm1232, 1, 0
      %v2939 = vsel %vm1233, 1, 0
      %v2940 = vsel %vm1234, 1, 0
      %v2941 = vsel %vm1235, 1, 0
      %v2942 = vsel %vm1236, 1, 0
      %v2943 = vsel %vm1237, 1, 0
      %v2944 = vsel %vm1238, 1, 0
      %2945 = vset.pattern.permute.xlu0 0
      %2946 = vperm.xlu0 %2945, %v2925
      %v2947 = vpop.permute.xlu0 %2946
      %2948 = vset.pattern.permute.xlu0 0
      %2949 = vperm.xlu0 %2948, %v2926
      %v2950 = vpop.permute.xlu0 %2949
      %2951 = vset.pattern.permute.xlu0 0
      %2952 = vperm.xlu0 %2951, %v2927
      %v2953 = vpop.permute.xlu0 %2952
      %2954 = vset.pattern.permute.xlu0 0
      %2955 = vperm.xlu0 %2954, %v2928
      %v2956 = vpop.permute.xlu0 %2955
      %2957 = vset.pattern.permute.xlu0 0
      %2958 = vperm.xlu0 %2957, %v2929
      %v2959 = vpop.permute.xlu0 %2958
      %2960 = vset.pattern.permute.xlu0 0
      %2961 = vperm.xlu0 %2960, %v2930
      %v2962 = vpop.permute.xlu0 %2961
      %2963 = vset.pattern.permute.xlu0 0
      %2964 = vperm.xlu0 %2963, %v2931
      %v2965 = vpop.permute.xlu0 %2964
      %2966 = vset.pattern.permute.xlu0 0
      %2967 = vperm.xlu0 %2966, %v2932
      %v2968 = vpop.permute.xlu0 %2967
      %2969 = vset.pattern.permute.xlu0 0
      %2970 = vperm.xlu0 %2969, %v2933
      %v2971 = vpop.permute.xlu0 %2970
      %2972 = vset.pattern.permute.xlu0 0
      %2973 = vperm.xlu0 %2972, %v2934
      %v2974 = vpop.permute.xlu0 %2973
      %2975 = vset.pattern.permute.xlu0 0
      %2976 = vperm.xlu0 %2975, %v2935
      %v2977 = vpop.permute.xlu0 %2976
      %2978 = vset.pattern.permute.xlu0 0
      %2979 = vperm.xlu0 %2978, %v2936
      %v2980 = vpop.permute.xlu0 %2979
      %2981 = vset.pattern.permute.xlu0 0
      %2982 = vperm.xlu0 %2981, %v2937
      %v2983 = vpop.permute.xlu0 %2982
      %2984 = vset.pattern.permute.xlu0 0
      %2985 = vperm.xlu0 %2984, %v2938
      %v2986 = vpop.permute.xlu0 %2985
      %2987 = vset.pattern.permute.xlu0 0
      %2988 = vperm.xlu0 %2987, %v2939
      %v2989 = vpop.permute.xlu0 %2988
      %2990 = vset.pattern.permute.xlu0 0
      %2991 = vperm.xlu0 %2990, %v2940
      %v2992 = vpop.permute.xlu0 %2991
      %2993 = vset.pattern.permute.xlu0 0
      %2994 = vperm.xlu0 %2993, %v2941
      %v2995 = vpop.permute.xlu0 %2994
      %2996 = vset.pattern.permute.xlu0 0
      %2997 = vperm.xlu0 %2996, %v2942
      %v2998 = vpop.permute.xlu0 %2997
      %2999 = vset.pattern.permute.xlu0 0
      %3000 = vperm.xlu0 %2999, %v2943
      %v3001 = vpop.permute.xlu0 %3000
      %3002 = vset.pattern.permute.xlu0 0
      %3003 = vperm.xlu0 %3002, %v2944
      %v3004 = vpop.permute.xlu0 %3003
      %vm3005 = vcmp.eq.s32.totalorder %v2947, 1
      %vm3006 = vcmp.eq.s32.totalorder %v2950, 1
      %vm3007 = vcmp.eq.s32.totalorder %v2953, 1
      %vm3008 = vcmp.eq.s32.totalorder %v2956, 1
      %vm3009 = vcmp.eq.s32.totalorder %v2959, 1
      %vm3010 = vcmp.eq.s32.totalorder %v2962, 1
      %vm3011 = vcmp.eq.s32.totalorder %v2965, 1
      %vm3012 = vcmp.eq.s32.totalorder %v2968, 1
      %vm3013 = vcmp.eq.s32.totalorder %v2971, 1
      %vm3014 = vcmp.eq.s32.totalorder %v2974, 1
      %vm3015 = vcmp.eq.s32.totalorder %v2977, 1
      %vm3016 = vcmp.eq.s32.totalorder %v2980, 1
      %vm3017 = vcmp.eq.s32.totalorder %v2983, 1
      %vm3018 = vcmp.eq.s32.totalorder %v2986, 1
      %vm3019 = vcmp.eq.s32.totalorder %v2989, 1
      %vm3020 = vcmp.eq.s32.totalorder %v2992, 1
      %vm3021 = vcmp.eq.s32.totalorder %v2995, 1
      %vm3022 = vcmp.eq.s32.totalorder %v2998, 1
      %vm3023 = vcmp.eq.s32.totalorder %v3001, 1
      %vm3024 = vcmp.eq.s32.totalorder %v3004, 1
      %v3025 = vsel %vm3005, %v2905, 0.0
      %v3026 = vsel %vm3006, %v2906, 0.0
      %v3027 = vsel %vm3007, %v2907, 0.0
      %v3028 = vsel %vm3008, %v2908, 0.0
      %v3029 = vsel %vm3009, %v2909, 0.0
      %v3030 = vsel %vm3010, %v2910, 0.0
      %v3031 = vsel %vm3011, %v2911, 0.0
      %v3032 = vsel %vm3012, %v2912, 0.0
      %v3033 = vsel %vm3013, %v2913, 0.0
      %v3034 = vsel %vm3014, %v2914, 0.0
      %v3035 = vsel %vm3015, %v2915, 0.0
      %v3036 = vsel %vm3016, %v2916, 0.0
      %v3037 = vsel %vm3017, %v2917, 0.0
      %v3038 = vsel %vm3018, %v2918, 0.0
      %v3039 = vsel %vm3019, %v2919, 0.0
      %v3040 = vsel %vm3020, %v2920, 0.0
      %v3041 = vsel %vm3021, %v2921, 0.0
      %v3042 = vsel %vm3022, %v2922, 0.0
      %v3043 = vsel %vm3023, %v2923, 0.0
      %v3044 = vsel %vm3024, %v2924, 0.0
      %3045 = vst.msk [vmem:[#allocation3 + $0x8] sm:$0xff] %vm762, %v3025
      %3046 = vst.msk [vmem:[#allocation3 + $0x10] sm:$0xff] %vm762, %v3026
      %3047 = vst.msk [vmem:[#allocation3 + $0x18] sm:$0xff] %vm762, %v3027
      %3048 = vst.msk [vmem:[#allocation3 + $0x20] sm:$0xff] %vm762, %v3028
      %3049 = vst.msk [vmem:[#allocation3 + $0x28] sm:$0xff] %vm762, %v3029
      %3050 = vst.msk [vmem:[#allocation3 + $0x30] sm:$0xff] %vm762, %v3030
      %3051 = vst.msk [vmem:[#allocation3 + $0x38] sm:$0xff] %vm762, %v3031
      %3052 = vst.msk [vmem:[#allocation3 + $0x40] sm:$0xff] %vm762, %v3032
      %3053 = vst.msk [vmem:[#allocation3 + $0x48] sm:$0xff] %vm762, %v3033
      %3054 = vst.msk [vmem:[#allocation3 + $0x50] sm:$0xff] %vm762, %v3034
      %3055 = vst.msk [vmem:[#allocation3 + $0x58] sm:$0xff] %vm762, %v3035
      %3056 = vst.msk [vmem:[#allocation3 + $0x60] sm:$0xff] %vm762, %v3036
      %3057 = vst.msk [vmem:[#allocation3 + $0x68] sm:$0xff] %vm762, %v3037
      %3058 = vst.msk [vmem:[#allocation3 + $0x70] sm:$0xff] %vm762, %v3038
      %3059 = vst.msk [vmem:[#allocation3 + $0x78] sm:$0xff] %vm762, %v3039
      %3060 = vst.msk [vmem:[#allocation3 + $0x80] sm:$0xff] %vm762, %v3040
      %3061 = vst.msk [vmem:[#allocation3 + $0x88] sm:$0xff] %vm762, %v3041
      %3062 = vst.msk [vmem:[#allocation3 + $0x90] sm:$0xff] %vm762, %v3042
      %3063 = vst.msk [vmem:[#allocation3 + $0x98] sm:$0xff] %vm762, %v3043
      %3064 = vst.msk [vmem:[#allocation3 + $0xa0] sm:$0xff] %vm762, %v3044
      %v3065 = vld [vmem:[#allocation2 + $0x7] sm:$0xff]
      %v3066 = vld [vmem:[#allocation2 + $0xf] sm:$0xff]
      %v3067 = vld [vmem:[#allocation2 + $0x17] sm:$0xff]
      %v3068 = vld [vmem:[#allocation2 + $0x1f] sm:$0xff]
      %v3069 = vld [vmem:[#allocation2 + $0x27] sm:$0xff]
      %v3070 = vld [vmem:[#allocation2 + $0x2f] sm:$0xff]
      %v3071 = vld [vmem:[#allocation2 + $0x37] sm:$0xff]
      %v3072 = vld [vmem:[#allocation2 + $0x3f] sm:$0xff]
      %v3073 = vld [vmem:[#allocation2 + $0x47] sm:$0xff]
      %v3074 = vld [vmem:[#allocation2 + $0x4f] sm:$0xff]
      %v3075 = vld [vmem:[#allocation2 + $0x57] sm:$0xff]
      %v3076 = vld [vmem:[#allocation2 + $0x5f] sm:$0xff]
      %v3077 = vld [vmem:[#allocation2 + $0x67] sm:$0xff]
      %v3078 = vld [vmem:[#allocation2 + $0x6f] sm:$0xff]
      %v3079 = vld [vmem:[#allocation2 + $0x77] sm:$0xff]
      %v3080 = vld [vmem:[#allocation2 + $0x7f] sm:$0xff]
      %v3081 = vld [vmem:[#allocation2 + $0x87] sm:$0xff]
      %v3082 = vld [vmem:[#allocation2 + $0x8f] sm:$0xff]
      %v3083 = vld [vmem:[#allocation2 + $0x97] sm:$0xff]
      %v3084 = vld [vmem:[#allocation2 + $0x9f] sm:$0xff]
      %v3085 = vpack.c.bf16 %v3066, %v3065
      %v3086 = vpack.c.bf16 %v3068, %v3067
      %v3087 = vpack.c.bf16 %v3070, %v3069
      %v3088 = vpack.c.bf16 %v3072, %v3071
      %v3089 = vpack.c.bf16 %v3074, %v3073
      %v3090 = vpack.c.bf16 %v3076, %v3075
      %v3091 = vpack.c.bf16 %v3078, %v3077
      %v3092 = vpack.c.bf16 %v3080, %v3079
      %v3093 = vpack.c.bf16 %v3082, %v3081
      %v3094 = vpack.c.bf16 %v3084, %v3083
      %v3095 = vld [vmem:[%s7] sm:$0xf]
      %v3096 = vld [vmem:[%s7 + $0x4] sm:$0xf]
      %v3097 = vld [vmem:[%s7 + $0x8] sm:$0xf]
      %v3098 = vld [vmem:[%s7 + $0xc] sm:$0xf]
      %v3099 = vld [vmem:[#allocation3 + $0x7] sm:$0xff]
      %v3100 = vld [vmem:[#allocation3 + $0xf] sm:$0xff]
      %v3101 = vld [vmem:[#allocation3 + $0x17] sm:$0xff]
      %v3102 = vld [vmem:[#allocation3 + $0x1f] sm:$0xff]
      %v3103 = vld [vmem:[#allocation3 + $0x27] sm:$0xff]
      %v3104 = vld [vmem:[#allocation3 + $0x2f] sm:$0xff]
      %v3105 = vld [vmem:[#allocation3 + $0x37] sm:$0xff]
      %v3106 = vld [vmem:[#allocation3 + $0x3f] sm:$0xff]
      %v3107 = vld [vmem:[#allocation3 + $0x47] sm:$0xff]
      %v3108 = vld [vmem:[#allocation3 + $0x4f] sm:$0xff]
      %v3109 = vld [vmem:[#allocation3 + $0x57] sm:$0xff]
      %v3110 = vld [vmem:[#allocation3 + $0x5f] sm:$0xff]
      %v3111 = vld [vmem:[#allocation3 + $0x67] sm:$0xff]
      %v3112 = vld [vmem:[#allocation3 + $0x6f] sm:$0xff]
      %v3113 = vld [vmem:[#allocation3 + $0x77] sm:$0xff]
      %v3114 = vld [vmem:[#allocation3 + $0x7f] sm:$0xff]
      %v3115 = vld [vmem:[#allocation3 + $0x87] sm:$0xff]
      %v3116 = vld [vmem:[#allocation3 + $0x8f] sm:$0xff]
      %v3117 = vld [vmem:[#allocation3 + $0x97] sm:$0xff]
      %v3118 = vld [vmem:[#allocation3 + $0x9f] sm:$0xff]
      %v3119 = vpack.c.bf16 %v3100, %v3099
      %v3120 = vpack.c.bf16 %v3102, %v3101
      %v3121 = vpack.c.bf16 %v3104, %v3103
      %v3122 = vpack.c.bf16 %v3106, %v3105
      %v3123 = vpack.c.bf16 %v3108, %v3107
      %v3124 = vpack.c.bf16 %v3110, %v3109
      %v3125 = vpack.c.bf16 %v3112, %v3111
      %v3126 = vpack.c.bf16 %v3114, %v3113
      %v3127 = vpack.c.bf16 %v3116, %v3115
      %v3128 = vpack.c.bf16 %v3118, %v3117
      %v3129 = vld [vmem:[%s8] sm:$0xf]
      %v3130 = vld [vmem:[%s8 + $0x4] sm:$0xf]
      %v3131 = vld [vmem:[%s8 + $0x8] sm:$0xf]
      %v3132 = vld [vmem:[%s8 + $0xc] sm:$0xf]
      %v3133 = vld [vmem:[%s8 + $0x10] sm:$0xf]
      %v3134 = vld [vmem:[%s8 + $0x14] sm:$0xf]
      %v3135 = vld [vmem:[%s8 + $0x18] sm:$0xf]
      %v3136 = vld [vmem:[%s8 + $0x1c] sm:$0xf]
      %v3137 = vld [vmem:[%s8 + $0x20] sm:$0xf]
      %v3138 = vld [vmem:[%s8 + $0x24] sm:$0xf]
      %v3139 = vld [vmem:[%s8 + $0x28] sm:$0xf]
      %v3140 = vld [vmem:[%s8 + $0x2c] sm:$0xf]
      %v3141 = vld [vmem:[%s8 + $0x30] sm:$0xf]
      %v3142 = vld [vmem:[%s8 + $0x34] sm:$0xf]
      %v3143 = vld [vmem:[%s8 + $0x38] sm:$0xf]
      %v3159 = vunpack.c.l.b16 %v3129
      %v3160 = vunpack.c.l.b16 %v3130
      %v3161 = vunpack.c.l.b16 %v3131
      %v3162 = vunpack.c.l.b16 %v3132
      %v3163 = vunpack.c.l.b16 %v3133
      %v3164 = vunpack.c.l.b16 %v3134
      %v3165 = vunpack.c.l.b16 %v3135
      %v3166 = vunpack.c.l.b16 %v3136
      %v3167 = vunpack.c.l.b16 %v3137
      %v3168 = vunpack.c.l.b16 %v3138
      %v3169 = vunpack.c.l.b16 %v3139
      %v3170 = vunpack.c.l.b16 %v3140
      %v3171 = vunpack.c.l.b16 %v3141
      %v3172 = vunpack.c.l.b16 %v3142
      %v3173 = vunpack.c.l.b16 %v3143
      %v3174 = vpack.c.b16 %v3160, %v3159
      %v3175 = vpack.c.b16 %v3162, %v3161
      %v3176 = vpack.c.b16 %v3164, %v3163
      %v3177 = vpack.c.b16 %v3166, %v3165
      %v3178 = vpack.c.b16 %v3168, %v3167
      %v3179 = vpack.c.b16 %v3170, %v3169
      %v3180 = vpack.c.b16 %v3172, %v3171
      %v3181 = vpack.c.b16 %v3173, %v3173
      %v3190 = vsel %vm762, %v3119, 0
      %v3193 = vsel %vm762, %v3120, 0
      %v3196 = vsel %vm762, %v3121, 0
      %v3199 = vsel %vm762, %v3122, 0
      %v3202 = vsel %vm762, %v3123, 0
      %v3205 = vsel %vm762, %v3124, 0
      %v3208 = vsel %vm762, %v3125, 0
      %v3211 = vsel %vm762, %v3126, 0
      %v3214 = vsel %vm762, %v3127, 0
      %v3217 = vsel %vm762, %v3128, 0
      %vm3219 = vcmask 1043456
      %v3221 = vsel %vm3219, %v3181, 0
      %3223 = vmatprep.subr.bf16.mxu0 0
      %3224 = vmatpush1.bf16.msra.mxu0 %v3174
      %3225 = vmatprep.subr.bf16.mxu0 0
      %3226 = vmatpush1.bf16.msra.mxu0 %v3175
      %3227 = vmatprep.subr.bf16.mxu0 0
      %3228 = vmatpush1.bf16.msra.mxu0 %v3176
      %3229 = vmatprep.subr.bf16.mxu0 0
      %3230 = vmatpush1.bf16.msra.mxu0 %v3177
      %3231 = vmatprep.subr.bf16.mxu0 0
      %3232 = vmatpush1.bf16.msra.mxu0 %v3178
      %3233 = vmatprep.subr.bf16.mxu0 0
      %3234 = vmatpush1.bf16.msra.mxu0 %v3179
      %3235 = vmatprep.subr.bf16.mxu0 0
      %3236 = vmatpush1.bf16.msra.mxu0 %v3180
      %3237 = vmatprep.subr.bf16.mxu0 0
      %3238 = vmatpush1.bf16.msra.mxu0 %v3221
      %3239 = vmatprep.subr.bf16.mxu0 0
      %3240 = vmatpush1.bf16.msra.mxu0 0
      %3241 = vmatprep.subr.bf16.mxu0 0
      %3242 = vmatpush1.bf16.msra.mxu0 0
      %3243 = vmatprep.subr.bf16.mxu0 0
      %3244 = vmatpush1.bf16.msra.mxu0 0
      %3245 = vmatprep.subr.bf16.mxu0 0
      %3246 = vmatpush1.bf16.msra.mxu0 0
      %3247 = vmatprep.subr.bf16.mxu0 0
      %3248 = vmatpush1.bf16.msra.mxu0 0
      %3249 = vmatprep.subr.bf16.mxu0 0
      %3250 = vmatpush1.bf16.msra.mxu0 0
      %3251 = vmatprep.subr.bf16.mxu0 0
      %3252 = vmatpush1.bf16.msra.mxu0 0
      %3253 = vmatprep.subr.bf16.mxu0 0
      %3254 = vmatpush1.bf16.msra.mxu0 0
      %3255 = vmatprep.mubr.bf16.mxu0 0
      %3256 = vmatmul.mubr.bf16.gmra.mrb[0].mxu0 %v3190
      %v3257 = vpop.f32.mrb[0].mxu0
      %v3258 = vadd.f32 0.0, %v3257
      %v3259 = vpop.f32.mrb[0].mxu0
      %v3260 = vpop.f32.mrb[0].mxu0
      %v3261 = vadd.f32 0.0, %v3260
      %v3262 = vpop.f32.mrb[0].mxu0
      %3263 = vmatprep.mubr.bf16.mxu0 0
      %3264 = vmatmul.mubr.bf16.gmra.mrb[0].mxu0 %v3193
      %v3265 = vpop.f32.mrb[0].mxu0
      %v3266 = vadd.f32 0.0, %v3265
      %v3267 = vpop.f32.mrb[0].mxu0
      %v3268 = vpop.f32.mrb[0].mxu0
      %v3269 = vadd.f32 0.0, %v3268
      %v3270 = vpop.f32.mrb[0].mxu0
      %3271 = vmatprep.mubr.bf16.mxu0 0
      %3272 = vmatmul.mubr.bf16.gmra.mrb[0].mxu0 %v3196
      %v3273 = vpop.f32.mrb[0].mxu0
      %v3274 = vadd.f32 0.0, %v3273
      %v3275 = vpop.f32.mrb[0].mxu0
      %v3276 = vpop.f32.mrb[0].mxu0
      %v3277 = vadd.f32 0.0, %v3276
      %v3278 = vpop.f32.mrb[0].mxu0
      %3279 = vmatprep.mubr.bf16.mxu0 0
      %3280 = vmatmul.mubr.bf16.gmra.mrb[0].mxu0 %v3199
      %v3281 = vpop.f32.mrb[0].mxu0
      %v3282 = vadd.f32 0.0, %v3281
      %v3283 = vpop.f32.mrb[0].mxu0
      %v3284 = vpop.f32.mrb[0].mxu0
      %v3285 = vadd.f32 0.0, %v3284
      %v3286 = vpop.f32.mrb[0].mxu0
      %3287 = vmatprep.mubr.bf16.mxu0 0
      %3288 = vmatmul.mubr.bf16.gmra.mrb[0].mxu0 %v3202
      %v3289 = vpop.f32.mrb[0].mxu0
      %v3290 = vadd.f32 0.0, %v3289
      %v3291 = vpop.f32.mrb[0].mxu0
      %v3292 = vpop.f32.mrb[0].mxu0
      %v3293 = vadd.f32 0.0, %v3292
      %v3294 = vpop.f32.mrb[0].mxu0
      %3295 = vmatprep.mubr.bf16.mxu0 0
      %3296 = vmatmul.mubr.bf16.gmra.mrb[0].mxu0 %v3205
      %v3297 = vpop.f32.mrb[0].mxu0
      %v3298 = vadd.f32 0.0, %v3297
      %v3299 = vpop.f32.mrb[0].mxu0
      %v3300 = vpop.f32.mrb[0].mxu0
      %v3301 = vadd.f32 0.0, %v3300
      %v3302 = vpop.f32.mrb[0].mxu0
      %3303 = vmatprep.mubr.bf16.mxu0 0
      %3304 = vmatmul.mubr.bf16.gmra.mrb[0].mxu0 %v3208
      %v3305 = vpop.f32.mrb[0].mxu0
      %v3306 = vadd.f32 0.0, %v3305
      %v3307 = vpop.f32.mrb[0].mxu0
      %v3308 = vpop.f32.mrb[0].mxu0
      %v3309 = vadd.f32 0.0, %v3308
      %v3310 = vpop.f32.mrb[0].mxu0
      %3311 = vmatprep.mubr.bf16.mxu0 0
      %3312 = vmatmul.mubr.bf16.gmra.mrb[0].mxu0 %v3211
      %v3313 = vpop.f32.mrb[0].mxu0
      %v3314 = vadd.f32 0.0, %v3313
      %v3315 = vpop.f32.mrb[0].mxu0
      %v3316 = vpop.f32.mrb[0].mxu0
      %v3317 = vadd.f32 0.0, %v3316
      %v3318 = vpop.f32.mrb[0].mxu0
      %3319 = vmatprep.mubr.bf16.mxu0 0
      %3320 = vmatmul.mubr.bf16.gmra.mrb[0].mxu0 %v3214
      %v3321 = vpop.f32.mrb[0].mxu0
      %v3322 = vadd.f32 0.0, %v3321
      %v3323 = vpop.f32.mrb[0].mxu0
      %v3324 = vpop.f32.mrb[0].mxu0
      %v3325 = vadd.f32 0.0, %v3324
      %v3326 = vpop.f32.mrb[0].mxu0
      %3327 = vmatprep.mubr.bf16.mxu0 0
      %3328 = vmatmul.mubr.bf16.gmra.mrb[0].mxu0 %v3217
      %v3329 = vpop.f32.mrb[0].mxu0
      %v3330 = vadd.f32 0.0, %v3329
      %v3331 = vpop.f32.mrb[0].mxu0
      %v3332 = vpop.f32.mrb[0].mxu0
      %v3333 = vadd.f32 0.0, %v3332
      %v3334 = vpop.f32.mrb[0].mxu0
      %3335 = vdwg.mxu0
      %v3340 = vunpack.c.l.b16 %v3095
      %v3341 = vunpack.c.l.b16 %v3096
      %v3342 = vunpack.c.l.b16 %v3097
      %v3343 = vunpack.c.l.b16 %v3098
      %v3344 = vpack.c.b16 %v3341, %v3340
      %v3345 = vpack.c.b16 %v3343, %v3342
      %v3349 = vsel %vm755, %v3085, 0
      %v3352 = vsel %vm755, %v3086, 0
      %v3355 = vsel %vm755, %v3087, 0
      %v3358 = vsel %vm755, %v3088, 0
      %v3361 = vsel %vm755, %v3089, 0
      %v3364 = vsel %vm755, %v3090, 0
      %v3367 = vsel %vm755, %v3091, 0
      %v3370 = vsel %vm755, %v3092, 0
      %v3373 = vsel %vm755, %v3093, 0
      %v3376 = vsel %vm755, %v3094, 0
      %3378 = vmatprep.subr.bf16.mxu0 0
      %3379 = vmatpush1.bf16.msra.mxu0 %v3344
      %3380 = vmatprep.subr.bf16.mxu0 0
      %3381 = vmatpush1.bf16.msra.mxu0 %v3345
      %3382 = vmatprep.subr.bf16.mxu0 0
      %3383 = vmatpush1.bf16.msra.mxu0 0
      %3384 = vmatprep.subr.bf16.mxu0 0
      %3385 = vmatpush1.bf16.msra.mxu0 0
      %3386 = vmatprep.subr.bf16.mxu0 0
      %3387 = vmatpush1.bf16.msra.mxu0 0
      %3388 = vmatprep.subr.bf16.mxu0 0
      %3389 = vmatpush1.bf16.msra.mxu0 0
      %3390 = vmatprep.subr.bf16.mxu0 0
      %3391 = vmatpush1.bf16.msra.mxu0 0
      %3392 = vmatprep.subr.bf16.mxu0 0
      %3393 = vmatpush1.bf16.msra.mxu0 0
      %3394 = vmatprep.subr.bf16.mxu0 0
      %3395 = vmatpush1.bf16.msra.mxu0 0
      %3396 = vmatprep.subr.bf16.mxu0 0
      %3397 = vmatpush1.bf16.msra.mxu0 0
      %3398 = vmatprep.subr.bf16.mxu0 0
      %3399 = vmatpush1.bf16.msra.mxu0 0
      %3400 = vmatprep.subr.bf16.mxu0 0
      %3401 = vmatpush1.bf16.msra.mxu0 0
      %3402 = vmatprep.subr.bf16.mxu0 0
      %3403 = vmatpush1.bf16.msra.mxu0 0
      %3404 = vmatprep.subr.bf16.mxu0 0
      %3405 = vmatpush1.bf16.msra.mxu0 0
      %3406 = vmatprep.subr.bf16.mxu0 0
      %3407 = vmatpush1.bf16.msra.mxu0 0
      %3408 = vmatprep.subr.bf16.mxu0 0
      %3409 = vmatpush1.bf16.msra.mxu0 0
      %3410 = vmatprep.mubr.bf16.mxu0 0
      %3411 = vmatmul.mubr.bf16.gmra.mrb[0].mxu0 %v3349
      %v3412 = vpop.f32.mrb[0].mxu0
      %v3413 = vadd.f32 %v3258, %v3412
      %v3414 = vpop.f32.mrb[0].mxu0
      %v3415 = vpop.f32.mrb[0].mxu0
      %v3416 = vadd.f32 %v3261, %v3415
      %v3417 = vpop.f32.mrb[0].mxu0
      %3418 = vmatprep.mubr.bf16.mxu0 0
      %3419 = vmatmul.mubr.bf16.gmra.mrb[0].mxu0 %v3352
      %v3420 = vpop.f32.mrb[0].mxu0
      %v3421 = vadd.f32 %v3266, %v3420
      %v3422 = vpop.f32.mrb[0].mxu0
      %v3423 = vpop.f32.mrb[0].mxu0
      %v3424 = vadd.f32 %v3269, %v3423
      %v3425 = vpop.f32.mrb[0].mxu0
      %3426 = vmatprep.mubr.bf16.mxu0 0
      %3427 = vmatmul.mubr.bf16.gmra.mrb[0].mxu0 %v3355
      %v3428 = vpop.f32.mrb[0].mxu0
      %v3429 = vadd.f32 %v3274, %v3428
      %v3430 = vpop.f32.mrb[0].mxu0
      %v3431 = vpop.f32.mrb[0].mxu0
      %v3432 = vadd.f32 %v3277, %v3431
      %v3433 = vpop.f32.mrb[0].mxu0
      %3434 = vmatprep.mubr.bf16.mxu0 0
      %3435 = vmatmul.mubr.bf16.gmra.mrb[0].mxu0 %v3358
      %v3436 = vpop.f32.mrb[0].mxu0
      %v3437 = vadd.f32 %v3282, %v3436
      %v3438 = vpop.f32.mrb[0].mxu0
      %v3439 = vpop.f32.mrb[0].mxu0
      %v3440 = vadd.f32 %v3285, %v3439
      %v3441 = vpop.f32.mrb[0].mxu0
      %3442 = vmatprep.mubr.bf16.mxu0 0
      %3443 = vmatmul.mubr.bf16.gmra.mrb[0].mxu0 %v3361
      %v3444 = vpop.f32.mrb[0].mxu0
      %v3445 = vadd.f32 %v3290, %v3444
      %v3446 = vpop.f32.mrb[0].mxu0
      %v3447 = vpop.f32.mrb[0].mxu0
      %v3448 = vadd.f32 %v3293, %v3447
      %v3449 = vpop.f32.mrb[0].mxu0
      %3450 = vmatprep.mubr.bf16.mxu0 0
      %3451 = vmatmul.mubr.bf16.gmra.mrb[0].mxu0 %v3364
      %v3452 = vpop.f32.mrb[0].mxu0
      %v3453 = vadd.f32 %v3298, %v3452
      %v3454 = vpop.f32.mrb[0].mxu0
      %v3455 = vpop.f32.mrb[0].mxu0
      %v3456 = vadd.f32 %v3301, %v3455
      %v3457 = vpop.f32.mrb[0].mxu0
      %3458 = vmatprep.mubr.bf16.mxu0 0
      %3459 = vmatmul.mubr.bf16.gmra.mrb[0].mxu0 %v3367
      %v3460 = vpop.f32.mrb[0].mxu0
      %v3461 = vadd.f32 %v3306, %v3460
      %v3462 = vpop.f32.mrb[0].mxu0
      %v3463 = vpop.f32.mrb[0].mxu0
      %v3464 = vadd.f32 %v3309, %v3463
      %v3465 = vpop.f32.mrb[0].mxu0
      %3466 = vmatprep.mubr.bf16.mxu0 0
      %3467 = vmatmul.mubr.bf16.gmra.mrb[0].mxu0 %v3370
      %v3468 = vpop.f32.mrb[0].mxu0
      %v3469 = vadd.f32 %v3314, %v3468
      %v3470 = vpop.f32.mrb[0].mxu0
      %v3471 = vpop.f32.mrb[0].mxu0
      %v3472 = vadd.f32 %v3317, %v3471
      %v3473 = vpop.f32.mrb[0].mxu0
      %3474 = vmatprep.mubr.bf16.mxu0 0
      %3475 = vmatmul.mubr.bf16.gmra.mrb[0].mxu0 %v3373
      %v3476 = vpop.f32.mrb[0].mxu0
      %v3477 = vadd.f32 %v3322, %v3476
      %v3478 = vpop.f32.mrb[0].mxu0
      %v3479 = vpop.f32.mrb[0].mxu0
      %v3480 = vadd.f32 %v3325, %v3479
      %v3481 = vpop.f32.mrb[0].mxu0
      %3482 = vmatprep.mubr.bf16.mxu0 0
      %3483 = vmatmul.mubr.bf16.gmra.mrb[0].mxu0 %v3376
      %v3484 = vpop.f32.mrb[0].mxu0
      %v3485 = vadd.f32 %v3330, %v3484
      %v3486 = vpop.f32.mrb[0].mxu0
      %v3487 = vpop.f32.mrb[0].mxu0
      %v3488 = vadd.f32 %v3333, %v3487
      %v3489 = vpop.f32.mrb[0].mxu0
      %3490 = vdwg.mxu0
      %v3491 = vld [vmem:[#allocation2 + $0x8] sm:$0xff]
      %v3492 = vld [vmem:[#allocation2 + $0x10] sm:$0xff]
      %v3493 = vld [vmem:[#allocation2 + $0x18] sm:$0xff]
      %v3494 = vld [vmem:[#allocation2 + $0x20] sm:$0xff]
      %v3495 = vld [vmem:[#allocation2 + $0x28] sm:$0xff]
      %v3496 = vld [vmem:[#allocation2 + $0x30] sm:$0xff]
      %v3497 = vld [vmem:[#allocation2 + $0x38] sm:$0xff]
      %v3498 = vld [vmem:[#allocation2 + $0x40] sm:$0xff]
      %v3499 = vld [vmem:[#allocation2 + $0x48] sm:$0xff]
      %v3500 = vld [vmem:[#allocation2 + $0x50] sm:$0xff]
      %v3501 = vld [vmem:[#allocation2 + $0x58] sm:$0xff]
      %v3502 = vld [vmem:[#allocation2 + $0x60] sm:$0xff]
      %v3503 = vld [vmem:[#allocation2 + $0x68] sm:$0xff]
      %v3504 = vld [vmem:[#allocation2 + $0x70] sm:$0xff]
      %v3505 = vld [vmem:[#allocation2 + $0x78] sm:$0xff]
      %v3506 = vld [vmem:[#allocation2 + $0x80] sm:$0xff]
      %v3507 = vld [vmem:[#allocation2 + $0x88] sm:$0xff]
      %v3508 = vld [vmem:[#allocation2 + $0x90] sm:$0xff]
      %v3509 = vld [vmem:[#allocation2 + $0x98] sm:$0xff]
      %v3510 = vld [vmem:[#allocation2 + $0xa0] sm:$0xff]
      %v3511 = vpack.c.bf16 %v3492, %v3491
      %v3512 = vpack.c.bf16 %v3494, %v3493
      %v3513 = vpack.c.bf16 %v3496, %v3495
      %v3514 = vpack.c.bf16 %v3498, %v3497
      %v3515 = vpack.c.bf16 %v3500, %v3499
      %v3516 = vpack.c.bf16 %v3502, %v3501
      %v3517 = vpack.c.bf16 %v3504, %v3503
      %v3518 = vpack.c.bf16 %v3506, %v3505
      %v3519 = vpack.c.bf16 %v3508, %v3507
      %v3520 = vpack.c.bf16 %v3510, %v3509
      %s3521 = scalar_lea.vmem %s7, 16
      %v3522 = vld [vmem:[%s3521] sm:$0xf]
      %v3523 = vld [vmem:[%s3521 + $0x4] sm:$0xf]
      %v3524 = vld [vmem:[%s3521 + $0x8] sm:$0xf]
      %v3525 = vld [vmem:[%s3521 + $0xc] sm:$0xf]
      %v3530 = vunpack.c.l.b16 %v3522
      %v3531 = vunpack.c.l.b16 %v3523
      %v3532 = vunpack.c.l.b16 %v3524
      %v3533 = vunpack.c.l.b16 %v3525
      %v3534 = vpack.c.b16 %v3531, %v3530
      %v3535 = vpack.c.b16 %v3533, %v3532
      %v3539 = vsel %vm755, %v3511, 0
      %v3542 = vsel %vm755, %v3512, 0
      %v3545 = vsel %vm755, %v3513, 0
      %v3548 = vsel %vm755, %v3514, 0
      %v3551 = vsel %vm755, %v3515, 0
      %v3554 = vsel %vm755, %v3516, 0
      %v3557 = vsel %vm755, %v3517, 0
      %v3560 = vsel %vm755, %v3518, 0
      %v3563 = vsel %vm755, %v3519, 0
      %v3566 = vsel %vm755, %v3520, 0
      %3568 = vmatprep.subr.bf16.mxu0 0
      %3569 = vmatpush1.bf16.msra.mxu0 %v3534
      %3570 = vmatprep.subr.bf16.mxu0 0
      %3571 = vmatpush1.bf16.msra.mxu0 %v3535
      %3572 = vmatprep.subr.bf16.mxu0 0
      %3573 = vmatpush1.bf16.msra.mxu0 0
      %3574 = vmatprep.subr.bf16.mxu0 0
      %3575 = vmatpush1.bf16.msra.mxu0 0
      %3576 = vmatprep.subr.bf16.mxu0 0
      %3577 = vmatpush1.bf16.msra.mxu0 0
      %3578 = vmatprep.subr.bf16.mxu0 0
      %3579 = vmatpush1.bf16.msra.mxu0 0
      %3580 = vmatprep.subr.bf16.mxu0 0
      %3581 = vmatpush1.bf16.msra.mxu0 0
      %3582 = vmatprep.subr.bf16.mxu0 0
      %3583 = vmatpush1.bf16.msra.mxu0 0
      %3584 = vmatprep.subr.bf16.mxu0 0
      %3585 = vmatpush1.bf16.msra.mxu0 0
      %3586 = vmatprep.subr.bf16.mxu0 0
      %3587 = vmatpush1.bf16.msra.mxu0 0
      %3588 = vmatprep.subr.bf16.mxu0 0
      %3589 = vmatpush1.bf16.msra.mxu0 0
      %3590 = vmatprep.subr.bf16.mxu0 0
      %3591 = vmatpush1.bf16.msra.mxu0 0
      %3592 = vmatprep.subr.bf16.mxu0 0
      %3593 = vmatpush1.bf16.msra.mxu0 0
      %3594 = vmatprep.subr.bf16.mxu0 0
      %3595 = vmatpush1.bf16.msra.mxu0 0
      %3596 = vmatprep.subr.bf16.mxu0 0
      %3597 = vmatpush1.bf16.msra.mxu0 0
      %3598 = vmatprep.subr.bf16.mxu0 0
      %3599 = vmatpush1.bf16.msra.mxu0 0
      %3600 = vmatprep.mubr.bf16.mxu0 0
      %3601 = vmatmul.mubr.bf16.gmra.mrb[0].mxu0 %v3539
      %v3602 = vpop.f32.mrb[0].mxu0
      %v3603 = vadd.f32 0.0, %v3602
      %v3604 = vpop.f32.mrb[0].mxu0
      %v3605 = vpop.f32.mrb[0].mxu0
      %v3606 = vadd.f32 0.0, %v3605
      %v3607 = vpop.f32.mrb[0].mxu0
      %3608 = vmatprep.mubr.bf16.mxu0 0
      %3609 = vmatmul.mubr.bf16.gmra.mrb[0].mxu0 %v3542
      %v3610 = vpop.f32.mrb[0].mxu0
      %v3611 = vadd.f32 0.0, %v3610
      %v3612 = vpop.f32.mrb[0].mxu0
      %v3613 = vpop.f32.mrb[0].mxu0
      %v3614 = vadd.f32 0.0, %v3613
      %v3615 = vpop.f32.mrb[0].mxu0
      %3616 = vmatprep.mubr.bf16.mxu0 0
      %3617 = vmatmul.mubr.bf16.gmra.mrb[0].mxu0 %v3545
      %v3618 = vpop.f32.mrb[0].mxu0
      %v3619 = vadd.f32 0.0, %v3618
      %v3620 = vpop.f32.mrb[0].mxu0
      %v3621 = vpop.f32.mrb[0].mxu0
      %v3622 = vadd.f32 0.0, %v3621
      %v3623 = vpop.f32.mrb[0].mxu0
      %3624 = vmatprep.mubr.bf16.mxu0 0
      %3625 = vmatmul.mubr.bf16.gmra.mrb[0].mxu0 %v3548
      %v3626 = vpop.f32.mrb[0].mxu0
      %v3627 = vadd.f32 0.0, %v3626
      %v3628 = vpop.f32.mrb[0].mxu0
      %v3629 = vpop.f32.mrb[0].mxu0
      %v3630 = vadd.f32 0.0, %v3629
      %v3631 = vpop.f32.mrb[0].mxu0
      %3632 = vmatprep.mubr.bf16.mxu0 0
      %3633 = vmatmul.mubr.bf16.gmra.mrb[0].mxu0 %v3551
      %v3634 = vpop.f32.mrb[0].mxu0
      %v3635 = vadd.f32 0.0, %v3634
      %v3636 = vpop.f32.mrb[0].mxu0
      %v3637 = vpop.f32.mrb[0].mxu0
      %v3638 = vadd.f32 0.0, %v3637
      %v3639 = vpop.f32.mrb[0].mxu0
      %3640 = vmatprep.mubr.bf16.mxu0 0
      %3641 = vmatmul.mubr.bf16.gmra.mrb[0].mxu0 %v3554
      %v3642 = vpop.f32.mrb[0].mxu0
      %v3643 = vadd.f32 0.0, %v3642
      %v3644 = vpop.f32.mrb[0].mxu0
      %v3645 = vpop.f32.mrb[0].mxu0
      %v3646 = vadd.f32 0.0, %v3645
      %v3647 = vpop.f32.mrb[0].mxu0
      %3648 = vmatprep.mubr.bf16.mxu0 0
      %3649 = vmatmul.mubr.bf16.gmra.mrb[0].mxu0 %v3557
      %v3650 = vpop.f32.mrb[0].mxu0
      %v3651 = vadd.f32 0.0, %v3650
      %v3652 = vpop.f32.mrb[0].mxu0
      %v3653 = vpop.f32.mrb[0].mxu0
      %v3654 = vadd.f32 0.0, %v3653
      %v3655 = vpop.f32.mrb[0].mxu0
      %3656 = vmatprep.mubr.bf16.mxu0 0
      %3657 = vmatmul.mubr.bf16.gmra.mrb[0].mxu0 %v3560
      %v3658 = vpop.f32.mrb[0].mxu0
      %v3659 = vadd.f32 0.0, %v3658
      %v3660 = vpop.f32.mrb[0].mxu0
      %v3661 = vpop.f32.mrb[0].mxu0
      %v3662 = vadd.f32 0.0, %v3661
      %v3663 = vpop.f32.mrb[0].mxu0
      %3664 = vmatprep.mubr.bf16.mxu0 0
      %3665 = vmatmul.mubr.bf16.gmra.mrb[0].mxu0 %v3563
      %v3666 = vpop.f32.mrb[0].mxu0
      %v3667 = vadd.f32 0.0, %v3666
      %v3668 = vpop.f32.mrb[0].mxu0
      %v3669 = vpop.f32.mrb[0].mxu0
      %v3670 = vadd.f32 0.0, %v3669
      %v3671 = vpop.f32.mrb[0].mxu0
      %3672 = vmatprep.mubr.bf16.mxu0 0
      %3673 = vmatmul.mubr.bf16.gmra.mrb[0].mxu0 %v3566
      %v3674 = vpop.f32.mrb[0].mxu0
      %v3675 = vadd.f32 0.0, %v3674
      %v3676 = vpop.f32.mrb[0].mxu0
      %v3677 = vpop.f32.mrb[0].mxu0
      %v3678 = vadd.f32 0.0, %v3677
      %v3679 = vpop.f32.mrb[0].mxu0
      %3680 = vdwg.mxu0
      %v3681 = vadd.f32 %v3413, %v3603
      %v3682 = vadd.f32 %v3416, %v3606
      %v3683 = vadd.f32 %v3421, %v3611
      %v3684 = vadd.f32 %v3424, %v3614
      %v3685 = vadd.f32 %v3429, %v3619
      %v3686 = vadd.f32 %v3432, %v3622
      %v3687 = vadd.f32 %v3437, %v3627
      %v3688 = vadd.f32 %v3440, %v3630
      %v3689 = vadd.f32 %v3445, %v3635
      %v3690 = vadd.f32 %v3448, %v3638
      %v3691 = vadd.f32 %v3453, %v3643
      %v3692 = vadd.f32 %v3456, %v3646
      %v3693 = vadd.f32 %v3461, %v3651
      %v3694 = vadd.f32 %v3464, %v3654
      %v3695 = vadd.f32 %v3469, %v3659
      %v3696 = vadd.f32 %v3472, %v3662
      %v3697 = vadd.f32 %v3477, %v3667
      %v3698 = vadd.f32 %v3480, %v3670
      %v3699 = vadd.f32 %v3485, %v3675
      %v3700 = vadd.f32 %v3488, %v3678
      %v3701 = vld [vmem:[#allocation3 + $0x8] sm:$0xff]
      %v3702 = vld [vmem:[#allocation3 + $0x10] sm:$0xff]
      %v3703 = vld [vmem:[#allocation3 + $0x18] sm:$0xff]
      %v3704 = vld [vmem:[#allocation3 + $0x20] sm:$0xff]
      %v3705 = vld [vmem:[#allocation3 + $0x28] sm:$0xff]
      %v3706 = vld [vmem:[#allocation3 + $0x30] sm:$0xff]
      %v3707 = vld [vmem:[#allocation3 + $0x38] sm:$0xff]
      %v3708 = vld [vmem:[#allocation3 + $0x40] sm:$0xff]
      %v3709 = vld [vmem:[#allocation3 + $0x48] sm:$0xff]
      %v3710 = vld [vmem:[#allocation3 + $0x50] sm:$0xff]
      %v3711 = vld [vmem:[#allocation3 + $0x58] sm:$0xff]
      %v3712 = vld [vmem:[#allocation3 + $0x60] sm:$0xff]
      %v3713 = vld [vmem:[#allocation3 + $0x68] sm:$0xff]
      %v3714 = vld [vmem:[#allocation3 + $0x70] sm:$0xff]
      %v3715 = vld [vmem:[#allocation3 + $0x78] sm:$0xff]
      %v3716 = vld [vmem:[#allocation3 + $0x80] sm:$0xff]
      %v3717 = vld [vmem:[#allocation3 + $0x88] sm:$0xff]
      %v3718 = vld [vmem:[#allocation3 + $0x90] sm:$0xff]
      %v3719 = vld [vmem:[#allocation3 + $0x98] sm:$0xff]
      %v3720 = vld [vmem:[#allocation3 + $0xa0] sm:$0xff]
      %v3721 = vpack.c.bf16 %v3702, %v3701
      %v3722 = vpack.c.bf16 %v3704, %v3703
      %v3723 = vpack.c.bf16 %v3706, %v3705
      %v3724 = vpack.c.bf16 %v3708, %v3707
      %v3725 = vpack.c.bf16 %v3710, %v3709
      %v3726 = vpack.c.bf16 %v3712, %v3711
      %v3727 = vpack.c.bf16 %v3714, %v3713
      %v3728 = vpack.c.bf16 %v3716, %v3715
      %v3729 = vpack.c.bf16 %v3718, %v3717
      %v3730 = vpack.c.bf16 %v3720, %v3719
      %s3731 = scalar_lea.vmem %s8, 60
      %v3732 = vld [vmem:[%s3731] sm:$0xf]
      %v3733 = vld [vmem:[%s3731 + $0x4] sm:$0xf]
      %v3734 = vld [vmem:[%s3731 + $0x8] sm:$0xf]
      %v3735 = vld [vmem:[%s3731 + $0xc] sm:$0xf]
      %v3736 = vld [vmem:[%s3731 + $0x10] sm:$0xf]
      %v3737 = vld [vmem:[%s3731 + $0x14] sm:$0xf]
      %v3738 = vld [vmem:[%s3731 + $0x18] sm:$0xf]
      %v3739 = vld [vmem:[%s3731 + $0x1c] sm:$0xf]
      %v3740 = vld [vmem:[%s3731 + $0x20] sm:$0xf]
      %v3741 = vld [vmem:[%s3731 + $0x24] sm:$0xf]
      %v3742 = vld [vmem:[%s3731 + $0x28] sm:$0xf]
      %v3743 = vld [vmem:[%s3731 + $0x2c] sm:$0xf]
      %v3744 = vld [vmem:[%s3731 + $0x30] sm:$0xf]
      %v3745 = vld [vmem:[%s3731 + $0x34] sm:$0xf]
      %v3746 = vld [vmem:[%s3731 + $0x38] sm:$0xf]
      %v3762 = vunpack.c.l.b16 %v3732
      %v3763 = vunpack.c.l.b16 %v3733
      %v3764 = vunpack.c.l.b16 %v3734
      %v3765 = vunpack.c.l.b16 %v3735
      %v3766 = vunpack.c.l.b16 %v3736
      %v3767 = vunpack.c.l.b16 %v3737
      %v3768 = vunpack.c.l.b16 %v3738
      %v3769 = vunpack.c.l.b16 %v3739
      %v3770 = vunpack.c.l.b16 %v3740
      %v3771 = vunpack.c.l.b16 %v3741
      %v3772 = vunpack.c.l.b16 %v3742
      %v3773 = vunpack.c.l.b16 %v3743
      %v3774 = vunpack.c.l.b16 %v3744
      %v3775 = vunpack.c.l.b16 %v3745
      %v3776 = vunpack.c.l.b16 %v3746
      %v3777 = vpack.c.b16 %v3763, %v3762
      %v3778 = vpack.c.b16 %v3765, %v3764
      %v3779 = vpack.c.b16 %v3767, %v3766
      %v3780 = vpack.c.b16 %v3769, %v3768
      %v3781 = vpack.c.b16 %v3771, %v3770
      %v3782 = vpack.c.b16 %v3773, %v3772
      %v3783 = vpack.c.b16 %v3775, %v3774
      %v3784 = vpack.c.b16 %v3776, %v3776
      %v3793 = vsel %vm762, %v3721, 0
      %v3796 = vsel %vm762, %v3722, 0
      %v3799 = vsel %vm762, %v3723, 0
      %v3802 = vsel %vm762, %v3724, 0
      %v3805 = vsel %vm762, %v3725, 0
      %v3808 = vsel %vm762, %v3726, 0
      %v3811 = vsel %vm762, %v3727, 0
      %v3814 = vsel %vm762, %v3728, 0
      %v3817 = vsel %vm762, %v3729, 0
      %v3820 = vsel %vm762, %v3730, 0
      %v3823 = vsel %vm3219, %v3784, 0
      %3825 = vmatprep.subr.bf16.mxu0 0
      %3826 = vmatpush1.bf16.msra.mxu0 %v3777
      %3827 = vmatprep.subr.bf16.mxu0 0
      %3828 = vmatpush1.bf16.msra.mxu0 %v3778
      %3829 = vmatprep.subr.bf16.mxu0 0
      %3830 = vmatpush1.bf16.msra.mxu0 %v3779
      %3831 = vmatprep.subr.bf16.mxu0 0
      %3832 = vmatpush1.bf16.msra.mxu0 %v3780
      %3833 = vmatprep.subr.bf16.mxu0 0
      %3834 = vmatpush1.bf16.msra.mxu0 %v3781
      %3835 = vmatprep.subr.bf16.mxu0 0
      %3836 = vmatpush1.bf16.msra.mxu0 %v3782
      %3837 = vmatprep.subr.bf16.mxu0 0
      %3838 = vmatpush1.bf16.msra.mxu0 %v3783
      %3839 = vmatprep.subr.bf16.mxu0 0
      %3840 = vmatpush1.bf16.msra.mxu0 %v3823
      %3841 = vmatprep.subr.bf16.mxu0 0
      %3842 = vmatpush1.bf16.msra.mxu0 0
      %3843 = vmatprep.subr.bf16.mxu0 0
      %3844 = vmatpush1.bf16.msra.mxu0 0
      %3845 = vmatprep.subr.bf16.mxu0 0
      %3846 = vmatpush1.bf16.msra.mxu0 0
      %3847 = vmatprep.subr.bf16.mxu0 0
      %3848 = vmatpush1.bf16.msra.mxu0 0
      %3849 = vmatprep.subr.bf16.mxu0 0
      %3850 = vmatpush1.bf16.msra.mxu0 0
      %3851 = vmatprep.subr.bf16.mxu0 0
      %3852 = vmatpush1.bf16.msra.mxu0 0
      %3853 = vmatprep.subr.bf16.mxu0 0
      %3854 = vmatpush1.bf16.msra.mxu0 0
      %3855 = vmatprep.subr.bf16.mxu0 0
      %3856 = vmatpush1.bf16.msra.mxu0 0
      %3857 = vmatprep.mubr.bf16.mxu0 0
      %3858 = vmatmul.mubr.bf16.gmra.mrb[0].mxu0 %v3793
      %v3859 = vpop.f32.mrb[0].mxu0
      %v3860 = vadd.f32 0.0, %v3859
      %v3861 = vpop.f32.mrb[0].mxu0
      %v3862 = vpop.f32.mrb[0].mxu0
      %v3863 = vadd.f32 0.0, %v3862
      %v3864 = vpop.f32.mrb[0].mxu0
      %3865 = vmatprep.mubr.bf16.mxu0 0
      %3866 = vmatmul.mubr.bf16.gmra.mrb[0].mxu0 %v3796
      %v3867 = vpop.f32.mrb[0].mxu0
      %v3868 = vadd.f32 0.0, %v3867
      %v3869 = vpop.f32.mrb[0].mxu0
      %v3870 = vpop.f32.mrb[0].mxu0
      %v3871 = vadd.f32 0.0, %v3870
      %v3872 = vpop.f32.mrb[0].mxu0
      %3873 = vmatprep.mubr.bf16.mxu0 0
      %3874 = vmatmul.mubr.bf16.gmra.mrb[0].mxu0 %v3799
      %v3875 = vpop.f32.mrb[0].mxu0
      %v3876 = vadd.f32 0.0, %v3875
      %v3877 = vpop.f32.mrb[0].mxu0
      %v3878 = vpop.f32.mrb[0].mxu0
      %v3879 = vadd.f32 0.0, %v3878
      %v3880 = vpop.f32.mrb[0].mxu0
      %3881 = vmatprep.mubr.bf16.mxu0 0
      %3882 = vmatmul.mubr.bf16.gmra.mrb[0].mxu0 %v3802
      %v3883 = vpop.f32.mrb[0].mxu0
      %v3884 = vadd.f32 0.0, %v3883
      %v3885 = vpop.f32.mrb[0].mxu0
      %v3886 = vpop.f32.mrb[0].mxu0
      %v3887 = vadd.f32 0.0, %v3886
      %v3888 = vpop.f32.mrb[0].mxu0
      %3889 = vmatprep.mubr.bf16.mxu0 0
      %3890 = vmatmul.mubr.bf16.gmra.mrb[0].mxu0 %v3805
      %v3891 = vpop.f32.mrb[0].mxu0
      %v3892 = vadd.f32 0.0, %v3891
      %v3893 = vpop.f32.mrb[0].mxu0
      %v3894 = vpop.f32.mrb[0].mxu0
      %v3895 = vadd.f32 0.0, %v3894
      %v3896 = vpop.f32.mrb[0].mxu0
      %3897 = vmatprep.mubr.bf16.mxu0 0
      %3898 = vmatmul.mubr.bf16.gmra.mrb[0].mxu0 %v3808
      %v3899 = vpop.f32.mrb[0].mxu0
      %v3900 = vadd.f32 0.0, %v3899
      %v3901 = vpop.f32.mrb[0].mxu0
      %v3902 = vpop.f32.mrb[0].mxu0
      %v3903 = vadd.f32 0.0, %v3902
      %v3904 = vpop.f32.mrb[0].mxu0
      %3905 = vmatprep.mubr.bf16.mxu0 0
      %3906 = vmatmul.mubr.bf16.gmra.mrb[0].mxu0 %v3811
      %v3907 = vpop.f32.mrb[0].mxu0
      %v3908 = vadd.f32 0.0, %v3907
      %v3909 = vpop.f32.mrb[0].mxu0
      %v3910 = vpop.f32.mrb[0].mxu0
      %v3911 = vadd.f32 0.0, %v3910
      %v3912 = vpop.f32.mrb[0].mxu0
      %3913 = vmatprep.mubr.bf16.mxu0 0
      %3914 = vmatmul.mubr.bf16.gmra.mrb[0].mxu0 %v3814
      %v3915 = vpop.f32.mrb[0].mxu0
      %v3916 = vadd.f32 0.0, %v3915
      %v3917 = vpop.f32.mrb[0].mxu0
      %v3918 = vpop.f32.mrb[0].mxu0
      %v3919 = vadd.f32 0.0, %v3918
      %v3920 = vpop.f32.mrb[0].mxu0
      %3921 = vmatprep.mubr.bf16.mxu0 0
      %3922 = vmatmul.mubr.bf16.gmra.mrb[0].mxu0 %v3817
      %v3923 = vpop.f32.mrb[0].mxu0
      %v3924 = vadd.f32 0.0, %v3923
      %v3925 = vpop.f32.mrb[0].mxu0
      %v3926 = vpop.f32.mrb[0].mxu0
      %v3927 = vadd.f32 0.0, %v3926
      %v3928 = vpop.f32.mrb[0].mxu0
      %3929 = vmatprep.mubr.bf16.mxu0 0
      %3930 = vmatmul.mubr.bf16.gmra.mrb[0].mxu0 %v3820
      %v3931 = vpop.f32.mrb[0].mxu0
      %v3932 = vadd.f32 0.0, %v3931
      %v3933 = vpop.f32.mrb[0].mxu0
      %v3934 = vpop.f32.mrb[0].mxu0
      %v3935 = vadd.f32 0.0, %v3934
      %v3936 = vpop.f32.mrb[0].mxu0
      %3937 = vdwg.mxu0
      %v3938 = vadd.f32 %v3681, %v3860
      %v3939 = vadd.f32 %v3682, %v3863
      %v3940 = vadd.f32 %v3683, %v3868
      %v3941 = vadd.f32 %v3684, %v3871
      %v3942 = vadd.f32 %v3685, %v3876
      %v3943 = vadd.f32 %v3686, %v3879
      %v3944 = vadd.f32 %v3687, %v3884
      %v3945 = vadd.f32 %v3688, %v3887
      %v3946 = vadd.f32 %v3689, %v3892
      %v3947 = vadd.f32 %v3690, %v3895
      %v3948 = vadd.f32 %v3691, %v3900
      %v3949 = vadd.f32 %v3692, %v3903
      %v3950 = vadd.f32 %v3693, %v3908
      %v3951 = vadd.f32 %v3694, %v3911
      %v3952 = vadd.f32 %v3695, %v3916
      %v3953 = vadd.f32 %v3696, %v3919
      %v3954 = vadd.f32 %v3697, %v3924
      %v3955 = vadd.f32 %v3698, %v3927
      %v3956 = vadd.f32 %v3699, %v3932
      %v3957 = vadd.f32 %v3700, %v3935
      %v3958 = vld [vmem:[#allocation2 + $0x9] sm:$0xff]
      %v3959 = vld [vmem:[#allocation2 + $0x11] sm:$0xff]
      %v3960 = vld [vmem:[#allocation2 + $0x19] sm:$0xff]
      %v3961 = vld [vmem:[#allocation2 + $0x21] sm:$0xff]
      %v3962 = vld [vmem:[#allocation2 + $0x29] sm:$0xff]
      %v3963 = vld [vmem:[#allocation2 + $0x31] sm:$0xff]
      %v3964 = vld [vmem:[#allocation2 + $0x39] sm:$0xff]
      %v3965 = vld [vmem:[#allocation2 + $0x41] sm:$0xff]
      %v3966 = vld [vmem:[#allocation2 + $0x49] sm:$0xff]
      %v3967 = vld [vmem:[#allocation2 + $0x51] sm:$0xff]
      %v3968 = vld [vmem:[#allocation2 + $0x59] sm:$0xff]
      %v3969 = vld [vmem:[#allocation2 + $0x61] sm:$0xff]
      %v3970 = vld [vmem:[#allocation2 + $0x69] sm:$0xff]
      %v3971 = vld [vmem:[#allocation2 + $0x71] sm:$0xff]
      %v3972 = vld [vmem:[#allocation2 + $0x79] sm:$0xff]
      %v3973 = vld [vmem:[#allocation2 + $0x81] sm:$0xff]
      %v3974 = vld [vmem:[#allocation2 + $0x89] sm:$0xff]
      %v3975 = vld [vmem:[#allocation2 + $0x91] sm:$0xff]
      %v3976 = vld [vmem:[#allocation2 + $0x99] sm:$0xff]
      %v3977 = vld [vmem:[#allocation2 + $0xa1] sm:$0xff]
      %v3978 = vpack.c.bf16 %v3959, %v3958
      %v3979 = vpack.c.bf16 %v3961, %v3960
      %v3980 = vpack.c.bf16 %v3963, %v3962
      %v3981 = vpack.c.bf16 %v3965, %v3964
      %v3982 = vpack.c.bf16 %v3967, %v3966
      %v3983 = vpack.c.bf16 %v3969, %v3968
      %v3984 = vpack.c.bf16 %v3971, %v3970
      %v3985 = vpack.c.bf16 %v3973, %v3972
      %v3986 = vpack.c.bf16 %v3975, %v3974
      %v3987 = vpack.c.bf16 %v3977, %v3976
      %s3988 = scalar_lea.vmem %s7, 32
      %v3989 = vld [vmem:[%s3988] sm:$0xf]
      %v3990 = vld [vmem:[%s3988 + $0x4] sm:$0xf]
      %v3991 = vld [vmem:[%s3988 + $0x8] sm:$0xf]
      %v3992 = vld [vmem:[%s3988 + $0xc] sm:$0xf]
      %v3997 = vunpack.c.l.b16 %v3989
      %v3998 = vunpack.c.l.b16 %v3990
      %v3999 = vunpack.c.l.b16 %v3991
      %v4000 = vunpack.c.l.b16 %v3992
      %v4001 = vpack.c.b16 %v3998, %v3997
      %v4002 = vpack.c.b16 %v4000, %v3999
      %v4006 = vsel %vm755, %v3978, 0
      %v4009 = vsel %vm755, %v3979, 0
      %v4012 = vsel %vm755, %v3980, 0
      %v4015 = vsel %vm755, %v3981, 0
      %v4018 = vsel %vm755, %v3982, 0
      %v4021 = vsel %vm755, %v3983, 0
      %v4024 = vsel %vm755, %v3984, 0
      %v4027 = vsel %vm755, %v3985, 0
      %v4030 = vsel %vm755, %v3986, 0
      %v4033 = vsel %vm755, %v3987, 0
      %4035 = vmatprep.subr.bf16.mxu0 0
      %4036 = vmatpush1.bf16.msra.mxu0 %v4001
      %4037 = vmatprep.subr.bf16.mxu0 0
      %4038 = vmatpush1.bf16.msra.mxu0 %v4002
      %4039 = vmatprep.subr.bf16.mxu0 0
      %4040 = vmatpush1.bf16.msra.mxu0 0
      %4041 = vmatprep.subr.bf16.mxu0 0
      %4042 = vmatpush1.bf16.msra.mxu0 0
      %4043 = vmatprep.subr.bf16.mxu0 0
      %4044 = vmatpush1.bf16.msra.mxu0 0
      %4045 = vmatprep.subr.bf16.mxu0 0
      %4046 = vmatpush1.bf16.msra.mxu0 0
      %4047 = vmatprep.subr.bf16.mxu0 0
      %4048 = vmatpush1.bf16.msra.mxu0 0
      %4049 = vmatprep.subr.bf16.mxu0 0
      %4050 = vmatpush1.bf16.msra.mxu0 0
      %4051 = vmatprep.subr.bf16.mxu0 0
      %4052 = vmatpush1.bf16.msra.mxu0 0
      %4053 = vmatprep.subr.bf16.mxu0 0
      %4054 = vmatpush1.bf16.msra.mxu0 0
      %4055 = vmatprep.subr.bf16.mxu0 0
      %4056 = vmatpush1.bf16.msra.mxu0 0
      %4057 = vmatprep.subr.bf16.mxu0 0
      %4058 = vmatpush1.bf16.msra.mxu0 0
      %4059 = vmatprep.subr.bf16.mxu0 0
      %4060 = vmatpush1.bf16.msra.mxu0 0
      %4061 = vmatprep.subr.bf16.mxu0 0
      %4062 = vmatpush1.bf16.msra.mxu0 0
      %4063 = vmatprep.subr.bf16.mxu0 0
      %4064 = vmatpush1.bf16.msra.mxu0 0
      %4065 = vmatprep.subr.bf16.mxu0 0
      %4066 = vmatpush1.bf16.msra.mxu0 0
      %4067 = vmatprep.mubr.bf16.mxu0 0
      %4068 = vmatmul.mubr.bf16.gmra.mrb[0].mxu0 %v4006
      %v4069 = vpop.f32.mrb[0].mxu0
      %v4070 = vadd.f32 0.0, %v4069
      %v4071 = vpop.f32.mrb[0].mxu0
      %v4072 = vpop.f32.mrb[0].mxu0
      %v4073 = vadd.f32 0.0, %v4072
      %v4074 = vpop.f32.mrb[0].mxu0
      %4075 = vmatprep.mubr.bf16.mxu0 0
      %4076 = vmatmul.mubr.bf16.gmra.mrb[0].mxu0 %v4009
      %v4077 = vpop.f32.mrb[0].mxu0
      %v4078 = vadd.f32 0.0, %v4077
      %v4079 = vpop.f32.mrb[0].mxu0
      %v4080 = vpop.f32.mrb[0].mxu0
      %v4081 = vadd.f32 0.0, %v4080
      %v4082 = vpop.f32.mrb[0].mxu0
      %4083 = vmatprep.mubr.bf16.mxu0 0
      %4084 = vmatmul.mubr.bf16.gmra.mrb[0].mxu0 %v4012
      %v4085 = vpop.f32.mrb[0].mxu0
      %v4086 = vadd.f32 0.0, %v4085
      %v4087 = vpop.f32.mrb[0].mxu0
      %v4088 = vpop.f32.mrb[0].mxu0
      %v4089 = vadd.f32 0.0, %v4088
      %v4090 = vpop.f32.mrb[0].mxu0
      %4091 = vmatprep.mubr.bf16.mxu0 0
      %4092 = vmatmul.mubr.bf16.gmra.mrb[0].mxu0 %v4015
      %v4093 = vpop.f32.mrb[0].mxu0
      %v4094 = vadd.f32 0.0, %v4093
      %v4095 = vpop.f32.mrb[0].mxu0
      %v4096 = vpop.f32.mrb[0].mxu0
      %v4097 = vadd.f32 0.0, %v4096
      %v4098 = vpop.f32.mrb[0].mxu0
      %4099 = vmatprep.mubr.bf16.mxu0 0
      %4100 = vmatmul.mubr.bf16.gmra.mrb[0].mxu0 %v4018
      %v4101 = vpop.f32.mrb[0].mxu0
      %v4102 = vadd.f32 0.0, %v4101
      %v4103 = vpop.f32.mrb[0].mxu0
      %v4104 = vpop.f32.mrb[0].mxu0
      %v4105 = vadd.f32 0.0, %v4104
      %v4106 = vpop.f32.mrb[0].mxu0
      %4107 = vmatprep.mubr.bf16.mxu0 0
      %4108 = vmatmul.mubr.bf16.gmra.mrb[0].mxu0 %v4021
      %v4109 = vpop.f32.mrb[0].mxu0
      %v4110 = vadd.f32 0.0, %v4109
      %v4111 = vpop.f32.mrb[0].mxu0
      %v4112 = vpop.f32.mrb[0].mxu0
      %v4113 = vadd.f32 0.0, %v4112
      %v4114 = vpop.f32.mrb[0].mxu0
      %4115 = vmatprep.mubr.bf16.mxu0 0
      %4116 = vmatmul.mubr.bf16.gmra.mrb[0].mxu0 %v4024
      %v4117 = vpop.f32.mrb[0].mxu0
      %v4118 = vadd.f32 0.0, %v4117
      %v4119 = vpop.f32.mrb[0].mxu0
      %v4120 = vpop.f32.mrb[0].mxu0
      %v4121 = vadd.f32 0.0, %v4120
      %v4122 = vpop.f32.mrb[0].mxu0
      %4123 = vmatprep.mubr.bf16.mxu0 0
      %4124 = vmatmul.mubr.bf16.gmra.mrb[0].mxu0 %v4027
      %v4125 = vpop.f32.mrb[0].mxu0
      %v4126 = vadd.f32 0.0, %v4125
      %v4127 = vpop.f32.mrb[0].mxu0
      %v4128 = vpop.f32.mrb[0].mxu0
      %v4129 = vadd.f32 0.0, %v4128
      %v4130 = vpop.f32.mrb[0].mxu0
      %4131 = vmatprep.mubr.bf16.mxu0 0
      %4132 = vmatmul.mubr.bf16.gmra.mrb[0].mxu0 %v4030
      %v4133 = vpop.f32.mrb[0].mxu0
      %v4134 = vadd.f32 0.0, %v4133
      %v4135 = vpop.f32.mrb[0].mxu0
      %v4136 = vpop.f32.mrb[0].mxu0
      %v4137 = vadd.f32 0.0, %v4136
      %v4138 = vpop.f32.mrb[0].mxu0
      %4139 = vmatprep.mubr.bf16.mxu0 0
      %4140 = vmatmul.mubr.bf16.gmra.mrb[0].mxu0 %v4033
      %v4141 = vpop.f32.mrb[0].mxu0
      %v4142 = vadd.f32 0.0, %v4141
      %v4143 = vpop.f32.mrb[0].mxu0
      %v4144 = vpop.f32.mrb[0].mxu0
      %v4145 = vadd.f32 0.0, %v4144
      %v4146 = vpop.f32.mrb[0].mxu0
      %4147 = vdwg.mxu0
      %v4148 = vadd.f32 %v3938, %v4070
      %v4149 = vadd.f32 %v3939, %v4073
      %v4150 = vadd.f32 %v3940, %v4078
      %v4151 = vadd.f32 %v3941, %v4081
      %v4152 = vadd.f32 %v3942, %v4086
      %v4153 = vadd.f32 %v3943, %v4089
      %v4154 = vadd.f32 %v3944, %v4094
      %v4155 = vadd.f32 %v3945, %v4097
      %v4156 = vadd.f32 %v3946, %v4102
      %v4157 = vadd.f32 %v3947, %v4105
      %v4158 = vadd.f32 %v3948, %v4110
      %v4159 = vadd.f32 %v3949, %v4113
      %v4160 = vadd.f32 %v3950, %v4118
      %v4161 = vadd.f32 %v3951, %v4121
      %v4162 = vadd.f32 %v3952, %v4126
      %v4163 = vadd.f32 %v3953, %v4129
      %v4164 = vadd.f32 %v3954, %v4134
      %v4165 = vadd.f32 %v3955, %v4137
      %v4166 = vadd.f32 %v3956, %v4142
      %v4167 = vadd.f32 %v3957, %v4145
      %v4168 = vld [vmem:[#allocation3 + $0x9] sm:$0xff]
      %v4169 = vld [vmem:[#allocation3 + $0x11] sm:$0xff]
      %v4170 = vld [vmem:[#allocation3 + $0x19] sm:$0xff]
      %v4171 = vld [vmem:[#allocation3 + $0x21] sm:$0xff]
      %v4172 = vld [vmem:[#allocation3 + $0x29] sm:$0xff]
      %v4173 = vld [vmem:[#allocation3 + $0x31] sm:$0xff]
      %v4174 = vld [vmem:[#allocation3 + $0x39] sm:$0xff]
      %v4175 = vld [vmem:[#allocation3 + $0x41] sm:$0xff]
      %v4176 = vld [vmem:[#allocation3 + $0x49] sm:$0xff]
      %v4177 = vld [vmem:[#allocation3 + $0x51] sm:$0xff]
      %v4178 = vld [vmem:[#allocation3 + $0x59] sm:$0xff]
      %v4179 = vld [vmem:[#allocation3 + $0x61] sm:$0xff]
      %v4180 = vld [vmem:[#allocation3 + $0x69] sm:$0xff]
      %v4181 = vld [vmem:[#allocation3 + $0x71] sm:$0xff]
      %v4182 = vld [vmem:[#allocation3 + $0x79] sm:$0xff]
      %v4183 = vld [vmem:[#allocation3 + $0x81] sm:$0xff]
      %v4184 = vld [vmem:[#allocation3 + $0x89] sm:$0xff]
      %v4185 = vld [vmem:[#allocation3 + $0x91] sm:$0xff]
      %v4186 = vld [vmem:[#allocation3 + $0x99] sm:$0xff]
      %v4187 = vld [vmem:[#allocation3 + $0xa1] sm:$0xff]
      %v4188 = vpack.c.bf16 %v4169, %v4168
      %v4189 = vpack.c.bf16 %v4171, %v4170
      %v4190 = vpack.c.bf16 %v4173, %v4172
      %v4191 = vpack.c.bf16 %v4175, %v4174
      %v4192 = vpack.c.bf16 %v4177, %v4176
      %v4193 = vpack.c.bf16 %v4179, %v4178
      %v4194 = vpack.c.bf16 %v4181, %v4180
      %v4195 = vpack.c.bf16 %v4183, %v4182
      %v4196 = vpack.c.bf16 %v4185, %v4184
      %v4197 = vpack.c.bf16 %v4187, %v4186
      %s4198 = scalar_lea.vmem %s8, 120
      %v4199 = vld [vmem:[%s4198] sm:$0xf]
      %v4200 = vld [vmem:[%s4198 + $0x4] sm:$0xf]
      %v4201 = vld [vmem:[%s4198 + $0x8] sm:$0xf]
      %v4202 = vld [vmem:[%s4198 + $0xc] sm:$0xf]
      %v4203 = vld [vmem:[%s4198 + $0x10] sm:$0xf]
      %v4204 = vld [vmem:[%s4198 + $0x14] sm:$0xf]
      %v4205 = vld [vmem:[%s4198 + $0x18] sm:$0xf]
      %v4206 = vld [vmem:[%s4198 + $0x1c] sm:$0xf]
      %v4207 = vld [vmem:[%s4198 + $0x20] sm:$0xf]
      %v4208 = vld [vmem:[%s4198 + $0x24] sm:$0xf]
      %v4209 = vld [vmem:[%s4198 + $0x28] sm:$0xf]
      %v4210 = vld [vmem:[%s4198 + $0x2c] sm:$0xf]
      %v4211 = vld [vmem:[%s4198 + $0x30] sm:$0xf]
      %v4212 = vld [vmem:[%s4198 + $0x34] sm:$0xf]
      %v4213 = vld [vmem:[%s4198 + $0x38] sm:$0xf]
      %v4229 = vunpack.c.l.b16 %v4199
      %v4230 = vunpack.c.l.b16 %v4200
      %v4231 = vunpack.c.l.b16 %v4201
      %v4232 = vunpack.c.l.b16 %v4202
      %v4233 = vunpack.c.l.b16 %v4203
      %v4234 = vunpack.c.l.b16 %v4204
      %v4235 = vunpack.c.l.b16 %v4205
      %v4236 = vunpack.c.l.b16 %v4206
      %v4237 = vunpack.c.l.b16 %v4207
      %v4238 = vunpack.c.l.b16 %v4208
      %v4239 = vunpack.c.l.b16 %v4209
      %v4240 = vunpack.c.l.b16 %v4210
      %v4241 = vunpack.c.l.b16 %v4211
      %v4242 = vunpack.c.l.b16 %v4212
      %v4243 = vunpack.c.l.b16 %v4213
      %v4244 = vpack.c.b16 %v4230, %v4229
      %v4245 = vpack.c.b16 %v4232, %v4231
      %v4246 = vpack.c.b16 %v4234, %v4233
      %v4247 = vpack.c.b16 %v4236, %v4235
      %v4248 = vpack.c.b16 %v4238, %v4237
      %v4249 = vpack.c.b16 %v4240, %v4239
      %v4250 = vpack.c.b16 %v4242, %v4241
      %v4251 = vpack.c.b16 %v4243, %v4243
      %v4260 = vsel %vm762, %v4188, 0
      %v4263 = vsel %vm762, %v4189, 0
      %v4266 = vsel %vm762, %v4190, 0
      %v4269 = vsel %vm762, %v4191, 0
      %v4272 = vsel %vm762, %v4192, 0
      %v4275 = vsel %vm762, %v4193, 0
      %v4278 = vsel %vm762, %v4194, 0
      %v4281 = vsel %vm762, %v4195, 0
      %v4284 = vsel %vm762, %v4196, 0
      %v4287 = vsel %vm762, %v4197, 0
      %v4290 = vsel %vm3219, %v4251, 0
      %4292 = vmatprep.subr.bf16.mxu0 0
      %4293 = vmatpush1.bf16.msra.mxu0 %v4244
      %4294 = vmatprep.subr.bf16.mxu0 0
      %4295 = vmatpush1.bf16.msra.mxu0 %v4245
      %4296 = vmatprep.subr.bf16.mxu0 0
      %4297 = vmatpush1.bf16.msra.mxu0 %v4246
      %4298 = vmatprep.subr.bf16.mxu0 0
      %4299 = vmatpush1.bf16.msra.mxu0 %v4247
      %4300 = vmatprep.subr.bf16.mxu0 0
      %4301 = vmatpush1.bf16.msra.mxu0 %v4248
      %4302 = vmatprep.subr.bf16.mxu0 0
      %4303 = vmatpush1.bf16.msra.mxu0 %v4249
      %4304 = vmatprep.subr.bf16.mxu0 0
      %4305 = vmatpush1.bf16.msra.mxu0 %v4250
      %4306 = vmatprep.subr.bf16.mxu0 0
      %4307 = vmatpush1.bf16.msra.mxu0 %v4290
      %4308 = vmatprep.subr.bf16.mxu0 0
      %4309 = vmatpush1.bf16.msra.mxu0 0
      %4310 = vmatprep.subr.bf16.mxu0 0
      %4311 = vmatpush1.bf16.msra.mxu0 0
      %4312 = vmatprep.subr.bf16.mxu0 0
      %4313 = vmatpush1.bf16.msra.mxu0 0
      %4314 = vmatprep.subr.bf16.mxu0 0
      %4315 = vmatpush1.bf16.msra.mxu0 0
      %4316 = vmatprep.subr.bf16.mxu0 0
      %4317 = vmatpush1.bf16.msra.mxu0 0
      %4318 = vmatprep.subr.bf16.mxu0 0
      %4319 = vmatpush1.bf16.msra.mxu0 0
      %4320 = vmatprep.subr.bf16.mxu0 0
      %4321 = vmatpush1.bf16.msra.mxu0 0
      %4322 = vmatprep.subr.bf16.mxu0 0
      %4323 = vmatpush1.bf16.msra.mxu0 0
      %4324 = vmatprep.mubr.bf16.mxu0 0
      %4325 = vmatmul.mubr.bf16.gmra.mrb[0].mxu0 %v4260
      %v4326 = vpop.f32.mrb[0].mxu0
      %v4327 = vadd.f32 0.0, %v4326
      %v4328 = vpop.f32.mrb[0].mxu0
      %v4329 = vpop.f32.mrb[0].mxu0
      %v4330 = vadd.f32 0.0, %v4329
      %v4331 = vpop.f32.mrb[0].mxu0
      %4332 = vmatprep.mubr.bf16.mxu0 0
      %4333 = vmatmul.mubr.bf16.gmra.mrb[0].mxu0 %v4263
      %v4334 = vpop.f32.mrb[0].mxu0
      %v4335 = vadd.f32 0.0, %v4334
      %v4336 = vpop.f32.mrb[0].mxu0
      %v4337 = vpop.f32.mrb[0].mxu0
      %v4338 = vadd.f32 0.0, %v4337
      %v4339 = vpop.f32.mrb[0].mxu0
      %4340 = vmatprep.mubr.bf16.mxu0 0
      %4341 = vmatmul.mubr.bf16.gmra.mrb[0].mxu0 %v4266
      %v4342 = vpop.f32.mrb[0].mxu0
      %v4343 = vadd.f32 0.0, %v4342
      %v4344 = vpop.f32.mrb[0].mxu0
      %v4345 = vpop.f32.mrb[0].mxu0
      %v4346 = vadd.f32 0.0, %v4345
      %v4347 = vpop.f32.mrb[0].mxu0
      %4348 = vmatprep.mubr.bf16.mxu0 0
      %4349 = vmatmul.mubr.bf16.gmra.mrb[0].mxu0 %v4269
      %v4350 = vpop.f32.mrb[0].mxu0
      %v4351 = vadd.f32 0.0, %v4350
      %v4352 = vpop.f32.mrb[0].mxu0
      %v4353 = vpop.f32.mrb[0].mxu0
      %v4354 = vadd.f32 0.0, %v4353
      %v4355 = vpop.f32.mrb[0].mxu0
      %4356 = vmatprep.mubr.bf16.mxu0 0
      %4357 = vmatmul.mubr.bf16.gmra.mrb[0].mxu0 %v4272
      %v4358 = vpop.f32.mrb[0].mxu0
      %v4359 = vadd.f32 0.0, %v4358
      %v4360 = vpop.f32.mrb[0].mxu0
      %v4361 = vpop.f32.mrb[0].mxu0
      %v4362 = vadd.f32 0.0, %v4361
      %v4363 = vpop.f32.mrb[0].mxu0
      %4364 = vmatprep.mubr.bf16.mxu0 0
      %4365 = vmatmul.mubr.bf16.gmra.mrb[0].mxu0 %v4275
      %v4366 = vpop.f32.mrb[0].mxu0
      %v4367 = vadd.f32 0.0, %v4366
      %v4368 = vpop.f32.mrb[0].mxu0
      %v4369 = vpop.f32.mrb[0].mxu0
      %v4370 = vadd.f32 0.0, %v4369
      %v4371 = vpop.f32.mrb[0].mxu0
      %4372 = vmatprep.mubr.bf16.mxu0 0
      %4373 = vmatmul.mubr.bf16.gmra.mrb[0].mxu0 %v4278
      %v4374 = vpop.f32.mrb[0].mxu0
      %v4375 = vadd.f32 0.0, %v4374
      %v4376 = vpop.f32.mrb[0].mxu0
      %v4377 = vpop.f32.mrb[0].mxu0
      %v4378 = vadd.f32 0.0, %v4377
      %v4379 = vpop.f32.mrb[0].mxu0
      %4380 = vmatprep.mubr.bf16.mxu0 0
      %4381 = vmatmul.mubr.bf16.gmra.mrb[0].mxu0 %v4281
      %v4382 = vpop.f32.mrb[0].mxu0
      %v4383 = vadd.f32 0.0, %v4382
      %v4384 = vpop.f32.mrb[0].mxu0
      %v4385 = vpop.f32.mrb[0].mxu0
      %v4386 = vadd.f32 0.0, %v4385
      %v4387 = vpop.f32.mrb[0].mxu0
      %4388 = vmatprep.mubr.bf16.mxu0 0
      %4389 = vmatmul.mubr.bf16.gmra.mrb[0].mxu0 %v4284
      %v4390 = vpop.f32.mrb[0].mxu0
      %v4391 = vadd.f32 0.0, %v4390
      %v4392 = vpop.f32.mrb[0].mxu0
      %v4393 = vpop.f32.mrb[0].mxu0
      %v4394 = vadd.f32 0.0, %v4393
      %v4395 = vpop.f32.mrb[0].mxu0
      %4396 = vmatprep.mubr.bf16.mxu0 0
      %4397 = vmatmul.mubr.bf16.gmra.mrb[0].mxu0 %v4287
      %v4398 = vpop.f32.mrb[0].mxu0
      %v4399 = vadd.f32 0.0, %v4398
      %v4400 = vpop.f32.mrb[0].mxu0
      %v4401 = vpop.f32.mrb[0].mxu0
      %v4402 = vadd.f32 0.0, %v4401
      %v4403 = vpop.f32.mrb[0].mxu0
      %4404 = vdwg.mxu0
      %v4405 = vadd.f32 %v4148, %v4327
      %v4406 = vadd.f32 %v4149, %v4330
      %v4407 = vadd.f32 %v4150, %v4335
      %v4408 = vadd.f32 %v4151, %v4338
      %v4409 = vadd.f32 %v4152, %v4343
      %v4410 = vadd.f32 %v4153, %v4346
      %v4411 = vadd.f32 %v4154, %v4351
      %v4412 = vadd.f32 %v4155, %v4354
      %v4413 = vadd.f32 %v4156, %v4359
      %v4414 = vadd.f32 %v4157, %v4362
      %v4415 = vadd.f32 %v4158, %v4367
      %v4416 = vadd.f32 %v4159, %v4370
      %v4417 = vadd.f32 %v4160, %v4375
      %v4418 = vadd.f32 %v4161, %v4378
      %v4419 = vadd.f32 %v4162, %v4383
      %v4420 = vadd.f32 %v4163, %v4386
      %v4421 = vadd.f32 %v4164, %v4391
      %v4422 = vadd.f32 %v4165, %v4394
      %v4423 = vadd.f32 %v4166, %v4399
      %v4424 = vadd.f32 %v4167, %v4402
      %v4425 = vld [vmem:[%s9] sm:$0x1]
      %v4427 = vlaneseq
      %v4428 = vshrl.u32 %v4427, 7
      %v4429 = vsub.s32 0, %v4428
      %v4430 = vrot.slane %v4425, %v4429
      %v4432 = vadd.f32 %v4405, %v4430
      %v4433 = vadd.f32 %v4406, %v4430
      %v4434 = vadd.f32 %v4407, %v4430
      %v4435 = vadd.f32 %v4408, %v4430
      %v4436 = vadd.f32 %v4409, %v4430
      %v4437 = vadd.f32 %v4410, %v4430
      %v4438 = vadd.f32 %v4411, %v4430
      %v4439 = vadd.f32 %v4412, %v4430
      %v4440 = vadd.f32 %v4413, %v4430
      %v4441 = vadd.f32 %v4414, %v4430
      %v4442 = vadd.f32 %v4415, %v4430
      %v4443 = vadd.f32 %v4416, %v4430
      %v4444 = vadd.f32 %v4417, %v4430
      %v4445 = vadd.f32 %v4418, %v4430
      %v4446 = vadd.f32 %v4419, %v4430
      %v4447 = vadd.f32 %v4420, %v4430
      %v4448 = vadd.f32 %v4421, %v4430
      %v4449 = vadd.f32 %v4422, %v4430
      %v4450 = vadd.f32 %v4423, %v4430
      %v4451 = vadd.f32 %v4424, %v4430
      %v4452 = vld [vmem:[%s10] sm:$0xff]
      %v4453 = vld [vmem:[%s10 + $0x8] sm:$0xff]
      %v4454 = vld [vmem:[%s10 + $0x10] sm:$0xff]
      %v4455 = vld [vmem:[%s10 + $0x18] sm:$0xff]
      %v4456 = vld [vmem:[%s10 + $0x20] sm:$0xff]
      %v4457 = vld [vmem:[%s10 + $0x28] sm:$0xff]
      %v4458 = vld [vmem:[%s10 + $0x30] sm:$0xff]
      %v4459 = vld [vmem:[%s10 + $0x38] sm:$0xff]
      %v4460 = vld [vmem:[%s10 + $0x40] sm:$0xff]
      %v4461 = vld [vmem:[%s10 + $0x48] sm:$0xff]
      %v4462 = vld [vmem:[%s10 + $0x50] sm:$0xff]
      %v4463 = vld [vmem:[%s10 + $0x58] sm:$0xff]
      %v4464 = vld [vmem:[%s10 + $0x60] sm:$0xff]
      %v4465 = vld [vmem:[%s10 + $0x68] sm:$0xff]
      %v4466 = vld [vmem:[%s10 + $0x70] sm:$0xff]
      %v4467 = vld [vmem:[%s10 + $0x78] sm:$0xff]
      %v4468 = vld [vmem:[%s10 + $0x80] sm:$0xff]
      %v4469 = vld [vmem:[%s10 + $0x88] sm:$0xff]
      %v4470 = vld [vmem:[%s10 + $0x90] sm:$0xff]
      %v4471 = vld [vmem:[%s10 + $0x98] sm:$0xff]
      %4473 = vset.pattern.permute.xlu0 0
      %4474 = vperm.xlu0 %4473, %v4452
      %v4475 = vpop.permute.xlu0 %4474
      %4478 = vset.pattern.permute.xlu0 0
      %4479 = vperm.xlu0 %4478, %v4453
      %v4480 = vpop.permute.xlu0 %4479
      %4483 = vset.pattern.permute.xlu0 0
      %4484 = vperm.xlu0 %4483, %v4454
      %v4485 = vpop.permute.xlu0 %4484
      %4488 = vset.pattern.permute.xlu0 0
      %4489 = vperm.xlu0 %4488, %v4455
      %v4490 = vpop.permute.xlu0 %4489
      %4493 = vset.pattern.permute.xlu0 0
      %4494 = vperm.xlu0 %4493, %v4456
      %v4495 = vpop.permute.xlu0 %4494
      %4498 = vset.pattern.permute.xlu0 0
      %4499 = vperm.xlu0 %4498, %v4457
      %v4500 = vpop.permute.xlu0 %4499
      %4503 = vset.pattern.permute.xlu0 0
      %4504 = vperm.xlu0 %4503, %v4458
      %v4505 = vpop.permute.xlu0 %4504
      %4508 = vset.pattern.permute.xlu0 0
      %4509 = vperm.xlu0 %4508, %v4459
      %v4510 = vpop.permute.xlu0 %4509
      %4513 = vset.pattern.permute.xlu0 0
      %4514 = vperm.xlu0 %4513, %v4460
      %v4515 = vpop.permute.xlu0 %4514
      %4518 = vset.pattern.permute.xlu0 0
      %4519 = vperm.xlu0 %4518, %v4461
      %v4520 = vpop.permute.xlu0 %4519
      %4523 = vset.pattern.permute.xlu0 0
      %4524 = vperm.xlu0 %4523, %v4462
      %v4525 = vpop.permute.xlu0 %4524
      %4528 = vset.pattern.permute.xlu0 0
      %4529 = vperm.xlu0 %4528, %v4463
      %v4530 = vpop.permute.xlu0 %4529
      %4533 = vset.pattern.permute.xlu0 0
      %4534 = vperm.xlu0 %4533, %v4464
      %v4535 = vpop.permute.xlu0 %4534
      %4538 = vset.pattern.permute.xlu0 0
      %4539 = vperm.xlu0 %4538, %v4465
      %v4540 = vpop.permute.xlu0 %4539
      %4543 = vset.pattern.permute.xlu0 0
      %4544 = vperm.xlu0 %4543, %v4466
      %v4545 = vpop.permute.xlu0 %4544
      %4548 = vset.pattern.permute.xlu0 0
      %4549 = vperm.xlu0 %4548, %v4467
      %v4550 = vpop.permute.xlu0 %4549
      %4553 = vset.pattern.permute.xlu0 0
      %4554 = vperm.xlu0 %4553, %v4468
      %v4555 = vpop.permute.xlu0 %4554
      %4558 = vset.pattern.permute.xlu0 0
      %4559 = vperm.xlu0 %4558, %v4469
      %v4560 = vpop.permute.xlu0 %4559
      %4563 = vset.pattern.permute.xlu0 0
      %4564 = vperm.xlu0 %4563, %v4470
      %v4565 = vpop.permute.xlu0 %4564
      %4568 = vset.pattern.permute.xlu0 0
      %4569 = vperm.xlu0 %4568, %v4471
      %v4570 = vpop.permute.xlu0 %4569
      %v4572 = vmul.f32 %v4432, %v4475
      %v4573 = vmul.f32 %v4433, %v4480
      %v4574 = vmul.f32 %v4434, %v4485
      %v4575 = vmul.f32 %v4435, %v4490
      %v4576 = vmul.f32 %v4436, %v4495
      %v4577 = vmul.f32 %v4437, %v4500
      %v4578 = vmul.f32 %v4438, %v4505
      %v4579 = vmul.f32 %v4439, %v4510
      %v4580 = vmul.f32 %v4440, %v4515
      %v4581 = vmul.f32 %v4441, %v4520
      %v4582 = vmul.f32 %v4442, %v4525
      %v4583 = vmul.f32 %v4443, %v4530
      %v4584 = vmul.f32 %v4444, %v4535
      %v4585 = vmul.f32 %v4445, %v4540
      %v4586 = vmul.f32 %v4446, %v4545
      %v4587 = vmul.f32 %v4447, %v4550
      %v4588 = vmul.f32 %v4448, %v4555
      %v4589 = vmul.f32 %v4449, %v4560
      %v4590 = vmul.f32 %v4450, %v4565
      %v4591 = vmul.f32 %v4451, %v4570
      %v4592 = vld [vmem:[%s11] sm:$0xff]
      %v4593 = vld [vmem:[%s11 + $0x8] sm:$0xff]
      %v4594 = vld [vmem:[%s11 + $0x10] sm:$0xff]
      %v4595 = vld [vmem:[%s11 + $0x18] sm:$0xff]
      %v4596 = vld [vmem:[%s11 + $0x20] sm:$0xff]
      %v4597 = vld [vmem:[%s11 + $0x28] sm:$0xff]
      %v4598 = vld [vmem:[%s11 + $0x30] sm:$0xff]
      %v4599 = vld [vmem:[%s11 + $0x38] sm:$0xff]
      %v4600 = vld [vmem:[%s11 + $0x40] sm:$0xff]
      %v4601 = vld [vmem:[%s11 + $0x48] sm:$0xff]
      %v4602 = vld [vmem:[%s11 + $0x50] sm:$0xff]
      %v4603 = vld [vmem:[%s11 + $0x58] sm:$0xff]
      %v4604 = vld [vmem:[%s11 + $0x60] sm:$0xff]
      %v4605 = vld [vmem:[%s11 + $0x68] sm:$0xff]
      %v4606 = vld [vmem:[%s11 + $0x70] sm:$0xff]
      %v4607 = vld [vmem:[%s11 + $0x78] sm:$0xff]
      %v4608 = vld [vmem:[%s11 + $0x80] sm:$0xff]
      %v4609 = vld [vmem:[%s11 + $0x88] sm:$0xff]
      %v4610 = vld [vmem:[%s11 + $0x90] sm:$0xff]
      %v4611 = vld [vmem:[%s11 + $0x98] sm:$0xff]
      %4613 = vset.pattern.permute.xlu0 0
      %4614 = vperm.xlu0 %4613, %v4592
      %v4615 = vpop.permute.xlu0 %4614
      %4618 = vset.pattern.permute.xlu0 0
      %4619 = vperm.xlu0 %4618, %v4593
      %v4620 = vpop.permute.xlu0 %4619
      %4623 = vset.pattern.permute.xlu0 0
      %4624 = vperm.xlu0 %4623, %v4594
      %v4625 = vpop.permute.xlu0 %4624
      %4628 = vset.pattern.permute.xlu0 0
      %4629 = vperm.xlu0 %4628, %v4595
      %v4630 = vpop.permute.xlu0 %4629
      %4633 = vset.pattern.permute.xlu0 0
      %4634 = vperm.xlu0 %4633, %v4596
      %v4635 = vpop.permute.xlu0 %4634
      %4638 = vset.pattern.permute.xlu0 0
      %4639 = vperm.xlu0 %4638, %v4597
      %v4640 = vpop.permute.xlu0 %4639
      %4643 = vset.pattern.permute.xlu0 0
      %4644 = vperm.xlu0 %4643, %v4598
      %v4645 = vpop.permute.xlu0 %4644
      %4648 = vset.pattern.permute.xlu0 0
      %4649 = vperm.xlu0 %4648, %v4599
      %v4650 = vpop.permute.xlu0 %4649
      %4653 = vset.pattern.permute.xlu0 0
      %4654 = vperm.xlu0 %4653, %v4600
      %v4655 = vpop.permute.xlu0 %4654
      %4658 = vset.pattern.permute.xlu0 0
      %4659 = vperm.xlu0 %4658, %v4601
      %v4660 = vpop.permute.xlu0 %4659
      %4663 = vset.pattern.permute.xlu0 0
      %4664 = vperm.xlu0 %4663, %v4602
      %v4665 = vpop.permute.xlu0 %4664
      %4668 = vset.pattern.permute.xlu0 0
      %4669 = vperm.xlu0 %4668, %v4603
      %v4670 = vpop.permute.xlu0 %4669
      %4673 = vset.pattern.permute.xlu0 0
      %4674 = vperm.xlu0 %4673, %v4604
      %v4675 = vpop.permute.xlu0 %4674
      %4678 = vset.pattern.permute.xlu0 0
      %4679 = vperm.xlu0 %4678, %v4605
      %v4680 = vpop.permute.xlu0 %4679
      %4683 = vset.pattern.permute.xlu0 0
      %4684 = vperm.xlu0 %4683, %v4606
      %v4685 = vpop.permute.xlu0 %4684
      %4688 = vset.pattern.permute.xlu0 0
      %4689 = vperm.xlu0 %4688, %v4607
      %v4690 = vpop.permute.xlu0 %4689
      %4693 = vset.pattern.permute.xlu0 0
      %4694 = vperm.xlu0 %4693, %v4608
      %v4695 = vpop.permute.xlu0 %4694
      %4698 = vset.pattern.permute.xlu0 0
      %4699 = vperm.xlu0 %4698, %v4609
      %v4700 = vpop.permute.xlu0 %4699
      %4703 = vset.pattern.permute.xlu0 0
      %4704 = vperm.xlu0 %4703, %v4610
      %v4705 = vpop.permute.xlu0 %4704
      %4708 = vset.pattern.permute.xlu0 0
      %4709 = vperm.xlu0 %4708, %v4611
      %v4710 = vpop.permute.xlu0 %4709
      %v4712 = vadd.f32 %v4572, %v4615
      %v4713 = vadd.f32 %v4573, %v4620
      %v4714 = vadd.f32 %v4574, %v4625
      %v4715 = vadd.f32 %v4575, %v4630
      %v4716 = vadd.f32 %v4576, %v4635
      %v4717 = vadd.f32 %v4577, %v4640
      %v4718 = vadd.f32 %v4578, %v4645
      %v4719 = vadd.f32 %v4579, %v4650
      %v4720 = vadd.f32 %v4580, %v4655
      %v4721 = vadd.f32 %v4581, %v4660
      %v4722 = vadd.f32 %v4582, %v4665
      %v4723 = vadd.f32 %v4583, %v4670
      %v4724 = vadd.f32 %v4584, %v4675
      %v4725 = vadd.f32 %v4585, %v4680
      %v4726 = vadd.f32 %v4586, %v4685
      %v4727 = vadd.f32 %v4587, %v4690
      %v4728 = vadd.f32 %v4588, %v4695
      %v4729 = vadd.f32 %v4589, %v4700
      %v4730 = vadd.f32 %v4590, %v4705
      %v4731 = vadd.f32 %v4591, %v4710
      %v4732 = vxor.u32 %v4712, 2147483648
      %v4733 = vxor.u32 %v4713, 2147483648
      %v4734 = vxor.u32 %v4714, 2147483648
      %v4735 = vxor.u32 %v4715, 2147483648
      %v4736 = vxor.u32 %v4716, 2147483648
      %v4737 = vxor.u32 %v4717, 2147483648
      %v4738 = vxor.u32 %v4718, 2147483648
      %v4739 = vxor.u32 %v4719, 2147483648
      %v4740 = vxor.u32 %v4720, 2147483648
      %v4741 = vxor.u32 %v4721, 2147483648
      %v4742 = vxor.u32 %v4722, 2147483648
      %v4743 = vxor.u32 %v4723, 2147483648
      %v4744 = vxor.u32 %v4724, 2147483648
      %v4745 = vxor.u32 %v4725, 2147483648
      %v4746 = vxor.u32 %v4726, 2147483648
      %v4747 = vxor.u32 %v4727, 2147483648
      %v4748 = vxor.u32 %v4728, 2147483648
      %v4749 = vxor.u32 %v4729, 2147483648
      %v4750 = vxor.u32 %v4730, 2147483648
      %v4751 = vxor.u32 %v4731, 2147483648
      %v4752 = vmul.f32 %v4732, 1.442695
      %v4753 = vpow.pop %v4752
      %v4754 = vmul.f32 %v4733, 1.442695
      %v4755 = vpow.pop %v4754
      %v4756 = vmul.f32 %v4734, 1.442695
      %v4757 = vpow.pop %v4756
      %v4758 = vmul.f32 %v4735, 1.442695
      %v4759 = vpow.pop %v4758
      %v4760 = vmul.f32 %v4736, 1.442695
      %v4761 = vpow.pop %v4760
      %v4762 = vmul.f32 %v4737, 1.442695
      %v4763 = vpow.pop %v4762
      %v4764 = vmul.f32 %v4738, 1.442695
      %v4765 = vpow.pop %v4764
      %v4766 = vmul.f32 %v4739, 1.442695
      %v4767 = vpow.pop %v4766
      %v4768 = vmul.f32 %v4740, 1.442695
      %v4769 = vpow.pop %v4768
      %v4770 = vmul.f32 %v4741, 1.442695
      %v4771 = vpow.pop %v4770
      %v4772 = vmul.f32 %v4742, 1.442695
      %v4773 = vpow.pop %v4772
      %v4774 = vmul.f32 %v4743, 1.442695
      %v4775 = vpow.pop %v4774
      %v4776 = vmul.f32 %v4744, 1.442695
      %v4777 = vpow.pop %v4776
      %v4778 = vmul.f32 %v4745, 1.442695
      %v4779 = vpow.pop %v4778
      %v4780 = vmul.f32 %v4746, 1.442695
      %v4781 = vpow.pop %v4780
      %v4782 = vmul.f32 %v4747, 1.442695
      %v4783 = vpow.pop %v4782
      %v4784 = vmul.f32 %v4748, 1.442695
      %v4785 = vpow.pop %v4784
      %v4786 = vmul.f32 %v4749, 1.442695
      %v4787 = vpow.pop %v4786
      %v4788 = vmul.f32 %v4750, 1.442695
      %v4789 = vpow.pop %v4788
      %v4790 = vmul.f32 %v4751, 1.442695
      %v4791 = vpow.pop %v4790
      %v4792 = vadd.f32 %v4753, 1.0
      %v4793 = vadd.f32 %v4755, 1.0
      %v4794 = vadd.f32 %v4757, 1.0
      %v4795 = vadd.f32 %v4759, 1.0
      %v4796 = vadd.f32 %v4761, 1.0
      %v4797 = vadd.f32 %v4763, 1.0
      %v4798 = vadd.f32 %v4765, 1.0
      %v4799 = vadd.f32 %v4767, 1.0
      %v4800 = vadd.f32 %v4769, 1.0
      %v4801 = vadd.f32 %v4771, 1.0
      %v4802 = vadd.f32 %v4773, 1.0
      %v4803 = vadd.f32 %v4775, 1.0
      %v4804 = vadd.f32 %v4777, 1.0
      %v4805 = vadd.f32 %v4779, 1.0
      %v4806 = vadd.f32 %v4781, 1.0
      %v4807 = vadd.f32 %v4783, 1.0
      %v4808 = vadd.f32 %v4785, 1.0
      %v4809 = vadd.f32 %v4787, 1.0
      %v4810 = vadd.f32 %v4789, 1.0
      %v4811 = vadd.f32 %v4791, 1.0
      %v4812 = vrcp.pop %v4792
      %v4813 = vmul.f32 1.0, %v4812
      %v4814 = vrcp.pop %v4793
      %v4815 = vmul.f32 1.0, %v4814
      %v4816 = vrcp.pop %v4794
      %v4817 = vmul.f32 1.0, %v4816
      %v4818 = vrcp.pop %v4795
      %v4819 = vmul.f32 1.0, %v4818
      %v4820 = vrcp.pop %v4796
      %v4821 = vmul.f32 1.0, %v4820
      %v4822 = vrcp.pop %v4797
      %v4823 = vmul.f32 1.0, %v4822
      %v4824 = vrcp.pop %v4798
      %v4825 = vmul.f32 1.0, %v4824
      %v4826 = vrcp.pop %v4799
      %v4827 = vmul.f32 1.0, %v4826
      %v4828 = vrcp.pop %v4800
      %v4829 = vmul.f32 1.0, %v4828
      %v4830 = vrcp.pop %v4801
      %v4831 = vmul.f32 1.0, %v4830
      %v4832 = vrcp.pop %v4802
      %v4833 = vmul.f32 1.0, %v4832
      %v4834 = vrcp.pop %v4803
      %v4835 = vmul.f32 1.0, %v4834
      %v4836 = vrcp.pop %v4804
      %v4837 = vmul.f32 1.0, %v4836
      %v4838 = vrcp.pop %v4805
      %v4839 = vmul.f32 1.0, %v4838
      %v4840 = vrcp.pop %v4806
      %v4841 = vmul.f32 1.0, %v4840
      %v4842 = vrcp.pop %v4807
      %v4843 = vmul.f32 1.0, %v4842
      %v4844 = vrcp.pop %v4808
      %v4845 = vmul.f32 1.0, %v4844
      %v4846 = vrcp.pop %v4809
      %v4847 = vmul.f32 1.0, %v4846
      %v4848 = vrcp.pop %v4810
      %v4849 = vmul.f32 1.0, %v4848
      %v4850 = vrcp.pop %v4811
      %v4851 = vmul.f32 1.0, %v4850
      %v4852 = vsub.f32 %v4813, 0.5
      %v4853 = vsub.f32 %v4815, 0.5
      %v4854 = vsub.f32 %v4817, 0.5
      %v4855 = vsub.f32 %v4819, 0.5
      %v4856 = vsub.f32 %v4821, 0.5
      %v4857 = vsub.f32 %v4823, 0.5
      %v4858 = vsub.f32 %v4825, 0.5
      %v4859 = vsub.f32 %v4827, 0.5
      %v4860 = vsub.f32 %v4829, 0.5
      %v4861 = vsub.f32 %v4831, 0.5
      %v4862 = vsub.f32 %v4833, 0.5
      %v4863 = vsub.f32 %v4835, 0.5
      %v4864 = vsub.f32 %v4837, 0.5
      %v4865 = vsub.f32 %v4839, 0.5
      %v4866 = vsub.f32 %v4841, 0.5
      %v4867 = vsub.f32 %v4843, 0.5
      %v4868 = vsub.f32 %v4845, 0.5
      %v4869 = vsub.f32 %v4847, 0.5
      %v4870 = vsub.f32 %v4849, 0.5
      %v4871 = vsub.f32 %v4851, 0.5
      %v4872 = vmul.f32 %v4852, %v4852
      %v4873 = vmul.f32 %v4853, %v4853
      %v4874 = vmul.f32 %v4854, %v4854
      %v4875 = vmul.f32 %v4855, %v4855
      %v4876 = vmul.f32 %v4856, %v4856
      %v4877 = vmul.f32 %v4857, %v4857
      %v4878 = vmul.f32 %v4858, %v4858
      %v4879 = vmul.f32 %v4859, %v4859
      %v4880 = vmul.f32 %v4860, %v4860
      %v4881 = vmul.f32 %v4861, %v4861
      %v4882 = vmul.f32 %v4862, %v4862
      %v4883 = vmul.f32 %v4863, %v4863
      %v4884 = vmul.f32 %v4864, %v4864
      %v4885 = vmul.f32 %v4865, %v4865
      %v4886 = vmul.f32 %v4866, %v4866
      %v4887 = vmul.f32 %v4867, %v4867
      %v4888 = vmul.f32 %v4868, %v4868
      %v4889 = vmul.f32 %v4869, %v4869
      %v4890 = vmul.f32 %v4870, %v4870
      %v4891 = vmul.f32 %v4871, %v4871
      %v4892 = vpack.c.bf16 %v4873, %v4872
      %v4893 = vpack.c.bf16 %v4875, %v4874
      %v4894 = vpack.c.bf16 %v4877, %v4876
      %v4895 = vpack.c.bf16 %v4879, %v4878
      %v4896 = vpack.c.bf16 %v4881, %v4880
      %v4897 = vpack.c.bf16 %v4883, %v4882
      %v4898 = vpack.c.bf16 %v4885, %v4884
      %v4899 = vpack.c.bf16 %v4887, %v4886
      %v4900 = vpack.c.bf16 %v4889, %v4888
      %v4901 = vpack.c.bf16 %v4891, %v4890
      %v4902 = vld [vmem:[%s12] sm:$0xf]
      %v4903 = vld [vmem:[%s12 + $0x4] sm:$0xf]
      %v4904 = vld [vmem:[%s12 + $0x8] sm:$0xf]
      %v4905 = vld [vmem:[%s12 + $0xc] sm:$0xf]
      %v4906 = vld [vmem:[%s12 + $0x10] sm:$0xf]
      %v4907 = vld [vmem:[%s12 + $0x14] sm:$0xf]
      %v4914 = vunpack.c.l.b16 %v4902
      %v4915 = vunpack.c.l.b16 %v4903
      %v4916 = vunpack.c.l.b16 %v4904
      %v4917 = vunpack.c.l.b16 %v4905
      %v4918 = vunpack.c.l.b16 %v4906
      %v4919 = vunpack.c.l.b16 %v4907
      %v4920 = vpack.c.b16 %v4915, %v4914
      %v4921 = vpack.c.b16 %v4917, %v4916
      %v4922 = vpack.c.b16 %v4919, %v4918
      %v4927 = vsel %vm765, %v4892, 0
      %v4930 = vsel %vm765, %v4893, 0
      %v4933 = vsel %vm765, %v4894, 0
      %v4936 = vsel %vm765, %v4895, 0
      %v4939 = vsel %vm765, %v4896, 0
      %v4942 = vsel %vm765, %v4897, 0
      %v4945 = vsel %vm765, %v4898, 0
      %v4948 = vsel %vm765, %v4899, 0
      %v4951 = vsel %vm765, %v4900, 0
      %v4954 = vsel %vm765, %v4901, 0
      %4956 = vmatprep.subr.bf16.mxu0 0
      %4957 = vmatpush1.bf16.msra.mxu0 %v4920
      %4958 = vmatprep.subr.bf16.mxu0 0
      %4959 = vmatpush1.bf16.msra.mxu0 %v4921
      %4960 = vmatprep.subr.bf16.mxu0 0
      %4961 = vmatpush1.bf16.msra.mxu0 %v4922
      %4962 = vmatprep.subr.bf16.mxu0 0
      %4963 = vmatpush1.bf16.msra.mxu0 0
      %4964 = vmatprep.subr.bf16.mxu0 0
      %4965 = vmatpush1.bf16.msra.mxu0 0
      %4966 = vmatprep.subr.bf16.mxu0 0
      %4967 = vmatpush1.bf16.msra.mxu0 0
      %4968 = vmatprep.subr.bf16.mxu0 0
      %4969 = vmatpush1.bf16.msra.mxu0 0
      %4970 = vmatprep.subr.bf16.mxu0 0
      %4971 = vmatpush1.bf16.msra.mxu0 0
      %4972 = vmatprep.subr.bf16.mxu0 0
      %4973 = vmatpush1.bf16.msra.mxu0 0
      %4974 = vmatprep.subr.bf16.mxu0 0
      %4975 = vmatpush1.bf16.msra.mxu0 0
      %4976 = vmatprep.subr.bf16.mxu0 0
      %4977 = vmatpush1.bf16.msra.mxu0 0
      %4978 = vmatprep.subr.bf16.mxu0 0
      %4979 = vmatpush1.bf16.msra.mxu0 0
      %4980 = vmatprep.subr.bf16.mxu0 0
      %4981 = vmatpush1.bf16.msra.mxu0 0
      %4982 = vmatprep.subr.bf16.mxu0 0
      %4983 = vmatpush1.bf16.msra.mxu0 0
      %4984 = vmatprep.subr.bf16.mxu0 0
      %4985 = vmatpush1.bf16.msra.mxu0 0
      %4986 = vmatprep.subr.bf16.mxu0 0
      %4987 = vmatpush1.bf16.msra.mxu0 0
      %4988 = vmatprep.mubr.bf16.mxu0 0
      %4989 = vmatmul.mubr.bf16.gmra.mrb[0].mxu0 %v4927
      %v4990 = vpop.f32.mrb[0].mxu0
      %v4991 = vadd.f32 0.0, %v4990
      %v4992 = vpop.f32.mrb[0].mxu0
      %v4993 = vpop.f32.mrb[0].mxu0
      %v4994 = vadd.f32 0.0, %v4993
      %v4995 = vpop.f32.mrb[0].mxu0
      %4996 = vmatprep.mubr.bf16.mxu0 0
      %4997 = vmatmul.mubr.bf16.gmra.mrb[0].mxu0 %v4930
      %v4998 = vpop.f32.mrb[0].mxu0
      %v4999 = vadd.f32 0.0, %v4998
      %v5000 = vpop.f32.mrb[0].mxu0
      %v5001 = vpop.f32.mrb[0].mxu0
      %v5002 = vadd.f32 0.0, %v5001
      %v5003 = vpop.f32.mrb[0].mxu0
      %5004 = vmatprep.mubr.bf16.mxu0 0
      %5005 = vmatmul.mubr.bf16.gmra.mrb[0].mxu0 %v4933
      %v5006 = vpop.f32.mrb[0].mxu0
      %v5007 = vadd.f32 0.0, %v5006
      %v5008 = vpop.f32.mrb[0].mxu0
      %v5009 = vpop.f32.mrb[0].mxu0
      %v5010 = vadd.f32 0.0, %v5009
      %v5011 = vpop.f32.mrb[0].mxu0
      %5012 = vmatprep.mubr.bf16.mxu0 0
      %5013 = vmatmul.mubr.bf16.gmra.mrb[0].mxu0 %v4936
      %v5014 = vpop.f32.mrb[0].mxu0
      %v5015 = vadd.f32 0.0, %v5014
      %v5016 = vpop.f32.mrb[0].mxu0
      %v5017 = vpop.f32.mrb[0].mxu0
      %v5018 = vadd.f32 0.0, %v5017
      %v5019 = vpop.f32.mrb[0].mxu0
      %5020 = vmatprep.mubr.bf16.mxu0 0
      %5021 = vmatmul.mubr.bf16.gmra.mrb[0].mxu0 %v4939
      %v5022 = vpop.f32.mrb[0].mxu0
      %v5023 = vadd.f32 0.0, %v5022
      %v5024 = vpop.f32.mrb[0].mxu0
      %v5025 = vpop.f32.mrb[0].mxu0
      %v5026 = vadd.f32 0.0, %v5025
      %v5027 = vpop.f32.mrb[0].mxu0
      %5028 = vmatprep.mubr.bf16.mxu0 0
      %5029 = vmatmul.mubr.bf16.gmra.mrb[0].mxu0 %v4942
      %v5030 = vpop.f32.mrb[0].mxu0
      %v5031 = vadd.f32 0.0, %v5030
      %v5032 = vpop.f32.mrb[0].mxu0
      %v5033 = vpop.f32.mrb[0].mxu0
      %v5034 = vadd.f32 0.0, %v5033
      %v5035 = vpop.f32.mrb[0].mxu0
      %5036 = vmatprep.mubr.bf16.mxu0 0
      %5037 = vmatmul.mubr.bf16.gmra.mrb[0].mxu0 %v4945
      %v5038 = vpop.f32.mrb[0].mxu0
      %v5039 = vadd.f32 0.0, %v5038
      %v5040 = vpop.f32.mrb[0].mxu0
      %v5041 = vpop.f32.mrb[0].mxu0
      %v5042 = vadd.f32 0.0, %v5041
      %v5043 = vpop.f32.mrb[0].mxu0
      %5044 = vmatprep.mubr.bf16.mxu0 0
      %5045 = vmatmul.mubr.bf16.gmra.mrb[0].mxu0 %v4948
      %v5046 = vpop.f32.mrb[0].mxu0
      %v5047 = vadd.f32 0.0, %v5046
      %v5048 = vpop.f32.mrb[0].mxu0
      %v5049 = vpop.f32.mrb[0].mxu0
      %v5050 = vadd.f32 0.0, %v5049
      %v5051 = vpop.f32.mrb[0].mxu0
      %5052 = vmatprep.mubr.bf16.mxu0 0
      %5053 = vmatmul.mubr.bf16.gmra.mrb[0].mxu0 %v4951
      %v5054 = vpop.f32.mrb[0].mxu0
      %v5055 = vadd.f32 0.0, %v5054
      %v5056 = vpop.f32.mrb[0].mxu0
      %v5057 = vpop.f32.mrb[0].mxu0
      %v5058 = vadd.f32 0.0, %v5057
      %v5059 = vpop.f32.mrb[0].mxu0
      %5060 = vmatprep.mubr.bf16.mxu0 0
      %5061 = vmatmul.mubr.bf16.gmra.mrb[0].mxu0 %v4954
      %v5062 = vpop.f32.mrb[0].mxu0
      %v5063 = vadd.f32 0.0, %v5062
      %v5064 = vpop.f32.mrb[0].mxu0
      %v5065 = vpop.f32.mrb[0].mxu0
      %v5066 = vadd.f32 0.0, %v5065
      %v5067 = vpop.f32.mrb[0].mxu0
      %5068 = vdwg.mxu0
      %v5069 = vmul.f32 %v4991, 0.25
      %v5070 = vmul.f32 %v4994, 0.25
      %v5071 = vmul.f32 %v4999, 0.25
      %v5072 = vmul.f32 %v5002, 0.25
      %v5073 = vmul.f32 %v5007, 0.25
      %v5074 = vmul.f32 %v5010, 0.25
      %v5075 = vmul.f32 %v5015, 0.25
      %v5076 = vmul.f32 %v5018, 0.25
      %v5077 = vmul.f32 %v5023, 0.25
      %v5078 = vmul.f32 %v5026, 0.25
      %v5079 = vmul.f32 %v5031, 0.25
      %v5080 = vmul.f32 %v5034, 0.25
      %v5081 = vmul.f32 %v5039, 0.25
      %v5082 = vmul.f32 %v5042, 0.25
      %v5083 = vmul.f32 %v5047, 0.25
      %v5084 = vmul.f32 %v5050, 0.25
      %v5085 = vmul.f32 %v5055, 0.25
      %v5086 = vmul.f32 %v5058, 0.25
      %v5087 = vmul.f32 %v5063, 0.25
      %v5088 = vmul.f32 %v5066, 0.25
      %v5089 = vrsqrt.pop %v5069
      %v5090 = vmul.f32 %v5069, %v5089
      %vm5091 = vcmp.eq.f32.partialorder %v5069, inf
      %v5092 = vsel %vm5091, %v5069, %v5090
      %vm5093 = vcmp.eq.f32.partialorder %v5069, 0.0
      %v5094 = vand.u32 %v5069, 2147483648
      %v5095 = vsel %vm5093, %v5094, %v5092
      %v5096 = vrsqrt.pop %v5070
      %v5097 = vmul.f32 %v5070, %v5096
      %vm5098 = vcmp.eq.f32.partialorder %v5070, inf
      %v5099 = vsel %vm5098, %v5070, %v5097
      %vm5100 = vcmp.eq.f32.partialorder %v5070, 0.0
      %v5101 = vand.u32 %v5070, 2147483648
      %v5102 = vsel %vm5100, %v5101, %v5099
      %v5103 = vrsqrt.pop %v5071
      %v5104 = vmul.f32 %v5071, %v5103
      %vm5105 = vcmp.eq.f32.partialorder %v5071, inf
      %v5106 = vsel %vm5105, %v5071, %v5104
      %vm5107 = vcmp.eq.f32.partialorder %v5071, 0.0
      %v5108 = vand.u32 %v5071, 2147483648
      %v5109 = vsel %vm5107, %v5108, %v5106
      %v5110 = vrsqrt.pop %v5072
      %v5111 = vmul.f32 %v5072, %v5110
      %vm5112 = vcmp.eq.f32.partialorder %v5072, inf
      %v5113 = vsel %vm5112, %v5072, %v5111
      %vm5114 = vcmp.eq.f32.partialorder %v5072, 0.0
      %v5115 = vand.u32 %v5072, 2147483648
      %v5116 = vsel %vm5114, %v5115, %v5113
      %v5117 = vrsqrt.pop %v5073
      %v5118 = vmul.f32 %v5073, %v5117
      %vm5119 = vcmp.eq.f32.partialorder %v5073, inf
      %v5120 = vsel %vm5119, %v5073, %v5118
      %vm5121 = vcmp.eq.f32.partialorder %v5073, 0.0
      %v5122 = vand.u32 %v5073, 2147483648
      %v5123 = vsel %vm5121, %v5122, %v5120
      %v5124 = vrsqrt.pop %v5074
      %v5125 = vmul.f32 %v5074, %v5124
      %vm5126 = vcmp.eq.f32.partialorder %v5074, inf
      %v5127 = vsel %vm5126, %v5074, %v5125
      %vm5128 = vcmp.eq.f32.partialorder %v5074, 0.0
      %v5129 = vand.u32 %v5074, 2147483648
      %v5130 = vsel %vm5128, %v5129, %v5127
      %v5131 = vrsqrt.pop %v5075
      %v5132 = vmul.f32 %v5075, %v5131
      %vm5133 = vcmp.eq.f32.partialorder %v5075, inf
      %v5134 = vsel %vm5133, %v5075, %v5132
      %vm5135 = vcmp.eq.f32.partialorder %v5075, 0.0
      %v5136 = vand.u32 %v5075, 2147483648
      %v5137 = vsel %vm5135, %v5136, %v5134
      %v5138 = vrsqrt.pop %v5076
      %v5139 = vmul.f32 %v5076, %v5138
      %vm5140 = vcmp.eq.f32.partialorder %v5076, inf
      %v5141 = vsel %vm5140, %v5076, %v5139
      %vm5142 = vcmp.eq.f32.partialorder %v5076, 0.0
      %v5143 = vand.u32 %v5076, 2147483648
      %v5144 = vsel %vm5142, %v5143, %v5141
      %v5145 = vrsqrt.pop %v5077
      %v5146 = vmul.f32 %v5077, %v5145
      %vm5147 = vcmp.eq.f32.partialorder %v5077, inf
      %v5148 = vsel %vm5147, %v5077, %v5146
      %vm5149 = vcmp.eq.f32.partialorder %v5077, 0.0
      %v5150 = vand.u32 %v5077, 2147483648
      %v5151 = vsel %vm5149, %v5150, %v5148
      %v5152 = vrsqrt.pop %v5078
      %v5153 = vmul.f32 %v5078, %v5152
      %vm5154 = vcmp.eq.f32.partialorder %v5078, inf
      %v5155 = vsel %vm5154, %v5078, %v5153
      %vm5156 = vcmp.eq.f32.partialorder %v5078, 0.0
      %v5157 = vand.u32 %v5078, 2147483648
      %v5158 = vsel %vm5156, %v5157, %v5155
      %v5159 = vrsqrt.pop %v5079
      %v5160 = vmul.f32 %v5079, %v5159
      %vm5161 = vcmp.eq.f32.partialorder %v5079, inf
      %v5162 = vsel %vm5161, %v5079, %v5160
      %vm5163 = vcmp.eq.f32.partialorder %v5079, 0.0
      %v5164 = vand.u32 %v5079, 2147483648
      %v5165 = vsel %vm5163, %v5164, %v5162
      %v5166 = vrsqrt.pop %v5080
      %v5167 = vmul.f32 %v5080, %v5166
      %vm5168 = vcmp.eq.f32.partialorder %v5080, inf
      %v5169 = vsel %vm5168, %v5080, %v5167
      %vm5170 = vcmp.eq.f32.partialorder %v5080, 0.0
      %v5171 = vand.u32 %v5080, 2147483648
      %v5172 = vsel %vm5170, %v5171, %v5169
      %v5173 = vrsqrt.pop %v5081
      %v5174 = vmul.f32 %v5081, %v5173
      %vm5175 = vcmp.eq.f32.partialorder %v5081, inf
      %v5176 = vsel %vm5175, %v5081, %v5174
      %vm5177 = vcmp.eq.f32.partialorder %v5081, 0.0
      %v5178 = vand.u32 %v5081, 2147483648
      %v5179 = vsel %vm5177, %v5178, %v5176
      %v5180 = vrsqrt.pop %v5082
      %v5181 = vmul.f32 %v5082, %v5180
      %vm5182 = vcmp.eq.f32.partialorder %v5082, inf
      %v5183 = vsel %vm5182, %v5082, %v5181
      %vm5184 = vcmp.eq.f32.partialorder %v5082, 0.0
      %v5185 = vand.u32 %v5082, 2147483648
      %v5186 = vsel %vm5184, %v5185, %v5183
      %v5187 = vrsqrt.pop %v5083
      %v5188 = vmul.f32 %v5083, %v5187
      %vm5189 = vcmp.eq.f32.partialorder %v5083, inf
      %v5190 = vsel %vm5189, %v5083, %v5188
      %vm5191 = vcmp.eq.f32.partialorder %v5083, 0.0
      %v5192 = vand.u32 %v5083, 2147483648
      %v5193 = vsel %vm5191, %v5192, %v5190
      %v5194 = vrsqrt.pop %v5084
      %v5195 = vmul.f32 %v5084, %v5194
      %vm5196 = vcmp.eq.f32.partialorder %v5084, inf
      %v5197 = vsel %vm5196, %v5084, %v5195
      %vm5198 = vcmp.eq.f32.partialorder %v5084, 0.0
      %v5199 = vand.u32 %v5084, 2147483648
      %v5200 = vsel %vm5198, %v5199, %v5197
      %v5201 = vrsqrt.pop %v5085
      %v5202 = vmul.f32 %v5085, %v5201
      %vm5203 = vcmp.eq.f32.partialorder %v5085, inf
      %v5204 = vsel %vm5203, %v5085, %v5202
      %vm5205 = vcmp.eq.f32.partialorder %v5085, 0.0
      %v5206 = vand.u32 %v5085, 2147483648
      %v5207 = vsel %vm5205, %v5206, %v5204
      %v5208 = vrsqrt.pop %v5086
      %v5209 = vmul.f32 %v5086, %v5208
      %vm5210 = vcmp.eq.f32.partialorder %v5086, inf
      %v5211 = vsel %vm5210, %v5086, %v5209
      %vm5212 = vcmp.eq.f32.partialorder %v5086, 0.0
      %v5213 = vand.u32 %v5086, 2147483648
      %v5214 = vsel %vm5212, %v5213, %v5211
      %v5215 = vrsqrt.pop %v5087
      %v5216 = vmul.f32 %v5087, %v5215
      %vm5217 = vcmp.eq.f32.partialorder %v5087, inf
      %v5218 = vsel %vm5217, %v5087, %v5216
      %vm5219 = vcmp.eq.f32.partialorder %v5087, 0.0
      %v5220 = vand.u32 %v5087, 2147483648
      %v5221 = vsel %vm5219, %v5220, %v5218
      %v5222 = vrsqrt.pop %v5088
      %v5223 = vmul.f32 %v5088, %v5222
      %vm5224 = vcmp.eq.f32.partialorder %v5088, inf
      %v5225 = vsel %vm5224, %v5088, %v5223
      %vm5226 = vcmp.eq.f32.partialorder %v5088, 0.0
      %v5227 = vand.u32 %v5088, 2147483648
      %v5228 = vsel %vm5226, %v5227, %v5225
      %5229 = vst [vmem:[%s748] sm:$0xff] %v5095
      %5230 = vst [vmem:[%s748 + $0x8] sm:$0xff] %v5102
      %5231 = vst [vmem:[%s748 + $0x10] sm:$0xff] %v5109
      %5232 = vst [vmem:[%s748 + $0x18] sm:$0xff] %v5116
      %s5233 = scalar_lea.vmem %s748, 32
      %5234 = vst [vmem:[%s5233] sm:$0xff] %v5130
      %5235 = vst [vmem:[%s5233 + $0x8] sm:$0xff] %v5137
      %5236 = vst [vmem:[%s5233 + $0x10] sm:$0xff] %v5144
      %5237 = vst [vmem:[%s5233 + $0x18] sm:$0xff] %v5151
      %s5238 = scalar_lea.vmem %s748, 64
      %5239 = vst [vmem:[%s5238] sm:$0xff] %v5165
      %5240 = vst [vmem:[%s5238 + $0x8] sm:$0xff] %v5172
      %5241 = vst [vmem:[%s5238 + $0x10] sm:$0xff] %v5179
      %5242 = vst [vmem:[%s5238 + $0x18] sm:$0xff] %v5186
      %s5243 = scalar_lea.vmem %s748, 96
      %5244 = vst [vmem:[%s5243] sm:$0xff] %v5200
      %5245 = vst [vmem:[%s5243 + $0x8] sm:$0xff] %v5207
      %5246 = vst [vmem:[%s5243 + $0x10] sm:$0xff] %v5214
      %5247 = vst [vmem:[%s5243 + $0x18] sm:$0xff] %v5221
      %v5248 = vmax.f32 %v4432, 0.0
      %v5249 = vmax.f32 %v4433, 0.0
      %v5250 = vmax.f32 %v4434, 0.0
      %v5251 = vmax.f32 %v4435, 0.0
      %v5252 = vmax.f32 %v4436, 0.0
      %v5253 = vmax.f32 %v4437, 0.0
      %v5254 = vmax.f32 %v4438, 0.0
      %v5255 = vmax.f32 %v4439, 0.0
      %v5256 = vmax.f32 %v4440, 0.0
      %v5257 = vmax.f32 %v4441, 0.0
      %v5258 = vmax.f32 %v4442, 0.0
      %v5259 = vmax.f32 %v4443, 0.0
      %v5260 = vmax.f32 %v4444, 0.0
      %v5261 = vmax.f32 %v4445, 0.0
      %v5262 = vmax.f32 %v4446, 0.0
      %v5263 = vmax.f32 %v4447, 0.0
      %v5264 = vmax.f32 %v4448, 0.0
      %v5265 = vmax.f32 %v4449, 0.0
      %v5266 = vmax.f32 %v4450, 0.0
      %v5267 = vmax.f32 %v4451, 0.0
      %5268 = vst.msk [vmem:[#allocation4] sm:$0xff] %vm765, %v5248
      %5269 = vst.msk [vmem:[#allocation4 + $0x8] sm:$0xff] %vm765, %v5249
      %5270 = vst.msk [vmem:[#allocation4 + $0x10] sm:$0xff] %vm765, %v5250
      %5271 = vst.msk [vmem:[#allocation4 + $0x18] sm:$0xff] %vm765, %v5251
      %5272 = vst.msk [vmem:[#allocation4 + $0x20] sm:$0xff] %vm765, %v5252
      %5273 = vst.msk [vmem:[#allocation4 + $0x28] sm:$0xff] %vm765, %v5253
      %5274 = vst.msk [vmem:[#allocation4 + $0x30] sm:$0xff] %vm765, %v5254
      %5275 = vst.msk [vmem:[#allocation4 + $0x38] sm:$0xff] %vm765, %v5255
      %5276 = vst.msk [vmem:[#allocation4 + $0x40] sm:$0xff] %vm765, %v5256
      %5277 = vst.msk [vmem:[#allocation4 + $0x48] sm:$0xff] %vm765, %v5257
      %5278 = vst.msk [vmem:[#allocation4 + $0x50] sm:$0xff] %vm765, %v5258
      %5279 = vst.msk [vmem:[#allocation4 + $0x58] sm:$0xff] %vm765, %v5259
      %5280 = vst.msk [vmem:[#allocation4 + $0x60] sm:$0xff] %vm765, %v5260
      %5281 = vst.msk [vmem:[#allocation4 + $0x68] sm:$0xff] %vm765, %v5261
      %5282 = vst.msk [vmem:[#allocation4 + $0x70] sm:$0xff] %vm765, %v5262
      %5283 = vst.msk [vmem:[#allocation4 + $0x78] sm:$0xff] %vm765, %v5263
      %5284 = vst.msk [vmem:[#allocation4 + $0x80] sm:$0xff] %vm765, %v5264
      %5285 = vst.msk [vmem:[#allocation4 + $0x88] sm:$0xff] %vm765, %v5265
      %5286 = vst.msk [vmem:[#allocation4 + $0x90] sm:$0xff] %vm765, %v5266
      %5287 = vst.msk [vmem:[#allocation4 + $0x98] sm:$0xff] %vm765, %v5267
      %v5288 = vsub.f32 1.0, %v5095
      %v5289 = vsub.f32 1.0, %v5102
      %v5290 = vsub.f32 1.0, %v5109
      %v5291 = vsub.f32 1.0, %v5116
      %v5292 = vsub.f32 1.0, %v5123
      %v5293 = vsub.f32 1.0, %v5130
      %v5294 = vsub.f32 1.0, %v5137
      %v5295 = vsub.f32 1.0, %v5144
      %v5296 = vsub.f32 1.0, %v5151
      %v5297 = vsub.f32 1.0, %v5158
      %v5298 = vsub.f32 1.0, %v5165
      %v5299 = vsub.f32 1.0, %v5172
      %v5300 = vsub.f32 1.0, %v5179
      %v5301 = vsub.f32 1.0, %v5186
      %v5302 = vsub.f32 1.0, %v5193
      %v5303 = vsub.f32 1.0, %v5200
      %v5304 = vsub.f32 1.0, %v5207
      %v5305 = vsub.f32 1.0, %v5214
      %v5306 = vsub.f32 1.0, %v5221
      %v5307 = vsub.f32 1.0, %v5228
      %v5308 = vmax.f32 %v5288, 0.0
      %v5309 = vmax.f32 %v5289, 0.0
      %v5310 = vmax.f32 %v5290, 0.0
      %v5311 = vmax.f32 %v5291, 0.0
      %v5312 = vmax.f32 %v5292, 0.0
      %v5313 = vmax.f32 %v5293, 0.0
      %v5314 = vmax.f32 %v5294, 0.0
      %v5315 = vmax.f32 %v5295, 0.0
      %v5316 = vmax.f32 %v5296, 0.0
      %v5317 = vmax.f32 %v5297, 0.0
      %v5318 = vmax.f32 %v5298, 0.0
      %v5319 = vmax.f32 %v5299, 0.0
      %v5320 = vmax.f32 %v5300, 0.0
      %v5321 = vmax.f32 %v5301, 0.0
      %v5322 = vmax.f32 %v5302, 0.0
      %v5323 = vmax.f32 %v5303, 0.0
      %v5324 = vmax.f32 %v5304, 0.0
      %v5325 = vmax.f32 %v5305, 0.0
      %v5326 = vmax.f32 %v5306, 0.0
      %v5327 = vmax.f32 %v5307, 0.0
      %5328 = vst [vmem:[#allocation5] sm:$0xff] %v5308
      %5329 = vst [vmem:[#allocation5 + $0x8] sm:$0xff] %v5309
      %5330 = vst [vmem:[#allocation5 + $0x10] sm:$0xff] %v5310
      %5331 = vst [vmem:[#allocation5 + $0x18] sm:$0xff] %v5311
      %5332 = vst [vmem:[#allocation5 + $0x20] sm:$0xff] %v5312
      %5333 = vst [vmem:[#allocation5 + $0x28] sm:$0xff] %v5313
      %5334 = vst [vmem:[#allocation5 + $0x30] sm:$0xff] %v5314
      %5335 = vst [vmem:[#allocation5 + $0x38] sm:$0xff] %v5315
      %5336 = vst [vmem:[#allocation5 + $0x40] sm:$0xff] %v5316
      %5337 = vst [vmem:[#allocation5 + $0x48] sm:$0xff] %v5317
      %5338 = vst [vmem:[#allocation5 + $0x50] sm:$0xff] %v5318
      %5339 = vst [vmem:[#allocation5 + $0x58] sm:$0xff] %v5319
      %5340 = vst [vmem:[#allocation5 + $0x60] sm:$0xff] %v5320
      %5341 = vst [vmem:[#allocation5 + $0x68] sm:$0xff] %v5321
      %5342 = vst [vmem:[#allocation5 + $0x70] sm:$0xff] %v5322
      %5343 = vst [vmem:[#allocation5 + $0x78] sm:$0xff] %v5323
      %5344 = vst [vmem:[#allocation5 + $0x80] sm:$0xff] %v5324
      %5345 = vst [vmem:[#allocation5 + $0x88] sm:$0xff] %v5325
      %5346 = vst [vmem:[#allocation5 + $0x90] sm:$0xff] %v5326
      %5347 = vst [vmem:[#allocation5 + $0x98] sm:$0xff] %v5327
      %v5348 = vld [vmem:[%s14] sm:$0xff]
      %v5349 = vld [vmem:[%s14 + $0x8] sm:$0xff]
      %v5350 = vld [vmem:[%s14 + $0x10] sm:$0xff]
      %v5351 = vld [vmem:[%s14 + $0x18] sm:$0xff]
      %v5352 = vld [vmem:[%s14 + $0x20] sm:$0xff]
      %v5353 = vld [vmem:[%s14 + $0x28] sm:$0xff]
      %v5354 = vld [vmem:[%s14 + $0x30] sm:$0xff]
      %v5355 = vld [vmem:[%s14 + $0x38] sm:$0xff]
      %v5356 = vld [vmem:[%s14 + $0x40] sm:$0xff]
      %v5357 = vld [vmem:[%s14 + $0x48] sm:$0xff]
      %vm5358 = vcmp.gt.f32.partialorder %v5348, 0.5
      %vm5359 = vcmp.gt.f32.partialorder %v5349, 0.5
      %vm5360 = vcmp.gt.f32.partialorder %v5350, 0.5
      %vm5361 = vcmp.gt.f32.partialorder %v5351, 0.5
      %vm5362 = vcmp.gt.f32.partialorder %v5352, 0.5
      %vm5363 = vcmp.gt.f32.partialorder %v5353, 0.5
      %vm5364 = vcmp.gt.f32.partialorder %v5354, 0.5
      %vm5365 = vcmp.gt.f32.partialorder %v5355, 0.5
      %vm5366 = vcmp.gt.f32.partialorder %v5356, 0.5
      %vm5367 = vcmp.gt.f32.partialorder %v5357, 0.5
      %v5368 = vld [vmem:[#allocation4] ss:$2 sm:$0xff]
      %s5369 = scalar_lea.vmem [#allocation4], 16
      %v5370 = vld [vmem:[%s5369] ss:$2 sm:$0xff]
      %s5371 = scalar_lea.vmem [#allocation4], 32
      %v5372 = vld [vmem:[%s5371] ss:$2 sm:$0xff]
      %s5373 = scalar_lea.vmem [#allocation4], 48
      %v5374 = vld [vmem:[%s5373] ss:$2 sm:$0xff]
      %s5375 = scalar_lea.vmem [#allocation4], 64
      %v5376 = vld [vmem:[%s5375] ss:$2 sm:$0xff]
      %s5377 = scalar_lea.vmem [#allocation4], 80
      %v5378 = vld [vmem:[%s5377] ss:$2 sm:$0xff]
      %s5379 = scalar_lea.vmem [#allocation4], 96
      %v5380 = vld [vmem:[%s5379] ss:$2 sm:$0xff]
      %s5381 = scalar_lea.vmem [#allocation4], 112
      %v5382 = vld [vmem:[%s5381] ss:$2 sm:$0xff]
      %s5383 = scalar_lea.vmem [#allocation4], 128
      %v5384 = vld [vmem:[%s5383] ss:$2 sm:$0xff]
      %s5385 = scalar_lea.vmem [#allocation4], 144
      %v5386 = vld [vmem:[%s5385] ss:$2 sm:$0xff]
      %s5387 = scalar_lea.vmem [#allocation4], 1
      %v5388 = vld [vmem:[%s5387] ss:$2 sm:$0xff]
      %s5389 = scalar_lea.vmem [#allocation4], 17
      %v5390 = vld [vmem:[%s5389] ss:$2 sm:$0xff]
      %s5391 = scalar_lea.vmem [#allocation4], 33
      %v5392 = vld [vmem:[%s5391] ss:$2 sm:$0xff]
      %s5393 = scalar_lea.vmem [#allocation4], 49
      %v5394 = vld [vmem:[%s5393] ss:$2 sm:$0xff]
      %s5395 = scalar_lea.vmem [#allocation4], 65
      %v5396 = vld [vmem:[%s5395] ss:$2 sm:$0xff]
      %s5397 = scalar_lea.vmem [#allocation4], 81
      %v5398 = vld [vmem:[%s5397] ss:$2 sm:$0xff]
      %s5399 = scalar_lea.vmem [#allocation4], 97
      %v5400 = vld [vmem:[%s5399] ss:$2 sm:$0xff]
      %s5401 = scalar_lea.vmem [#allocation4], 113
      %v5402 = vld [vmem:[%s5401] ss:$2 sm:$0xff]
      %s5403 = scalar_lea.vmem [#allocation4], 129
      %v5404 = vld [vmem:[%s5403] ss:$2 sm:$0xff]
      %s5405 = scalar_lea.vmem [#allocation4], 145
      %v5406 = vld [vmem:[%s5405] ss:$2 sm:$0xff]
      %s5407 = scalar_lea.vmem [#allocation4], 2
      %v5408 = vld [vmem:[%s5407] ss:$2 sm:$0xff]
      %s5409 = scalar_lea.vmem [#allocation4], 18
      %v5410 = vld [vmem:[%s5409] ss:$2 sm:$0xff]
      %s5411 = scalar_lea.vmem [#allocation4], 34
      %v5412 = vld [vmem:[%s5411] ss:$2 sm:$0xff]
      %s5413 = scalar_lea.vmem [#allocation4], 50
      %v5414 = vld [vmem:[%s5413] ss:$2 sm:$0xff]
      %s5415 = scalar_lea.vmem [#allocation4], 66
      %v5416 = vld [vmem:[%s5415] ss:$2 sm:$0xff]
      %s5417 = scalar_lea.vmem [#allocation4], 82
      %v5418 = vld [vmem:[%s5417] ss:$2 sm:$0xff]
      %s5419 = scalar_lea.vmem [#allocation4], 98
      %v5420 = vld [vmem:[%s5419] ss:$2 sm:$0xff]
      %s5421 = scalar_lea.vmem [#allocation4], 114
      %v5422 = vld [vmem:[%s5421] ss:$2 sm:$0xff]
      %s5423 = scalar_lea.vmem [#allocation4], 130
      %v5424 = vld [vmem:[%s5423] ss:$2 sm:$0xff]
      %s5425 = scalar_lea.vmem [#allocation4], 146
      %v5426 = vld [vmem:[%s5425] ss:$2 sm:$0xff]
      %v5427 = vmax.f32 %v5368, %v5388
      %v5428 = vmax.f32 %v5370, %v5390
      %v5429 = vmax.f32 %v5372, %v5392
      %v5430 = vmax.f32 %v5374, %v5394
      %v5431 = vmax.f32 %v5376, %v5396
      %v5432 = vmax.f32 %v5378, %v5398
      %v5433 = vmax.f32 %v5380, %v5400
      %v5434 = vmax.f32 %v5382, %v5402
      %v5435 = vmax.f32 %v5384, %v5404
      %v5436 = vmax.f32 %v5386, %v5406
      %v5437 = vmax.f32 %v5427, %v5408
      %v5438 = vmax.f32 %v5428, %v5410
      %v5439 = vmax.f32 %v5429, %v5412
      %v5440 = vmax.f32 %v5430, %v5414
      %v5441 = vmax.f32 %v5431, %v5416
      %v5442 = vmax.f32 %v5432, %v5418
      %v5443 = vmax.f32 %v5433, %v5420
      %v5444 = vmax.f32 %v5434, %v5422
      %v5445 = vmax.f32 %v5435, %v5424
      %v5446 = vmax.f32 %v5436, %v5426
      %v5447 = vsel %vm5358, 1, 0
      %v5448 = vsel %vm5359, 1, 0
      %v5449 = vsel %vm5360, 1, 0
      %v5450 = vsel %vm5361, 1, 0
      %v5451 = vsel %vm5362, 1, 0
      %v5452 = vsel %vm5363, 1, 0
      %v5453 = vsel %vm5364, 1, 0
      %v5454 = vsel %vm5365, 1, 0
      %v5455 = vsel %vm5366, 1, 0
      %v5456 = vsel %vm5367, 1, 0
      %5457 = vset.pattern.permute.xlu0 0
      %5458 = vperm.xlu0 %5457, %v5447
      %v5459 = vpop.permute.xlu0 %5458
      %5460 = vset.pattern.permute.xlu0 0
      %5461 = vperm.xlu0 %5460, %v5448
      %v5462 = vpop.permute.xlu0 %5461
      %5463 = vset.pattern.permute.xlu0 0
      %5464 = vperm.xlu0 %5463, %v5449
      %v5465 = vpop.permute.xlu0 %5464
      %5466 = vset.pattern.permute.xlu0 0
      %5467 = vperm.xlu0 %5466, %v5450
      %v5468 = vpop.permute.xlu0 %5467
      %5469 = vset.pattern.permute.xlu0 0
      %5470 = vperm.xlu0 %5469, %v5451
      %v5471 = vpop.permute.xlu0 %5470
      %5472 = vset.pattern.permute.xlu0 0
      %5473 = vperm.xlu0 %5472, %v5452
      %v5474 = vpop.permute.xlu0 %5473
      %5475 = vset.pattern.permute.xlu0 0
      %5476 = vperm.xlu0 %5475, %v5453
      %v5477 = vpop.permute.xlu0 %5476
      %5478 = vset.pattern.permute.xlu0 0
      %5479 = vperm.xlu0 %5478, %v5454
      %v5480 = vpop.permute.xlu0 %5479
      %5481 = vset.pattern.permute.xlu0 0
      %5482 = vperm.xlu0 %5481, %v5455
      %v5483 = vpop.permute.xlu0 %5482
      %5484 = vset.pattern.permute.xlu0 0
      %5485 = vperm.xlu0 %5484, %v5456
      %v5486 = vpop.permute.xlu0 %5485
      %vm5487 = vcmp.eq.s32.totalorder %v5459, 1
      %vm5488 = vcmp.eq.s32.totalorder %v5462, 1
      %vm5489 = vcmp.eq.s32.totalorder %v5465, 1
      %vm5490 = vcmp.eq.s32.totalorder %v5468, 1
      %vm5491 = vcmp.eq.s32.totalorder %v5471, 1
      %vm5492 = vcmp.eq.s32.totalorder %v5474, 1
      %vm5493 = vcmp.eq.s32.totalorder %v5477, 1
      %vm5494 = vcmp.eq.s32.totalorder %v5480, 1
      %vm5495 = vcmp.eq.s32.totalorder %v5483, 1
      %vm5496 = vcmp.eq.s32.totalorder %v5486, 1
      %v5497 = vsel %vm5487, %v5437, 0.0
      %v5498 = vsel %vm5488, %v5438, 0.0
      %v5499 = vsel %vm5489, %v5439, 0.0
      %v5500 = vsel %vm5490, %v5440, 0.0
      %v5501 = vsel %vm5491, %v5441, 0.0
      %v5502 = vsel %vm5492, %v5442, 0.0
      %v5503 = vsel %vm5493, %v5443, 0.0
      %v5504 = vsel %vm5494, %v5444, 0.0
      %v5505 = vsel %vm5495, %v5445, 0.0
      %v5506 = vsel %vm5496, %v5446, 0.0
      %5507 = vst.msk [vmem:[#allocation6 + $0x8] sm:$0xff] %vm765, %v5497
      %5508 = vst.msk [vmem:[#allocation6 + $0x10] sm:$0xff] %vm765, %v5498
      %5509 = vst.msk [vmem:[#allocation6 + $0x18] sm:$0xff] %vm765, %v5499
      %5510 = vst.msk [vmem:[#allocation6 + $0x20] sm:$0xff] %vm765, %v5500
      %5511 = vst.msk [vmem:[#allocation6 + $0x28] sm:$0xff] %vm765, %v5501
      %5512 = vst.msk [vmem:[#allocation6 + $0x30] sm:$0xff] %vm765, %v5502
      %5513 = vst.msk [vmem:[#allocation6 + $0x38] sm:$0xff] %vm765, %v5503
      %5514 = vst.msk [vmem:[#allocation6 + $0x40] sm:$0xff] %vm765, %v5504
      %5515 = vst.msk [vmem:[#allocation6 + $0x48] sm:$0xff] %vm765, %v5505
      %5516 = vst.msk [vmem:[#allocation6 + $0x50] sm:$0xff] %vm765, %v5506
      %v5517 = vld [vmem:[#allocation5] ss:$2 sm:$0xff]
      %s5518 = scalar_lea.vmem [#allocation5], 16
      %v5519 = vld [vmem:[%s5518] ss:$2 sm:$0xff]
      %s5520 = scalar_lea.vmem [#allocation5], 32
      %v5521 = vld [vmem:[%s5520] ss:$2 sm:$0xff]
      %s5522 = scalar_lea.vmem [#allocation5], 48
      %v5523 = vld [vmem:[%s5522] ss:$2 sm:$0xff]
      %s5524 = scalar_lea.vmem [#allocation5], 64
      %v5525 = vld [vmem:[%s5524] ss:$2 sm:$0xff]
      %s5526 = scalar_lea.vmem [#allocation5], 80
      %v5527 = vld [vmem:[%s5526] ss:$2 sm:$0xff]
      %s5528 = scalar_lea.vmem [#allocation5], 96
      %v5529 = vld [vmem:[%s5528] ss:$2 sm:$0xff]
      %s5530 = scalar_lea.vmem [#allocation5], 112
      %v5531 = vld [vmem:[%s5530] ss:$2 sm:$0xff]
      %s5532 = scalar_lea.vmem [#allocation5], 128
      %v5533 = vld [vmem:[%s5532] ss:$2 sm:$0xff]
      %s5534 = scalar_lea.vmem [#allocation5], 144
      %v5535 = vld [vmem:[%s5534] ss:$2 sm:$0xff]
      %s5536 = scalar_lea.vmem [#allocation5], 1
      %v5537 = vld [vmem:[%s5536] ss:$2 sm:$0xff]
      %s5538 = scalar_lea.vmem [#allocation5], 17
      %v5539 = vld [vmem:[%s5538] ss:$2 sm:$0xff]
      %s5540 = scalar_lea.vmem [#allocation5], 33
      %v5541 = vld [vmem:[%s5540] ss:$2 sm:$0xff]
      %s5542 = scalar_lea.vmem [#allocation5], 49
      %v5543 = vld [vmem:[%s5542] ss:$2 sm:$0xff]
      %s5544 = scalar_lea.vmem [#allocation5], 65
      %v5545 = vld [vmem:[%s5544] ss:$2 sm:$0xff]
      %s5546 = scalar_lea.vmem [#allocation5], 81
      %v5547 = vld [vmem:[%s5546] ss:$2 sm:$0xff]
      %s5548 = scalar_lea.vmem [#allocation5], 97
      %v5549 = vld [vmem:[%s5548] ss:$2 sm:$0xff]
      %s5550 = scalar_lea.vmem [#allocation5], 113
      %v5551 = vld [vmem:[%s5550] ss:$2 sm:$0xff]
      %s5552 = scalar_lea.vmem [#allocation5], 129
      %v5553 = vld [vmem:[%s5552] ss:$2 sm:$0xff]
      %s5554 = scalar_lea.vmem [#allocation5], 145
      %v5555 = vld [vmem:[%s5554] ss:$2 sm:$0xff]
      %s5556 = scalar_lea.vmem [#allocation5], 2
      %v5557 = vld [vmem:[%s5556] ss:$2 sm:$0xff]
      %s5558 = scalar_lea.vmem [#allocation5], 18
      %v5559 = vld [vmem:[%s5558] ss:$2 sm:$0xff]
      %s5560 = scalar_lea.vmem [#allocation5], 34
      %v5561 = vld [vmem:[%s5560] ss:$2 sm:$0xff]
      %s5562 = scalar_lea.vmem [#allocation5], 50
      %v5563 = vld [vmem:[%s5562] ss:$2 sm:$0xff]
      %s5564 = scalar_lea.vmem [#allocation5], 66
      %v5565 = vld [vmem:[%s5564] ss:$2 sm:$0xff]
      %s5566 = scalar_lea.vmem [#allocation5], 82
      %v5567 = vld [vmem:[%s5566] ss:$2 sm:$0xff]
      %s5568 = scalar_lea.vmem [#allocation5], 98
      %v5569 = vld [vmem:[%s5568] ss:$2 sm:$0xff]
      %s5570 = scalar_lea.vmem [#allocation5], 114
      %v5571 = vld [vmem:[%s5570] ss:$2 sm:$0xff]
      %s5572 = scalar_lea.vmem [#allocation5], 130
      %v5573 = vld [vmem:[%s5572] ss:$2 sm:$0xff]
      %s5574 = scalar_lea.vmem [#allocation5], 146
      %v5575 = vld [vmem:[%s5574] ss:$2 sm:$0xff]
      %v5576 = vmax.f32 %v5517, %v5537
      %v5577 = vmax.f32 %v5519, %v5539
      %v5578 = vmax.f32 %v5521, %v5541
      %v5579 = vmax.f32 %v5523, %v5543
      %v5580 = vmax.f32 %v5525, %v5545
      %v5581 = vmax.f32 %v5527, %v5547
      %v5582 = vmax.f32 %v5529, %v5549
      %v5583 = vmax.f32 %v5531, %v5551
      %v5584 = vmax.f32 %v5533, %v5553
      %v5585 = vmax.f32 %v5535, %v5555
      %v5586 = vmax.f32 %v5576, %v5557
      %v5587 = vmax.f32 %v5577, %v5559
      %v5588 = vmax.f32 %v5578, %v5561
      %v5589 = vmax.f32 %v5579, %v5563
      %v5590 = vmax.f32 %v5580, %v5565
      %v5591 = vmax.f32 %v5581, %v5567
      %v5592 = vmax.f32 %v5582, %v5569
      %v5593 = vmax.f32 %v5583, %v5571
      %v5594 = vmax.f32 %v5584, %v5573
      %v5595 = vmax.f32 %v5585, %v5575
      %v5596 = vsel %vm5487, %v5586, 0.0
      %v5597 = vsel %vm5488, %v5587, 0.0
      %v5598 = vsel %vm5489, %v5588, 0.0
      %v5599 = vsel %vm5490, %v5589, 0.0
      %v5600 = vsel %vm5491, %v5590, 0.0
      %v5601 = vsel %vm5492, %v5591, 0.0
      %v5602 = vsel %vm5493, %v5592, 0.0
      %v5603 = vsel %vm5494, %v5593, 0.0
      %v5604 = vsel %vm5495, %v5594, 0.0
      %v5605 = vsel %vm5496, %v5595, 0.0
      %5606 = vst [vmem:[#allocation7 + $0x8] sm:$0xff] %v5596
      %5607 = vst [vmem:[#allocation7 + $0x10] sm:$0xff] %v5597
      %5608 = vst [vmem:[#allocation7 + $0x18] sm:$0xff] %v5598
      %5609 = vst [vmem:[#allocation7 + $0x20] sm:$0xff] %v5599
      %5610 = vst [vmem:[#allocation7 + $0x28] sm:$0xff] %v5600
      %5611 = vst [vmem:[#allocation7 + $0x30] sm:$0xff] %v5601
      %5612 = vst [vmem:[#allocation7 + $0x38] sm:$0xff] %v5602
      %5613 = vst [vmem:[#allocation7 + $0x40] sm:$0xff] %v5603
      %5614 = vst [vmem:[#allocation7 + $0x48] sm:$0xff] %v5604
      %5615 = vst [vmem:[#allocation7 + $0x50] sm:$0xff] %v5605
      %v5616 = vld [vmem:[#allocation6 + $0x7] sm:$0xff]
      %v5617 = vld [vmem:[#allocation6 + $0xf] sm:$0xff]
      %v5618 = vld [vmem:[#allocation6 + $0x17] sm:$0xff]
      %v5619 = vld [vmem:[#allocation6 + $0x1f] sm:$0xff]
      %v5620 = vld [vmem:[#allocation6 + $0x27] sm:$0xff]
      %v5621 = vld [vmem:[#allocation6 + $0x2f] sm:$0xff]
      %v5622 = vld [vmem:[#allocation6 + $0x37] sm:$0xff]
      %v5623 = vld [vmem:[#allocation6 + $0x3f] sm:$0xff]
      %v5624 = vld [vmem:[#allocation6 + $0x47] sm:$0xff]
      %v5625 = vld [vmem:[#allocation6 + $0x4f] sm:$0xff]
      %v5626 = vpack.c.bf16 %v5617, %v5616
      %v5627 = vpack.c.bf16 %v5619, %v5618
      %v5628 = vpack.c.bf16 %v5621, %v5620
      %v5629 = vpack.c.bf16 %v5623, %v5622
      %v5630 = vpack.c.bf16 %v5625, %v5624
      %v5631 = vld [vmem:[%s16] sm:$0xf]
      %v5632 = vld [vmem:[%s16 + $0x4] sm:$0xf]
      %v5633 = vld [vmem:[%s16 + $0x8] sm:$0xf]
      %v5634 = vld [vmem:[%s16 + $0xc] sm:$0xf]
      %v5635 = vld [vmem:[%s16 + $0x10] sm:$0xf]
      %v5636 = vld [vmem:[%s16 + $0x14] sm:$0xf]
      %v5637 = vld [vmem:[#allocation7 + $0x7] sm:$0xff]
      %v5638 = vld [vmem:[#allocation7 + $0xf] sm:$0xff]
      %v5639 = vld [vmem:[#allocation7 + $0x17] sm:$0xff]
      %v5640 = vld [vmem:[#allocation7 + $0x1f] sm:$0xff]
      %v5641 = vld [vmem:[#allocation7 + $0x27] sm:$0xff]
      %v5642 = vld [vmem:[#allocation7 + $0x2f] sm:$0xff]
      %v5643 = vld [vmem:[#allocation7 + $0x37] sm:$0xff]
      %v5644 = vld [vmem:[#allocation7 + $0x3f] sm:$0xff]
      %v5645 = vld [vmem:[#allocation7 + $0x47] sm:$0xff]
      %v5646 = vld [vmem:[#allocation7 + $0x4f] sm:$0xff]
      %v5647 = vpack.c.bf16 %v5638, %v5637
      %v5648 = vpack.c.bf16 %v5640, %v5639
      %v5649 = vpack.c.bf16 %v5642, %v5641
      %v5650 = vpack.c.bf16 %v5644, %v5643
      %v5651 = vpack.c.bf16 %v5646, %v5645
      %v5652 = vld [vmem:[%s17] sm:$0xf]
      %v5653 = vld [vmem:[%s17 + $0x4] sm:$0xf]
      %v5654 = vld [vmem:[%s17 + $0x8] sm:$0xf]
      %v5655 = vld [vmem:[%s17 + $0xc] sm:$0xf]
      %v5656 = vld [vmem:[%s17 + $0x10] sm:$0xf]
      %v5657 = vld [vmem:[%s17 + $0x14] sm:$0xf]
      %v5658 = vld [vmem:[%s17 + $0x18] sm:$0xf]
      %v5659 = vld [vmem:[%s17 + $0x1c] sm:$0xf]
      %v5660 = vld [vmem:[%s17 + $0x20] sm:$0xf]
      %v5661 = vld [vmem:[%s17 + $0x24] sm:$0xf]
      %v5662 = vld [vmem:[%s17 + $0x28] sm:$0xf]
      %v5663 = vld [vmem:[%s17 + $0x2c] sm:$0xf]
      %v5664 = vld [vmem:[%s17 + $0x30] sm:$0xf]
      %v5665 = vld [vmem:[%s17 + $0x34] sm:$0xf]
      %v5666 = vld [vmem:[%s17 + $0x38] sm:$0xf]
      %v5667 = vld [vmem:[%s17 + $0x3c] sm:$0xf]
      %v5684 = vunpack.c.l.b16 %v5652
      %v5685 = vunpack.c.l.b16 %v5653
      %v5686 = vunpack.c.l.b16 %v5654
      %v5687 = vunpack.c.l.b16 %v5655
      %v5688 = vunpack.c.l.b16 %v5656
      %v5689 = vunpack.c.l.b16 %v5657
      %v5690 = vunpack.c.l.b16 %v5658
      %v5691 = vunpack.c.l.b16 %v5659
      %v5692 = vunpack.c.l.b16 %v5660
      %v5693 = vunpack.c.l.b16 %v5661
      %v5694 = vunpack.c.l.b16 %v5662
      %v5695 = vunpack.c.l.b16 %v5663
      %v5696 = vunpack.c.l.b16 %v5664
      %v5697 = vunpack.c.l.b16 %v5665
      %v5698 = vunpack.c.l.b16 %v5666
      %v5699 = vunpack.c.l.b16 %v5667
      %v5700 = vpack.c.b16 %v5685, %v5684
      %v5701 = vpack.c.b16 %v5687, %v5686
      %v5702 = vpack.c.b16 %v5689, %v5688
      %v5703 = vpack.c.b16 %v5691, %v5690
      %v5704 = vpack.c.b16 %v5693, %v5692
      %v5705 = vpack.c.b16 %v5695, %v5694
      %v5706 = vpack.c.b16 %v5697, %v5696
      %v5707 = vpack.c.b16 %v5699, %v5698
      %5716 = vmatprep.subr.bf16.mxu0 0
      %5717 = vmatpush1.bf16.msra.mxu0 %v5700
      %5718 = vmatprep.subr.bf16.mxu0 0
      %5719 = vmatpush1.bf16.msra.mxu0 %v5701
      %5720 = vmatprep.subr.bf16.mxu0 0
      %5721 = vmatpush1.bf16.msra.mxu0 %v5702
      %5722 = vmatprep.subr.bf16.mxu0 0
      %5723 = vmatpush1.bf16.msra.mxu0 %v5703
      %5724 = vmatprep.subr.bf16.mxu0 0
      %5725 = vmatpush1.bf16.msra.mxu0 %v5704
      %5726 = vmatprep.subr.bf16.mxu0 0
      %5727 = vmatpush1.bf16.msra.mxu0 %v5705
      %5728 = vmatprep.subr.bf16.mxu0 0
      %5729 = vmatpush1.bf16.msra.mxu0 %v5706
      %5730 = vmatprep.subr.bf16.mxu0 0
      %5731 = vmatpush1.bf16.msra.mxu0 %v5707
      %5732 = vmatprep.subr.bf16.mxu0 0
      %5733 = vmatpush1.bf16.msra.mxu0 0
      %5734 = vmatprep.subr.bf16.mxu0 0
      %5735 = vmatpush1.bf16.msra.mxu0 0
      %5736 = vmatprep.subr.bf16.mxu0 0
      %5737 = vmatpush1.bf16.msra.mxu0 0
      %5738 = vmatprep.subr.bf16.mxu0 0
      %5739 = vmatpush1.bf16.msra.mxu0 0
      %5740 = vmatprep.subr.bf16.mxu0 0
      %5741 = vmatpush1.bf16.msra.mxu0 0
      %5742 = vmatprep.subr.bf16.mxu0 0
      %5743 = vmatpush1.bf16.msra.mxu0 0
      %5744 = vmatprep.subr.bf16.mxu0 0
      %5745 = vmatpush1.bf16.msra.mxu0 0
      %5746 = vmatprep.subr.bf16.mxu0 0
      %5747 = vmatpush1.bf16.msra.mxu0 0
      %5748 = vmatprep.mubr.bf16.mxu0 0
      %5749 = vmatmul.mubr.bf16.gmra.mrb[0].mxu0 %v5647
      %v5750 = vpop.f32.mrb[0].mxu0
      %v5751 = vadd.f32 0.0, %v5750
      %v5752 = vpop.f32.mrb[0].mxu0
      %v5753 = vpop.f32.mrb[0].mxu0
      %v5754 = vadd.f32 0.0, %v5753
      %v5755 = vpop.f32.mrb[0].mxu0
      %5756 = vmatprep.mubr.bf16.mxu0 0
      %5757 = vmatmul.mubr.bf16.gmra.mrb[0].mxu0 %v5648
      %v5758 = vpop.f32.mrb[0].mxu0
      %v5759 = vadd.f32 0.0, %v5758
      %v5760 = vpop.f32.mrb[0].mxu0
      %v5761 = vpop.f32.mrb[0].mxu0
      %v5762 = vadd.f32 0.0, %v5761
      %v5763 = vpop.f32.mrb[0].mxu0
      %5764 = vmatprep.mubr.bf16.mxu0 0
      %5765 = vmatmul.mubr.bf16.gmra.mrb[0].mxu0 %v5649
      %v5766 = vpop.f32.mrb[0].mxu0
      %v5767 = vadd.f32 0.0, %v5766
      %v5768 = vpop.f32.mrb[0].mxu0
      %v5769 = vpop.f32.mrb[0].mxu0
      %v5770 = vadd.f32 0.0, %v5769
      %v5771 = vpop.f32.mrb[0].mxu0
      %5772 = vmatprep.mubr.bf16.mxu0 0
      %5773 = vmatmul.mubr.bf16.gmra.mrb[0].mxu0 %v5650
      %v5774 = vpop.f32.mrb[0].mxu0
      %v5775 = vadd.f32 0.0, %v5774
      %v5776 = vpop.f32.mrb[0].mxu0
      %v5777 = vpop.f32.mrb[0].mxu0
      %v5778 = vadd.f32 0.0, %v5777
      %v5779 = vpop.f32.mrb[0].mxu0
      %5780 = vmatprep.mubr.bf16.mxu0 0
      %5781 = vmatmul.mubr.bf16.gmra.mrb[0].mxu0 %v5651
      %v5782 = vpop.f32.mrb[0].mxu0
      %v5783 = vadd.f32 0.0, %v5782
      %v5784 = vpop.f32.mrb[0].mxu0
      %v5785 = vpop.f32.mrb[0].mxu0
      %v5786 = vadd.f32 0.0, %v5785
      %v5787 = vpop.f32.mrb[0].mxu0
      %5788 = vdwg.mxu0
      %v5795 = vunpack.c.l.b16 %v5631
      %v5796 = vunpack.c.l.b16 %v5632
      %v5797 = vunpack.c.l.b16 %v5633
      %v5798 = vunpack.c.l.b16 %v5634
      %v5799 = vunpack.c.l.b16 %v5635
      %v5800 = vunpack.c.l.b16 %v5636
      %v5801 = vpack.c.b16 %v5796, %v5795
      %v5802 = vpack.c.b16 %v5798, %v5797
      %v5803 = vpack.c.b16 %v5800, %v5799
      %v5808 = vsel %vm765, %v5626, 0
      %v5811 = vsel %vm765, %v5627, 0
      %v5814 = vsel %vm765, %v5628, 0
      %v5817 = vsel %vm765, %v5629, 0
      %v5820 = vsel %vm765, %v5630, 0
      %5822 = vmatprep.subr.bf16.mxu0 0
      %5823 = vmatpush1.bf16.msra.mxu0 %v5801
      %5824 = vmatprep.subr.bf16.mxu0 0
      %5825 = vmatpush1.bf16.msra.mxu0 %v5802
      %5826 = vmatprep.subr.bf16.mxu0 0
      %5827 = vmatpush1.bf16.msra.mxu0 %v5803
      %5828 = vmatprep.subr.bf16.mxu0 0
      %5829 = vmatpush1.bf16.msra.mxu0 0
      %5830 = vmatprep.subr.bf16.mxu0 0
      %5831 = vmatpush1.bf16.msra.mxu0 0
      %5832 = vmatprep.subr.bf16.mxu0 0
      %5833 = vmatpush1.bf16.msra.mxu0 0
      %5834 = vmatprep.subr.bf16.mxu0 0
      %5835 = vmatpush1.bf16.msra.mxu0 0
      %5836 = vmatprep.subr.bf16.mxu0 0
      %5837 = vmatpush1.bf16.msra.mxu0 0
      %5838 = vmatprep.subr.bf16.mxu0 0
      %5839 = vmatpush1.bf16.msra.mxu0 0
      %5840 = vmatprep.subr.bf16.mxu0 0
      %5841 = vmatpush1.bf16.msra.mxu0 0
      %5842 = vmatprep.subr.bf16.mxu0 0
      %5843 = vmatpush1.bf16.msra.mxu0 0
      %5844 = vmatprep.subr.bf16.mxu0 0
      %5845 = vmatpush1.bf16.msra.mxu0 0
      %5846 = vmatprep.subr.bf16.mxu0 0
      %5847 = vmatpush1.bf16.msra.mxu0 0
      %5848 = vmatprep.subr.bf16.mxu0 0
      %5849 = vmatpush1.bf16.msra.mxu0 0
      %5850 = vmatprep.subr.bf16.mxu0 0
      %5851 = vmatpush1.bf16.msra.mxu0 0
      %5852 = vmatprep.subr.bf16.mxu0 0
      %5853 = vmatpush1.bf16.msra.mxu0 0
      %5854 = vmatprep.mubr.bf16.mxu0 0
      %5855 = vmatmul.mubr.bf16.gmra.mrb[0].mxu0 %v5808
      %v5856 = vpop.f32.mrb[0].mxu0
      %v5857 = vadd.f32 %v5751, %v5856
      %v5858 = vpop.f32.mrb[0].mxu0
      %v5859 = vpop.f32.mrb[0].mxu0
      %v5860 = vadd.f32 %v5754, %v5859
      %v5861 = vpop.f32.mrb[0].mxu0
      %5862 = vmatprep.mubr.bf16.mxu0 0
      %5863 = vmatmul.mubr.bf16.gmra.mrb[0].mxu0 %v5811
      %v5864 = vpop.f32.mrb[0].mxu0
      %v5865 = vadd.f32 %v5759, %v5864
      %v5866 = vpop.f32.mrb[0].mxu0
      %v5867 = vpop.f32.mrb[0].mxu0
      %v5868 = vadd.f32 %v5762, %v5867
      %v5869 = vpop.f32.mrb[0].mxu0
      %5870 = vmatprep.mubr.bf16.mxu0 0
      %5871 = vmatmul.mubr.bf16.gmra.mrb[0].mxu0 %v5814
      %v5872 = vpop.f32.mrb[0].mxu0
      %v5873 = vadd.f32 %v5767, %v5872
      %v5874 = vpop.f32.mrb[0].mxu0
      %v5875 = vpop.f32.mrb[0].mxu0
      %v5876 = vadd.f32 %v5770, %v5875
      %v5877 = vpop.f32.mrb[0].mxu0
      %5878 = vmatprep.mubr.bf16.mxu0 0
      %5879 = vmatmul.mubr.bf16.gmra.mrb[0].mxu0 %v5817
      %v5880 = vpop.f32.mrb[0].mxu0
      %v5881 = vadd.f32 %v5775, %v5880
      %v5882 = vpop.f32.mrb[0].mxu0
      %v5883 = vpop.f32.mrb[0].mxu0
      %v5884 = vadd.f32 %v5778, %v5883
      %v5885 = vpop.f32.mrb[0].mxu0
      %5886 = vmatprep.mubr.bf16.mxu0 0
      %5887 = vmatmul.mubr.bf16.gmra.mrb[0].mxu0 %v5820
      %v5888 = vpop.f32.mrb[0].mxu0
      %v5889 = vadd.f32 %v5783, %v5888
      %v5890 = vpop.f32.mrb[0].mxu0
      %v5891 = vpop.f32.mrb[0].mxu0
      %v5892 = vadd.f32 %v5786, %v5891
      %v5893 = vpop.f32.mrb[0].mxu0
      %5894 = vdwg.mxu0
      %v5895 = vld [vmem:[#allocation6 + $0x8] sm:$0xff]
      %v5896 = vld [vmem:[#allocation6 + $0x10] sm:$0xff]
      %v5897 = vld [vmem:[#allocation6 + $0x18] sm:$0xff]
      %v5898 = vld [vmem:[#allocation6 + $0x20] sm:$0xff]
      %v5899 = vld [vmem:[#allocation6 + $0x28] sm:$0xff]
      %v5900 = vld [vmem:[#allocation6 + $0x30] sm:$0xff]
      %v5901 = vld [vmem:[#allocation6 + $0x38] sm:$0xff]
      %v5902 = vld [vmem:[#allocation6 + $0x40] sm:$0xff]
      %v5903 = vld [vmem:[#allocation6 + $0x48] sm:$0xff]
      %v5904 = vld [vmem:[#allocation6 + $0x50] sm:$0xff]
      %v5905 = vpack.c.bf16 %v5896, %v5895
      %v5906 = vpack.c.bf16 %v5898, %v5897
      %v5907 = vpack.c.bf16 %v5900, %v5899
      %v5908 = vpack.c.bf16 %v5902, %v5901
      %v5909 = vpack.c.bf16 %v5904, %v5903
      %s5910 = scalar_lea.vmem %s16, 24
      %v5911 = vld [vmem:[%s5910] sm:$0xf]
      %v5912 = vld [vmem:[%s5910 + $0x4] sm:$0xf]
      %v5913 = vld [vmem:[%s5910 + $0x8] sm:$0xf]
      %v5914 = vld [vmem:[%s5910 + $0xc] sm:$0xf]
      %v5915 = vld [vmem:[%s5910 + $0x10] sm:$0xf]
      %v5916 = vld [vmem:[%s5910 + $0x14] sm:$0xf]
      %v5923 = vunpack.c.l.b16 %v5911
      %v5924 = vunpack.c.l.b16 %v5912
      %v5925 = vunpack.c.l.b16 %v5913
      %v5926 = vunpack.c.l.b16 %v5914
      %v5927 = vunpack.c.l.b16 %v5915
      %v5928 = vunpack.c.l.b16 %v5916
      %v5929 = vpack.c.b16 %v5924, %v5923
      %v5930 = vpack.c.b16 %v5926, %v5925
      %v5931 = vpack.c.b16 %v5928, %v5927
      %v5936 = vsel %vm765, %v5905, 0
      %v5939 = vsel %vm765, %v5906, 0
      %v5942 = vsel %vm765, %v5907, 0
      %v5945 = vsel %vm765, %v5908, 0
      %v5948 = vsel %vm765, %v5909, 0
      %5950 = vmatprep.subr.bf16.mxu0 0
      %5951 = vmatpush1.bf16.msra.mxu0 %v5929
      %5952 = vmatprep.subr.bf16.mxu0 0
      %5953 = vmatpush1.bf16.msra.mxu0 %v5930
      %5954 = vmatprep.subr.bf16.mxu0 0
      %5955 = vmatpush1.bf16.msra.mxu0 %v5931
      %5956 = vmatprep.subr.bf16.mxu0 0
      %5957 = vmatpush1.bf16.msra.mxu0 0
      %5958 = vmatprep.subr.bf16.mxu0 0
      %5959 = vmatpush1.bf16.msra.mxu0 0
      %5960 = vmatprep.subr.bf16.mxu0 0
      %5961 = vmatpush1.bf16.msra.mxu0 0
      %5962 = vmatprep.subr.bf16.mxu0 0
      %5963 = vmatpush1.bf16.msra.mxu0 0
      %5964 = vmatprep.subr.bf16.mxu0 0
      %5965 = vmatpush1.bf16.msra.mxu0 0
      %5966 = vmatprep.subr.bf16.mxu0 0
      %5967 = vmatpush1.bf16.msra.mxu0 0
      %5968 = vmatprep.subr.bf16.mxu0 0
      %5969 = vmatpush1.bf16.msra.mxu0 0
      %5970 = vmatprep.subr.bf16.mxu0 0
      %5971 = vmatpush1.bf16.msra.mxu0 0
      %5972 = vmatprep.subr.bf16.mxu0 0
      %5973 = vmatpush1.bf16.msra.mxu0 0
      %5974 = vmatprep.subr.bf16.mxu0 0
      %5975 = vmatpush1.bf16.msra.mxu0 0
      %5976 = vmatprep.subr.bf16.mxu0 0
      %5977 = vmatpush1.bf16.msra.mxu0 0
      %5978 = vmatprep.subr.bf16.mxu0 0
      %5979 = vmatpush1.bf16.msra.mxu0 0
      %5980 = vmatprep.subr.bf16.mxu0 0
      %5981 = vmatpush1.bf16.msra.mxu0 0
      %5982 = vmatprep.mubr.bf16.mxu0 0
      %5983 = vmatmul.mubr.bf16.gmra.mrb[0].mxu0 %v5936
      %v5984 = vpop.f32.mrb[0].mxu0
      %v5985 = vadd.f32 0.0, %v5984
      %v5986 = vpop.f32.mrb[0].mxu0
      %v5987 = vpop.f32.mrb[0].mxu0
      %v5988 = vadd.f32 0.0, %v5987
      %v5989 = vpop.f32.mrb[0].mxu0
      %5990 = vmatprep.mubr.bf16.mxu0 0
      %5991 = vmatmul.mubr.bf16.gmra.mrb[0].mxu0 %v5939
      %v5992 = vpop.f32.mrb[0].mxu0
      %v5993 = vadd.f32 0.0, %v5992
      %v5994 = vpop.f32.mrb[0].mxu0
      %v5995 = vpop.f32.mrb[0].mxu0
      %v5996 = vadd.f32 0.0, %v5995
      %v5997 = vpop.f32.mrb[0].mxu0
      %5998 = vmatprep.mubr.bf16.mxu0 0
      %5999 = vmatmul.mubr.bf16.gmra.mrb[0].mxu0 %v5942
      %v6000 = vpop.f32.mrb[0].mxu0
      %v6001 = vadd.f32 0.0, %v6000
      %v6002 = vpop.f32.mrb[0].mxu0
      %v6003 = vpop.f32.mrb[0].mxu0
      %v6004 = vadd.f32 0.0, %v6003
      %v6005 = vpop.f32.mrb[0].mxu0
      %6006 = vmatprep.mubr.bf16.mxu0 0
      %6007 = vmatmul.mubr.bf16.gmra.mrb[0].mxu0 %v5945
      %v6008 = vpop.f32.mrb[0].mxu0
      %v6009 = vadd.f32 0.0, %v6008
      %v6010 = vpop.f32.mrb[0].mxu0
      %v6011 = vpop.f32.mrb[0].mxu0
      %v6012 = vadd.f32 0.0, %v6011
      %v6013 = vpop.f32.mrb[0].mxu0
      %6014 = vmatprep.mubr.bf16.mxu0 0
      %6015 = vmatmul.mubr.bf16.gmra.mrb[0].mxu0 %v5948
      %v6016 = vpop.f32.mrb[0].mxu0
      %v6017 = vadd.f32 0.0, %v6016
      %v6018 = vpop.f32.mrb[0].mxu0
      %v6019 = vpop.f32.mrb[0].mxu0
      %v6020 = vadd.f32 0.0, %v6019
      %v6021 = vpop.f32.mrb[0].mxu0
      %6022 = vdwg.mxu0
      %v6023 = vadd.f32 %v5857, %v5985
      %v6024 = vadd.f32 %v5860, %v5988
      %v6025 = vadd.f32 %v5865, %v5993
      %v6026 = vadd.f32 %v5868, %v5996
      %v6027 = vadd.f32 %v5873, %v6001
      %v6028 = vadd.f32 %v5876, %v6004
      %v6029 = vadd.f32 %v5881, %v6009
      %v6030 = vadd.f32 %v5884, %v6012
      %v6031 = vadd.f32 %v5889, %v6017
      %v6032 = vadd.f32 %v5892, %v6020
      %v6033 = vld [vmem:[#allocation7 + $0x8] sm:$0xff]
      %v6034 = vld [vmem:[#allocation7 + $0x10] sm:$0xff]
      %v6035 = vld [vmem:[#allocation7 + $0x18] sm:$0xff]
      %v6036 = vld [vmem:[#allocation7 + $0x20] sm:$0xff]
      %v6037 = vld [vmem:[#allocation7 + $0x28] sm:$0xff]
      %v6038 = vld [vmem:[#allocation7 + $0x30] sm:$0xff]
      %v6039 = vld [vmem:[#allocation7 + $0x38] sm:$0xff]
      %v6040 = vld [vmem:[#allocation7 + $0x40] sm:$0xff]
      %v6041 = vld [vmem:[#allocation7 + $0x48] sm:$0xff]
      %v6042 = vld [vmem:[#allocation7 + $0x50] sm:$0xff]
      %v6043 = vpack.c.bf16 %v6034, %v6033
      %v6044 = vpack.c.bf16 %v6036, %v6035
      %v6045 = vpack.c.bf16 %v6038, %v6037
      %v6046 = vpack.c.bf16 %v6040, %v6039
      %v6047 = vpack.c.bf16 %v6042, %v6041
      %s6048 = scalar_lea.vmem %s17, 64
      %v6049 = vld [vmem:[%s6048] sm:$0xf]
      %v6050 = vld [vmem:[%s6048 + $0x4] sm:$0xf]
      %v6051 = vld [vmem:[%s6048 + $0x8] sm:$0xf]
      %v6052 = vld [vmem:[%s6048 + $0xc] sm:$0xf]
      %v6053 = vld [vmem:[%s6048 + $0x10] sm:$0xf]
      %v6054 = vld [vmem:[%s6048 + $0x14] sm:$0xf]
      %v6055 = vld [vmem:[%s6048 + $0x18] sm:$0xf]
      %v6056 = vld [vmem:[%s6048 + $0x1c] sm:$0xf]
      %v6057 = vld [vmem:[%s6048 + $0x20] sm:$0xf]
      %v6058 = vld [vmem:[%s6048 + $0x24] sm:$0xf]
      %v6059 = vld [vmem:[%s6048 + $0x28] sm:$0xf]
      %v6060 = vld [vmem:[%s6048 + $0x2c] sm:$0xf]
      %v6061 = vld [vmem:[%s6048 + $0x30] sm:$0xf]
      %v6062 = vld [vmem:[%s6048 + $0x34] sm:$0xf]
      %v6063 = vld [vmem:[%s6048 + $0x38] sm:$0xf]
      %v6064 = vld [vmem:[%s6048 + $0x3c] sm:$0xf]
      %v6081 = vunpack.c.l.b16 %v6049
      %v6082 = vunpack.c.l.b16 %v6050
      %v6083 = vunpack.c.l.b16 %v6051
      %v6084 = vunpack.c.l.b16 %v6052
      %v6085 = vunpack.c.l.b16 %v6053
      %v6086 = vunpack.c.l.b16 %v6054
      %v6087 = vunpack.c.l.b16 %v6055
      %v6088 = vunpack.c.l.b16 %v6056
      %v6089 = vunpack.c.l.b16 %v6057
      %v6090 = vunpack.c.l.b16 %v6058
      %v6091 = vunpack.c.l.b16 %v6059
      %v6092 = vunpack.c.l.b16 %v6060
      %v6093 = vunpack.c.l.b16 %v6061
      %v6094 = vunpack.c.l.b16 %v6062
      %v6095 = vunpack.c.l.b16 %v6063
      %v6096 = vunpack.c.l.b16 %v6064
      %v6097 = vpack.c.b16 %v6082, %v6081
      %v6098 = vpack.c.b16 %v6084, %v6083
      %v6099 = vpack.c.b16 %v6086, %v6085
      %v6100 = vpack.c.b16 %v6088, %v6087
      %v6101 = vpack.c.b16 %v6090, %v6089
      %v6102 = vpack.c.b16 %v6092, %v6091
      %v6103 = vpack.c.b16 %v6094, %v6093
      %v6104 = vpack.c.b16 %v6096, %v6095
      %6113 = vmatprep.subr.bf16.mxu0 0
      %6114 = vmatpush1.bf16.msra.mxu0 %v6097
      %6115 = vmatprep.subr.bf16.mxu0 0
      %6116 = vmatpush1.bf16.msra.mxu0 %v6098
      %6117 = vmatprep.subr.bf16.mxu0 0
      %6118 = vmatpush1.bf16.msra.mxu0 %v6099
      %6119 = vmatprep.subr.bf16.mxu0 0
      %6120 = vmatpush1.bf16.msra.mxu0 %v6100
      %6121 = vmatprep.subr.bf16.mxu0 0
      %6122 = vmatpush1.bf16.msra.mxu0 %v6101
      %6123 = vmatprep.subr.bf16.mxu0 0
      %6124 = vmatpush1.bf16.msra.mxu0 %v6102
      %6125 = vmatprep.subr.bf16.mxu0 0
      %6126 = vmatpush1.bf16.msra.mxu0 %v6103
      %6127 = vmatprep.subr.bf16.mxu0 0
      %6128 = vmatpush1.bf16.msra.mxu0 %v6104
      %6129 = vmatprep.subr.bf16.mxu0 0
      %6130 = vmatpush1.bf16.msra.mxu0 0
      %6131 = vmatprep.subr.bf16.mxu0 0
      %6132 = vmatpush1.bf16.msra.mxu0 0
      %6133 = vmatprep.subr.bf16.mxu0 0
      %6134 = vmatpush1.bf16.msra.mxu0 0
      %6135 = vmatprep.subr.bf16.mxu0 0
      %6136 = vmatpush1.bf16.msra.mxu0 0
      %6137 = vmatprep.subr.bf16.mxu0 0
      %6138 = vmatpush1.bf16.msra.mxu0 0
      %6139 = vmatprep.subr.bf16.mxu0 0
      %6140 = vmatpush1.bf16.msra.mxu0 0
      %6141 = vmatprep.subr.bf16.mxu0 0
      %6142 = vmatpush1.bf16.msra.mxu0 0
      %6143 = vmatprep.subr.bf16.mxu0 0
      %6144 = vmatpush1.bf16.msra.mxu0 0
      %6145 = vmatprep.mubr.bf16.mxu0 0
      %6146 = vmatmul.mubr.bf16.gmra.mrb[0].mxu0 %v6043
      %v6147 = vpop.f32.mrb[0].mxu0
      %v6148 = vadd.f32 0.0, %v6147
      %v6149 = vpop.f32.mrb[0].mxu0
      %v6150 = vpop.f32.mrb[0].mxu0
      %v6151 = vadd.f32 0.0, %v6150
      %v6152 = vpop.f32.mrb[0].mxu0
      %6153 = vmatprep.mubr.bf16.mxu0 0
      %6154 = vmatmul.mubr.bf16.gmra.mrb[0].mxu0 %v6044
      %v6155 = vpop.f32.mrb[0].mxu0
      %v6156 = vadd.f32 0.0, %v6155
      %v6157 = vpop.f32.mrb[0].mxu0
      %v6158 = vpop.f32.mrb[0].mxu0
      %v6159 = vadd.f32 0.0, %v6158
      %v6160 = vpop.f32.mrb[0].mxu0
      %6161 = vmatprep.mubr.bf16.mxu0 0
      %6162 = vmatmul.mubr.bf16.gmra.mrb[0].mxu0 %v6045
      %v6163 = vpop.f32.mrb[0].mxu0
      %v6164 = vadd.f32 0.0, %v6163
      %v6165 = vpop.f32.mrb[0].mxu0
      %v6166 = vpop.f32.mrb[0].mxu0
      %v6167 = vadd.f32 0.0, %v6166
      %v6168 = vpop.f32.mrb[0].mxu0
      %6169 = vmatprep.mubr.bf16.mxu0 0
      %6170 = vmatmul.mubr.bf16.gmra.mrb[0].mxu0 %v6046
      %v6171 = vpop.f32.mrb[0].mxu0
      %v6172 = vadd.f32 0.0, %v6171
      %v6173 = vpop.f32.mrb[0].mxu0
      %v6174 = vpop.f32.mrb[0].mxu0
      %v6175 = vadd.f32 0.0, %v6174
      %v6176 = vpop.f32.mrb[0].mxu0
      %6177 = vmatprep.mubr.bf16.mxu0 0
      %6178 = vmatmul.mubr.bf16.gmra.mrb[0].mxu0 %v6047
      %v6179 = vpop.f32.mrb[0].mxu0
      %v6180 = vadd.f32 0.0, %v6179
      %v6181 = vpop.f32.mrb[0].mxu0
      %v6182 = vpop.f32.mrb[0].mxu0
      %v6183 = vadd.f32 0.0, %v6182
      %v6184 = vpop.f32.mrb[0].mxu0
      %6185 = vdwg.mxu0
      %v6186 = vadd.f32 %v6023, %v6148
      %v6187 = vadd.f32 %v6024, %v6151
      %v6188 = vadd.f32 %v6025, %v6156
      %v6189 = vadd.f32 %v6026, %v6159
      %v6190 = vadd.f32 %v6027, %v6164
      %v6191 = vadd.f32 %v6028, %v6167
      %v6192 = vadd.f32 %v6029, %v6172
      %v6193 = vadd.f32 %v6030, %v6175
      %v6194 = vadd.f32 %v6031, %v6180
      %v6195 = vadd.f32 %v6032, %v6183
      %v6196 = vld [vmem:[#allocation6 + $0x9] sm:$0xff]
      %v6197 = vld [vmem:[#allocation6 + $0x11] sm:$0xff]
      %v6198 = vld [vmem:[#allocation6 + $0x19] sm:$0xff]
      %v6199 = vld [vmem:[#allocation6 + $0x21] sm:$0xff]
      %v6200 = vld [vmem:[#allocation6 + $0x29] sm:$0xff]
      %v6201 = vld [vmem:[#allocation6 + $0x31] sm:$0xff]
      %v6202 = vld [vmem:[#allocation6 + $0x39] sm:$0xff]
      %v6203 = vld [vmem:[#allocation6 + $0x41] sm:$0xff]
      %v6204 = vld [vmem:[#allocation6 + $0x49] sm:$0xff]
      %v6205 = vld [vmem:[#allocation6 + $0x51] sm:$0xff]
      %v6206 = vpack.c.bf16 %v6197, %v6196
      %v6207 = vpack.c.bf16 %v6199, %v6198
      %v6208 = vpack.c.bf16 %v6201, %v6200
      %v6209 = vpack.c.bf16 %v6203, %v6202
      %v6210 = vpack.c.bf16 %v6205, %v6204
      %s6211 = scalar_lea.vmem %s16, 48
      %v6212 = vld [vmem:[%s6211] sm:$0xf]
      %v6213 = vld [vmem:[%s6211 + $0x4] sm:$0xf]
      %v6214 = vld [vmem:[%s6211 + $0x8] sm:$0xf]
      %v6215 = vld [vmem:[%s6211 + $0xc] sm:$0xf]
      %v6216 = vld [vmem:[%s6211 + $0x10] sm:$0xf]
      %v6217 = vld [vmem:[%s6211 + $0x14] sm:$0xf]
      %v6224 = vunpack.c.l.b16 %v6212
      %v6225 = vunpack.c.l.b16 %v6213
      %v6226 = vunpack.c.l.b16 %v6214
      %v6227 = vunpack.c.l.b16 %v6215
      %v6228 = vunpack.c.l.b16 %v6216
      %v6229 = vunpack.c.l.b16 %v6217
      %v6230 = vpack.c.b16 %v6225, %v6224
      %v6231 = vpack.c.b16 %v6227, %v6226
      %v6232 = vpack.c.b16 %v6229, %v6228
      %v6237 = vsel %vm765, %v6206, 0
      %v6240 = vsel %vm765, %v6207, 0
      %v6243 = vsel %vm765, %v6208, 0
      %v6246 = vsel %vm765, %v6209, 0
      %v6249 = vsel %vm765, %v6210, 0
      %6251 = vmatprep.subr.bf16.mxu0 0
      %6252 = vmatpush1.bf16.msra.mxu0 %v6230
      %6253 = vmatprep.subr.bf16.mxu0 0
      %6254 = vmatpush1.bf16.msra.mxu0 %v6231
      %6255 = vmatprep.subr.bf16.mxu0 0
      %6256 = vmatpush1.bf16.msra.mxu0 %v6232
      %6257 = vmatprep.subr.bf16.mxu0 0
      %6258 = vmatpush1.bf16.msra.mxu0 0
      %6259 = vmatprep.subr.bf16.mxu0 0
      %6260 = vmatpush1.bf16.msra.mxu0 0
      %6261 = vmatprep.subr.bf16.mxu0 0
      %6262 = vmatpush1.bf16.msra.mxu0 0
      %6263 = vmatprep.subr.bf16.mxu0 0
      %6264 = vmatpush1.bf16.msra.mxu0 0
      %6265 = vmatprep.subr.bf16.mxu0 0
      %6266 = vmatpush1.bf16.msra.mxu0 0
      %6267 = vmatprep.subr.bf16.mxu0 0
      %6268 = vmatpush1.bf16.msra.mxu0 0
      %6269 = vmatprep.subr.bf16.mxu0 0
      %6270 = vmatpush1.bf16.msra.mxu0 0
      %6271 = vmatprep.subr.bf16.mxu0 0
      %6272 = vmatpush1.bf16.msra.mxu0 0
      %6273 = vmatprep.subr.bf16.mxu0 0
      %6274 = vmatpush1.bf16.msra.mxu0 0
      %6275 = vmatprep.subr.bf16.mxu0 0
      %6276 = vmatpush1.bf16.msra.mxu0 0
      %6277 = vmatprep.subr.bf16.mxu0 0
      %6278 = vmatpush1.bf16.msra.mxu0 0
      %6279 = vmatprep.subr.bf16.mxu0 0
      %6280 = vmatpush1.bf16.msra.mxu0 0
      %6281 = vmatprep.subr.bf16.mxu0 0
      %6282 = vmatpush1.bf16.msra.mxu0 0
      %6283 = vmatprep.mubr.bf16.mxu0 0
      %6284 = vmatmul.mubr.bf16.gmra.mrb[0].mxu0 %v6237
      %v6285 = vpop.f32.mrb[0].mxu0
      %v6286 = vadd.f32 0.0, %v6285
      %v6287 = vpop.f32.mrb[0].mxu0
      %v6288 = vpop.f32.mrb[0].mxu0
      %v6289 = vadd.f32 0.0, %v6288
      %v6290 = vpop.f32.mrb[0].mxu0
      %6291 = vmatprep.mubr.bf16.mxu0 0
      %6292 = vmatmul.mubr.bf16.gmra.mrb[0].mxu0 %v6240
      %v6293 = vpop.f32.mrb[0].mxu0
      %v6294 = vadd.f32 0.0, %v6293
      %v6295 = vpop.f32.mrb[0].mxu0
      %v6296 = vpop.f32.mrb[0].mxu0
      %v6297 = vadd.f32 0.0, %v6296
      %v6298 = vpop.f32.mrb[0].mxu0
      %6299 = vmatprep.mubr.bf16.mxu0 0
      %6300 = vmatmul.mubr.bf16.gmra.mrb[0].mxu0 %v6243
      %v6301 = vpop.f32.mrb[0].mxu0
      %v6302 = vadd.f32 0.0, %v6301
      %v6303 = vpop.f32.mrb[0].mxu0
      %v6304 = vpop.f32.mrb[0].mxu0
      %v6305 = vadd.f32 0.0, %v6304
      %v6306 = vpop.f32.mrb[0].mxu0
      %6307 = vmatprep.mubr.bf16.mxu0 0
      %6308 = vmatmul.mubr.bf16.gmra.mrb[0].mxu0 %v6246
      %v6309 = vpop.f32.mrb[0].mxu0
      %v6310 = vadd.f32 0.0, %v6309
      %v6311 = vpop.f32.mrb[0].mxu0
      %v6312 = vpop.f32.mrb[0].mxu0
      %v6313 = vadd.f32 0.0, %v6312
      %v6314 = vpop.f32.mrb[0].mxu0
      %6315 = vmatprep.mubr.bf16.mxu0 0
      %6316 = vmatmul.mubr.bf16.gmra.mrb[0].mxu0 %v6249
      %v6317 = vpop.f32.mrb[0].mxu0
      %v6318 = vadd.f32 0.0, %v6317
      %v6319 = vpop.f32.mrb[0].mxu0
      %v6320 = vpop.f32.mrb[0].mxu0
      %v6321 = vadd.f32 0.0, %v6320
      %v6322 = vpop.f32.mrb[0].mxu0
      %6323 = vdwg.mxu0
      %v6324 = vadd.f32 %v6186, %v6286
      %v6325 = vadd.f32 %v6187, %v6289
      %v6326 = vadd.f32 %v6188, %v6294
      %v6327 = vadd.f32 %v6189, %v6297
      %v6328 = vadd.f32 %v6190, %v6302
      %v6329 = vadd.f32 %v6191, %v6305
      %v6330 = vadd.f32 %v6192, %v6310
      %v6331 = vadd.f32 %v6193, %v6313
      %v6332 = vadd.f32 %v6194, %v6318
      %v6333 = vadd.f32 %v6195, %v6321
      %v6334 = vld [vmem:[#allocation7 + $0x9] sm:$0xff]
      %v6335 = vld [vmem:[#allocation7 + $0x11] sm:$0xff]
      %v6336 = vld [vmem:[#allocation7 + $0x19] sm:$0xff]
      %v6337 = vld [vmem:[#allocation7 + $0x21] sm:$0xff]
      %v6338 = vld [vmem:[#allocation7 + $0x29] sm:$0xff]
      %v6339 = vld [vmem:[#allocation7 + $0x31] sm:$0xff]
      %v6340 = vld [vmem:[#allocation7 + $0x39] sm:$0xff]
      %v6341 = vld [vmem:[#allocation7 + $0x41] sm:$0xff]
      %v6342 = vld [vmem:[#allocation7 + $0x49] sm:$0xff]
      %v6343 = vld [vmem:[#allocation7 + $0x51] sm:$0xff]
      %v6344 = vpack.c.bf16 %v6335, %v6334
      %v6345 = vpack.c.bf16 %v6337, %v6336
      %v6346 = vpack.c.bf16 %v6339, %v6338
      %v6347 = vpack.c.bf16 %v6341, %v6340
      %v6348 = vpack.c.bf16 %v6343, %v6342
      %s6349 = scalar_lea.vmem %s17, 128
      %v6350 = vld [vmem:[%s6349] sm:$0xf]
      %v6351 = vld [vmem:[%s6349 + $0x4] sm:$0xf]
      %v6352 = vld [vmem:[%s6349 + $0x8] sm:$0xf]
      %v6353 = vld [vmem:[%s6349 + $0xc] sm:$0xf]
      %v6354 = vld [vmem:[%s6349 + $0x10] sm:$0xf]
      %v6355 = vld [vmem:[%s6349 + $0x14] sm:$0xf]
      %v6356 = vld [vmem:[%s6349 + $0x18] sm:$0xf]
      %v6357 = vld [vmem:[%s6349 + $0x1c] sm:$0xf]
      %v6358 = vld [vmem:[%s6349 + $0x20] sm:$0xf]
      %v6359 = vld [vmem:[%s6349 + $0x24] sm:$0xf]
      %v6360 = vld [vmem:[%s6349 + $0x28] sm:$0xf]
      %v6361 = vld [vmem:[%s6349 + $0x2c] sm:$0xf]
      %v6362 = vld [vmem:[%s6349 + $0x30] sm:$0xf]
      %v6363 = vld [vmem:[%s6349 + $0x34] sm:$0xf]
      %v6364 = vld [vmem:[%s6349 + $0x38] sm:$0xf]
      %v6365 = vld [vmem:[%s6349 + $0x3c] sm:$0xf]
      %v6382 = vunpack.c.l.b16 %v6350
      %v6383 = vunpack.c.l.b16 %v6351
      %v6384 = vunpack.c.l.b16 %v6352
      %v6385 = vunpack.c.l.b16 %v6353
      %v6386 = vunpack.c.l.b16 %v6354
      %v6387 = vunpack.c.l.b16 %v6355
      %v6388 = vunpack.c.l.b16 %v6356
      %v6389 = vunpack.c.l.b16 %v6357
      %v6390 = vunpack.c.l.b16 %v6358
      %v6391 = vunpack.c.l.b16 %v6359
      %v6392 = vunpack.c.l.b16 %v6360
      %v6393 = vunpack.c.l.b16 %v6361
      %v6394 = vunpack.c.l.b16 %v6362
      %v6395 = vunpack.c.l.b16 %v6363
      %v6396 = vunpack.c.l.b16 %v6364
      %v6397 = vunpack.c.l.b16 %v6365
      %v6398 = vpack.c.b16 %v6383, %v6382
      %v6399 = vpack.c.b16 %v6385, %v6384
      %v6400 = vpack.c.b16 %v6387, %v6386
      %v6401 = vpack.c.b16 %v6389, %v6388
      %v6402 = vpack.c.b16 %v6391, %v6390
      %v6403 = vpack.c.b16 %v6393, %v6392
      %v6404 = vpack.c.b16 %v6395, %v6394
      %v6405 = vpack.c.b16 %v6397, %v6396
      %6414 = vmatprep.subr.bf16.mxu0 0
      %6415 = vmatpush1.bf16.msra.mxu0 %v6398
      %6416 = vmatprep.subr.bf16.mxu0 0
      %6417 = vmatpush1.bf16.msra.mxu0 %v6399
      %6418 = vmatprep.subr.bf16.mxu0 0
      %6419 = vmatpush1.bf16.msra.mxu0 %v6400
      %6420 = vmatprep.subr.bf16.mxu0 0
      %6421 = vmatpush1.bf16.msra.mxu0 %v6401
      %6422 = vmatprep.subr.bf16.mxu0 0
      %6423 = vmatpush1.bf16.msra.mxu0 %v6402
      %6424 = vmatprep.subr.bf16.mxu0 0
      %6425 = vmatpush1.bf16.msra.mxu0 %v6403
      %6426 = vmatprep.subr.bf16.mxu0 0
      %6427 = vmatpush1.bf16.msra.mxu0 %v6404
      %6428 = vmatprep.subr.bf16.mxu0 0
      %6429 = vmatpush1.bf16.msra.mxu0 %v6405
      %6430 = vmatprep.subr.bf16.mxu0 0
      %6431 = vmatpush1.bf16.msra.mxu0 0
      %6432 = vmatprep.subr.bf16.mxu0 0
      %6433 = vmatpush1.bf16.msra.mxu0 0
      %6434 = vmatprep.subr.bf16.mxu0 0
      %6435 = vmatpush1.bf16.msra.mxu0 0
      %6436 = vmatprep.subr.bf16.mxu0 0
      %6437 = vmatpush1.bf16.msra.mxu0 0
      %6438 = vmatprep.subr.bf16.mxu0 0
      %6439 = vmatpush1.bf16.msra.mxu0 0
      %6440 = vmatprep.subr.bf16.mxu0 0
      %6441 = vmatpush1.bf16.msra.mxu0 0
      %6442 = vmatprep.subr.bf16.mxu0 0
      %6443 = vmatpush1.bf16.msra.mxu0 0
      %6444 = vmatprep.subr.bf16.mxu0 0
      %6445 = vmatpush1.bf16.msra.mxu0 0
      %6446 = vmatprep.mubr.bf16.mxu0 0
      %6447 = vmatmul.mubr.bf16.gmra.mrb[0].mxu0 %v6344
      %v6448 = vpop.f32.mrb[0].mxu0
      %v6449 = vadd.f32 0.0, %v6448
      %v6450 = vpop.f32.mrb[0].mxu0
      %v6451 = vpop.f32.mrb[0].mxu0
      %v6452 = vadd.f32 0.0, %v6451
      %v6453 = vpop.f32.mrb[0].mxu0
      %6454 = vmatprep.mubr.bf16.mxu0 0
      %6455 = vmatmul.mubr.bf16.gmra.mrb[0].mxu0 %v6345
      %v6456 = vpop.f32.mrb[0].mxu0
      %v6457 = vadd.f32 0.0, %v6456
      %v6458 = vpop.f32.mrb[0].mxu0
      %v6459 = vpop.f32.mrb[0].mxu0
      %v6460 = vadd.f32 0.0, %v6459
      %v6461 = vpop.f32.mrb[0].mxu0
      %6462 = vmatprep.mubr.bf16.mxu0 0
      %6463 = vmatmul.mubr.bf16.gmra.mrb[0].mxu0 %v6346
      %v6464 = vpop.f32.mrb[0].mxu0
      %v6465 = vadd.f32 0.0, %v6464
      %v6466 = vpop.f32.mrb[0].mxu0
      %v6467 = vpop.f32.mrb[0].mxu0
      %v6468 = vadd.f32 0.0, %v6467
      %v6469 = vpop.f32.mrb[0].mxu0
      %6470 = vmatprep.mubr.bf16.mxu0 0
      %6471 = vmatmul.mubr.bf16.gmra.mrb[0].mxu0 %v6347
      %v6472 = vpop.f32.mrb[0].mxu0
      %v6473 = vadd.f32 0.0, %v6472
      %v6474 = vpop.f32.mrb[0].mxu0
      %v6475 = vpop.f32.mrb[0].mxu0
      %v6476 = vadd.f32 0.0, %v6475
      %v6477 = vpop.f32.mrb[0].mxu0
      %6478 = vmatprep.mubr.bf16.mxu0 0
      %6479 = vmatmul.mubr.bf16.gmra.mrb[0].mxu0 %v6348
      %v6480 = vpop.f32.mrb[0].mxu0
      %v6481 = vadd.f32 0.0, %v6480
      %v6482 = vpop.f32.mrb[0].mxu0
      %v6483 = vpop.f32.mrb[0].mxu0
      %v6484 = vadd.f32 0.0, %v6483
      %v6485 = vpop.f32.mrb[0].mxu0
      %6486 = vdwg.mxu0
      %v6487 = vadd.f32 %v6324, %v6449
      %v6488 = vadd.f32 %v6325, %v6452
      %v6489 = vadd.f32 %v6326, %v6457
      %v6490 = vadd.f32 %v6327, %v6460
      %v6491 = vadd.f32 %v6328, %v6465
      %v6492 = vadd.f32 %v6329, %v6468
      %v6493 = vadd.f32 %v6330, %v6473
      %v6494 = vadd.f32 %v6331, %v6476
      %v6495 = vadd.f32 %v6332, %v6481
      %v6496 = vadd.f32 %v6333, %v6484
      %v6497 = vld [vmem:[%s18] sm:$0x1]
      %v6499 = vlaneseq
      %v6500 = vshrl.u32 %v6499, 7
      %v6501 = vsub.s32 0, %v6500
      %v6502 = vrot.slane %v6497, %v6501
      %v6504 = vadd.f32 %v6487, %v6502
      %v6505 = vadd.f32 %v6488, %v6502
      %v6506 = vadd.f32 %v6489, %v6502
      %v6507 = vadd.f32 %v6490, %v6502
      %v6508 = vadd.f32 %v6491, %v6502
      %v6509 = vadd.f32 %v6492, %v6502
      %v6510 = vadd.f32 %v6493, %v6502
      %v6511 = vadd.f32 %v6494, %v6502
      %v6512 = vadd.f32 %v6495, %v6502
      %v6513 = vadd.f32 %v6496, %v6502
      %v6514 = vmax.f32 %v6504, 0.0
      %v6515 = vmax.f32 %v6505, 0.0
      %v6516 = vmax.f32 %v6506, 0.0
      %v6517 = vmax.f32 %v6507, 0.0
      %v6518 = vmax.f32 %v6508, 0.0
      %v6519 = vmax.f32 %v6509, 0.0
      %v6520 = vmax.f32 %v6510, 0.0
      %v6521 = vmax.f32 %v6511, 0.0
      %v6522 = vmax.f32 %v6512, 0.0
      %v6523 = vmax.f32 %v6513, 0.0
      %6524 = vst.msk [vmem:[#allocation8] sm:$0xff] %vm755, %v6514
      %6525 = vst.msk [vmem:[#allocation8 + $0x8] sm:$0xff] %vm755, %v6515
      %6526 = vst.msk [vmem:[#allocation8 + $0x10] sm:$0xff] %vm755, %v6516
      %6527 = vst.msk [vmem:[#allocation8 + $0x18] sm:$0xff] %vm755, %v6517
      %6528 = vst.msk [vmem:[#allocation8 + $0x20] sm:$0xff] %vm755, %v6518
      %6529 = vst.msk [vmem:[#allocation8 + $0x28] sm:$0xff] %vm755, %v6519
      %6530 = vst.msk [vmem:[#allocation8 + $0x30] sm:$0xff] %vm755, %v6520
      %6531 = vst.msk [vmem:[#allocation8 + $0x38] sm:$0xff] %vm755, %v6521
      %6532 = vst.msk [vmem:[#allocation8 + $0x40] sm:$0xff] %vm755, %v6522
      %6533 = vst.msk [vmem:[#allocation8 + $0x48] sm:$0xff] %vm755, %v6523
      %v6534 = vld [vmem:[%s15] sm:$0xff]
      %v6535 = vld [vmem:[%s15 + $0x8] sm:$0xff]
      %v6536 = vld [vmem:[%s15 + $0x10] sm:$0xff]
      %v6537 = vld [vmem:[%s15 + $0x18] sm:$0xff]
      %v6538 = vld [vmem:[%s15 + $0x20] sm:$0xff]
      %vm6539 = vcmp.gt.f32.partialorder %v6534, 0.5
      %vm6540 = vcmp.gt.f32.partialorder %v6535, 0.5
      %vm6541 = vcmp.gt.f32.partialorder %v6536, 0.5
      %vm6542 = vcmp.gt.f32.partialorder %v6537, 0.5
      %vm6543 = vcmp.gt.f32.partialorder %v6538, 0.5
      %v6544 = vld [vmem:[#allocation8] ss:$2 sm:$0xff]
      %s6545 = scalar_lea.vmem [#allocation8], 16
      %v6546 = vld [vmem:[%s6545] ss:$2 sm:$0xff]
      %s6547 = scalar_lea.vmem [#allocation8], 32
      %v6548 = vld [vmem:[%s6547] ss:$2 sm:$0xff]
      %s6549 = scalar_lea.vmem [#allocation8], 48
      %v6550 = vld [vmem:[%s6549] ss:$2 sm:$0xff]
      %s6551 = scalar_lea.vmem [#allocation8], 64
      %v6552 = vld [vmem:[%s6551] ss:$2 sm:$0xff]
      %s6553 = scalar_lea.vmem [#allocation8], 1
      %v6554 = vld [vmem:[%s6553] ss:$2 sm:$0xff]
      %s6555 = scalar_lea.vmem [#allocation8], 17
      %v6556 = vld [vmem:[%s6555] ss:$2 sm:$0xff]
      %s6557 = scalar_lea.vmem [#allocation8], 33
      %v6558 = vld [vmem:[%s6557] ss:$2 sm:$0xff]
      %s6559 = scalar_lea.vmem [#allocation8], 49
      %v6560 = vld [vmem:[%s6559] ss:$2 sm:$0xff]
      %s6561 = scalar_lea.vmem [#allocation8], 65
      %v6562 = vld [vmem:[%s6561] ss:$2 sm:$0xff]
      %s6563 = scalar_lea.vmem [#allocation8], 2
      %v6564 = vld [vmem:[%s6563] ss:$2 sm:$0xff]
      %s6565 = scalar_lea.vmem [#allocation8], 18
      %v6566 = vld [vmem:[%s6565] ss:$2 sm:$0xff]
      %s6567 = scalar_lea.vmem [#allocation8], 34
      %v6568 = vld [vmem:[%s6567] ss:$2 sm:$0xff]
      %s6569 = scalar_lea.vmem [#allocation8], 50
      %v6570 = vld [vmem:[%s6569] ss:$2 sm:$0xff]
      %s6571 = scalar_lea.vmem [#allocation8], 66
      %v6572 = vld [vmem:[%s6571] ss:$2 sm:$0xff]
      %v6573 = vmax.f32 %v6544, %v6554
      %v6574 = vmax.f32 %v6546, %v6556
      %v6575 = vmax.f32 %v6548, %v6558
      %v6576 = vmax.f32 %v6550, %v6560
      %v6577 = vmax.f32 %v6552, %v6562
      %v6578 = vmax.f32 %v6573, %v6564
      %v6579 = vmax.f32 %v6574, %v6566
      %v6580 = vmax.f32 %v6575, %v6568
      %v6581 = vmax.f32 %v6576, %v6570
      %v6582 = vmax.f32 %v6577, %v6572
      %v6583 = vsel %vm6539, 1, 0
      %v6584 = vsel %vm6540, 1, 0
      %v6585 = vsel %vm6541, 1, 0
      %v6586 = vsel %vm6542, 1, 0
      %v6587 = vsel %vm6543, 1, 0
      %6588 = vset.pattern.permute.xlu0 0
      %6589 = vperm.xlu0 %6588, %v6583
      %v6590 = vpop.permute.xlu0 %6589
      %6591 = vset.pattern.permute.xlu0 0
      %6592 = vperm.xlu0 %6591, %v6584
      %v6593 = vpop.permute.xlu0 %6592
      %6594 = vset.pattern.permute.xlu0 0
      %6595 = vperm.xlu0 %6594, %v6585
      %v6596 = vpop.permute.xlu0 %6595
      %6597 = vset.pattern.permute.xlu0 0
      %6598 = vperm.xlu0 %6597, %v6586
      %v6599 = vpop.permute.xlu0 %6598
      %6600 = vset.pattern.permute.xlu0 0
      %6601 = vperm.xlu0 %6600, %v6587
      %v6602 = vpop.permute.xlu0 %6601
      %vm6603 = vcmp.eq.s32.totalorder %v6590, 1
      %vm6604 = vcmp.eq.s32.totalorder %v6593, 1
      %vm6605 = vcmp.eq.s32.totalorder %v6596, 1
      %vm6606 = vcmp.eq.s32.totalorder %v6599, 1
      %vm6607 = vcmp.eq.s32.totalorder %v6602, 1
      %v6608 = vsel %vm6603, %v6578, 0.0
      %v6609 = vsel %vm6604, %v6579, 0.0
      %v6610 = vsel %vm6605, %v6580, 0.0
      %v6611 = vsel %vm6606, %v6581, 0.0
      %v6612 = vsel %vm6607, %v6582, 0.0
      %6613 = vst.msk [vmem:[#allocation9 + $0x8] sm:$0xff] %vm755, %v6608
      %6614 = vst.msk [vmem:[#allocation9 + $0x10] sm:$0xff] %vm755, %v6609
      %6615 = vst.msk [vmem:[#allocation9 + $0x18] sm:$0xff] %vm755, %v6610
      %6616 = vst.msk [vmem:[#allocation9 + $0x20] sm:$0xff] %vm755, %v6611
      %6617 = vst.msk [vmem:[#allocation9 + $0x28] sm:$0xff] %vm755, %v6612
      %v6618 = vld [vmem:[#allocation9 + $0x7] sm:$0xff]
      %v6619 = vld [vmem:[#allocation9 + $0xf] sm:$0xff]
      %v6620 = vld [vmem:[#allocation9 + $0x17] sm:$0xff]
      %v6621 = vld [vmem:[#allocation9 + $0x1f] sm:$0xff]
      %v6622 = vld [vmem:[#allocation9 + $0x27] sm:$0xff]
      %v6623 = vpack.c.bf16 %v6619, %v6618
      %v6624 = vpack.c.bf16 %v6621, %v6620
      %v6625 = vpack.c.bf16 %v6622, %v6622
      %v6626 = vld [vmem:[%s19] sm:$0xf]
      %v6627 = vld [vmem:[%s19 + $0x4] sm:$0xf]
      %v6628 = vld [vmem:[%s19 + $0x8] sm:$0xf]
      %v6629 = vld [vmem:[%s19 + $0xc] sm:$0xf]
      %v6630 = vld [vmem:[#allocation9 + $0x8] sm:$0xff]
      %v6631 = vld [vmem:[#allocation9 + $0x10] sm:$0xff]
      %v6632 = vld [vmem:[#allocation9 + $0x18] sm:$0xff]
      %v6633 = vld [vmem:[#allocation9 + $0x20] sm:$0xff]
      %v6634 = vld [vmem:[#allocation9 + $0x28] sm:$0xff]
      %v6635 = vpack.c.bf16 %v6631, %v6630
      %v6636 = vpack.c.bf16 %v6633, %v6632
      %v6637 = vpack.c.bf16 %v6634, %v6634
      %s6638 = scalar_lea.vmem %s19, 16
      %v6639 = vld [vmem:[%s6638] sm:$0xf]
      %v6640 = vld [vmem:[%s6638 + $0x4] sm:$0xf]
      %v6641 = vld [vmem:[%s6638 + $0x8] sm:$0xf]
      %v6642 = vld [vmem:[%s6638 + $0xc] sm:$0xf]
      %v6647 = vunpack.c.l.b16 %v6639
      %v6648 = vunpack.c.l.b16 %v6640
      %v6649 = vunpack.c.l.b16 %v6641
      %v6650 = vunpack.c.l.b16 %v6642
      %v6651 = vpack.c.b16 %v6648, %v6647
      %v6652 = vpack.c.b16 %v6650, %v6649
      %v6656 = vsel %vm755, %v6635, 0
      %v6659 = vsel %vm755, %v6636, 0
      %v6662 = vsel %vm755, %v6637, 0
      %6664 = vmatprep.subr.bf16.mxu0 0
      %6665 = vmatpush1.bf16.msra.mxu0 %v6651
      %6666 = vmatprep.subr.bf16.mxu0 0
      %6667 = vmatpush1.bf16.msra.mxu0 %v6652
      %6668 = vmatprep.subr.bf16.mxu0 0
      %6669 = vmatpush1.bf16.msra.mxu0 0
      %6670 = vmatprep.subr.bf16.mxu0 0
      %6671 = vmatpush1.bf16.msra.mxu0 0
      %6672 = vmatprep.subr.bf16.mxu0 0
      %6673 = vmatpush1.bf16.msra.mxu0 0
      %6674 = vmatprep.subr.bf16.mxu0 0
      %6675 = vmatpush1.bf16.msra.mxu0 0
      %6676 = vmatprep.subr.bf16.mxu0 0
      %6677 = vmatpush1.bf16.msra.mxu0 0
      %6678 = vmatprep.subr.bf16.mxu0 0
      %6679 = vmatpush1.bf16.msra.mxu0 0
      %6680 = vmatprep.subr.bf16.mxu0 0
      %6681 = vmatpush1.bf16.msra.mxu0 0
      %6682 = vmatprep.subr.bf16.mxu0 0
      %6683 = vmatpush1.bf16.msra.mxu0 0
      %6684 = vmatprep.subr.bf16.mxu0 0
      %6685 = vmatpush1.bf16.msra.mxu0 0
      %6686 = vmatprep.subr.bf16.mxu0 0
      %6687 = vmatpush1.bf16.msra.mxu0 0
      %6688 = vmatprep.subr.bf16.mxu0 0
      %6689 = vmatpush1.bf16.msra.mxu0 0
      %6690 = vmatprep.subr.bf16.mxu0 0
      %6691 = vmatpush1.bf16.msra.mxu0 0
      %6692 = vmatprep.subr.bf16.mxu0 0
      %6693 = vmatpush1.bf16.msra.mxu0 0
      %6694 = vmatprep.subr.bf16.mxu0 0
      %6695 = vmatpush1.bf16.msra.mxu0 0
      %6696 = vmatprep.mubr.bf16.mxu0 0
      %6697 = vmatmul.mubr.bf16.gmra.mrb[0].mxu0 %v6656
      %v6698 = vpop.f32.mrb[0].mxu0
      %v6699 = vadd.f32 0.0, %v6698
      %v6700 = vpop.f32.mrb[0].mxu0
      %v6701 = vpop.f32.mrb[0].mxu0
      %v6702 = vadd.f32 0.0, %v6701
      %v6703 = vpop.f32.mrb[0].mxu0
      %6704 = vmatprep.mubr.bf16.mxu0 0
      %6705 = vmatmul.mubr.bf16.gmra.mrb[0].mxu0 %v6659
      %v6706 = vpop.f32.mrb[0].mxu0
      %v6707 = vadd.f32 0.0, %v6706
      %v6708 = vpop.f32.mrb[0].mxu0
      %v6709 = vpop.f32.mrb[0].mxu0
      %v6710 = vadd.f32 0.0, %v6709
      %v6711 = vpop.f32.mrb[0].mxu0
      %6712 = vmatprep.mubr.bf16.mxu0 0
      %6713 = vmatmul.mubr.bf16.gmra.mrb[0].mxu0 %v6662
      %v6714 = vpop.f32.mrb[0].mxu0
      %v6715 = vadd.f32 0.0, %v6714
      %v6716 = vpop.f32.mrb[0].mxu0
      %v6717 = vpop.f32.mrb[0].mxu0
      %v6718 = vpop.f32.mrb[0].mxu0
      %6719 = vdwg.mxu0
      %v6724 = vunpack.c.l.b16 %v6626
      %v6725 = vunpack.c.l.b16 %v6627
      %v6726 = vunpack.c.l.b16 %v6628
      %v6727 = vunpack.c.l.b16 %v6629
      %v6728 = vpack.c.b16 %v6725, %v6724
      %v6729 = vpack.c.b16 %v6727, %v6726
      %v6733 = vsel %vm755, %v6623, 0
      %v6736 = vsel %vm755, %v6624, 0
      %v6739 = vsel %vm755, %v6625, 0
      %6741 = vmatprep.subr.bf16.mxu0 0
      %6742 = vmatpush1.bf16.msra.mxu0 %v6728
      %6743 = vmatprep.subr.bf16.mxu0 0
      %6744 = vmatpush1.bf16.msra.mxu0 %v6729
      %6745 = vmatprep.subr.bf16.mxu0 0
      %6746 = vmatpush1.bf16.msra.mxu0 0
      %6747 = vmatprep.subr.bf16.mxu0 0
      %6748 = vmatpush1.bf16.msra.mxu0 0
      %6749 = vmatprep.subr.bf16.mxu0 0
      %6750 = vmatpush1.bf16.msra.mxu0 0
      %6751 = vmatprep.subr.bf16.mxu0 0
      %6752 = vmatpush1.bf16.msra.mxu0 0
      %6753 = vmatprep.subr.bf16.mxu0 0
      %6754 = vmatpush1.bf16.msra.mxu0 0
      %6755 = vmatprep.subr.bf16.mxu0 0
      %6756 = vmatpush1.bf16.msra.mxu0 0
      %6757 = vmatprep.subr.bf16.mxu0 0
      %6758 = vmatpush1.bf16.msra.mxu0 0
      %6759 = vmatprep.subr.bf16.mxu0 0
      %6760 = vmatpush1.bf16.msra.mxu0 0
      %6761 = vmatprep.subr.bf16.mxu0 0
      %6762 = vmatpush1.bf16.msra.mxu0 0
      %6763 = vmatprep.subr.bf16.mxu0 0
      %6764 = vmatpush1.bf16.msra.mxu0 0
      %6765 = vmatprep.subr.bf16.mxu0 0
      %6766 = vmatpush1.bf16.msra.mxu0 0
      %6767 = vmatprep.subr.bf16.mxu0 0
      %6768 = vmatpush1.bf16.msra.mxu0 0
      %6769 = vmatprep.subr.bf16.mxu0 0
      %6770 = vmatpush1.bf16.msra.mxu0 0
      %6771 = vmatprep.subr.bf16.mxu0 0
      %6772 = vmatpush1.bf16.msra.mxu0 0
      %6773 = vmatprep.mubr.bf16.mxu0 0
      %6774 = vmatmul.mubr.bf16.gmra.mrb[0].mxu0 %v6733
      %v6775 = vpop.f32.mrb[0].mxu0
      %v6776 = vadd.f32 %v6699, %v6775
      %v6777 = vpop.f32.mrb[0].mxu0
      %v6778 = vpop.f32.mrb[0].mxu0
      %v6779 = vadd.f32 %v6702, %v6778
      %v6780 = vpop.f32.mrb[0].mxu0
      %6781 = vmatprep.mubr.bf16.mxu0 0
      %6782 = vmatmul.mubr.bf16.gmra.mrb[0].mxu0 %v6736
      %v6783 = vpop.f32.mrb[0].mxu0
      %v6784 = vadd.f32 %v6707, %v6783
      %v6785 = vpop.f32.mrb[0].mxu0
      %v6786 = vpop.f32.mrb[0].mxu0
      %v6787 = vadd.f32 %v6710, %v6786
      %v6788 = vpop.f32.mrb[0].mxu0
      %6789 = vmatprep.mubr.bf16.mxu0 0
      %6790 = vmatmul.mubr.bf16.gmra.mrb[0].mxu0 %v6739
      %v6791 = vpop.f32.mrb[0].mxu0
      %v6792 = vadd.f32 %v6715, %v6791
      %v6793 = vpop.f32.mrb[0].mxu0
      %v6794 = vpop.f32.mrb[0].mxu0
      %v6795 = vpop.f32.mrb[0].mxu0
      %6796 = vdwg.mxu0
      %v6797 = vld [vmem:[#allocation9 + $0x9] sm:$0xff]
      %v6798 = vld [vmem:[#allocation9 + $0x11] sm:$0xff]
      %v6799 = vld [vmem:[#allocation9 + $0x19] sm:$0xff]
      %v6800 = vld [vmem:[#allocation9 + $0x21] sm:$0xff]
      %v6801 = vld [vmem:[#allocation9 + $0x29] sm:$0xff]
      %v6802 = vpack.c.bf16 %v6798, %v6797
      %v6803 = vpack.c.bf16 %v6800, %v6799
      %v6804 = vpack.c.bf16 %v6801, %v6801
      %s6805 = scalar_lea.vmem %s19, 32
      %v6806 = vld [vmem:[%s6805] sm:$0xf]
      %v6807 = vld [vmem:[%s6805 + $0x4] sm:$0xf]
      %v6808 = vld [vmem:[%s6805 + $0x8] sm:$0xf]
      %v6809 = vld [vmem:[%s6805 + $0xc] sm:$0xf]
      %v6814 = vunpack.c.l.b16 %v6806
      %v6815 = vunpack.c.l.b16 %v6807
      %v6816 = vunpack.c.l.b16 %v6808
      %v6817 = vunpack.c.l.b16 %v6809
      %v6818 = vpack.c.b16 %v6815, %v6814
      %v6819 = vpack.c.b16 %v6817, %v6816
      %v6823 = vsel %vm755, %v6802, 0
      %v6826 = vsel %vm755, %v6803, 0
      %v6829 = vsel %vm755, %v6804, 0
      %6831 = vmatprep.subr.bf16.mxu0 0
      %6832 = vmatpush1.bf16.msra.mxu0 %v6818
      %6833 = vmatprep.subr.bf16.mxu0 0
      %6834 = vmatpush1.bf16.msra.mxu0 %v6819
      %6835 = vmatprep.subr.bf16.mxu0 0
      %6836 = vmatpush1.bf16.msra.mxu0 0
      %6837 = vmatprep.subr.bf16.mxu0 0
      %6838 = vmatpush1.bf16.msra.mxu0 0
      %6839 = vmatprep.subr.bf16.mxu0 0
      %6840 = vmatpush1.bf16.msra.mxu0 0
      %6841 = vmatprep.subr.bf16.mxu0 0
      %6842 = vmatpush1.bf16.msra.mxu0 0
      %6843 = vmatprep.subr.bf16.mxu0 0
      %6844 = vmatpush1.bf16.msra.mxu0 0
      %6845 = vmatprep.subr.bf16.mxu0 0
      %6846 = vmatpush1.bf16.msra.mxu0 0
      %6847 = vmatprep.subr.bf16.mxu0 0
      %6848 = vmatpush1.bf16.msra.mxu0 0
      %6849 = vmatprep.subr.bf16.mxu0 0
      %6850 = vmatpush1.bf16.msra.mxu0 0
      %6851 = vmatprep.subr.bf16.mxu0 0
      %6852 = vmatpush1.bf16.msra.mxu0 0
      %6853 = vmatprep.subr.bf16.mxu0 0
      %6854 = vmatpush1.bf16.msra.mxu0 0
      %6855 = vmatprep.subr.bf16.mxu0 0
      %6856 = vmatpush1.bf16.msra.mxu0 0
      %6857 = vmatprep.subr.bf16.mxu0 0
      %6858 = vmatpush1.bf16.msra.mxu0 0
      %6859 = vmatprep.subr.bf16.mxu0 0
      %6860 = vmatpush1.bf16.msra.mxu0 0
      %6861 = vmatprep.subr.bf16.mxu0 0
      %6862 = vmatpush1.bf16.msra.mxu0 0
      %6863 = vmatprep.mubr.bf16.mxu0 0
      %6864 = vmatmul.mubr.bf16.gmra.mrb[0].mxu0 %v6823
      %v6865 = vpop.f32.mrb[0].mxu0
      %v6866 = vadd.f32 0.0, %v6865
      %v6867 = vpop.f32.mrb[0].mxu0
      %v6868 = vpop.f32.mrb[0].mxu0
      %v6869 = vadd.f32 0.0, %v6868
      %v6870 = vpop.f32.mrb[0].mxu0
      %6871 = vmatprep.mubr.bf16.mxu0 0
      %6872 = vmatmul.mubr.bf16.gmra.mrb[0].mxu0 %v6826
      %v6873 = vpop.f32.mrb[0].mxu0
      %v6874 = vadd.f32 0.0, %v6873
      %v6875 = vpop.f32.mrb[0].mxu0
      %v6876 = vpop.f32.mrb[0].mxu0
      %v6877 = vadd.f32 0.0, %v6876
      %v6878 = vpop.f32.mrb[0].mxu0
      %6879 = vmatprep.mubr.bf16.mxu0 0
      %6880 = vmatmul.mubr.bf16.gmra.mrb[0].mxu0 %v6829
      %v6881 = vpop.f32.mrb[0].mxu0
      %v6882 = vadd.f32 0.0, %v6881
      %v6883 = vpop.f32.mrb[0].mxu0
      %v6884 = vpop.f32.mrb[0].mxu0
      %v6885 = vpop.f32.mrb[0].mxu0
      %6886 = vdwg.mxu0
      %v6887 = vadd.f32 %v6776, %v6866
      %v6888 = vadd.f32 %v6779, %v6869
      %v6889 = vadd.f32 %v6784, %v6874
      %v6890 = vadd.f32 %v6787, %v6877
      %v6891 = vadd.f32 %v6792, %v6882
      %v6892 = vld [vmem:[%s20] sm:$0x1]
      %v6894 = vlaneseq
      %v6895 = vshrl.u32 %v6894, 7
      %v6896 = vsub.s32 0, %v6895
      %v6897 = vrot.slane %v6892, %v6896
      %v6899 = vadd.f32 %v6887, %v6897
      %v6900 = vadd.f32 %v6888, %v6897
      %v6901 = vadd.f32 %v6889, %v6897
      %v6902 = vadd.f32 %v6890, %v6897
      %v6903 = vadd.f32 %v6891, %v6897
      %v6904 = vmax.f32 %v6899, 0.0
      %v6905 = vmax.f32 %v6900, 0.0
      %v6906 = vmax.f32 %v6901, 0.0
      %v6907 = vmax.f32 %v6902, 0.0
      %v6908 = vmax.f32 %v6903, 0.0
      %vm6909 = vcmask 130048
      %6910 = vst.msk [vmem:[#allocation10] sm:$0xff] %vm6909, %v6904
      %6911 = vst.msk [vmem:[#allocation10 + $0x8] sm:$0xff] %vm6909, %v6905
      %6912 = vst.msk [vmem:[#allocation10 + $0x10] sm:$0xff] %vm6909, %v6906
      %6913 = vst.msk [vmem:[#allocation10 + $0x18] sm:$0xff] %vm6909, %v6907
      %6914 = vst.msk [vmem:[#allocation10 + $0x20] sm:$0xff] %vm6909, %v6908
      %v6915 = vld [vmem:[%s22] sm:$0x1]
      %v6917 = vlaneseq
      %v6918 = vshrl.u32 %v6917, 7
      %v6919 = vsub.s32 0, %v6918
      %v6920 = vrot.slane %v6915, %v6919
      %v6922 = vadd.f32 %v6920, 0.0
      %v6923 = vld [vmem:[#allocation10] ss:$10 sm:$0xf]
      %s6924 = scalar_lea.vmem [#allocation10], 1
      %v6925 = vld [vmem:[%s6924] ss:$10 sm:$0xf]
      %s6926 = scalar_lea.vmem [#allocation10], 2
      %v6927 = vld [vmem:[%s6926] ss:$10 sm:$0xf]
      %v6928 = vmax.f32 %v6923, %v6925
      %v6929 = vmax.f32 %v6928, %v6927
      %v6930 = vpack.c.bf16 %v6929, %v6929
      %v6931 = vld [vmem:[%s21] sm:$0xf]
      %v6932 = vld [vmem:[%s21 + $0x4] sm:$0xf]
      %v6935 = vunpack.c.l.b16 %v6931
      %v6936 = vunpack.c.l.b16 %v6932
      %v6937 = vpack.c.b16 %v6936, %v6935
      %v6940 = vsel %vm6909, %v6930, 0
      %6942 = vmatprep.subr.bf16.mxu0 0
      %6943 = vmatpush1.bf16.msra.mxu0 %v6937
      %6944 = vmatprep.subr.bf16.mxu0 0
      %6945 = vmatpush1.bf16.msra.mxu0 0
      %6946 = vmatprep.subr.bf16.mxu0 0
      %6947 = vmatpush1.bf16.msra.mxu0 0
      %6948 = vmatprep.subr.bf16.mxu0 0
      %6949 = vmatpush1.bf16.msra.mxu0 0
      %6950 = vmatprep.subr.bf16.mxu0 0
      %6951 = vmatpush1.bf16.msra.mxu0 0
      %6952 = vmatprep.subr.bf16.mxu0 0
      %6953 = vmatpush1.bf16.msra.mxu0 0
      %6954 = vmatprep.subr.bf16.mxu0 0
      %6955 = vmatpush1.bf16.msra.mxu0 0
      %6956 = vmatprep.subr.bf16.mxu0 0
      %6957 = vmatpush1.bf16.msra.mxu0 0
      %6958 = vmatprep.subr.bf16.mxu0 0
      %6959 = vmatpush1.bf16.msra.mxu0 0
      %6960 = vmatprep.subr.bf16.mxu0 0
      %6961 = vmatpush1.bf16.msra.mxu0 0
      %6962 = vmatprep.subr.bf16.mxu0 0
      %6963 = vmatpush1.bf16.msra.mxu0 0
      %6964 = vmatprep.subr.bf16.mxu0 0
      %6965 = vmatpush1.bf16.msra.mxu0 0
      %6966 = vmatprep.subr.bf16.mxu0 0
      %6967 = vmatpush1.bf16.msra.mxu0 0
      %6968 = vmatprep.subr.bf16.mxu0 0
      %6969 = vmatpush1.bf16.msra.mxu0 0
      %6970 = vmatprep.subr.bf16.mxu0 0
      %6971 = vmatpush1.bf16.msra.mxu0 0
      %6972 = vmatprep.subr.bf16.mxu0 0
      %6973 = vmatpush1.bf16.msra.mxu0 0
      %6974 = vmatprep.mubr.bf16.mxu0 0
      %6975 = vmatmul.mubr.bf16.gmra.mrb[0].mxu0 %v6940
      %v6976 = vpop.f32.mrb[0].mxu0
      %v6977 = vadd.f32 0.0, %v6976
      %v6978 = vpop.f32.mrb[0].mxu0
      %v6979 = vpop.f32.mrb[0].mxu0
      %v6980 = vpop.f32.mrb[0].mxu0
      %6981 = vdwg.mxu0
      %v6982 = vadd.f32 %v6922, %v6977
      %s6983 = scalar_lea.vmem [#allocation10], 3
      %v6984 = vld [vmem:[%s6983] ss:$10 sm:$0xf]
      %s6985 = scalar_lea.vmem [#allocation10], 4
      %v6986 = vld [vmem:[%s6985] ss:$10 sm:$0xf]
      %v6987 = vmax.f32 %v6927, %v6984
      %v6988 = vmax.f32 %v6987, %v6986
      %v6989 = vpack.c.bf16 %v6988, %v6988
      %s6990 = scalar_lea.vmem %s21, 8
      %v6991 = vld [vmem:[%s6990] sm:$0xf]
      %v6992 = vld [vmem:[%s6990 + $0x4] sm:$0xf]
      %v6995 = vunpack.c.l.b16 %v6991
      %v6996 = vunpack.c.l.b16 %v6992
      %v6997 = vpack.c.b16 %v6996, %v6995
      %v7000 = vsel %vm6909, %v6989, 0
      %7002 = vmatprep.subr.bf16.mxu0 0
      %7003 = vmatpush1.bf16.msra.mxu0 %v6997
      %7004 = vmatprep.subr.bf16.mxu0 0
      %7005 = vmatpush1.bf16.msra.mxu0 0
      %7006 = vmatprep.subr.bf16.mxu0 0
      %7007 = vmatpush1.bf16.msra.mxu0 0
      %7008 = vmatprep.subr.bf16.mxu0 0
      %7009 = vmatpush1.bf16.msra.mxu0 0
      %7010 = vmatprep.subr.bf16.mxu0 0
      %7011 = vmatpush1.bf16.msra.mxu0 0
      %7012 = vmatprep.subr.bf16.mxu0 0
      %7013 = vmatpush1.bf16.msra.mxu0 0
      %7014 = vmatprep.subr.bf16.mxu0 0
      %7015 = vmatpush1.bf16.msra.mxu0 0
      %7016 = vmatprep.subr.bf16.mxu0 0
      %7017 = vmatpush1.bf16.msra.mxu0 0
      %7018 = vmatprep.subr.bf16.mxu0 0
      %7019 = vmatpush1.bf16.msra.mxu0 0
      %7020 = vmatprep.subr.bf16.mxu0 0
      %7021 = vmatpush1.bf16.msra.mxu0 0
      %7022 = vmatprep.subr.bf16.mxu0 0
      %7023 = vmatpush1.bf16.msra.mxu0 0
      %7024 = vmatprep.subr.bf16.mxu0 0
      %7025 = vmatpush1.bf16.msra.mxu0 0
      %7026 = vmatprep.subr.bf16.mxu0 0
      %7027 = vmatpush1.bf16.msra.mxu0 0
      %7028 = vmatprep.subr.bf16.mxu0 0
      %7029 = vmatpush1.bf16.msra.mxu0 0
      %7030 = vmatprep.subr.bf16.mxu0 0
      %7031 = vmatpush1.bf16.msra.mxu0 0
      %7032 = vmatprep.subr.bf16.mxu0 0
      %7033 = vmatpush1.bf16.msra.mxu0 0
      %7034 = vmatprep.mubr.bf16.mxu0 0
      %7035 = vmatmul.mubr.bf16.gmra.mrb[0].mxu0 %v7000
      %v7036 = vpop.f32.mrb[0].mxu0
      %v7037 = vadd.f32 0.0, %v7036
      %v7038 = vpop.f32.mrb[0].mxu0
      %v7039 = vpop.f32.mrb[0].mxu0
      %v7040 = vpop.f32.mrb[0].mxu0
      %7041 = vdwg.mxu0
      %v7042 = vadd.f32 %v6982, %v7037
      %s7043 = scalar_lea.vmem [#allocation10], 5
      %v7044 = vld [vmem:[%s7043] ss:$10 sm:$0xf]
      %s7045 = scalar_lea.vmem [#allocation10], 6
      %v7046 = vld [vmem:[%s7045] ss:$10 sm:$0xf]
      %v7047 = vmax.f32 %v6986, %v7044
      %v7048 = vmax.f32 %v7047, %v7046
      %v7049 = vpack.c.bf16 %v7048, %v7048
      %s7050 = scalar_lea.vmem %s21, 16
      %v7051 = vld [vmem:[%s7050] sm:$0xf]
      %v7052 = vld [vmem:[%s7050 + $0x4] sm:$0xf]
      %v7055 = vunpack.c.l.b16 %v7051
      %v7056 = vunpack.c.l.b16 %v7052
      %v7057 = vpack.c.b16 %v7056, %v7055
      %v7060 = vsel %vm6909, %v7049, 0
      %7062 = vmatprep.subr.bf16.mxu0 0
      %7063 = vmatpush1.bf16.msra.mxu0 %v7057
      %7064 = vmatprep.subr.bf16.mxu0 0
      %7065 = vmatpush1.bf16.msra.mxu0 0
      %7066 = vmatprep.subr.bf16.mxu0 0
      %7067 = vmatpush1.bf16.msra.mxu0 0
      %7068 = vmatprep.subr.bf16.mxu0 0
      %7069 = vmatpush1.bf16.msra.mxu0 0
      %7070 = vmatprep.subr.bf16.mxu0 0
      %7071 = vmatpush1.bf16.msra.mxu0 0
      %7072 = vmatprep.subr.bf16.mxu0 0
      %7073 = vmatpush1.bf16.msra.mxu0 0
      %7074 = vmatprep.subr.bf16.mxu0 0
      %7075 = vmatpush1.bf16.msra.mxu0 0
      %7076 = vmatprep.subr.bf16.mxu0 0
      %7077 = vmatpush1.bf16.msra.mxu0 0
      %7078 = vmatprep.subr.bf16.mxu0 0
      %7079 = vmatpush1.bf16.msra.mxu0 0
      %7080 = vmatprep.subr.bf16.mxu0 0
      %7081 = vmatpush1.bf16.msra.mxu0 0
      %7082 = vmatprep.subr.bf16.mxu0 0
      %7083 = vmatpush1.bf16.msra.mxu0 0
      %7084 = vmatprep.subr.bf16.mxu0 0
      %7085 = vmatpush1.bf16.msra.mxu0 0
      %7086 = vmatprep.subr.bf16.mxu0 0
      %7087 = vmatpush1.bf16.msra.mxu0 0
      %7088 = vmatprep.subr.bf16.mxu0 0
      %7089 = vmatpush1.bf16.msra.mxu0 0
      %7090 = vmatprep.subr.bf16.mxu0 0
      %7091 = vmatpush1.bf16.msra.mxu0 0
      %7092 = vmatprep.subr.bf16.mxu0 0
      %7093 = vmatpush1.bf16.msra.mxu0 0
      %7094 = vmatprep.mubr.bf16.mxu0 0
      %7095 = vmatmul.mubr.bf16.gmra.mrb[0].mxu0 %v7060
      %v7096 = vpop.f32.mrb[0].mxu0
      %v7097 = vadd.f32 0.0, %v7096
      %v7098 = vpop.f32.mrb[0].mxu0
      %v7099 = vpop.f32.mrb[0].mxu0
      %v7100 = vpop.f32.mrb[0].mxu0
      %7101 = vdwg.mxu0
      %v7102 = vadd.f32 %v7042, %v7097
      %7103 = vst [vmem:[%s753] sm:$0xf] %v7102
      %s7104 = smul.u32 4, %s36
      %p7105 = scmp.lt.s32.totalorder %s7104, 7
      %s7106 = scalar_select %p7105, %s7104, 7
      %s7107 = smul.addr %s7106, 4
      %s7108 = smul.addr %s7107, 8
      %s7109 = scalar_lea.vmem %s23, %s7108
      %p7110 = scmp.lt.s32.totalorder %s36, 1
      %s7111 = scalar_select %p7110, %s36, 1
      %s7112 = smul.addr %s7111, 4
      %s7113 = scalar_lea.vmem %s24, %s7112
      // Predicated region
      $region113: #{forward_pallas.1} parent=111 // pred_check
        %p7114 = pneg %p542
      $region114: #{forward_pallas.1} parent=111 // pred_check_branch
        %7116 = sbr.rel (%p7114) target = $region116
      $region115: #{forward_pallas.1} parent=111 // pred_region
        %s7117 = smul.u32 4, %s36
      $region116: #{forward_pallas.1} parent=111 // pred_fallthru
        _
      // Predicated region
      $region117: #{forward_pallas.1} parent=111 // pred_check
        %p7118 = pneg %p568
      $region118: #{forward_pallas.1} parent=111 // pred_check_branch
        %7120 = sbr.rel (%p7118) target = $region120
      $region119: #{forward_pallas.1} parent=111 // pred_region
        _
      $region120: #{forward_pallas.1} parent=111 // pred_fallthru
        _
    $region112: #{forward_pallas.1} parent=5 // pred_fallthru
      _
    %p7121 = scmp.le.s32.totalorder 2, %s31
    // Predicated region
    $region121: #{forward_pallas.1} parent=5 // pred_check
      %p7122 = pneg %p7121
    $region122: #{forward_pallas.1} parent=5 // pred_check_branch
      %7124 = sbr.rel (%p7122) target = $region124
    $region123: #{forward_pallas.1} parent=5 // pred_region
      %s7125 = ssub.s32 %s31, 2
      // Predicated region
      $region125: #{forward_pallas.1} parent=123 // pred_check
        %p7126 = pneg %p548
      $region126: #{forward_pallas.1} parent=123 // pred_check_branch
        %7128 = sbr.rel (%p7126) target = $region128
      $region127: #{forward_pallas.1} parent=123 // pred_region
        %s7129 = smul.u32 4, %s37
        %p7130 = scmp.lt.s32.totalorder %s7129, 7
        %s7131 = scalar_select %p7130, %s7129, 7
        %s7132 = smul.addr %s7131, 4
        %s7133 = smul.addr %s7132, 8
        %s7134 = scalar_lea.vmem %s23, %s7133
      $region128: #{forward_pallas.1} parent=123 // pred_fallthru
        _
      // Predicated region
      $region129: #{forward_pallas.1} parent=123 // pred_check
        %p7135 = pneg %p574
      $region130: #{forward_pallas.1} parent=123 // pred_check_branch
        %7137 = sbr.rel (%p7135) target = $region132
      $region131: #{forward_pallas.1} parent=123 // pred_region
        %p7138 = scmp.lt.s32.totalorder %s37, 1
        %s7139 = scalar_select %p7138, %s37, 1
        %s7140 = smul.addr %s7139, 4
        %s7141 = scalar_lea.vmem %s24, %s7140
      $region132: #{forward_pallas.1} parent=123 // pred_fallthru
        _
    $region124: #{forward_pallas.1} parent=5 // pred_fallthru
      _
  $region6: #{forward_pallas.1} parent=0 // loop_footer
    %s35 = sadd.s32 1, %s31
  $region7: #{forward_pallas.1} parent=0 // loop_footer_branch
    %30 = sbr.rel target = $region3
  $region8: #{forward_pallas.1} parent=0 // loop_exit
    _

</llo_original>
